<compile_context>
chip_gen: v6e
topology: v6e:2x2x1
jax: 0.10.0
libtpu: 0.0.40
codegen_flags: <defaults>
</compile_context>

<pallas_src>
import functools

import jax
import jax.numpy as jnp
from jax.experimental import pallas as pl
from jax.experimental.pallas import tpu as pltpu

F32 = jnp.float32
BF16 = jnp.bfloat16


# ----------------------------------------------------------------------------
# hardware-aware budgets
# ----------------------------------------------------------------------------
def _vmem_capacity_bytes():
    try:
        return int(pltpu.get_tpu_info().vmem_capacity_bytes)
    except Exception:
        return 64 * 1024 * 1024            # conservative default (v7x-sized)


_VMEM_CAP = _vmem_capacity_bytes()
_VMEM_LIMIT = min(int(_VMEM_CAP * 0.6), 100 * 1024 * 1024)
_PW_BUDGET = min(_VMEM_CAP // 8, 16 * 1024 * 1024)    # pointwise block budget
_DW_BUDGET = min(_VMEM_CAP // 10, 12 * 1024 * 1024)   # depthwise block budget


def _sub8(x):
    return -(-x // 8) * 8


def _lane128(x):
    return -(-x // 128) * 128


def _round_up(x, m):
    return -(-x // m) * m


def _act(x, act):
    if act == "none":
        return x
    if act == "relu":
        return jnp.maximum(x, 0.0)
    if act == "relu6":
        return jnp.clip(x, 0.0, 6.0)
    if act == "sigmoid":
        return jax.nn.sigmoid(x)
    raise ValueError(act)


# ----------------------------------------------------------------------------
# pointwise (1x1) conv: bf16 MXU matmul, fused bias + activation (+ optional
# residual / gating input, optional second weight-split input)
# ----------------------------------------------------------------------------
def _pw_generic_kernel(*refs, act, n_x, has_extra, extra_mode):
    # refs = (x_1..x_nx, w_1..w_nx, b, [extra], out)
    o_ref = refs[-1]
    xs = refs[:n_x]
    ws = refs[n_x:2 * n_x]
    b_ref = refs[2 * n_x]
    e_ref = refs[2 * n_x + 1] if has_extra else None

    y = jnp.dot(ws[0][...], xs[0][...], preferred_element_type=jnp.float32)
    for i in range(1, n_x):
        y = y + jnp.dot(ws[i][...], xs[i][...],
                        preferred_element_type=jnp.float32)
    y = _act(y + b_ref[...], act)
    if has_extra:
        e = e_ref[...].astype(jnp.float32)
        if extra_mode == "residual":
            y = y + e
        else:                                   # "gate": e * act(y) + e
            y = e * y + e
    o_ref[...] = y.astype(o_ref.dtype)


def _pick_tm(hw_pad, n_channels):
    # bf16, double-buffered input + output columns
    per_col = n_channels * 2 * 2
    cands = [t for t in range(128, hw_pad + 1, 128)
             if hw_pad % t == 0 and per_col * t <= _PW_BUDGET]
    if not cands:
        return 128
    piped = [t for t in cands if hw_pad // t >= 4]   # keep the pipe busy
    return max(piped) if piped else max(cands)


def _pw_call(xs, ws, b, act="none", extra=None, extra_mode="residual"):
    n, _, h, wd = xs[0].shape
    cout = ws[0].shape[0]
    hw = h * wd
    hw_pad = _round_up(hw, 128)                      # lane-dense stores

    def flat(t):
        tf = t.reshape(n, t.shape[1], hw)
        if hw_pad != hw:
            tf = jnp.pad(tf, ((0, 0), (0, 0), (0, hw_pad - hw)))
        return tf

    xfs = [flat(x) for x in xs]
    ef = flat(extra) if extra is not None else None

    n_chan = sum(x.shape[1] for x in xs) + cout
    if extra is not None:
        n_chan += cout
    tm = _pick_tm(hw_pad, n_chan)

    operands, in_specs = [], []
    for xf in xfs:
        cin = xf.shape[1]
        operands.append(xf)
        in_specs.append(pl.BlockSpec((None, cin, tm), lambda i, k: (i, 0, k)))
    for w in ws:
        operands.append(w)
        in_specs.append(pl.BlockSpec(w.shape, lambda i, k: (0, 0)))
    operands.append(b)
    in_specs.append(pl.BlockSpec((cout, 1), lambda i, k: (0, 0)))
    if ef is not None:
        operands.append(ef)
        in_specs.append(pl.BlockSpec((None, cout, tm), lambda i, k: (i, 0, k)))

    out = pl.pallas_call(
        functools.partial(_pw_generic_kernel, act=act, n_x=len(xs),
                          has_extra=extra is not None, extra_mode=extra_mode),
        out_shape=jax.ShapeDtypeStruct((n, cout, hw_pad), BF16),
        grid=(n, hw_pad // tm),
        in_specs=in_specs,
        out_specs=pl.BlockSpec((None, cout, tm), lambda i, k: (i, 0, k)),
        compiler_params=pltpu.CompilerParams(
            dimension_semantics=("parallel", "parallel"),
            vmem_limit_bytes=_VMEM_LIMIT),
    )(*operands)

    if hw_pad != hw:
        out = out[:, :, :hw]
    return out.reshape(n, cout, h, wd)


def pointwise_conv(x, w, b, act="none", extra=None, extra_mode="residual"):
    """1x1 conv.  x (N,Cin,H,W) bf16, w (Cout,Cin) bf16, b (Cout,1) f32.

    extra (N,Cout,H,W) optionally fuses `out = act(conv(x)) + extra`
    (extra_mode='residual') or `out = extra * act(conv(x)) + extra`
    (extra_mode='gate')."""
    return _pw_call([x], [w], b, act, extra=extra, extra_mode=extra_mode)


def pointwise_conv2(x1, x2, w1, w2, b, act="none"):
    """1x1 conv on a channel-concat [x1; x2] without materializing the concat."""
    return _pw_call([x1, x2], [w1, w2], b, act)


# ----------------------------------------------------------------------------
# depthwise 3x3 conv (padding=1), bias + activation fused
# ----------------------------------------------------------------------------
def _pick_strip(hh):
    if hh <= 32:
        return hh
    for s in (16, 8):
        if hh % s == 0:
            return s
    for s in range(16, 0, -1):
        if hh % s == 0:
            return s
    return hh


def _pick_dw_tc_s1(c, h, wd, strip):
    def est(tc):
        pad_b = tc * _sub8(h + 2) * _lane128(wd + 2) * 4        # f32 scratch
        io_b = 4 * tc * _sub8(h) * _lane128(wd) * 2             # bf16 in+out x2
        live_b = 5 * tc * _sub8(strip + 2) * _lane128(wd + 2) * 4
        return pad_b + io_b + live_b

    best = 1
    for tc in range(1, c + 1):
        if c % tc == 0 and est(tc) <= _DW_BUDGET:
            best = tc
    return best


def _pick_dw_tc_s2(c, ho, wo, strip):
    def est(tc):
        scr_b = tc * (2 * _sub8(ho + 1) + _sub8(ho)) * _lane128(wo + 1) * 4
        in_b = 4 * 2 * tc * _sub8(ho) * _lane128(wo) * 2        # 4 planes x2
        out_b = 2 * tc * _sub8(ho) * _lane128(wo) * 2
        live_b = 5 * tc * _sub8(strip + 1) * _lane128(wo + 1) * 4
        return scr_b + in_b + out_b + live_b

    best = 1
    for tc in range(1, c + 1):
        if c % tc == 0 and est(tc) <= _DW_BUDGET:
            best = tc
    return best


def _dw_s1_kernel(x_ref, w_ref, b_ref, o_ref, pad_ref, *, act, strip):
    # x: (TC, H, W) bf16, w: (TC, 3, 3) f32, b: (TC, 1, 1) f32,
    # o: (TC, H, W) bf16, pad scratch: (TC, H+2, W+2) f32.
    tc, h, wd = o_ref.shape
    hp, wp = h + 2, wd + 2

    # Border is re-zeroed every grid step (cheap) so megacore sharding of the
    # channel axis stays correct (scratch is per-core).
    pad_ref[:, 0:1, :] = jnp.zeros((tc, 1, wp), F32)
    pad_ref[:, hp - 1:hp, :] = jnp.zeros((tc, 1, wp), F32)
    pad_ref[:, :, 0:1] = jnp.zeros((tc, hp, 1), F32)
    pad_ref[:, :, wp - 1:wp] = jnp.zeros((tc, hp, 1), F32)
    pad_ref[:, 1:h + 1, 1:wd + 1] = x_ref[...].astype(F32)

    w = w_ref[...].astype(F32)
    bias = b_ref[...]
    nstrips = h // strip

    def body(s, carry):
        y0 = pl.multiple_of(s * strip, strip)
        blk = pad_ref[:, pl.ds(y0, strip + 2), :]        # (tc, strip+2, wp)
        acc = jnp.zeros((tc, strip, wd), F32)
        for ky in range(3):
            for kx in range(3):
                acc = acc + blk[:, ky:ky + strip, kx:kx + wd] * \
                    w[:, ky:ky + 1, kx:kx + 1]
        o_ref[:, pl.ds(y0, strip), :] = _act(acc + bias, act).astype(o_ref.dtype)
        return carry

    jax.lax.fori_loop(0, nstrips, body, 0)


def _dw_s2_kernel(ee_ref, eo_ref, oe_ref, oo_ref, w_ref, b_ref, o_ref,
                  poo_ref, poe_ref, peo_ref, *, act, strip):
    # Parity planes of the input (even/odd rows x even/odd cols), each
    # (TC, Hout, Wout) bf16.  Output (TC, Hout, Wout) bf16.
    tc, ho, wo = o_ref.shape

    # Padded parity scratches (1-row / 1-col zero halo where a -1 offset is
    # needed).  Zeroed every grid step for megacore safety.
    poo_ref[:, 0:1, :] = jnp.zeros((tc, 1, wo + 1), F32)
    poo_ref[:, :, 0:1] = jnp.zeros((tc, ho + 1, 1), F32)
    poo_ref[:, 1:ho + 1, 1:wo + 1] = oo_ref[...].astype(F32)
    poe_ref[:, 0:1, :] = jnp.zeros((tc, 1, wo), F32)
    poe_ref[:, 1:ho + 1, :] = oe_ref[...].astype(F32)
    peo_ref[:, :, 0:1] = jnp.zeros((tc, ho, 1), F32)
    peo_ref[:, :, 1:wo + 1] = eo_ref[...].astype(F32)

    w = w_ref[...].astype(F32)
    bias = b_ref[...]
    nstrips = ho // strip

    def body(s, carry):
        y0 = pl.multiple_of(s * strip, strip)
        b_oo = poo_ref[:, pl.ds(y0, strip + 1), :]       # (tc, strip+1, wo+1)
        b_oe = poe_ref[:, pl.ds(y0, strip + 1), :]       # (tc, strip+1, wo)
        b_eo = peo_ref[:, pl.ds(y0, strip), :]           # (tc, strip,   wo+1)
        b_ee = ee_ref[:, pl.ds(y0, strip), :].astype(F32)

        acc = jnp.zeros((tc, strip, wo), F32)
        # ky = 0 (odd input rows, shifted up by one)
        acc = acc + b_oo[:, 0:strip, 0:wo] * w[:, 0:1, 0:1]
        acc = acc + b_oe[:, 0:strip, :] * w[:, 0:1, 1:2]
        acc = acc + b_oo[:, 0:strip, 1:wo + 1] * w[:, 0:1, 2:3]
        # ky = 1 (even input rows)
        acc = acc + b_eo[:, :, 0:wo] * w[:, 1:2, 0:1]
        acc = acc + b_ee * w[:, 1:2, 1:2]
        acc = acc + b_eo[:, :, 1:wo + 1] * w[:, 1:2, 2:3]
        # ky = 2 (odd input rows)
        acc = acc + b_oo[:, 1:strip + 1, 0:wo] * w[:, 2:3, 0:1]
        acc = acc + b_oe[:, 1:strip + 1, :] * w[:, 2:3, 1:2]
        acc = acc + b_oo[:, 1:strip + 1, 1:wo + 1] * w[:, 2:3, 2:3]

        o_ref[:, pl.ds(y0, strip), :] = _act(acc + bias, act).astype(o_ref.dtype)
        return carry

    jax.lax.fori_loop(0, nstrips, body, 0)


def _dw_s1(x, w, b, act):
    n, c, h, wd = x.shape
    strip = _pick_strip(h)
    tc = _pick_dw_tc_s1(c, h, wd, strip)
    return pl.pallas_call(
        functools.partial(_dw_s1_kernel, act=act, strip=strip),
        out_shape=jax.ShapeDtypeStruct((n, c, h, wd), BF16),
        grid=(n, c // tc),
        in_specs=[
            pl.BlockSpec((None, tc, h, wd), lambda i, j: (i, j, 0, 0)),
            pl.BlockSpec((tc, 3, 3), lambda i, j: (j, 0, 0)),
            pl.BlockSpec((tc, 1, 1), lambda i, j: (j, 0, 0)),
        ],
        out_specs=pl.BlockSpec((None, tc, h, wd), lambda i, j: (i, j, 0, 0)),
        scratch_shapes=[pltpu.VMEM((tc, h + 2, wd + 2), F32)],
        compiler_params=pltpu.CompilerParams(
            dimension_semantics=("parallel", "parallel"),
            vmem_limit_bytes=_VMEM_LIMIT),
    )(x, w, b)


def _dw_s2(x, w, b, act):
    n, c, h, wd = x.shape
    assert h % 2 == 0 and wd % 2 == 0
    ho, wo = h // 2, wd // 2
    # even/odd row x even/odd column parity planes (layout plumbing in XLA);
    # every tap inside the kernel becomes a contiguous slice.
    x_ee = x[:, :, 0::2, 0::2]
    x_eo = x[:, :, 0::2, 1::2]
    x_oe = x[:, :, 1::2, 0::2]
    x_oo = x[:, :, 1::2, 1::2]
    strip = _pick_strip(ho)
    tc = _pick_dw_tc_s2(c, ho, wo, strip)
    plane_spec = pl.BlockSpec((None, tc, ho, wo), lambda i, j: (i, j, 0, 0))
    return pl.pallas_call(
        functools.partial(_dw_s2_kernel, act=act, strip=strip),
        out_shape=jax.ShapeDtypeStruct((n, c, ho, wo), BF16),
        grid=(n, c // tc),
        in_specs=[
            plane_spec, plane_spec, plane_spec, plane_spec,
            pl.BlockSpec((tc, 3, 3), lambda i, j: (j, 0, 0)),
            pl.BlockSpec((tc, 1, 1), lambda i, j: (j, 0, 0)),
        ],
        out_specs=pl.BlockSpec((None, tc, ho, wo), lambda i, j: (i, j, 0, 0)),
        scratch_shapes=[
            pltpu.VMEM((tc, ho + 1, wo + 1), F32),   # odd rows, odd cols
            pltpu.VMEM((tc, ho + 1, wo), F32),       # odd rows, even cols
            pltpu.VMEM((tc, ho, wo + 1), F32),       # even rows, odd cols
        ],
        compiler_params=pltpu.CompilerParams(
            dimension_semantics=("parallel", "parallel"),
            vmem_limit_bytes=_VMEM_LIMIT),
    )(x_ee, x_eo, x_oe, x_oo, w, b)


def depthwise_conv3x3(x, w, b, stride=1, act="none"):
    """Depthwise 3x3 conv, padding=1.  x (N,C,H,W) bf16, w (C,3,3), b (C,1,1)."""
    if stride == 1:
        return _dw_s1(x, w, b, act)
    return _dw_s2(x, w, b, act)


# ----------------------------------------------------------------------------
# resize glue (layout plumbing, plain JAX)
# ----------------------------------------------------------------------------
def upsample_nearest(x, size):
    """F.interpolate(mode='nearest') -- integer factors via reshape/broadcast."""
    n, c, h, w = x.shape
    ho, wo = size
    if ho % h == 0 and wo % w == 0:
        fy, fx = ho // h, wo // w
        y = jnp.broadcast_to(x[:, :, :, None, :, None], (n, c, h, fy, w, fx))
        return y.reshape(n, c, ho, wo)
    # TODO(synk): non-integer factors fall back to a gather-based resize.
    iy = jnp.floor(jnp.arange(ho) * (h / ho)).astype(jnp.int32)
    ix = jnp.floor(jnp.arange(wo) * (w / wo)).astype(jnp.int32)
    return x[:, :, iy[:, None], ix[None, :]]


def _bilinear_matrix(in_sz, out_sz):
    """Interpolation matrix M (out, in): out = M @ in, align_corners=False."""
    s = (jnp.arange(out_sz, dtype=F32) + 0.5) * (in_sz / out_sz) - 0.5
    s = jnp.maximum(s, 0.0)
    i0 = jnp.minimum(jnp.floor(s).astype(jnp.int32), in_sz - 1)
    i1 = jnp.minimum(i0 + 1, in_sz - 1)
    t = s - i0.astype(F32)
    cols = jnp.arange(in_sz)[None, :]
    m = (cols == i0[:, None]).astype(F32) * (1.0 - t)[:, None] + \
        (cols == i1[:, None]).astype(F32) * t[:, None]
    return m


def bilinear_resize(x, size):
    """F.interpolate(..., mode='bilinear', align_corners=False) equivalent,
    expressed as two small separable interpolation matmuls (no gathers)."""
    x = x.astype(F32)
    n, c, h, w = x.shape
    ho, wo = size
    wy = _bilinear_matrix(h, ho)          # (ho, h)
    wx = _bilinear_matrix(w, wo)          # (wo, w)
    tmp = jnp.einsum('oh,nchw->ncow', wy, x)
    return jnp.einsum('pw,ncow->ncop', wx, tmp)


# ----------------------------------------------------------------------------
# parameter construction (deterministic, synthetic)
# ----------------------------------------------------------------------------
class KeyGen:
    def __init__(self, key):
        self.key = key

    def __call__(self):
        self.key, sub = jax.random.split(self.key)
        return sub


def init_pw(key, cin, cout):
    w = (jax.random.normal(key, (cout, cin), F32) *
         (1.0 / jnp.sqrt(cin))).astype(BF16)
    b = jnp.zeros((cout, 1), F32)
    return {"w": w, "b": b}


def init_dw(key, c):
    w = jax.random.normal(key, (c, 3, 3), F32) * (1.0 / 3.0)
    b = jnp.zeros((c, 1, 1), F32)
    return {"w": w, "b": b}


# --- InvertedResidual (standard MobileNetV2 block; BN folded into bias) -----
def init_inverted_residual(kg, inp, oup, expand_ratio):
    hidden = int(round(inp * expand_ratio))
    p = {"expand": None,
         "dw": init_dw(kg(), hidden),
         "project": init_pw(kg(), hidden, oup)}
    if expand_ratio != 1:
        p["expand"] = init_pw(kg(), inp, hidden)
    return p


def inverted_residual(x, p, stride):
    h = x
    if p["expand"] is not None:
        h = pointwise_conv(h, p["expand"]["w"], p["expand"]["b"], "relu6")
    h = depthwise_conv3x3(h, p["dw"]["w"], p["dw"]["b"], stride=stride,
                          act="relu6")
    if stride == 1 and x.shape[1] == p["project"]["w"].shape[0]:
        # residual add fused into the projection kernel
        return pointwise_conv(h, p["project"]["w"], p["project"]["b"], "none",
                              extra=x, extra_mode="residual")
    return pointwise_conv(h, p["project"]["w"], p["project"]["b"], "none")


# --- DepthStreamStage --------------------------------------------------------
def init_stage(kg, cin, cout, m=4):
    return {"ir1": init_inverted_residual(kg, cin, int(cout / m), m),
            "ir2": init_inverted_residual(kg, int(cout / m), cout, m)}


def stage_apply(x, p):
    x = inverted_residual(x, p["ir1"], stride=2)
    x = inverted_residual(x, p["ir2"], stride=1)
    return x


# --- CMF / IDR / CPR / Decoder ----------------------------------------------
def init_cmf(kg):
    # TODO(synk): CrossModalityFusion definition not provided; depth-gated
    # fusion stand-in (c5 * sigmoid(conv1x1(d5)) + c5).
    return {"gate": init_pw(kg(), 320, 320)}


def cmf_apply(c5, d5, p):
    # fused: one kernel computes c5 * sigmoid(conv(d5)) + c5
    return pointwise_conv(d5, p["gate"]["w"], p["gate"]["b"], "sigmoid",
                          extra=c5, extra_mode="gate")


def init_idr(kg, chs=(16, 32, 64, 96, 320), mid=16):
    # TODO(synk): ImplicitDepthRestore definition not provided; reduce ->
    # upsample -> fuse -> 1-channel sigmoid head stand-in.
    return {"reduce": [init_pw(kg(), c, mid) for c in chs],
            "out": init_pw(kg(), mid, 1)}


def idr_apply(feats, p):
    n, _, h, w = feats[0].shape
    acc = None
    for f, rp in zip(feats, p["reduce"]):
        r = pointwise_conv(f, rp["w"], rp["b"], "relu")
        if r.shape[2:] != (h, w):
            r = upsample_nearest(r, (h, w))
        acc = r if acc is None else acc + r
    d = pointwise_conv(acc, p["out"]["w"], p["out"]["b"], "sigmoid")
    return bilinear_resize(d, (320, 320))


def init_cpr(kg, cin, cout):
    # TODO(synk): CompactPyramidRefine definition not provided; compact
    # pw -> dw3x3 -> pw refinement stand-in.
    return {"pw1": init_pw(kg(), cin, cout),
            "dw": init_dw(kg(), cout),
            "pw2": init_pw(kg(), cout, cout)}


def cpr_apply(x, p, x2=None):
    if x2 is None:
        h = pointwise_conv(x, p["pw1"]["w"], p["pw1"]["b"], "relu6")
    else:
        # channel-concat folded into a split-weight two-input matmul
        c1 = x.shape[1]
        h = pointwise_conv2(x, x2, p["pw1"]["w"][:, :c1], p["pw1"]["w"][:, c1:],
                            p["pw1"]["b"], "relu6")
    h = depthwise_conv3x3(h, p["dw"]["w"], p["dw"]["b"], stride=1, act="relu6")
    return pointwise_conv(h, p["pw2"]["w"], p["pw2"]["b"], "relu")


def init_decoder(kg, cin):
    return {"conv": init_pw(kg(), cin, 1)}


def decoder_apply(x, p):
    # TODO(synk): the Cout=1 head still runs on the MXU; batching the five
    # decoder heads into one call is a further (small) win.
    h = pointwise_conv(x, p["conv"]["w"], p["conv"]["b"], "sigmoid")
    return bilinear_resize(h, (320, 320))


# ----------------------------------------------------------------------------
# MobileSal
# ----------------------------------------------------------------------------
def init_mobilesal(key):
    kg = KeyGen(key)
    # TODO(synk): MobileNetV2 definition not provided; RGB stream uses an
    # inverted-residual stage stack producing (16,32,64,96,320)-channel
    # features at strides (2,4,8,16,32), matching the DepthStream doc.
    rgb_chs = [(3, 16), (16, 32), (32, 64), (64, 96), (96, 320)]
    depth_chs = [(1, 16), (16, 32), (32, 64), (64, 96), (96, 320)]
    return {
        "rgb": [init_stage(kg, i, o) for i, o in rgb_chs],
        "depth": [init_stage(kg, i, o) for i, o in depth_chs],
        "cmf": init_cmf(kg),
        "idr": init_idr(kg),
        "cpr1": init_cpr(kg, 320, 96),
        "cpr2": init_cpr(kg, 192, 64),
        "cpr3": init_cpr(kg, 128, 32),
        "cpr4": init_cpr(kg, 64, 16),
        "cpr5": init_cpr(kg, 32, 8),   # defined in __init__, unused in forward
        "dec1": init_decoder(kg, 96),
        "dec2": init_decoder(kg, 64),
        "dec3": init_decoder(kg, 32),
        "dec4": init_decoder(kg, 16),
        "dec5": init_decoder(kg, 16),
    }


def mobilesal_forward(params, rgb_image, depth_map):
    # RGB stream -> c1..c5
    cs, x = [], rgb_image
    for sp in params["rgb"]:
        x = stage_apply(x, sp)
        cs.append(x)
    c1, c2, c3, c4, c5 = cs

    # Depth stream -> d1..d5
    ds, x = [], depth_map
    for sp in params["depth"]:
        x = stage_apply(x, sp)
        ds.append(x)
    d1, d2, d3, d4, d5 = ds

    c5d = cmf_apply(c5, d5, params["cmf"])
    restored_depth = idr_apply([c1, c2, c3, c4, c5d], params["idr"])

    pass1 = cpr_apply(c5d, params["cpr1"])
    pred1 = decoder_apply(pass1, params["dec1"])

    pass2 = cpr_apply(upsample_nearest(pass1, (20, 20)), params["cpr2"], x2=c4)
    pred2 = decoder_apply(pass2, params["dec2"])

    pass3 = cpr_apply(upsample_nearest(pass2, (40, 40)), params["cpr3"], x2=c3)
    pred3 = decoder_apply(pass3, params["dec3"])

    pass4 = cpr_apply(upsample_nearest(pass3, (80, 80)), params["cpr4"], x2=c2)
    pred4 = decoder_apply(pass4, params["dec4"])
    pred5 = decoder_apply(pass4, params["dec5"])

    return (pred1, pred2, pred3, pred4, pred5), restored_depth


# ----------------------------------------------------------------------------
if __name__ == "__main__":
    key = jax.random.PRNGKey(0)
    k_rgb, k_depth, k_param = jax.random.split(key, 3)

    # The module hard-codes 320x320 outputs and 20/40/80 intermediate sizes,
    # which implies a 320x320 input; batch kept at 1 to stay small.
    rgb_image = jax.random.normal(k_rgb, (1, 3, 320, 320), F32).astype(BF16)
    depth_map = jax.random.normal(k_depth, (1, 1, 320, 320), F32).astype(BF16)

    params = init_mobilesal(k_param)

    preds, restored_depth = mobilesal_forward(params, rgb_image, depth_map)
    jax.block_until_ready((preds, restored_depth))

    assert all(p.shape == (1, 1, 320, 320) for p in preds)
    assert restored_depth.shape == (1, 1, 320, 320)
    assert all(bool(jnp.all(jnp.isfinite(p.astype(F32)))) for p in preds)
    assert bool(jnp.all(jnp.isfinite(restored_depth.astype(F32))))

    print("KERNEL_OK")
</pallas_src>

<mosaic_0001>
module attributes {stable_mosaic.version = 11 : i64} {
  func.func @_pw_generic_kernel(%arg0: i32, %arg1: i32, %arg2: memref<1x3x25600xbf16, #tpu.memory_space<vmem>>, %arg3: memref<12x3xbf16, #tpu.memory_space<vmem>>, %arg4: memref<12x1xf32, #tpu.memory_space<vmem>>, %arg5: memref<1x12x25600xbf16, #tpu.memory_space<vmem>>) attributes {dimension_semantics = [#tpu.dimension_semantics<parallel>, #tpu.dimension_semantics<parallel>], iteration_bounds = array<i64: 1, 4>, scalar_prefetch = 0 : i64, scratch_operands = 0 : i64, tpu.core_type = #tpu.core_type<tc>, window_params = [{transform_indices = @transform_0, window_bounds = array<i64: 1, 3, 25600>}, {pipeline_mode = #tpu.pipeline_mode<synchronous>, transform_indices = @transform_1, window_bounds = array<i64: 12, 3>}, {pipeline_mode = #tpu.pipeline_mode<synchronous>, transform_indices = @transform_2, window_bounds = array<i64: 12, 1>}, {transform_indices = @transform_3, window_bounds = array<i64: 1, 12, 25600>}]} {
    %c0 = arith.constant 0 : index
    %c0_0 = arith.constant 0 : index
    %0 = vector.load %arg3[%c0, %c0_0] : memref<12x3xbf16, #tpu.memory_space<vmem>>, vector<12x3xbf16>
    %c0_1 = arith.constant 0 : index
    %c0_2 = arith.constant 0 : index
    %c0_3 = arith.constant 0 : index
    %1 = vector.load %arg2[%c0_1, %c0_2, %c0_3] : memref<1x3x25600xbf16, #tpu.memory_space<vmem>>, vector<1x3x25600xbf16>
    %2 = vector.shape_cast %1 : vector<1x3x25600xbf16> to vector<3x25600xbf16>
    %cst = arith.constant dense<0.000000e+00> : vector<12x25600xf32>
    %3 = tpu.matmul %0, %2, %cst {dimension_numbers = #tpu.dot_dimension_numbers<[1], [0], [0], [1], [0, 0, 1, 1], [], []>} : vector<12x3xbf16>, vector<3x25600xbf16>, vector<12x25600xf32> -> vector<12x25600xf32>
    %c0_4 = arith.constant 0 : index
    %c0_5 = arith.constant 0 : index
    %4 = vector.load %arg4[%c0_4, %c0_5] : memref<12x1xf32, #tpu.memory_space<vmem>>, vector<12x1xf32>
    %5 = vector.broadcast %4 : vector<12x1xf32> to vector<12x25600xf32>
    %6 = arith.addf %3, %5 : vector<12x25600xf32>
    %cst_6 = arith.constant 0.000000e+00 : f32
    %cst_7 = arith.constant 6.000000e+00 : f32
    %7 = vector.broadcast %cst_6 : f32 to vector<12x25600xf32>
    %8 = arith.maximumf %7, %6 : vector<12x25600xf32>
    %9 = vector.broadcast %cst_7 : f32 to vector<12x25600xf32>
    %10 = arith.minimumf %9, %8 : vector<12x25600xf32>
    %11 = arith.truncf %10 : vector<12x25600xf32> to vector<12x25600xbf16>
    %c0_8 = arith.constant 0 : index
    %c0_9 = arith.constant 0 : index
    %c0_10 = arith.constant 0 : index
    %12 = vector.load %arg5[%c0_8, %c0_9, %c0_10] : memref<1x12x25600xbf16, #tpu.memory_space<vmem>>, vector<1x12x25600xbf16>
    %13 = vector.shape_cast %12 : vector<1x12x25600xbf16> to vector<12x25600xbf16>
    %14 = vector.shape_cast %11 : vector<12x25600xbf16> to vector<1x12x25600xbf16>
    tpu.vector_store %arg5[%c0_8, %c0_9, %c0_10], %14 {strides = array<i32>} : memref<1x12x25600xbf16, #tpu.memory_space<vmem>>, vector<1x12x25600xbf16>,
    return
  }
  func.func @transform_0(%arg0: i32, %arg1: i32) -> (i32, i32, i32) {
    %c0_i32 = arith.constant 0 : i32
    %c0_i32_0 = arith.constant 0 : i32
    return %arg0, %c0_i32, %arg1 : i32, i32, i32
  }
  func.func @transform_1(%arg0: i32, %arg1: i32) -> (i32, i32) {
    %c0_i32 = arith.constant 0 : i32
    %c0_i32_0 = arith.constant 0 : i32
    %c0_i32_1 = arith.constant 0 : i32
    return %c0_i32, %c0_i32_0 : i32, i32
  }
  func.func @transform_2(%arg0: i32, %arg1: i32) -> (i32, i32) {
    %c0_i32 = arith.constant 0 : i32
    %c0_i32_0 = arith.constant 0 : i32
    %c0_i32_1 = arith.constant 0 : i32
    return %c0_i32, %c0_i32_0 : i32, i32
  }
  func.func @transform_3(%arg0: i32, %arg1: i32) -> (i32, i32, i32) {
    %c0_i32 = arith.constant 0 : i32
    %c0_i32_0 = arith.constant 0 : i32
    return %arg0, %c0_i32, %arg1 : i32, i32, i32
  }
}

</mosaic_0001>

<llo_original>
// kernel: tpu_custom_call.1
$region0: #{tpu_custom_call.1}
  #allocation0 [shape = 'u32[]', space=smem, size = 0x4, offset = 0x4, fixed_abs, tag = 'smem constant byte address 0x4 - core index']
  #allocation1 [shape = 'u32[144,128]{1,0:T(1,128)}', space=vmem, size = 0x12000, scoped, tag = 'internal scratch']
  %s0 = inlined_call_operand.hbm [shape: bf16[1,3,102400], index: 0, kind: input, shape index: {}]
  %s1 = inlined_call_operand.vmem [shape: bf16[12,3], index: 1, kind: input, shape index: {}]
  %s2 = inlined_call_operand.vmem [shape: f32[12,1], index: 2, kind: input, shape index: {}]
  %s3 = inlined_call_operand.hbm [shape: bf16[1,12,102400], index: 3, kind: output, shape index: {}]
  %s4 = sld [smem:[#allocation0]]
  $region49: #{tpu_custom_call.1} parent=0
    _
  %s6 = ssub.s32 1, %s4
  %s7 = scalar_select 0, %s6, %s4
  $region1: #{tpu_custom_call.1} parent=0
    #allocation2 [shape = 'u8[409600]{0}', space=vmem, size = 0x64000, scoped, tag = 'input window, operand 0']
    #allocation3 [shape = 's32[2]{0}', space=sflag, size = 0x8, scoped, tag = 'scoped memory for tpu_custom_call.1']
    #allocation4 [shape = 's32[2]{0}', space=sflag, size = 0x8, scoped, tag = 'scoped memory for tpu_custom_call.1']
    #allocation5 [shape = 'u8[1638400]{0}', space=vmem, size = 0x190000, scoped, tag = 'output window, operand 0']
    %8 = vsyncpa [#allocation3], 0
    %s9 = scalar_lea.sflag [#allocation3], 1
    %10 = vsyncpa %s9, 0
    %11 = vsyncpa [#allocation4], 0
    %s12 = scalar_lea.sflag [#allocation4], 1
    %13 = vsyncpa %s12, 0
    loop: start=0, step=1, limit=6
    $region2: #{tpu_custom_call.1} parent=1 // loop_pre_header
      _
    $region3: #{tpu_custom_call.1} parent=1 // loop_header
      %s15 = sphi 0, %s19
      %p16 = scmp.ge.s32.totalorder %s15, 6
      %s22 = sphi 0, %s34
      %s23 = sphi 0, %s30
      %s24 = sphi 0, %s22
      %s25 = sphi 0, %s23
      %s26 = sphi 0, %s24
      %s27 = sphi 0, %s25
      %s39 = sphi 0, %s41
      %s42 = sphi 0, %s39
      %s43 = sphi 0, %s42
      %s59 = sphi 0, %s43
      %s63 = sphi 0, %s63
      %s65 = sphi 0, %s63
      %s66 = sphi 0, %s65
      %s80 = sphi 0, %s66
      %s84 = sphi 0, %s84
      %s86 = sphi 0, %s84
      %s87 = sphi 0, %s86
      %s101 = sphi 0, %s87
      %s109 = sphi 0, %s111
      %s112 = sphi 0, %s109
      %s113 = sphi 0, %s112
      %s129 = sphi 0, %s113
    $region4: #{tpu_custom_call.1} parent=1 // loop_header_branch
      %18 = sbr.rel (%p16) target = $region8
    $region5: #{tpu_custom_call.1} parent=1 // loop_body
      %s20 = ssub.s32 %s15, 1
      %s21 = ssub.s32 %s15, 2
      %s28 = sadd.s32 1, %s23
      %p29 = scmp.ge.s32.totalorder %s28, 4
      %s30 = scalar_select %p29, 0, %s28
      %s31 = sadd.s32 1, %s22
      %s32 = scalar_select %p29, %s31, %s22
      %p33 = scmp.ge.s32.totalorder %s32, 1
      %s34 = scalar_select %p33, 0, %s32
      %s35 = ssub.s32 %s22, %s34
      %s36 = ssub.s32 %s23, %s30
      %s37 = sor.u32 %s35, %s36
      %p38 = scmp.eq.s32.totalorder %s37, 0
      %s40 = sadd.s32 %s39, 1
      %s41 = scalar_select %p38, %s39, %s40
      %p44 = pneg %p38
      %p45 = scmp.eq.s32.totalorder %s15, 3
      %p46 = por %p44, %p45
      %p47 = scmp.ne.s32.totalorder %s39, %s42
      %p48 = scmp.eq.s32.totalorder %s15, 0
      %p49 = por %p47, %p48
      %p50 = scmp.ne.s32.totalorder %s39, %s42
      %p51 = scmp.eq.s32.totalorder %s20, 3
      %p52 = por %p50, %p51
      %p53 = scmp.ne.s32.totalorder %s42, %s43
      %p54 = scmp.eq.s32.totalorder %s20, 0
      %p55 = por %p53, %p54
      %p56 = scmp.ne.s32.totalorder %s42, %s43
      %p57 = scmp.eq.s32.totalorder %s21, 3
      %p58 = por %p56, %p57
      %p60 = scmp.ne.s32.totalorder %s43, %s59
      %p61 = scmp.eq.s32.totalorder %s21, 0
      %p62 = por %p60, %p61
      %s64 = sadd.s32 %s63, 1
      %p67 = scmp.eq.s32.totalorder %s15, 3
      %p68 = scmp.ne.s32.totalorder %s63, %s65
      %p69 = scmp.eq.s32.totalorder %s15, 0
      %p70 = por %p68, %p69
      %p71 = scmp.ne.s32.totalorder %s63, %s65
      %p72 = scmp.eq.s32.totalorder %s20, 3
      %p73 = por %p71, %p72
      %p74 = scmp.ne.s32.totalorder %s65, %s66
      %p75 = scmp.eq.s32.totalorder %s20, 0
      %p76 = por %p74, %p75
      %p77 = scmp.ne.s32.totalorder %s65, %s66
      %p78 = scmp.eq.s32.totalorder %s21, 3
      %p79 = por %p77, %p78
      %p81 = scmp.ne.s32.totalorder %s66, %s80
      %p82 = scmp.eq.s32.totalorder %s21, 0
      %p83 = por %p81, %p82
      %s85 = sadd.s32 %s84, 1
      %p88 = scmp.eq.s32.totalorder %s15, 3
      %p89 = scmp.ne.s32.totalorder %s84, %s86
      %p90 = scmp.eq.s32.totalorder %s15, 0
      %p91 = por %p89, %p90
      %p92 = scmp.ne.s32.totalorder %s84, %s86
      %p93 = scmp.eq.s32.totalorder %s20, 3
      %p94 = por %p92, %p93
      %p95 = scmp.ne.s32.totalorder %s86, %s87
      %p96 = scmp.eq.s32.totalorder %s20, 0
      %p97 = por %p95, %p96
      %p98 = scmp.ne.s32.totalorder %s86, %s87
      %p99 = scmp.eq.s32.totalorder %s21, 3
      %p100 = por %p98, %p99
      %p102 = scmp.ne.s32.totalorder %s87, %s101
      %p103 = scmp.eq.s32.totalorder %s21, 0
      %p104 = por %p102, %p103
      %s105 = ssub.s32 %s22, %s34
      %s106 = ssub.s32 %s23, %s30
      %s107 = sor.u32 %s105, %s106
      %p108 = scmp.eq.s32.totalorder %s107, 0
      %s110 = sadd.s32 %s109, 1
      %s111 = scalar_select %p108, %s109, %s110
      %p114 = pneg %p108
      %p115 = scmp.eq.s32.totalorder %s15, 3
      %p116 = por %p114, %p115
      %p117 = scmp.ne.s32.totalorder %s109, %s112
      %p118 = scmp.eq.s32.totalorder %s15, 0
      %p119 = por %p117, %p118
      %p120 = scmp.ne.s32.totalorder %s109, %s112
      %p121 = scmp.eq.s32.totalorder %s20, 3
      %p122 = por %p120, %p121
      %p123 = scmp.ne.s32.totalorder %s112, %s113
      %p124 = scmp.eq.s32.totalorder %s20, 0
      %p125 = por %p123, %p124
      %p126 = scmp.ne.s32.totalorder %s112, %s113
      %p127 = scmp.eq.s32.totalorder %s21, 3
      %p128 = por %p126, %p127
      %p130 = scmp.ne.s32.totalorder %s113, %s129
      %p131 = scmp.eq.s32.totalorder %s21, 0
      %p132 = por %p130, %p131
      %p133 = scmp.le.s32.totalorder 1, %s15
      %p134 = scmp.lt.s32.totalorder %s15, 5
      %p135 = pnand %p133, %p134
      %p136 = pneg %p135
      // Predicated region
      $region9: #{tpu_custom_call.1} parent=5 // pred_check
        _
      $region10: #{tpu_custom_call.1} parent=5 // pred_check_branch
        %138 = sbr.rel (%p135) target = $region12
      $region11: #{tpu_custom_call.1} parent=5 // pred_region
        %s139 = ssub.s32 %s15, 1
        // Predicated region
        $region13: #{tpu_custom_call.1} parent=11 // pred_check
          %p140 = pneg %p76
        $region14: #{tpu_custom_call.1} parent=11 // pred_check_branch
          %142 = sbr.rel (%p140) target = $region16
        $region15: #{tpu_custom_call.1} parent=11 // pred_region
          _
        $region16: #{tpu_custom_call.1} parent=11 // pred_fallthru
          _
        // Predicated region
        $region17: #{tpu_custom_call.1} parent=11 // pred_check
          %p143 = pneg %p97
        $region18: #{tpu_custom_call.1} parent=11 // pred_check_branch
          %145 = sbr.rel (%p143) target = $region20
        $region19: #{tpu_custom_call.1} parent=11 // pred_region
          _
        $region20: #{tpu_custom_call.1} parent=11 // pred_fallthru
          _
      $region12: #{tpu_custom_call.1} parent=5 // pred_fallthru
        _
      %p146 = scmp.lt.s32.totalorder %s15, 4
      // Predicated region
      $region21: #{tpu_custom_call.1} parent=5 // pred_check
        %p147 = pneg %p146
      $region22: #{tpu_custom_call.1} parent=5 // pred_check_branch
        %149 = sbr.rel (%p147) target = $region24
      $region23: #{tpu_custom_call.1} parent=5 // pred_region
        // Predicated region
        $region25: #{tpu_custom_call.1} parent=23 // pred_check
          %p150 = pneg %p49
        $region26: #{tpu_custom_call.1} parent=23 // pred_check_branch
          %152 = sbr.rel (%p150) target = $region28
        $region27: #{tpu_custom_call.1} parent=23 // pred_region
          %s153 = sand.u32 %s39, 1
          %s154 = scalar_lea.sflag [#allocation3], %s153
          %s155 = sand.u32 %s39, 1
          %s156 = smul.addr %s155, 400
          %s157 = scalar_lea.vmem [#allocation2], %s156
          %s158 = smul.u32 200, %s23
          %s160 = ssub.s32 6400, 6400
          %161 = vsyncadd %s154, %s160
          %s162 = smul.addr %s22, 800
          %s163 = sadd.s32 %s158, %s162
          %s164 = smul.addr %s163, 32
          %s165 = scalar_lea.hbm %s0, %s164
          %s167 = sshll.u32 %s157, 4
          %s168 = int_to_ptr.vmem [resolvable:$true] %s167
          %170 = dma.hbm_to_vmem [thread:$0]  %s165, 6400, %s168, %s154
        $region28: #{tpu_custom_call.1} parent=23 // pred_fallthru
          _
      $region24: #{tpu_custom_call.1} parent=5 // pred_fallthru
        _
      %p171 = scmp.le.s32.totalorder 1, %s15
      %p172 = scmp.lt.s32.totalorder %s15, 5
      %p173 = pnand %p171, %p172
      %p174 = pneg %p173
      // Predicated region
      $region29: #{tpu_custom_call.1} parent=5 // pred_check
        _
      $region30: #{tpu_custom_call.1} parent=5 // pred_check_branch
        %176 = sbr.rel (%p173) target = $region32
      $region31: #{tpu_custom_call.1} parent=5 // pred_region
        %s177 = ssub.s32 %s15, 1
        %s178 = sand.u32 %s42, 1
        %s179 = scalar_lea.sflag [#allocation3], %s178
        %s180 = sand.u32 %s42, 1
        %s181 = smul.addr %s180, 400
        %s182 = scalar_lea.vmem [#allocation2], %s181
        // Predicated region
        $region33: #{tpu_custom_call.1} parent=31 // pred_check
          %p183 = pneg %p55
        $region34: #{tpu_custom_call.1} parent=31 // pred_check_branch
          %185 = sbr.rel (%p183) target = $region36
        $region35: #{tpu_custom_call.1} parent=31 // pred_region
          %186 = dma.done %s179, 6400
        $region36: #{tpu_custom_call.1} parent=31 // pred_fallthru
          _
        %s187 = sand.u32 %s42, 1
        %s188 = scalar_lea.sflag [#allocation3], %s187
        %s189 = sand.u32 %s42, 1
        %s190 = smul.addr %s189, 400
        %s191 = scalar_lea.vmem [#allocation2], %s190
        %p192 = pneg %p55
        %p193 = pneg %p52
        %p194 = pneg %p76
        %p195 = pneg %p73
        %p196 = pneg %p97
        %p197 = pneg %p94
        %p198 = pneg %p125
        %p199 = pneg %p122
        %s200 = sand.u32 %s112, 1
        %s201 = scalar_lea.sflag [#allocation4], %s200
        %s202 = sand.u32 %s112, 1
        %s203 = smul.addr %s202, 1600
        %s204 = scalar_lea.vmem [#allocation5], %s203
        %s205 = smul.u32 200, %s25
        %s206 = smul.u32 200, %s25
        %v208 = vld [vmem:[%s1] sm:$0xf]
        %v209 = vld [vmem:[%s1 + $0x4] sm:$0x3]
        %v210 = vld [vmem:[%s182] sm:$0xff]
        %v211 = vld [vmem:[%s182 + $0x8] sm:$0xff]
        %v212 = vld [vmem:[%s182 + $0x10] sm:$0xff]
        %v213 = vld [vmem:[%s182 + $0x18] sm:$0xff]
        %v214 = vld [vmem:[%s182 + $0x20] sm:$0xff]
        %v215 = vld [vmem:[%s182 + $0x28] sm:$0xff]
        %v216 = vld [vmem:[%s182 + $0x30] sm:$0xff]
        %v217 = vld [vmem:[%s182 + $0x38] sm:$0xff]
        %v218 = vld [vmem:[%s182 + $0x40] sm:$0xff]
        %v219 = vld [vmem:[%s182 + $0x48] sm:$0xff]
        %v220 = vld [vmem:[%s182 + $0x50] sm:$0xff]
        %v221 = vld [vmem:[%s182 + $0x58] sm:$0xff]
        %v222 = vld [vmem:[%s182 + $0x60] sm:$0xff]
        %v223 = vld [vmem:[%s182 + $0x68] sm:$0xff]
        %v224 = vld [vmem:[%s182 + $0x70] sm:$0xff]
        %v225 = vld [vmem:[%s182 + $0x78] sm:$0xff]
        %v226 = vld [vmem:[%s182 + $0x80] sm:$0xff]
        %v227 = vld [vmem:[%s182 + $0x88] sm:$0xff]
        %v228 = vld [vmem:[%s182 + $0x90] sm:$0xff]
        %v229 = vld [vmem:[%s182 + $0x98] sm:$0xff]
        %v230 = vld [vmem:[%s182 + $0xa0] sm:$0xff]
        %v231 = vld [vmem:[%s182 + $0xa8] sm:$0xff]
        %v232 = vld [vmem:[%s182 + $0xb0] sm:$0xff]
        %v233 = vld [vmem:[%s182 + $0xb8] sm:$0xff]
        %v234 = vld [vmem:[%s182 + $0xc0] sm:$0xff]
        %v235 = vld [vmem:[%s182 + $0xc8] sm:$0xff]
        %v236 = vld [vmem:[%s182 + $0xd0] sm:$0xff]
        %v237 = vld [vmem:[%s182 + $0xd8] sm:$0xff]
        %v238 = vld [vmem:[%s182 + $0xe0] sm:$0xff]
        %v239 = vld [vmem:[%s182 + $0xe8] sm:$0xff]
        %v240 = vld [vmem:[%s182 + $0xf0] sm:$0xff]
        %v241 = vld [vmem:[%s182 + $0xf8] sm:$0xff]
        %v242 = vld [vmem:[%s182 + $0x100] sm:$0xff]
        %v243 = vld [vmem:[%s182 + $0x108] sm:$0xff]
        %v244 = vld [vmem:[%s182 + $0x110] sm:$0xff]
        %v245 = vld [vmem:[%s182 + $0x118] sm:$0xff]
        %v246 = vld [vmem:[%s182 + $0x120] sm:$0xff]
        %v247 = vld [vmem:[%s182 + $0x128] sm:$0xff]
        %v248 = vld [vmem:[%s182 + $0x130] sm:$0xff]
        %v249 = vld [vmem:[%s182 + $0x138] sm:$0xff]
        %v250 = vld [vmem:[%s182 + $0x140] sm:$0xff]
        %v251 = vld [vmem:[%s182 + $0x148] sm:$0xff]
        %v252 = vld [vmem:[%s182 + $0x150] sm:$0xff]
        %v253 = vld [vmem:[%s182 + $0x158] sm:$0xff]
        %v254 = vld [vmem:[%s182 + $0x160] sm:$0xff]
        %v255 = vld [vmem:[%s182 + $0x168] sm:$0xff]
        %v256 = vld [vmem:[%s182 + $0x170] sm:$0xff]
        %v257 = vld [vmem:[%s182 + $0x178] sm:$0xff]
        %v258 = vld [vmem:[%s182 + $0x180] sm:$0xff]
        %v259 = vld [vmem:[%s182 + $0x188] sm:$0xff]
        %v260 = vld [vmem:[%s2] sm:$0xff]
        %v261 = vld [vmem:[%s2 + $0x8] sm:$0xf]
        %263 = vset.pattern.permute.xlu0 0
        %264 = vperm.xlu0 %263, %v260
        %v265 = vpop.permute.xlu0 %264
        %268 = vset.pattern.permute.xlu0 0
        %269 = vperm.xlu0 %268, %v261
        %v270 = vpop.permute.xlu0 %269
        %v274 = vunpack.c.l.b16 %v208
        %v275 = vunpack.c.l.b16 %v209
        %v276 = vpack.c.b16 %v275, %v274
        %v327 = vcombine.high %v210, %v210
        %v329 = vunpack.c.l.s4 1983009808
        %v330 = vunpack.c.0.s8 %v329
        %v331 = vlaneseq
        %v332 = vshrl.u32 %v331, 7
        %v333 = vsub.s32 %v330, %v332
        %v334 = vrot.slane %v210, %v333
        %v336 = vunpack.c.l.s4 1983009808
        %v337 = vunpack.c.0.s8 %v336
        %v338 = vlaneseq
        %v339 = vshrl.u32 %v338, 7
        %v340 = vsub.s32 %v337, %v339
        %v341 = vrot.slane %v327, %v340
        %v342 = vcombine.high %v334, %v334
        %v343 = vcombine.high %v341, %v341
        %v344 = vcombine.high %v211, %v211
        %v346 = vunpack.c.l.s4 1983009808
        %v347 = vunpack.c.0.s8 %v346
        %v348 = vlaneseq
        %v349 = vshrl.u32 %v348, 7
        %v350 = vsub.s32 %v347, %v349
        %v351 = vrot.slane %v211, %v350
        %v353 = vunpack.c.l.s4 1983009808
        %v354 = vunpack.c.0.s8 %v353
        %v355 = vlaneseq
        %v356 = vshrl.u32 %v355, 7
        %v357 = vsub.s32 %v354, %v356
        %v358 = vrot.slane %v344, %v357
        %v359 = vcombine.high %v351, %v351
        %v360 = vcombine.high %v358, %v358
        %v361 = vcombine.high %v212, %v212
        %v363 = vunpack.c.l.s4 1983009808
        %v364 = vunpack.c.0.s8 %v363
        %v365 = vlaneseq
        %v366 = vshrl.u32 %v365, 7
        %v367 = vsub.s32 %v364, %v366
        %v368 = vrot.slane %v212, %v367
        %v370 = vunpack.c.l.s4 1983009808
        %v371 = vunpack.c.0.s8 %v370
        %v372 = vlaneseq
        %v373 = vshrl.u32 %v372, 7
        %v374 = vsub.s32 %v371, %v373
        %v375 = vrot.slane %v361, %v374
        %v376 = vcombine.high %v368, %v368
        %v377 = vcombine.high %v375, %v375
        %v378 = vcombine.high %v213, %v213
        %v380 = vunpack.c.l.s4 1983009808
        %v381 = vunpack.c.0.s8 %v380
        %v382 = vlaneseq
        %v383 = vshrl.u32 %v382, 7
        %v384 = vsub.s32 %v381, %v383
        %v385 = vrot.slane %v213, %v384
        %v387 = vunpack.c.l.s4 1983009808
        %v388 = vunpack.c.0.s8 %v387
        %v389 = vlaneseq
        %v390 = vshrl.u32 %v389, 7
        %v391 = vsub.s32 %v388, %v390
        %v392 = vrot.slane %v378, %v391
        %v393 = vcombine.high %v385, %v385
        %v394 = vcombine.high %v392, %v392
        %v395 = vcombine.high %v214, %v214
        %v397 = vunpack.c.l.s4 1983009808
        %v398 = vunpack.c.0.s8 %v397
        %v399 = vlaneseq
        %v400 = vshrl.u32 %v399, 7
        %v401 = vsub.s32 %v398, %v400
        %v402 = vrot.slane %v214, %v401
        %v404 = vunpack.c.l.s4 1983009808
        %v405 = vunpack.c.0.s8 %v404
        %v406 = vlaneseq
        %v407 = vshrl.u32 %v406, 7
        %v408 = vsub.s32 %v405, %v407
        %v409 = vrot.slane %v395, %v408
        %v410 = vcombine.high %v402, %v402
        %v411 = vcombine.high %v409, %v409
        %v412 = vcombine.high %v215, %v215
        %v414 = vunpack.c.l.s4 1983009808
        %v415 = vunpack.c.0.s8 %v414
        %v416 = vlaneseq
        %v417 = vshrl.u32 %v416, 7
        %v418 = vsub.s32 %v415, %v417
        %v419 = vrot.slane %v215, %v418
        %v421 = vunpack.c.l.s4 1983009808
        %v422 = vunpack.c.0.s8 %v421
        %v423 = vlaneseq
        %v424 = vshrl.u32 %v423, 7
        %v425 = vsub.s32 %v422, %v424
        %v426 = vrot.slane %v412, %v425
        %v427 = vcombine.high %v419, %v419
        %v428 = vcombine.high %v426, %v426
        %v429 = vcombine.high %v216, %v216
        %v431 = vunpack.c.l.s4 1983009808
        %v432 = vunpack.c.0.s8 %v431
        %v433 = vlaneseq
        %v434 = vshrl.u32 %v433, 7
        %v435 = vsub.s32 %v432, %v434
        %v436 = vrot.slane %v216, %v435
        %v438 = vunpack.c.l.s4 1983009808
        %v439 = vunpack.c.0.s8 %v438
        %v440 = vlaneseq
        %v441 = vshrl.u32 %v440, 7
        %v442 = vsub.s32 %v439, %v441
        %v443 = vrot.slane %v429, %v442
        %v444 = vcombine.high %v436, %v436
        %v445 = vcombine.high %v443, %v443
        %v446 = vcombine.high %v217, %v217
        %v448 = vunpack.c.l.s4 1983009808
        %v449 = vunpack.c.0.s8 %v448
        %v450 = vlaneseq
        %v451 = vshrl.u32 %v450, 7
        %v452 = vsub.s32 %v449, %v451
        %v453 = vrot.slane %v217, %v452
        %v455 = vunpack.c.l.s4 1983009808
        %v456 = vunpack.c.0.s8 %v455
        %v457 = vlaneseq
        %v458 = vshrl.u32 %v457, 7
        %v459 = vsub.s32 %v456, %v458
        %v460 = vrot.slane %v446, %v459
        %v461 = vcombine.high %v453, %v453
        %v462 = vcombine.high %v460, %v460
        %v463 = vcombine.high %v218, %v218
        %v465 = vunpack.c.l.s4 1983009808
        %v466 = vunpack.c.0.s8 %v465
        %v467 = vlaneseq
        %v468 = vshrl.u32 %v467, 7
        %v469 = vsub.s32 %v466, %v468
        %v470 = vrot.slane %v218, %v469
        %v472 = vunpack.c.l.s4 1983009808
        %v473 = vunpack.c.0.s8 %v472
        %v474 = vlaneseq
        %v475 = vshrl.u32 %v474, 7
        %v476 = vsub.s32 %v473, %v475
        %v477 = vrot.slane %v463, %v476
        %v478 = vcombine.high %v470, %v470
        %v479 = vcombine.high %v477, %v477
        %v480 = vcombine.high %v219, %v219
        %v482 = vunpack.c.l.s4 1983009808
        %v483 = vunpack.c.0.s8 %v482
        %v484 = vlaneseq
        %v485 = vshrl.u32 %v484, 7
        %v486 = vsub.s32 %v483, %v485
        %v487 = vrot.slane %v219, %v486
        %v489 = vunpack.c.l.s4 1983009808
        %v490 = vunpack.c.0.s8 %v489
        %v491 = vlaneseq
        %v492 = vshrl.u32 %v491, 7
        %v493 = vsub.s32 %v490, %v492
        %v494 = vrot.slane %v480, %v493
        %v495 = vcombine.high %v487, %v487
        %v496 = vcombine.high %v494, %v494
        %v497 = vcombine.high %v220, %v220
        %v499 = vunpack.c.l.s4 1983009808
        %v500 = vunpack.c.0.s8 %v499
        %v501 = vlaneseq
        %v502 = vshrl.u32 %v501, 7
        %v503 = vsub.s32 %v500, %v502
        %v504 = vrot.slane %v220, %v503
        %v506 = vunpack.c.l.s4 1983009808
        %v507 = vunpack.c.0.s8 %v506
        %v508 = vlaneseq
        %v509 = vshrl.u32 %v508, 7
        %v510 = vsub.s32 %v507, %v509
        %v511 = vrot.slane %v497, %v510
        %v512 = vcombine.high %v504, %v504
        %v513 = vcombine.high %v511, %v511
        %v514 = vcombine.high %v221, %v221
        %v516 = vunpack.c.l.s4 1983009808
        %v517 = vunpack.c.0.s8 %v516
        %v518 = vlaneseq
        %v519 = vshrl.u32 %v518, 7
        %v520 = vsub.s32 %v517, %v519
        %v521 = vrot.slane %v221, %v520
        %v523 = vunpack.c.l.s4 1983009808
        %v524 = vunpack.c.0.s8 %v523
        %v525 = vlaneseq
        %v526 = vshrl.u32 %v525, 7
        %v527 = vsub.s32 %v524, %v526
        %v528 = vrot.slane %v514, %v527
        %v529 = vcombine.high %v521, %v521
        %v530 = vcombine.high %v528, %v528
        %v531 = vcombine.high %v222, %v222
        %v533 = vunpack.c.l.s4 1983009808
        %v534 = vunpack.c.0.s8 %v533
        %v535 = vlaneseq
        %v536 = vshrl.u32 %v535, 7
        %v537 = vsub.s32 %v534, %v536
        %v538 = vrot.slane %v222, %v537
        %v540 = vunpack.c.l.s4 1983009808
        %v541 = vunpack.c.0.s8 %v540
        %v542 = vlaneseq
        %v543 = vshrl.u32 %v542, 7
        %v544 = vsub.s32 %v541, %v543
        %v545 = vrot.slane %v531, %v544
        %v546 = vcombine.high %v538, %v538
        %v547 = vcombine.high %v545, %v545
        %v548 = vcombine.high %v223, %v223
        %v550 = vunpack.c.l.s4 1983009808
        %v551 = vunpack.c.0.s8 %v550
        %v552 = vlaneseq
        %v553 = vshrl.u32 %v552, 7
        %v554 = vsub.s32 %v551, %v553
        %v555 = vrot.slane %v223, %v554
        %v557 = vunpack.c.l.s4 1983009808
        %v558 = vunpack.c.0.s8 %v557
        %v559 = vlaneseq
        %v560 = vshrl.u32 %v559, 7
        %v561 = vsub.s32 %v558, %v560
        %v562 = vrot.slane %v548, %v561
        %v563 = vcombine.high %v555, %v555
        %v564 = vcombine.high %v562, %v562
        %v565 = vcombine.high %v224, %v224
        %v567 = vunpack.c.l.s4 1983009808
        %v568 = vunpack.c.0.s8 %v567
        %v569 = vlaneseq
        %v570 = vshrl.u32 %v569, 7
        %v571 = vsub.s32 %v568, %v570
        %v572 = vrot.slane %v224, %v571
        %v574 = vunpack.c.l.s4 1983009808
        %v575 = vunpack.c.0.s8 %v574
        %v576 = vlaneseq
        %v577 = vshrl.u32 %v576, 7
        %v578 = vsub.s32 %v575, %v577
        %v579 = vrot.slane %v565, %v578
        %v580 = vcombine.high %v572, %v572
        %v581 = vcombine.high %v579, %v579
        %v582 = vcombine.high %v225, %v225
        %v584 = vunpack.c.l.s4 1983009808
        %v585 = vunpack.c.0.s8 %v584
        %v586 = vlaneseq
        %v587 = vshrl.u32 %v586, 7
        %v588 = vsub.s32 %v585, %v587
        %v589 = vrot.slane %v225, %v588
        %v591 = vunpack.c.l.s4 1983009808
        %v592 = vunpack.c.0.s8 %v591
        %v593 = vlaneseq
        %v594 = vshrl.u32 %v593, 7
        %v595 = vsub.s32 %v592, %v594
        %v596 = vrot.slane %v582, %v595
        %v597 = vcombine.high %v589, %v589
        %v598 = vcombine.high %v596, %v596
        %v599 = vcombine.high %v226, %v226
        %v601 = vunpack.c.l.s4 1983009808
        %v602 = vunpack.c.0.s8 %v601
        %v603 = vlaneseq
        %v604 = vshrl.u32 %v603, 7
        %v605 = vsub.s32 %v602, %v604
        %v606 = vrot.slane %v226, %v605
        %v608 = vunpack.c.l.s4 1983009808
        %v609 = vunpack.c.0.s8 %v608
        %v610 = vlaneseq
        %v611 = vshrl.u32 %v610, 7
        %v612 = vsub.s32 %v609, %v611
        %v613 = vrot.slane %v599, %v612
        %v614 = vcombine.high %v606, %v606
        %v615 = vcombine.high %v613, %v613
        %v616 = vcombine.high %v227, %v227
        %v618 = vunpack.c.l.s4 1983009808
        %v619 = vunpack.c.0.s8 %v618
        %v620 = vlaneseq
        %v621 = vshrl.u32 %v620, 7
        %v622 = vsub.s32 %v619, %v621
        %v623 = vrot.slane %v227, %v622
        %v625 = vunpack.c.l.s4 1983009808
        %v626 = vunpack.c.0.s8 %v625
        %v627 = vlaneseq
        %v628 = vshrl.u32 %v627, 7
        %v629 = vsub.s32 %v626, %v628
        %v630 = vrot.slane %v616, %v629
        %v631 = vcombine.high %v623, %v623
        %v632 = vcombine.high %v630, %v630
        %v633 = vcombine.high %v228, %v228
        %v635 = vunpack.c.l.s4 1983009808
        %v636 = vunpack.c.0.s8 %v635
        %v637 = vlaneseq
        %v638 = vshrl.u32 %v637, 7
        %v639 = vsub.s32 %v636, %v638
        %v640 = vrot.slane %v228, %v639
        %v642 = vunpack.c.l.s4 1983009808
        %v643 = vunpack.c.0.s8 %v642
        %v644 = vlaneseq
        %v645 = vshrl.u32 %v644, 7
        %v646 = vsub.s32 %v643, %v645
        %v647 = vrot.slane %v633, %v646
        %v648 = vcombine.high %v640, %v640
        %v649 = vcombine.high %v647, %v647
        %v650 = vcombine.high %v229, %v229
        %v652 = vunpack.c.l.s4 1983009808
        %v653 = vunpack.c.0.s8 %v652
        %v654 = vlaneseq
        %v655 = vshrl.u32 %v654, 7
        %v656 = vsub.s32 %v653, %v655
        %v657 = vrot.slane %v229, %v656
        %v659 = vunpack.c.l.s4 1983009808
        %v660 = vunpack.c.0.s8 %v659
        %v661 = vlaneseq
        %v662 = vshrl.u32 %v661, 7
        %v663 = vsub.s32 %v660, %v662
        %v664 = vrot.slane %v650, %v663
        %v665 = vcombine.high %v657, %v657
        %v666 = vcombine.high %v664, %v664
        %v667 = vcombine.high %v230, %v230
        %v669 = vunpack.c.l.s4 1983009808
        %v670 = vunpack.c.0.s8 %v669
        %v671 = vlaneseq
        %v672 = vshrl.u32 %v671, 7
        %v673 = vsub.s32 %v670, %v672
        %v674 = vrot.slane %v230, %v673
        %v676 = vunpack.c.l.s4 1983009808
        %v677 = vunpack.c.0.s8 %v676
        %v678 = vlaneseq
        %v679 = vshrl.u32 %v678, 7
        %v680 = vsub.s32 %v677, %v679
        %v681 = vrot.slane %v667, %v680
        %v682 = vcombine.high %v674, %v674
        %v683 = vcombine.high %v681, %v681
        %v684 = vcombine.high %v231, %v231
        %v686 = vunpack.c.l.s4 1983009808
        %v687 = vunpack.c.0.s8 %v686
        %v688 = vlaneseq
        %v689 = vshrl.u32 %v688, 7
        %v690 = vsub.s32 %v687, %v689
        %v691 = vrot.slane %v231, %v690
        %v693 = vunpack.c.l.s4 1983009808
        %v694 = vunpack.c.0.s8 %v693
        %v695 = vlaneseq
        %v696 = vshrl.u32 %v695, 7
        %v697 = vsub.s32 %v694, %v696
        %v698 = vrot.slane %v684, %v697
        %v699 = vcombine.high %v691, %v691
        %v700 = vcombine.high %v698, %v698
        %v701 = vcombine.high %v232, %v232
        %v703 = vunpack.c.l.s4 1983009808
        %v704 = vunpack.c.0.s8 %v703
        %v705 = vlaneseq
        %v706 = vshrl.u32 %v705, 7
        %v707 = vsub.s32 %v704, %v706
        %v708 = vrot.slane %v232, %v707
        %v710 = vunpack.c.l.s4 1983009808
        %v711 = vunpack.c.0.s8 %v710
        %v712 = vlaneseq
        %v713 = vshrl.u32 %v712, 7
        %v714 = vsub.s32 %v711, %v713
        %v715 = vrot.slane %v701, %v714
        %v716 = vcombine.high %v708, %v708
        %v717 = vcombine.high %v715, %v715
        %v718 = vcombine.high %v233, %v233
        %v720 = vunpack.c.l.s4 1983009808
        %v721 = vunpack.c.0.s8 %v720
        %v722 = vlaneseq
        %v723 = vshrl.u32 %v722, 7
        %v724 = vsub.s32 %v721, %v723
        %v725 = vrot.slane %v233, %v724
        %v727 = vunpack.c.l.s4 1983009808
        %v728 = vunpack.c.0.s8 %v727
        %v729 = vlaneseq
        %v730 = vshrl.u32 %v729, 7
        %v731 = vsub.s32 %v728, %v730
        %v732 = vrot.slane %v718, %v731
        %v733 = vcombine.high %v725, %v725
        %v734 = vcombine.high %v732, %v732
        %v735 = vcombine.high %v234, %v234
        %v737 = vunpack.c.l.s4 1983009808
        %v738 = vunpack.c.0.s8 %v737
        %v739 = vlaneseq
        %v740 = vshrl.u32 %v739, 7
        %v741 = vsub.s32 %v738, %v740
        %v742 = vrot.slane %v234, %v741
        %v744 = vunpack.c.l.s4 1983009808
        %v745 = vunpack.c.0.s8 %v744
        %v746 = vlaneseq
        %v747 = vshrl.u32 %v746, 7
        %v748 = vsub.s32 %v745, %v747
        %v749 = vrot.slane %v735, %v748
        %v750 = vcombine.high %v742, %v742
        %v751 = vcombine.high %v749, %v749
        %v752 = vcombine.high %v235, %v235
        %v754 = vunpack.c.l.s4 1983009808
        %v755 = vunpack.c.0.s8 %v754
        %v756 = vlaneseq
        %v757 = vshrl.u32 %v756, 7
        %v758 = vsub.s32 %v755, %v757
        %v759 = vrot.slane %v235, %v758
        %v761 = vunpack.c.l.s4 1983009808
        %v762 = vunpack.c.0.s8 %v761
        %v763 = vlaneseq
        %v764 = vshrl.u32 %v763, 7
        %v765 = vsub.s32 %v762, %v764
        %v766 = vrot.slane %v752, %v765
        %v767 = vcombine.high %v759, %v759
        %v768 = vcombine.high %v766, %v766
        %v769 = vcombine.high %v236, %v236
        %v771 = vunpack.c.l.s4 1983009808
        %v772 = vunpack.c.0.s8 %v771
        %v773 = vlaneseq
        %v774 = vshrl.u32 %v773, 7
        %v775 = vsub.s32 %v772, %v774
        %v776 = vrot.slane %v236, %v775
        %v778 = vunpack.c.l.s4 1983009808
        %v779 = vunpack.c.0.s8 %v778
        %v780 = vlaneseq
        %v781 = vshrl.u32 %v780, 7
        %v782 = vsub.s32 %v779, %v781
        %v783 = vrot.slane %v769, %v782
        %v784 = vcombine.high %v776, %v776
        %v785 = vcombine.high %v783, %v783
        %v786 = vcombine.high %v237, %v237
        %v788 = vunpack.c.l.s4 1983009808
        %v789 = vunpack.c.0.s8 %v788
        %v790 = vlaneseq
        %v791 = vshrl.u32 %v790, 7
        %v792 = vsub.s32 %v789, %v791
        %v793 = vrot.slane %v237, %v792
        %v795 = vunpack.c.l.s4 1983009808
        %v796 = vunpack.c.0.s8 %v795
        %v797 = vlaneseq
        %v798 = vshrl.u32 %v797, 7
        %v799 = vsub.s32 %v796, %v798
        %v800 = vrot.slane %v786, %v799
        %v801 = vcombine.high %v793, %v793
        %v802 = vcombine.high %v800, %v800
        %v803 = vcombine.high %v238, %v238
        %v805 = vunpack.c.l.s4 1983009808
        %v806 = vunpack.c.0.s8 %v805
        %v807 = vlaneseq
        %v808 = vshrl.u32 %v807, 7
        %v809 = vsub.s32 %v806, %v808
        %v810 = vrot.slane %v238, %v809
        %v812 = vunpack.c.l.s4 1983009808
        %v813 = vunpack.c.0.s8 %v812
        %v814 = vlaneseq
        %v815 = vshrl.u32 %v814, 7
        %v816 = vsub.s32 %v813, %v815
        %v817 = vrot.slane %v803, %v816
        %v818 = vcombine.high %v810, %v810
        %v819 = vcombine.high %v817, %v817
        %v820 = vcombine.high %v239, %v239
        %v822 = vunpack.c.l.s4 1983009808
        %v823 = vunpack.c.0.s8 %v822
        %v824 = vlaneseq
        %v825 = vshrl.u32 %v824, 7
        %v826 = vsub.s32 %v823, %v825
        %v827 = vrot.slane %v239, %v826
        %v829 = vunpack.c.l.s4 1983009808
        %v830 = vunpack.c.0.s8 %v829
        %v831 = vlaneseq
        %v832 = vshrl.u32 %v831, 7
        %v833 = vsub.s32 %v830, %v832
        %v834 = vrot.slane %v820, %v833
        %v835 = vcombine.high %v827, %v827
        %v836 = vcombine.high %v834, %v834
        %v837 = vcombine.high %v240, %v240
        %v839 = vunpack.c.l.s4 1983009808
        %v840 = vunpack.c.0.s8 %v839
        %v841 = vlaneseq
        %v842 = vshrl.u32 %v841, 7
        %v843 = vsub.s32 %v840, %v842
        %v844 = vrot.slane %v240, %v843
        %v846 = vunpack.c.l.s4 1983009808
        %v847 = vunpack.c.0.s8 %v846
        %v848 = vlaneseq
        %v849 = vshrl.u32 %v848, 7
        %v850 = vsub.s32 %v847, %v849
        %v851 = vrot.slane %v837, %v850
        %v852 = vcombine.high %v844, %v844
        %v853 = vcombine.high %v851, %v851
        %v854 = vcombine.high %v241, %v241
        %v856 = vunpack.c.l.s4 1983009808
        %v857 = vunpack.c.0.s8 %v856
        %v858 = vlaneseq
        %v859 = vshrl.u32 %v858, 7
        %v860 = vsub.s32 %v857, %v859
        %v861 = vrot.slane %v241, %v860
        %v863 = vunpack.c.l.s4 1983009808
        %v864 = vunpack.c.0.s8 %v863
        %v865 = vlaneseq
        %v866 = vshrl.u32 %v865, 7
        %v867 = vsub.s32 %v864, %v866
        %v868 = vrot.slane %v854, %v867
        %v869 = vcombine.high %v861, %v861
        %v870 = vcombine.high %v868, %v868
        %v871 = vcombine.high %v242, %v242
        %v873 = vunpack.c.l.s4 1983009808
        %v874 = vunpack.c.0.s8 %v873
        %v875 = vlaneseq
        %v876 = vshrl.u32 %v875, 7
        %v877 = vsub.s32 %v874, %v876
        %v878 = vrot.slane %v242, %v877
        %v880 = vunpack.c.l.s4 1983009808
        %v881 = vunpack.c.0.s8 %v880
        %v882 = vlaneseq
        %v883 = vshrl.u32 %v882, 7
        %v884 = vsub.s32 %v881, %v883
        %v885 = vrot.slane %v871, %v884
        %v886 = vcombine.high %v878, %v878
        %v887 = vcombine.high %v885, %v885
        %v888 = vcombine.high %v243, %v243
        %v890 = vunpack.c.l.s4 1983009808
        %v891 = vunpack.c.0.s8 %v890
        %v892 = vlaneseq
        %v893 = vshrl.u32 %v892, 7
        %v894 = vsub.s32 %v891, %v893
        %v895 = vrot.slane %v243, %v894
        %v897 = vunpack.c.l.s4 1983009808
        %v898 = vunpack.c.0.s8 %v897
        %v899 = vlaneseq
        %v900 = vshrl.u32 %v899, 7
        %v901 = vsub.s32 %v898, %v900
        %v902 = vrot.slane %v888, %v901
        %v903 = vcombine.high %v895, %v895
        %v904 = vcombine.high %v902, %v902
        %v905 = vcombine.high %v244, %v244
        %v907 = vunpack.c.l.s4 1983009808
        %v908 = vunpack.c.0.s8 %v907
        %v909 = vlaneseq
        %v910 = vshrl.u32 %v909, 7
        %v911 = vsub.s32 %v908, %v910
        %v912 = vrot.slane %v244, %v911
        %v914 = vunpack.c.l.s4 1983009808
        %v915 = vunpack.c.0.s8 %v914
        %v916 = vlaneseq
        %v917 = vshrl.u32 %v916, 7
        %v918 = vsub.s32 %v915, %v917
        %v919 = vrot.slane %v905, %v918
        %v920 = vcombine.high %v912, %v912
        %v921 = vcombine.high %v919, %v919
        %v922 = vcombine.high %v245, %v245
        %v924 = vunpack.c.l.s4 1983009808
        %v925 = vunpack.c.0.s8 %v924
        %v926 = vlaneseq
        %v927 = vshrl.u32 %v926, 7
        %v928 = vsub.s32 %v925, %v927
        %v929 = vrot.slane %v245, %v928
        %v931 = vunpack.c.l.s4 1983009808
        %v932 = vunpack.c.0.s8 %v931
        %v933 = vlaneseq
        %v934 = vshrl.u32 %v933, 7
        %v935 = vsub.s32 %v932, %v934
        %v936 = vrot.slane %v922, %v935
        %v937 = vcombine.high %v929, %v929
        %v938 = vcombine.high %v936, %v936
        %v939 = vcombine.high %v246, %v246
        %v941 = vunpack.c.l.s4 1983009808
        %v942 = vunpack.c.0.s8 %v941
        %v943 = vlaneseq
        %v944 = vshrl.u32 %v943, 7
        %v945 = vsub.s32 %v942, %v944
        %v946 = vrot.slane %v246, %v945
        %v948 = vunpack.c.l.s4 1983009808
        %v949 = vunpack.c.0.s8 %v948
        %v950 = vlaneseq
        %v951 = vshrl.u32 %v950, 7
        %v952 = vsub.s32 %v949, %v951
        %v953 = vrot.slane %v939, %v952
        %v954 = vcombine.high %v946, %v946
        %v955 = vcombine.high %v953, %v953
        %v956 = vcombine.high %v247, %v247
        %v958 = vunpack.c.l.s4 1983009808
        %v959 = vunpack.c.0.s8 %v958
        %v960 = vlaneseq
        %v961 = vshrl.u32 %v960, 7
        %v962 = vsub.s32 %v959, %v961
        %v963 = vrot.slane %v247, %v962
        %v965 = vunpack.c.l.s4 1983009808
        %v966 = vunpack.c.0.s8 %v965
        %v967 = vlaneseq
        %v968 = vshrl.u32 %v967, 7
        %v969 = vsub.s32 %v966, %v968
        %v970 = vrot.slane %v956, %v969
        %v971 = vcombine.high %v963, %v963
        %v972 = vcombine.high %v970, %v970
        %v973 = vcombine.high %v248, %v248
        %v975 = vunpack.c.l.s4 1983009808
        %v976 = vunpack.c.0.s8 %v975
        %v977 = vlaneseq
        %v978 = vshrl.u32 %v977, 7
        %v979 = vsub.s32 %v976, %v978
        %v980 = vrot.slane %v248, %v979
        %v982 = vunpack.c.l.s4 1983009808
        %v983 = vunpack.c.0.s8 %v982
        %v984 = vlaneseq
        %v985 = vshrl.u32 %v984, 7
        %v986 = vsub.s32 %v983, %v985
        %v987 = vrot.slane %v973, %v986
        %v988 = vcombine.high %v980, %v980
        %v989 = vcombine.high %v987, %v987
        %v990 = vcombine.high %v249, %v249
        %v992 = vunpack.c.l.s4 1983009808
        %v993 = vunpack.c.0.s8 %v992
        %v994 = vlaneseq
        %v995 = vshrl.u32 %v994, 7
        %v996 = vsub.s32 %v993, %v995
        %v997 = vrot.slane %v249, %v996
        %v999 = vunpack.c.l.s4 1983009808
        %v1000 = vunpack.c.0.s8 %v999
        %v1001 = vlaneseq
        %v1002 = vshrl.u32 %v1001, 7
        %v1003 = vsub.s32 %v1000, %v1002
        %v1004 = vrot.slane %v990, %v1003
        %v1005 = vcombine.high %v997, %v997
        %v1006 = vcombine.high %v1004, %v1004
        %v1007 = vcombine.high %v250, %v250
        %v1009 = vunpack.c.l.s4 1983009808
        %v1010 = vunpack.c.0.s8 %v1009
        %v1011 = vlaneseq
        %v1012 = vshrl.u32 %v1011, 7
        %v1013 = vsub.s32 %v1010, %v1012
        %v1014 = vrot.slane %v250, %v1013
        %v1016 = vunpack.c.l.s4 1983009808
        %v1017 = vunpack.c.0.s8 %v1016
        %v1018 = vlaneseq
        %v1019 = vshrl.u32 %v1018, 7
        %v1020 = vsub.s32 %v1017, %v1019
        %v1021 = vrot.slane %v1007, %v1020
        %v1022 = vcombine.high %v1014, %v1014
        %v1023 = vcombine.high %v1021, %v1021
        %v1024 = vcombine.high %v251, %v251
        %v1026 = vunpack.c.l.s4 1983009808
        %v1027 = vunpack.c.0.s8 %v1026
        %v1028 = vlaneseq
        %v1029 = vshrl.u32 %v1028, 7
        %v1030 = vsub.s32 %v1027, %v1029
        %v1031 = vrot.slane %v251, %v1030
        %v1033 = vunpack.c.l.s4 1983009808
        %v1034 = vunpack.c.0.s8 %v1033
        %v1035 = vlaneseq
        %v1036 = vshrl.u32 %v1035, 7
        %v1037 = vsub.s32 %v1034, %v1036
        %v1038 = vrot.slane %v1024, %v1037
        %v1039 = vcombine.high %v1031, %v1031
        %v1040 = vcombine.high %v1038, %v1038
        %v1041 = vcombine.high %v252, %v252
        %v1043 = vunpack.c.l.s4 1983009808
        %v1044 = vunpack.c.0.s8 %v1043
        %v1045 = vlaneseq
        %v1046 = vshrl.u32 %v1045, 7
        %v1047 = vsub.s32 %v1044, %v1046
        %v1048 = vrot.slane %v252, %v1047
        %v1050 = vunpack.c.l.s4 1983009808
        %v1051 = vunpack.c.0.s8 %v1050
        %v1052 = vlaneseq
        %v1053 = vshrl.u32 %v1052, 7
        %v1054 = vsub.s32 %v1051, %v1053
        %v1055 = vrot.slane %v1041, %v1054
        %v1056 = vcombine.high %v1048, %v1048
        %v1057 = vcombine.high %v1055, %v1055
        %v1058 = vcombine.high %v253, %v253
        %v1060 = vunpack.c.l.s4 1983009808
        %v1061 = vunpack.c.0.s8 %v1060
        %v1062 = vlaneseq
        %v1063 = vshrl.u32 %v1062, 7
        %v1064 = vsub.s32 %v1061, %v1063
        %v1065 = vrot.slane %v253, %v1064
        %v1067 = vunpack.c.l.s4 1983009808
        %v1068 = vunpack.c.0.s8 %v1067
        %v1069 = vlaneseq
        %v1070 = vshrl.u32 %v1069, 7
        %v1071 = vsub.s32 %v1068, %v1070
        %v1072 = vrot.slane %v1058, %v1071
        %v1073 = vcombine.high %v1065, %v1065
        %v1074 = vcombine.high %v1072, %v1072
        %v1075 = vcombine.high %v254, %v254
        %v1077 = vunpack.c.l.s4 1983009808
        %v1078 = vunpack.c.0.s8 %v1077
        %v1079 = vlaneseq
        %v1080 = vshrl.u32 %v1079, 7
        %v1081 = vsub.s32 %v1078, %v1080
        %v1082 = vrot.slane %v254, %v1081
        %v1084 = vunpack.c.l.s4 1983009808
        %v1085 = vunpack.c.0.s8 %v1084
        %v1086 = vlaneseq
        %v1087 = vshrl.u32 %v1086, 7
        %v1088 = vsub.s32 %v1085, %v1087
        %v1089 = vrot.slane %v1075, %v1088
        %v1090 = vcombine.high %v1082, %v1082
        %v1091 = vcombine.high %v1089, %v1089
        %v1092 = vcombine.high %v255, %v255
        %v1094 = vunpack.c.l.s4 1983009808
        %v1095 = vunpack.c.0.s8 %v1094
        %v1096 = vlaneseq
        %v1097 = vshrl.u32 %v1096, 7
        %v1098 = vsub.s32 %v1095, %v1097
        %v1099 = vrot.slane %v255, %v1098
        %v1101 = vunpack.c.l.s4 1983009808
        %v1102 = vunpack.c.0.s8 %v1101
        %v1103 = vlaneseq
        %v1104 = vshrl.u32 %v1103, 7
        %v1105 = vsub.s32 %v1102, %v1104
        %v1106 = vrot.slane %v1092, %v1105
        %v1107 = vcombine.high %v1099, %v1099
        %v1108 = vcombine.high %v1106, %v1106
        %v1109 = vcombine.high %v256, %v256
        %v1111 = vunpack.c.l.s4 1983009808
        %v1112 = vunpack.c.0.s8 %v1111
        %v1113 = vlaneseq
        %v1114 = vshrl.u32 %v1113, 7
        %v1115 = vsub.s32 %v1112, %v1114
        %v1116 = vrot.slane %v256, %v1115
        %v1118 = vunpack.c.l.s4 1983009808
        %v1119 = vunpack.c.0.s8 %v1118
        %v1120 = vlaneseq
        %v1121 = vshrl.u32 %v1120, 7
        %v1122 = vsub.s32 %v1119, %v1121
        %v1123 = vrot.slane %v1109, %v1122
        %v1124 = vcombine.high %v1116, %v1116
        %v1125 = vcombine.high %v1123, %v1123
        %v1126 = vcombine.high %v257, %v257
        %v1128 = vunpack.c.l.s4 1983009808
        %v1129 = vunpack.c.0.s8 %v1128
        %v1130 = vlaneseq
        %v1131 = vshrl.u32 %v1130, 7
        %v1132 = vsub.s32 %v1129, %v1131
        %v1133 = vrot.slane %v257, %v1132
        %v1135 = vunpack.c.l.s4 1983009808
        %v1136 = vunpack.c.0.s8 %v1135
        %v1137 = vlaneseq
        %v1138 = vshrl.u32 %v1137, 7
        %v1139 = vsub.s32 %v1136, %v1138
        %v1140 = vrot.slane %v1126, %v1139
        %v1141 = vcombine.high %v1133, %v1133
        %v1142 = vcombine.high %v1140, %v1140
        %v1143 = vcombine.high %v258, %v258
        %v1145 = vunpack.c.l.s4 1983009808
        %v1146 = vunpack.c.0.s8 %v1145
        %v1147 = vlaneseq
        %v1148 = vshrl.u32 %v1147, 7
        %v1149 = vsub.s32 %v1146, %v1148
        %v1150 = vrot.slane %v258, %v1149
        %v1152 = vunpack.c.l.s4 1983009808
        %v1153 = vunpack.c.0.s8 %v1152
        %v1154 = vlaneseq
        %v1155 = vshrl.u32 %v1154, 7
        %v1156 = vsub.s32 %v1153, %v1155
        %v1157 = vrot.slane %v1143, %v1156
        %v1158 = vcombine.high %v1150, %v1150
        %v1159 = vcombine.high %v1157, %v1157
        %v1160 = vcombine.high %v259, %v259
        %v1162 = vunpack.c.l.s4 1983009808
        %v1163 = vunpack.c.0.s8 %v1162
        %v1164 = vlaneseq
        %v1165 = vshrl.u32 %v1164, 7
        %v1166 = vsub.s32 %v1163, %v1165
        %v1167 = vrot.slane %v259, %v1166
        %v1169 = vunpack.c.l.s4 1983009808
        %v1170 = vunpack.c.0.s8 %v1169
        %v1171 = vlaneseq
        %v1172 = vshrl.u32 %v1171, 7
        %v1173 = vsub.s32 %v1170, %v1172
        %v1174 = vrot.slane %v1160, %v1173
        %v1175 = vcombine.high %v1167, %v1167
        %v1176 = vcombine.high %v1174, %v1174
        %vm1177 = vcmask 23552
        %v1179 = vsel %vm1177, %v276, 0
        %vm1181 = vcmask 1040384
        %vm1182 = vcmask 1041408
        %v1183 = vsel %vm1181, 4294967295, 65535
        %v1184 = vsel %vm1182, %v1183, 0
        %v1186 = vand.u32 %v334, %v1184
        %v1189 = vand.u32 %v342, %v1184
        %v1192 = vand.u32 %v341, %v1184
        %v1195 = vand.u32 %v343, %v1184
        %v1198 = vand.u32 %v351, %v1184
        %v1201 = vand.u32 %v359, %v1184
        %v1204 = vand.u32 %v358, %v1184
        %v1207 = vand.u32 %v360, %v1184
        %v1210 = vand.u32 %v368, %v1184
        %v1213 = vand.u32 %v376, %v1184
        %v1216 = vand.u32 %v375, %v1184
        %v1219 = vand.u32 %v377, %v1184
        %v1222 = vand.u32 %v385, %v1184
        %v1225 = vand.u32 %v393, %v1184
        %v1228 = vand.u32 %v392, %v1184
        %v1231 = vand.u32 %v394, %v1184
        %v1234 = vand.u32 %v402, %v1184
        %v1237 = vand.u32 %v410, %v1184
        %v1240 = vand.u32 %v409, %v1184
        %v1243 = vand.u32 %v411, %v1184
        %v1246 = vand.u32 %v419, %v1184
        %v1249 = vand.u32 %v427, %v1184
        %v1252 = vand.u32 %v426, %v1184
        %v1255 = vand.u32 %v428, %v1184
        %v1258 = vand.u32 %v436, %v1184
        %v1261 = vand.u32 %v444, %v1184
        %v1264 = vand.u32 %v443, %v1184
        %v1267 = vand.u32 %v445, %v1184
        %v1270 = vand.u32 %v453, %v1184
        %v1273 = vand.u32 %v461, %v1184
        %v1276 = vand.u32 %v460, %v1184
        %v1279 = vand.u32 %v462, %v1184
        %v1282 = vand.u32 %v470, %v1184
        %v1285 = vand.u32 %v478, %v1184
        %v1288 = vand.u32 %v477, %v1184
        %v1291 = vand.u32 %v479, %v1184
        %v1294 = vand.u32 %v487, %v1184
        %v1297 = vand.u32 %v495, %v1184
        %v1300 = vand.u32 %v494, %v1184
        %v1303 = vand.u32 %v496, %v1184
        %v1306 = vand.u32 %v504, %v1184
        %v1309 = vand.u32 %v512, %v1184
        %v1312 = vand.u32 %v511, %v1184
        %v1315 = vand.u32 %v513, %v1184
        %v1318 = vand.u32 %v521, %v1184
        %v1321 = vand.u32 %v529, %v1184
        %v1324 = vand.u32 %v528, %v1184
        %v1327 = vand.u32 %v530, %v1184
        %v1330 = vand.u32 %v538, %v1184
        %v1333 = vand.u32 %v546, %v1184
        %v1336 = vand.u32 %v545, %v1184
        %v1339 = vand.u32 %v547, %v1184
        %v1342 = vand.u32 %v555, %v1184
        %v1345 = vand.u32 %v563, %v1184
        %v1348 = vand.u32 %v562, %v1184
        %v1351 = vand.u32 %v564, %v1184
        %v1354 = vand.u32 %v572, %v1184
        %v1357 = vand.u32 %v580, %v1184
        %v1360 = vand.u32 %v579, %v1184
        %v1363 = vand.u32 %v581, %v1184
        %v1366 = vand.u32 %v589, %v1184
        %v1369 = vand.u32 %v597, %v1184
        %v1372 = vand.u32 %v596, %v1184
        %v1375 = vand.u32 %v598, %v1184
        %v1378 = vand.u32 %v606, %v1184
        %v1381 = vand.u32 %v614, %v1184
        %v1384 = vand.u32 %v613, %v1184
        %v1387 = vand.u32 %v615, %v1184
        %v1390 = vand.u32 %v623, %v1184
        %v1393 = vand.u32 %v631, %v1184
        %v1396 = vand.u32 %v630, %v1184
        %v1399 = vand.u32 %v632, %v1184
        %v1402 = vand.u32 %v640, %v1184
        %v1405 = vand.u32 %v648, %v1184
        %v1408 = vand.u32 %v647, %v1184
        %v1411 = vand.u32 %v649, %v1184
        %v1414 = vand.u32 %v657, %v1184
        %v1417 = vand.u32 %v665, %v1184
        %v1420 = vand.u32 %v664, %v1184
        %v1423 = vand.u32 %v666, %v1184
        %v1426 = vand.u32 %v674, %v1184
        %v1429 = vand.u32 %v682, %v1184
        %v1432 = vand.u32 %v681, %v1184
        %v1435 = vand.u32 %v683, %v1184
        %v1438 = vand.u32 %v691, %v1184
        %v1441 = vand.u32 %v699, %v1184
        %v1444 = vand.u32 %v698, %v1184
        %v1447 = vand.u32 %v700, %v1184
        %v1450 = vand.u32 %v708, %v1184
        %v1453 = vand.u32 %v716, %v1184
        %v1456 = vand.u32 %v715, %v1184
        %v1459 = vand.u32 %v717, %v1184
        %v1462 = vand.u32 %v725, %v1184
        %v1465 = vand.u32 %v733, %v1184
        %v1468 = vand.u32 %v732, %v1184
        %v1471 = vand.u32 %v734, %v1184
        %v1474 = vand.u32 %v742, %v1184
        %v1477 = vand.u32 %v750, %v1184
        %v1480 = vand.u32 %v749, %v1184
        %v1483 = vand.u32 %v751, %v1184
        %v1486 = vand.u32 %v759, %v1184
        %v1489 = vand.u32 %v767, %v1184
        %v1492 = vand.u32 %v766, %v1184
        %v1495 = vand.u32 %v768, %v1184
        %v1498 = vand.u32 %v776, %v1184
        %v1501 = vand.u32 %v784, %v1184
        %v1504 = vand.u32 %v783, %v1184
        %v1507 = vand.u32 %v785, %v1184
        %v1510 = vand.u32 %v793, %v1184
        %v1513 = vand.u32 %v801, %v1184
        %v1516 = vand.u32 %v800, %v1184
        %v1519 = vand.u32 %v802, %v1184
        %v1522 = vand.u32 %v810, %v1184
        %v1525 = vand.u32 %v818, %v1184
        %v1528 = vand.u32 %v817, %v1184
        %v1531 = vand.u32 %v819, %v1184
        %v1534 = vand.u32 %v827, %v1184
        %v1537 = vand.u32 %v835, %v1184
        %v1540 = vand.u32 %v834, %v1184
        %v1543 = vand.u32 %v836, %v1184
        %v1546 = vand.u32 %v844, %v1184
        %v1549 = vand.u32 %v852, %v1184
        %v1552 = vand.u32 %v851, %v1184
        %v1555 = vand.u32 %v853, %v1184
        %v1558 = vand.u32 %v861, %v1184
        %v1561 = vand.u32 %v869, %v1184
        %v1564 = vand.u32 %v868, %v1184
        %v1567 = vand.u32 %v870, %v1184
        %v1570 = vand.u32 %v878, %v1184
        %v1573 = vand.u32 %v886, %v1184
        %v1576 = vand.u32 %v885, %v1184
        %v1579 = vand.u32 %v887, %v1184
        %v1582 = vand.u32 %v895, %v1184
        %v1585 = vand.u32 %v903, %v1184
        %v1588 = vand.u32 %v902, %v1184
        %v1591 = vand.u32 %v904, %v1184
        %v1594 = vand.u32 %v912, %v1184
        %v1597 = vand.u32 %v920, %v1184
        %v1600 = vand.u32 %v919, %v1184
        %v1603 = vand.u32 %v921, %v1184
        %v1606 = vand.u32 %v929, %v1184
        %v1609 = vand.u32 %v937, %v1184
        %v1612 = vand.u32 %v936, %v1184
        %v1615 = vand.u32 %v938, %v1184
        %v1618 = vand.u32 %v946, %v1184
        %v1621 = vand.u32 %v954, %v1184
        %v1624 = vand.u32 %v953, %v1184
        %v1627 = vand.u32 %v955, %v1184
        %v1630 = vand.u32 %v963, %v1184
        %v1633 = vand.u32 %v971, %v1184
        %v1636 = vand.u32 %v970, %v1184
        %v1639 = vand.u32 %v972, %v1184
        %v1642 = vand.u32 %v980, %v1184
        %v1645 = vand.u32 %v988, %v1184
        %v1648 = vand.u32 %v987, %v1184
        %v1651 = vand.u32 %v989, %v1184
        %v1654 = vand.u32 %v997, %v1184
        %v1657 = vand.u32 %v1005, %v1184
        %v1660 = vand.u32 %v1004, %v1184
        %v1663 = vand.u32 %v1006, %v1184
        %v1666 = vand.u32 %v1014, %v1184
        %v1669 = vand.u32 %v1022, %v1184
        %v1672 = vand.u32 %v1021, %v1184
        %v1675 = vand.u32 %v1023, %v1184
        %v1678 = vand.u32 %v1031, %v1184
        %v1681 = vand.u32 %v1039, %v1184
        %v1684 = vand.u32 %v1038, %v1184
        %v1687 = vand.u32 %v1040, %v1184
        %v1690 = vand.u32 %v1048, %v1184
        %v1693 = vand.u32 %v1056, %v1184
        %v1696 = vand.u32 %v1055, %v1184
        %v1699 = vand.u32 %v1057, %v1184
        %v1702 = vand.u32 %v1065, %v1184
        %v1705 = vand.u32 %v1073, %v1184
        %v1708 = vand.u32 %v1072, %v1184
        %v1711 = vand.u32 %v1074, %v1184
        %v1714 = vand.u32 %v1082, %v1184
        %v1717 = vand.u32 %v1090, %v1184
        %v1720 = vand.u32 %v1089, %v1184
        %v1723 = vand.u32 %v1091, %v1184
        %v1726 = vand.u32 %v1099, %v1184
        %v1729 = vand.u32 %v1107, %v1184
        %v1732 = vand.u32 %v1106, %v1184
        %v1735 = vand.u32 %v1108, %v1184
        %v1738 = vand.u32 %v1116, %v1184
        %v1741 = vand.u32 %v1124, %v1184
        %v1744 = vand.u32 %v1123, %v1184
        %v1747 = vand.u32 %v1125, %v1184
        %v1750 = vand.u32 %v1133, %v1184
        %v1753 = vand.u32 %v1141, %v1184
        %v1756 = vand.u32 %v1140, %v1184
        %v1759 = vand.u32 %v1142, %v1184
        %v1762 = vand.u32 %v1150, %v1184
        %v1765 = vand.u32 %v1158, %v1184
        %v1768 = vand.u32 %v1157, %v1184
        %v1771 = vand.u32 %v1159, %v1184
        %v1774 = vand.u32 %v1167, %v1184
        %v1777 = vand.u32 %v1175, %v1184
        %v1780 = vand.u32 %v1174, %v1184
        %v1783 = vand.u32 %v1176, %v1184
        %1785 = vmatprep.subr.bf16.mxu0 0
        %1786 = vmatpush1.bf16.msra.mxu0 0
        %1787 = vmatprep.subr.bf16.mxu0 0
        %1788 = vmatpush1.bf16.msra.mxu0 0
        %1789 = vmatprep.subr.bf16.mxu0 0
        %1790 = vmatpush1.bf16.msra.mxu0 0
        %1791 = vmatprep.subr.bf16.mxu0 0
        %1792 = vmatpush1.bf16.msra.mxu0 0
        %1793 = vmatprep.subr.bf16.mxu0 0
        %1794 = vmatpush1.bf16.msra.mxu0 0
        %1795 = vmatprep.subr.bf16.mxu0 0
        %1796 = vmatpush1.bf16.msra.mxu0 0
        %1797 = vmatprep.subr.bf16.mxu0 0
        %1798 = vmatpush1.bf16.msra.mxu0 0
        %1799 = vmatprep.subr.bf16.mxu0 %v1189
        %1800 = vmatpush1.bf16.msra.mxu0 %v1186
        %1801 = vmatprep.subr.bf16.mxu0 0
        %1802 = vmatpush2.bf16.msra.mxu0 0
        %1803 = vmatprep.subr.bf16.mxu0 0
        %1804 = vmatpush2.bf16.msra.mxu0 0
        %1805 = vmatprep.subr.bf16.mxu0 0
        %1806 = vmatpush2.bf16.msra.mxu0 0
        %1807 = vmatprep.subr.bf16.mxu0 0
        %1808 = vmatpush2.bf16.msra.mxu0 0
        %1809 = vmatprep.subr.bf16.mxu0 0
        %1810 = vmatpush2.bf16.msra.mxu0 0
        %1811 = vmatprep.subr.bf16.mxu0 0
        %1812 = vmatpush2.bf16.msra.mxu0 0
        %1813 = vmatprep.subr.bf16.mxu0 0
        %1814 = vmatpush2.bf16.msra.mxu0 0
        %1815 = vmatprep.subr.bf16.mxu0 0
        %1816 = vmatpush2.bf16.msra.mxu0 0
        %1817 = vmatprep.mubr.bf16.mxu0 0
        %1818 = vmatmul.mubr.bf16.gmra.mxu0 %v1179
        %v1819 = vpop.f32.mrf.mxu0
        %v1820 = vadd.f32 %v265, %v1819
        %v1821 = vpop.f32.mrf.mxu0
        %v1822 = vadd.f32 %v265, %v1821
        %v1823 = vpop.f32.mrf.mxu0
        %v1824 = vadd.f32 %v270, %v1823
        %v1825 = vpop.f32.mrf.mxu0
        %v1826 = vadd.f32 %v270, %v1825
        %1827 = vdwg.mxu0
        %1828 = vmatprep.subr.bf16.mxu0 0
        %1829 = vmatpush1.bf16.msra.mxu0 0
        %1830 = vmatprep.subr.bf16.mxu0 0
        %1831 = vmatpush1.bf16.msra.mxu0 0
        %1832 = vmatprep.subr.bf16.mxu0 0
        %1833 = vmatpush1.bf16.msra.mxu0 0
        %1834 = vmatprep.subr.bf16.mxu0 0
        %1835 = vmatpush1.bf16.msra.mxu0 0
        %1836 = vmatprep.subr.bf16.mxu0 0
        %1837 = vmatpush1.bf16.msra.mxu0 0
        %1838 = vmatprep.subr.bf16.mxu0 0
        %1839 = vmatpush1.bf16.msra.mxu0 0
        %1840 = vmatprep.subr.bf16.mxu0 0
        %1841 = vmatpush1.bf16.msra.mxu0 0
        %1842 = vmatprep.subr.bf16.mxu0 %v1195
        %1843 = vmatpush1.bf16.msra.mxu0 %v1192
        %1844 = vmatprep.subr.bf16.mxu0 0
        %1845 = vmatpush2.bf16.msra.mxu0 0
        %1846 = vmatprep.subr.bf16.mxu0 0
        %1847 = vmatpush2.bf16.msra.mxu0 0
        %1848 = vmatprep.subr.bf16.mxu0 0
        %1849 = vmatpush2.bf16.msra.mxu0 0
        %1850 = vmatprep.subr.bf16.mxu0 0
        %1851 = vmatpush2.bf16.msra.mxu0 0
        %1852 = vmatprep.subr.bf16.mxu0 0
        %1853 = vmatpush2.bf16.msra.mxu0 0
        %1854 = vmatprep.subr.bf16.mxu0 0
        %1855 = vmatpush2.bf16.msra.mxu0 0
        %1856 = vmatprep.subr.bf16.mxu0 0
        %1857 = vmatpush2.bf16.msra.mxu0 0
        %1858 = vmatprep.subr.bf16.mxu0 0
        %1859 = vmatpush2.bf16.msra.mxu0 0
        %1860 = vmatprep.mubr.bf16.mxu0 0
        %1861 = vmatmul.mubr.bf16.gmra.mxu0 %v1179
        %v1862 = vpop.f32.mrf.mxu0
        %v1863 = vadd.f32 %v265, %v1862
        %v1864 = vpop.f32.mrf.mxu0
        %v1865 = vadd.f32 %v265, %v1864
        %v1866 = vpop.f32.mrf.mxu0
        %v1867 = vadd.f32 %v270, %v1866
        %v1868 = vpop.f32.mrf.mxu0
        %v1869 = vadd.f32 %v270, %v1868
        %1870 = vdwg.mxu0
        %1871 = vmatprep.subr.bf16.mxu0 0
        %1872 = vmatpush1.bf16.msra.mxu0 0
        %1873 = vmatprep.subr.bf16.mxu0 0
        %1874 = vmatpush1.bf16.msra.mxu0 0
        %1875 = vmatprep.subr.bf16.mxu0 0
        %1876 = vmatpush1.bf16.msra.mxu0 0
        %1877 = vmatprep.subr.bf16.mxu0 0
        %1878 = vmatpush1.bf16.msra.mxu0 0
        %1879 = vmatprep.subr.bf16.mxu0 0
        %1880 = vmatpush1.bf16.msra.mxu0 0
        %1881 = vmatprep.subr.bf16.mxu0 0
        %1882 = vmatpush1.bf16.msra.mxu0 0
        %1883 = vmatprep.subr.bf16.mxu0 0
        %1884 = vmatpush1.bf16.msra.mxu0 0
        %1885 = vmatprep.subr.bf16.mxu0 %v1201
        %1886 = vmatpush1.bf16.msra.mxu0 %v1198
        %1887 = vmatprep.subr.bf16.mxu0 0
        %1888 = vmatpush2.bf16.msra.mxu0 0
        %1889 = vmatprep.subr.bf16.mxu0 0
        %1890 = vmatpush2.bf16.msra.mxu0 0
        %1891 = vmatprep.subr.bf16.mxu0 0
        %1892 = vmatpush2.bf16.msra.mxu0 0
        %1893 = vmatprep.subr.bf16.mxu0 0
        %1894 = vmatpush2.bf16.msra.mxu0 0
        %1895 = vmatprep.subr.bf16.mxu0 0
        %1896 = vmatpush2.bf16.msra.mxu0 0
        %1897 = vmatprep.subr.bf16.mxu0 0
        %1898 = vmatpush2.bf16.msra.mxu0 0
        %1899 = vmatprep.subr.bf16.mxu0 0
        %1900 = vmatpush2.bf16.msra.mxu0 0
        %1901 = vmatprep.subr.bf16.mxu0 0
        %1902 = vmatpush2.bf16.msra.mxu0 0
        %1903 = vmatprep.mubr.bf16.mxu0 0
        %1904 = vmatmul.mubr.bf16.gmra.mxu0 %v1179
        %v1905 = vpop.f32.mrf.mxu0
        %v1906 = vadd.f32 %v265, %v1905
        %v1907 = vpop.f32.mrf.mxu0
        %v1908 = vadd.f32 %v265, %v1907
        %v1909 = vpop.f32.mrf.mxu0
        %v1910 = vadd.f32 %v270, %v1909
        %v1911 = vpop.f32.mrf.mxu0
        %v1912 = vadd.f32 %v270, %v1911
        %1913 = vdwg.mxu0
        %1914 = vmatprep.subr.bf16.mxu0 0
        %1915 = vmatpush1.bf16.msra.mxu0 0
        %1916 = vmatprep.subr.bf16.mxu0 0
        %1917 = vmatpush1.bf16.msra.mxu0 0
        %1918 = vmatprep.subr.bf16.mxu0 0
        %1919 = vmatpush1.bf16.msra.mxu0 0
        %1920 = vmatprep.subr.bf16.mxu0 0
        %1921 = vmatpush1.bf16.msra.mxu0 0
        %1922 = vmatprep.subr.bf16.mxu0 0
        %1923 = vmatpush1.bf16.msra.mxu0 0
        %1924 = vmatprep.subr.bf16.mxu0 0
        %1925 = vmatpush1.bf16.msra.mxu0 0
        %1926 = vmatprep.subr.bf16.mxu0 0
        %1927 = vmatpush1.bf16.msra.mxu0 0
        %1928 = vmatprep.subr.bf16.mxu0 %v1207
        %1929 = vmatpush1.bf16.msra.mxu0 %v1204
        %1930 = vmatprep.subr.bf16.mxu0 0
        %1931 = vmatpush2.bf16.msra.mxu0 0
        %1932 = vmatprep.subr.bf16.mxu0 0
        %1933 = vmatpush2.bf16.msra.mxu0 0
        %1934 = vmatprep.subr.bf16.mxu0 0
        %1935 = vmatpush2.bf16.msra.mxu0 0
        %1936 = vmatprep.subr.bf16.mxu0 0
        %1937 = vmatpush2.bf16.msra.mxu0 0
        %1938 = vmatprep.subr.bf16.mxu0 0
        %1939 = vmatpush2.bf16.msra.mxu0 0
        %1940 = vmatprep.subr.bf16.mxu0 0
        %1941 = vmatpush2.bf16.msra.mxu0 0
        %1942 = vmatprep.subr.bf16.mxu0 0
        %1943 = vmatpush2.bf16.msra.mxu0 0
        %1944 = vmatprep.subr.bf16.mxu0 0
        %1945 = vmatpush2.bf16.msra.mxu0 0
        %1946 = vmatprep.mubr.bf16.mxu0 0
        %1947 = vmatmul.mubr.bf16.gmra.mxu0 %v1179
        %v1948 = vpop.f32.mrf.mxu0
        %v1949 = vadd.f32 %v265, %v1948
        %v1950 = vpop.f32.mrf.mxu0
        %v1951 = vadd.f32 %v265, %v1950
        %v1952 = vpop.f32.mrf.mxu0
        %v1953 = vadd.f32 %v270, %v1952
        %v1954 = vpop.f32.mrf.mxu0
        %v1955 = vadd.f32 %v270, %v1954
        %1956 = vdwg.mxu0
        %1957 = vmatprep.subr.bf16.mxu0 0
        %1958 = vmatpush1.bf16.msra.mxu0 0
        %1959 = vmatprep.subr.bf16.mxu0 0
        %1960 = vmatpush1.bf16.msra.mxu0 0
        %1961 = vmatprep.subr.bf16.mxu0 0
        %1962 = vmatpush1.bf16.msra.mxu0 0
        %1963 = vmatprep.subr.bf16.mxu0 0
        %1964 = vmatpush1.bf16.msra.mxu0 0
        %1965 = vmatprep.subr.bf16.mxu0 0
        %1966 = vmatpush1.bf16.msra.mxu0 0
        %1967 = vmatprep.subr.bf16.mxu0 0
        %1968 = vmatpush1.bf16.msra.mxu0 0
        %1969 = vmatprep.subr.bf16.mxu0 0
        %1970 = vmatpush1.bf16.msra.mxu0 0
        %1971 = vmatprep.subr.bf16.mxu0 %v1213
        %1972 = vmatpush1.bf16.msra.mxu0 %v1210
        %1973 = vmatprep.subr.bf16.mxu0 0
        %1974 = vmatpush2.bf16.msra.mxu0 0
        %1975 = vmatprep.subr.bf16.mxu0 0
        %1976 = vmatpush2.bf16.msra.mxu0 0
        %1977 = vmatprep.subr.bf16.mxu0 0
        %1978 = vmatpush2.bf16.msra.mxu0 0
        %1979 = vmatprep.subr.bf16.mxu0 0
        %1980 = vmatpush2.bf16.msra.mxu0 0
        %1981 = vmatprep.subr.bf16.mxu0 0
        %1982 = vmatpush2.bf16.msra.mxu0 0
        %1983 = vmatprep.subr.bf16.mxu0 0
        %1984 = vmatpush2.bf16.msra.mxu0 0
        %1985 = vmatprep.subr.bf16.mxu0 0
        %1986 = vmatpush2.bf16.msra.mxu0 0
        %1987 = vmatprep.subr.bf16.mxu0 0
        %1988 = vmatpush2.bf16.msra.mxu0 0
        %1989 = vmatprep.mubr.bf16.mxu0 0
        %1990 = vmatmul.mubr.bf16.gmra.mxu0 %v1179
        %v1991 = vpop.f32.mrf.mxu0
        %v1992 = vadd.f32 %v265, %v1991
        %v1993 = vpop.f32.mrf.mxu0
        %v1994 = vadd.f32 %v265, %v1993
        %v1995 = vpop.f32.mrf.mxu0
        %v1996 = vadd.f32 %v270, %v1995
        %v1997 = vpop.f32.mrf.mxu0
        %v1998 = vadd.f32 %v270, %v1997
        %1999 = vdwg.mxu0
        %2000 = vmatprep.subr.bf16.mxu0 0
        %2001 = vmatpush1.bf16.msra.mxu0 0
        %2002 = vmatprep.subr.bf16.mxu0 0
        %2003 = vmatpush1.bf16.msra.mxu0 0
        %2004 = vmatprep.subr.bf16.mxu0 0
        %2005 = vmatpush1.bf16.msra.mxu0 0
        %2006 = vmatprep.subr.bf16.mxu0 0
        %2007 = vmatpush1.bf16.msra.mxu0 0
        %2008 = vmatprep.subr.bf16.mxu0 0
        %2009 = vmatpush1.bf16.msra.mxu0 0
        %2010 = vmatprep.subr.bf16.mxu0 0
        %2011 = vmatpush1.bf16.msra.mxu0 0
        %2012 = vmatprep.subr.bf16.mxu0 0
        %2013 = vmatpush1.bf16.msra.mxu0 0
        %2014 = vmatprep.subr.bf16.mxu0 %v1219
        %2015 = vmatpush1.bf16.msra.mxu0 %v1216
        %2016 = vmatprep.subr.bf16.mxu0 0
        %2017 = vmatpush2.bf16.msra.mxu0 0
        %2018 = vmatprep.subr.bf16.mxu0 0
        %2019 = vmatpush2.bf16.msra.mxu0 0
        %2020 = vmatprep.subr.bf16.mxu0 0
        %2021 = vmatpush2.bf16.msra.mxu0 0
        %2022 = vmatprep.subr.bf16.mxu0 0
        %2023 = vmatpush2.bf16.msra.mxu0 0
        %2024 = vmatprep.subr.bf16.mxu0 0
        %2025 = vmatpush2.bf16.msra.mxu0 0
        %2026 = vmatprep.subr.bf16.mxu0 0
        %2027 = vmatpush2.bf16.msra.mxu0 0
        %2028 = vmatprep.subr.bf16.mxu0 0
        %2029 = vmatpush2.bf16.msra.mxu0 0
        %2030 = vmatprep.subr.bf16.mxu0 0
        %2031 = vmatpush2.bf16.msra.mxu0 0
        %2032 = vmatprep.mubr.bf16.mxu0 0
        %2033 = vmatmul.mubr.bf16.gmra.mxu0 %v1179
        %v2034 = vpop.f32.mrf.mxu0
        %v2035 = vadd.f32 %v265, %v2034
        %v2036 = vpop.f32.mrf.mxu0
        %v2037 = vadd.f32 %v265, %v2036
        %v2038 = vpop.f32.mrf.mxu0
        %v2039 = vadd.f32 %v270, %v2038
        %v2040 = vpop.f32.mrf.mxu0
        %v2041 = vadd.f32 %v270, %v2040
        %2042 = vdwg.mxu0
        %2043 = vmatprep.subr.bf16.mxu0 0
        %2044 = vmatpush1.bf16.msra.mxu0 0
        %2045 = vmatprep.subr.bf16.mxu0 0
        %2046 = vmatpush1.bf16.msra.mxu0 0
        %2047 = vmatprep.subr.bf16.mxu0 0
        %2048 = vmatpush1.bf16.msra.mxu0 0
        %2049 = vmatprep.subr.bf16.mxu0 0
        %2050 = vmatpush1.bf16.msra.mxu0 0
        %2051 = vmatprep.subr.bf16.mxu0 0
        %2052 = vmatpush1.bf16.msra.mxu0 0
        %2053 = vmatprep.subr.bf16.mxu0 0
        %2054 = vmatpush1.bf16.msra.mxu0 0
        %2055 = vmatprep.subr.bf16.mxu0 0
        %2056 = vmatpush1.bf16.msra.mxu0 0
        %2057 = vmatprep.subr.bf16.mxu0 %v1225
        %2058 = vmatpush1.bf16.msra.mxu0 %v1222
        %2059 = vmatprep.subr.bf16.mxu0 0
        %2060 = vmatpush2.bf16.msra.mxu0 0
        %2061 = vmatprep.subr.bf16.mxu0 0
        %2062 = vmatpush2.bf16.msra.mxu0 0
        %2063 = vmatprep.subr.bf16.mxu0 0
        %2064 = vmatpush2.bf16.msra.mxu0 0
        %2065 = vmatprep.subr.bf16.mxu0 0
        %2066 = vmatpush2.bf16.msra.mxu0 0
        %2067 = vmatprep.subr.bf16.mxu0 0
        %2068 = vmatpush2.bf16.msra.mxu0 0
        %2069 = vmatprep.subr.bf16.mxu0 0
        %2070 = vmatpush2.bf16.msra.mxu0 0
        %2071 = vmatprep.subr.bf16.mxu0 0
        %2072 = vmatpush2.bf16.msra.mxu0 0
        %2073 = vmatprep.subr.bf16.mxu0 0
        %2074 = vmatpush2.bf16.msra.mxu0 0
        %2075 = vmatprep.mubr.bf16.mxu0 0
        %2076 = vmatmul.mubr.bf16.gmra.mxu0 %v1179
        %v2077 = vpop.f32.mrf.mxu0
        %v2078 = vadd.f32 %v265, %v2077
        %v2079 = vpop.f32.mrf.mxu0
        %v2080 = vadd.f32 %v265, %v2079
        %v2081 = vpop.f32.mrf.mxu0
        %v2082 = vadd.f32 %v270, %v2081
        %v2083 = vpop.f32.mrf.mxu0
        %v2084 = vadd.f32 %v270, %v2083
        %2085 = vdwg.mxu0
        %2086 = vmatprep.subr.bf16.mxu0 0
        %2087 = vmatpush1.bf16.msra.mxu0 0
        %2088 = vmatprep.subr.bf16.mxu0 0
        %2089 = vmatpush1.bf16.msra.mxu0 0
        %2090 = vmatprep.subr.bf16.mxu0 0
        %2091 = vmatpush1.bf16.msra.mxu0 0
        %2092 = vmatprep.subr.bf16.mxu0 0
        %2093 = vmatpush1.bf16.msra.mxu0 0
        %2094 = vmatprep.subr.bf16.mxu0 0
        %2095 = vmatpush1.bf16.msra.mxu0 0
        %2096 = vmatprep.subr.bf16.mxu0 0
        %2097 = vmatpush1.bf16.msra.mxu0 0
        %2098 = vmatprep.subr.bf16.mxu0 0
        %2099 = vmatpush1.bf16.msra.mxu0 0
        %2100 = vmatprep.subr.bf16.mxu0 %v1231
        %2101 = vmatpush1.bf16.msra.mxu0 %v1228
        %2102 = vmatprep.subr.bf16.mxu0 0
        %2103 = vmatpush2.bf16.msra.mxu0 0
        %2104 = vmatprep.subr.bf16.mxu0 0
        %2105 = vmatpush2.bf16.msra.mxu0 0
        %2106 = vmatprep.subr.bf16.mxu0 0
        %2107 = vmatpush2.bf16.msra.mxu0 0
        %2108 = vmatprep.subr.bf16.mxu0 0
        %2109 = vmatpush2.bf16.msra.mxu0 0
        %2110 = vmatprep.subr.bf16.mxu0 0
        %2111 = vmatpush2.bf16.msra.mxu0 0
        %2112 = vmatprep.subr.bf16.mxu0 0
        %2113 = vmatpush2.bf16.msra.mxu0 0
        %2114 = vmatprep.subr.bf16.mxu0 0
        %2115 = vmatpush2.bf16.msra.mxu0 0
        %2116 = vmatprep.subr.bf16.mxu0 0
        %2117 = vmatpush2.bf16.msra.mxu0 0
        %2118 = vmatprep.mubr.bf16.mxu0 0
        %2119 = vmatmul.mubr.bf16.gmra.mxu0 %v1179
        %v2120 = vpop.f32.mrf.mxu0
        %v2121 = vadd.f32 %v265, %v2120
        %v2122 = vpop.f32.mrf.mxu0
        %v2123 = vadd.f32 %v265, %v2122
        %v2124 = vpop.f32.mrf.mxu0
        %v2125 = vadd.f32 %v270, %v2124
        %v2126 = vpop.f32.mrf.mxu0
        %v2127 = vadd.f32 %v270, %v2126
        %2128 = vdwg.mxu0
        %2129 = vmatprep.subr.bf16.mxu0 0
        %2130 = vmatpush1.bf16.msra.mxu0 0
        %2131 = vmatprep.subr.bf16.mxu0 0
        %2132 = vmatpush1.bf16.msra.mxu0 0
        %2133 = vmatprep.subr.bf16.mxu0 0
        %2134 = vmatpush1.bf16.msra.mxu0 0
        %2135 = vmatprep.subr.bf16.mxu0 0
        %2136 = vmatpush1.bf16.msra.mxu0 0
        %2137 = vmatprep.subr.bf16.mxu0 0
        %2138 = vmatpush1.bf16.msra.mxu0 0
        %2139 = vmatprep.subr.bf16.mxu0 0
        %2140 = vmatpush1.bf16.msra.mxu0 0
        %2141 = vmatprep.subr.bf16.mxu0 0
        %2142 = vmatpush1.bf16.msra.mxu0 0
        %2143 = vmatprep.subr.bf16.mxu0 %v1237
        %2144 = vmatpush1.bf16.msra.mxu0 %v1234
        %2145 = vmatprep.subr.bf16.mxu0 0
        %2146 = vmatpush2.bf16.msra.mxu0 0
        %2147 = vmatprep.subr.bf16.mxu0 0
        %2148 = vmatpush2.bf16.msra.mxu0 0
        %2149 = vmatprep.subr.bf16.mxu0 0
        %2150 = vmatpush2.bf16.msra.mxu0 0
        %2151 = vmatprep.subr.bf16.mxu0 0
        %2152 = vmatpush2.bf16.msra.mxu0 0
        %2153 = vmatprep.subr.bf16.mxu0 0
        %2154 = vmatpush2.bf16.msra.mxu0 0
        %2155 = vmatprep.subr.bf16.mxu0 0
        %2156 = vmatpush2.bf16.msra.mxu0 0
        %2157 = vmatprep.subr.bf16.mxu0 0
        %2158 = vmatpush2.bf16.msra.mxu0 0
        %2159 = vmatprep.subr.bf16.mxu0 0
        %2160 = vmatpush2.bf16.msra.mxu0 0
        %2161 = vmatprep.mubr.bf16.mxu0 0
        %2162 = vmatmul.mubr.bf16.gmra.mxu0 %v1179
        %v2163 = vpop.f32.mrf.mxu0
        %v2164 = vadd.f32 %v265, %v2163
        %v2165 = vpop.f32.mrf.mxu0
        %v2166 = vadd.f32 %v265, %v2165
        %v2167 = vpop.f32.mrf.mxu0
        %v2168 = vadd.f32 %v270, %v2167
        %v2169 = vpop.f32.mrf.mxu0
        %v2170 = vadd.f32 %v270, %v2169
        %2171 = vdwg.mxu0
        %2172 = vmatprep.subr.bf16.mxu0 0
        %2173 = vmatpush1.bf16.msra.mxu0 0
        %2174 = vmatprep.subr.bf16.mxu0 0
        %2175 = vmatpush1.bf16.msra.mxu0 0
        %2176 = vmatprep.subr.bf16.mxu0 0
        %2177 = vmatpush1.bf16.msra.mxu0 0
        %2178 = vmatprep.subr.bf16.mxu0 0
        %2179 = vmatpush1.bf16.msra.mxu0 0
        %2180 = vmatprep.subr.bf16.mxu0 0
        %2181 = vmatpush1.bf16.msra.mxu0 0
        %2182 = vmatprep.subr.bf16.mxu0 0
        %2183 = vmatpush1.bf16.msra.mxu0 0
        %2184 = vmatprep.subr.bf16.mxu0 0
        %2185 = vmatpush1.bf16.msra.mxu0 0
        %2186 = vmatprep.subr.bf16.mxu0 %v1243
        %2187 = vmatpush1.bf16.msra.mxu0 %v1240
        %2188 = vmatprep.subr.bf16.mxu0 0
        %2189 = vmatpush2.bf16.msra.mxu0 0
        %2190 = vmatprep.subr.bf16.mxu0 0
        %2191 = vmatpush2.bf16.msra.mxu0 0
        %2192 = vmatprep.subr.bf16.mxu0 0
        %2193 = vmatpush2.bf16.msra.mxu0 0
        %2194 = vmatprep.subr.bf16.mxu0 0
        %2195 = vmatpush2.bf16.msra.mxu0 0
        %2196 = vmatprep.subr.bf16.mxu0 0
        %2197 = vmatpush2.bf16.msra.mxu0 0
        %2198 = vmatprep.subr.bf16.mxu0 0
        %2199 = vmatpush2.bf16.msra.mxu0 0
        %2200 = vmatprep.subr.bf16.mxu0 0
        %2201 = vmatpush2.bf16.msra.mxu0 0
        %2202 = vmatprep.subr.bf16.mxu0 0
        %2203 = vmatpush2.bf16.msra.mxu0 0
        %2204 = vmatprep.mubr.bf16.mxu0 0
        %2205 = vmatmul.mubr.bf16.gmra.mxu0 %v1179
        %v2206 = vpop.f32.mrf.mxu0
        %v2207 = vadd.f32 %v265, %v2206
        %v2208 = vpop.f32.mrf.mxu0
        %v2209 = vadd.f32 %v265, %v2208
        %v2210 = vpop.f32.mrf.mxu0
        %v2211 = vadd.f32 %v270, %v2210
        %v2212 = vpop.f32.mrf.mxu0
        %v2213 = vadd.f32 %v270, %v2212
        %2214 = vdwg.mxu0
        %2215 = vmatprep.subr.bf16.mxu0 0
        %2216 = vmatpush1.bf16.msra.mxu0 0
        %2217 = vmatprep.subr.bf16.mxu0 0
        %2218 = vmatpush1.bf16.msra.mxu0 0
        %2219 = vmatprep.subr.bf16.mxu0 0
        %2220 = vmatpush1.bf16.msra.mxu0 0
        %2221 = vmatprep.subr.bf16.mxu0 0
        %2222 = vmatpush1.bf16.msra.mxu0 0
        %2223 = vmatprep.subr.bf16.mxu0 0
        %2224 = vmatpush1.bf16.msra.mxu0 0
        %2225 = vmatprep.subr.bf16.mxu0 0
        %2226 = vmatpush1.bf16.msra.mxu0 0
        %2227 = vmatprep.subr.bf16.mxu0 0
        %2228 = vmatpush1.bf16.msra.mxu0 0
        %2229 = vmatprep.subr.bf16.mxu0 %v1249
        %2230 = vmatpush1.bf16.msra.mxu0 %v1246
        %2231 = vmatprep.subr.bf16.mxu0 0
        %2232 = vmatpush2.bf16.msra.mxu0 0
        %2233 = vmatprep.subr.bf16.mxu0 0
        %2234 = vmatpush2.bf16.msra.mxu0 0
        %2235 = vmatprep.subr.bf16.mxu0 0
        %2236 = vmatpush2.bf16.msra.mxu0 0
        %2237 = vmatprep.subr.bf16.mxu0 0
        %2238 = vmatpush2.bf16.msra.mxu0 0
        %2239 = vmatprep.subr.bf16.mxu0 0
        %2240 = vmatpush2.bf16.msra.mxu0 0
        %2241 = vmatprep.subr.bf16.mxu0 0
        %2242 = vmatpush2.bf16.msra.mxu0 0
        %2243 = vmatprep.subr.bf16.mxu0 0
        %2244 = vmatpush2.bf16.msra.mxu0 0
        %2245 = vmatprep.subr.bf16.mxu0 0
        %2246 = vmatpush2.bf16.msra.mxu0 0
        %2247 = vmatprep.mubr.bf16.mxu0 0
        %2248 = vmatmul.mubr.bf16.gmra.mxu0 %v1179
        %v2249 = vpop.f32.mrf.mxu0
        %v2250 = vadd.f32 %v265, %v2249
        %v2251 = vpop.f32.mrf.mxu0
        %v2252 = vadd.f32 %v265, %v2251
        %v2253 = vpop.f32.mrf.mxu0
        %v2254 = vadd.f32 %v270, %v2253
        %v2255 = vpop.f32.mrf.mxu0
        %v2256 = vadd.f32 %v270, %v2255
        %2257 = vdwg.mxu0
        %2258 = vmatprep.subr.bf16.mxu0 0
        %2259 = vmatpush1.bf16.msra.mxu0 0
        %2260 = vmatprep.subr.bf16.mxu0 0
        %2261 = vmatpush1.bf16.msra.mxu0 0
        %2262 = vmatprep.subr.bf16.mxu0 0
        %2263 = vmatpush1.bf16.msra.mxu0 0
        %2264 = vmatprep.subr.bf16.mxu0 0
        %2265 = vmatpush1.bf16.msra.mxu0 0
        %2266 = vmatprep.subr.bf16.mxu0 0
        %2267 = vmatpush1.bf16.msra.mxu0 0
        %2268 = vmatprep.subr.bf16.mxu0 0
        %2269 = vmatpush1.bf16.msra.mxu0 0
        %2270 = vmatprep.subr.bf16.mxu0 0
        %2271 = vmatpush1.bf16.msra.mxu0 0
        %2272 = vmatprep.subr.bf16.mxu0 %v1255
        %2273 = vmatpush1.bf16.msra.mxu0 %v1252
        %2274 = vmatprep.subr.bf16.mxu0 0
        %2275 = vmatpush2.bf16.msra.mxu0 0
        %2276 = vmatprep.subr.bf16.mxu0 0
        %2277 = vmatpush2.bf16.msra.mxu0 0
        %2278 = vmatprep.subr.bf16.mxu0 0
        %2279 = vmatpush2.bf16.msra.mxu0 0
        %2280 = vmatprep.subr.bf16.mxu0 0
        %2281 = vmatpush2.bf16.msra.mxu0 0
        %2282 = vmatprep.subr.bf16.mxu0 0
        %2283 = vmatpush2.bf16.msra.mxu0 0
        %2284 = vmatprep.subr.bf16.mxu0 0
        %2285 = vmatpush2.bf16.msra.mxu0 0
        %2286 = vmatprep.subr.bf16.mxu0 0
        %2287 = vmatpush2.bf16.msra.mxu0 0
        %2288 = vmatprep.subr.bf16.mxu0 0
        %2289 = vmatpush2.bf16.msra.mxu0 0
        %2290 = vmatprep.mubr.bf16.mxu0 0
        %2291 = vmatmul.mubr.bf16.gmra.mxu0 %v1179
        %v2292 = vpop.f32.mrf.mxu0
        %v2293 = vadd.f32 %v265, %v2292
        %v2294 = vpop.f32.mrf.mxu0
        %v2295 = vadd.f32 %v265, %v2294
        %v2296 = vpop.f32.mrf.mxu0
        %v2297 = vadd.f32 %v270, %v2296
        %v2298 = vpop.f32.mrf.mxu0
        %v2299 = vadd.f32 %v270, %v2298
        %2300 = vdwg.mxu0
        %2301 = vmatprep.subr.bf16.mxu0 0
        %2302 = vmatpush1.bf16.msra.mxu0 0
        %2303 = vmatprep.subr.bf16.mxu0 0
        %2304 = vmatpush1.bf16.msra.mxu0 0
        %2305 = vmatprep.subr.bf16.mxu0 0
        %2306 = vmatpush1.bf16.msra.mxu0 0
        %2307 = vmatprep.subr.bf16.mxu0 0
        %2308 = vmatpush1.bf16.msra.mxu0 0
        %2309 = vmatprep.subr.bf16.mxu0 0
        %2310 = vmatpush1.bf16.msra.mxu0 0
        %2311 = vmatprep.subr.bf16.mxu0 0
        %2312 = vmatpush1.bf16.msra.mxu0 0
        %2313 = vmatprep.subr.bf16.mxu0 0
        %2314 = vmatpush1.bf16.msra.mxu0 0
        %2315 = vmatprep.subr.bf16.mxu0 %v1261
        %2316 = vmatpush1.bf16.msra.mxu0 %v1258
        %2317 = vmatprep.subr.bf16.mxu0 0
        %2318 = vmatpush2.bf16.msra.mxu0 0
        %2319 = vmatprep.subr.bf16.mxu0 0
        %2320 = vmatpush2.bf16.msra.mxu0 0
        %2321 = vmatprep.subr.bf16.mxu0 0
        %2322 = vmatpush2.bf16.msra.mxu0 0
        %2323 = vmatprep.subr.bf16.mxu0 0
        %2324 = vmatpush2.bf16.msra.mxu0 0
        %2325 = vmatprep.subr.bf16.mxu0 0
        %2326 = vmatpush2.bf16.msra.mxu0 0
        %2327 = vmatprep.subr.bf16.mxu0 0
        %2328 = vmatpush2.bf16.msra.mxu0 0
        %2329 = vmatprep.subr.bf16.mxu0 0
        %2330 = vmatpush2.bf16.msra.mxu0 0
        %2331 = vmatprep.subr.bf16.mxu0 0
        %2332 = vmatpush2.bf16.msra.mxu0 0
        %2333 = vmatprep.mubr.bf16.mxu0 0
        %2334 = vmatmul.mubr.bf16.gmra.mxu0 %v1179
        %v2335 = vpop.f32.mrf.mxu0
        %v2336 = vadd.f32 %v265, %v2335
        %v2337 = vpop.f32.mrf.mxu0
        %v2338 = vadd.f32 %v265, %v2337
        %v2339 = vpop.f32.mrf.mxu0
        %v2340 = vadd.f32 %v270, %v2339
        %v2341 = vpop.f32.mrf.mxu0
        %v2342 = vadd.f32 %v270, %v2341
        %2343 = vdwg.mxu0
        %2344 = vmatprep.subr.bf16.mxu0 0
        %2345 = vmatpush1.bf16.msra.mxu0 0
        %2346 = vmatprep.subr.bf16.mxu0 0
        %2347 = vmatpush1.bf16.msra.mxu0 0
        %2348 = vmatprep.subr.bf16.mxu0 0
        %2349 = vmatpush1.bf16.msra.mxu0 0
        %2350 = vmatprep.subr.bf16.mxu0 0
        %2351 = vmatpush1.bf16.msra.mxu0 0
        %2352 = vmatprep.subr.bf16.mxu0 0
        %2353 = vmatpush1.bf16.msra.mxu0 0
        %2354 = vmatprep.subr.bf16.mxu0 0
        %2355 = vmatpush1.bf16.msra.mxu0 0
        %2356 = vmatprep.subr.bf16.mxu0 0
        %2357 = vmatpush1.bf16.msra.mxu0 0
        %2358 = vmatprep.subr.bf16.mxu0 %v1267
        %2359 = vmatpush1.bf16.msra.mxu0 %v1264
        %2360 = vmatprep.subr.bf16.mxu0 0
        %2361 = vmatpush2.bf16.msra.mxu0 0
        %2362 = vmatprep.subr.bf16.mxu0 0
        %2363 = vmatpush2.bf16.msra.mxu0 0
        %2364 = vmatprep.subr.bf16.mxu0 0
        %2365 = vmatpush2.bf16.msra.mxu0 0
        %2366 = vmatprep.subr.bf16.mxu0 0
        %2367 = vmatpush2.bf16.msra.mxu0 0
        %2368 = vmatprep.subr.bf16.mxu0 0
        %2369 = vmatpush2.bf16.msra.mxu0 0
        %2370 = vmatprep.subr.bf16.mxu0 0
        %2371 = vmatpush2.bf16.msra.mxu0 0
        %2372 = vmatprep.subr.bf16.mxu0 0
        %2373 = vmatpush2.bf16.msra.mxu0 0
        %2374 = vmatprep.subr.bf16.mxu0 0
        %2375 = vmatpush2.bf16.msra.mxu0 0
        %2376 = vmatprep.mubr.bf16.mxu0 0
        %2377 = vmatmul.mubr.bf16.gmra.mxu0 %v1179
        %v2378 = vpop.f32.mrf.mxu0
        %v2379 = vadd.f32 %v265, %v2378
        %v2380 = vpop.f32.mrf.mxu0
        %v2381 = vadd.f32 %v265, %v2380
        %v2382 = vpop.f32.mrf.mxu0
        %v2383 = vadd.f32 %v270, %v2382
        %v2384 = vpop.f32.mrf.mxu0
        %v2385 = vadd.f32 %v270, %v2384
        %2386 = vdwg.mxu0
        %2387 = vmatprep.subr.bf16.mxu0 0
        %2388 = vmatpush1.bf16.msra.mxu0 0
        %2389 = vmatprep.subr.bf16.mxu0 0
        %2390 = vmatpush1.bf16.msra.mxu0 0
        %2391 = vmatprep.subr.bf16.mxu0 0
        %2392 = vmatpush1.bf16.msra.mxu0 0
        %2393 = vmatprep.subr.bf16.mxu0 0
        %2394 = vmatpush1.bf16.msra.mxu0 0
        %2395 = vmatprep.subr.bf16.mxu0 0
        %2396 = vmatpush1.bf16.msra.mxu0 0
        %2397 = vmatprep.subr.bf16.mxu0 0
        %2398 = vmatpush1.bf16.msra.mxu0 0
        %2399 = vmatprep.subr.bf16.mxu0 0
        %2400 = vmatpush1.bf16.msra.mxu0 0
        %2401 = vmatprep.subr.bf16.mxu0 %v1273
        %2402 = vmatpush1.bf16.msra.mxu0 %v1270
        %2403 = vmatprep.subr.bf16.mxu0 0
        %2404 = vmatpush2.bf16.msra.mxu0 0
        %2405 = vmatprep.subr.bf16.mxu0 0
        %2406 = vmatpush2.bf16.msra.mxu0 0
        %2407 = vmatprep.subr.bf16.mxu0 0
        %2408 = vmatpush2.bf16.msra.mxu0 0
        %2409 = vmatprep.subr.bf16.mxu0 0
        %2410 = vmatpush2.bf16.msra.mxu0 0
        %2411 = vmatprep.subr.bf16.mxu0 0
        %2412 = vmatpush2.bf16.msra.mxu0 0
        %2413 = vmatprep.subr.bf16.mxu0 0
        %2414 = vmatpush2.bf16.msra.mxu0 0
        %2415 = vmatprep.subr.bf16.mxu0 0
        %2416 = vmatpush2.bf16.msra.mxu0 0
        %2417 = vmatprep.subr.bf16.mxu0 0
        %2418 = vmatpush2.bf16.msra.mxu0 0
        %2419 = vmatprep.mubr.bf16.mxu0 0
        %2420 = vmatmul.mubr.bf16.gmra.mxu0 %v1179
        %v2421 = vpop.f32.mrf.mxu0
        %v2422 = vadd.f32 %v265, %v2421
        %v2423 = vpop.f32.mrf.mxu0
        %v2424 = vadd.f32 %v265, %v2423
        %v2425 = vpop.f32.mrf.mxu0
        %v2426 = vadd.f32 %v270, %v2425
        %v2427 = vpop.f32.mrf.mxu0
        %v2428 = vadd.f32 %v270, %v2427
        %2429 = vdwg.mxu0
        %2430 = vmatprep.subr.bf16.mxu0 0
        %2431 = vmatpush1.bf16.msra.mxu0 0
        %2432 = vmatprep.subr.bf16.mxu0 0
        %2433 = vmatpush1.bf16.msra.mxu0 0
        %2434 = vmatprep.subr.bf16.mxu0 0
        %2435 = vmatpush1.bf16.msra.mxu0 0
        %2436 = vmatprep.subr.bf16.mxu0 0
        %2437 = vmatpush1.bf16.msra.mxu0 0
        %2438 = vmatprep.subr.bf16.mxu0 0
        %2439 = vmatpush1.bf16.msra.mxu0 0
        %2440 = vmatprep.subr.bf16.mxu0 0
        %2441 = vmatpush1.bf16.msra.mxu0 0
        %2442 = vmatprep.subr.bf16.mxu0 0
        %2443 = vmatpush1.bf16.msra.mxu0 0
        %2444 = vmatprep.subr.bf16.mxu0 %v1279
        %2445 = vmatpush1.bf16.msra.mxu0 %v1276
        %2446 = vmatprep.subr.bf16.mxu0 0
        %2447 = vmatpush2.bf16.msra.mxu0 0
        %2448 = vmatprep.subr.bf16.mxu0 0
        %2449 = vmatpush2.bf16.msra.mxu0 0
        %2450 = vmatprep.subr.bf16.mxu0 0
        %2451 = vmatpush2.bf16.msra.mxu0 0
        %2452 = vmatprep.subr.bf16.mxu0 0
        %2453 = vmatpush2.bf16.msra.mxu0 0
        %2454 = vmatprep.subr.bf16.mxu0 0
        %2455 = vmatpush2.bf16.msra.mxu0 0
        %2456 = vmatprep.subr.bf16.mxu0 0
        %2457 = vmatpush2.bf16.msra.mxu0 0
        %2458 = vmatprep.subr.bf16.mxu0 0
        %2459 = vmatpush2.bf16.msra.mxu0 0
        %2460 = vmatprep.subr.bf16.mxu0 0
        %2461 = vmatpush2.bf16.msra.mxu0 0
        %2462 = vmatprep.mubr.bf16.mxu0 0
        %2463 = vmatmul.mubr.bf16.gmra.mxu0 %v1179
        %v2464 = vpop.f32.mrf.mxu0
        %v2465 = vadd.f32 %v265, %v2464
        %v2466 = vpop.f32.mrf.mxu0
        %v2467 = vadd.f32 %v265, %v2466
        %v2468 = vpop.f32.mrf.mxu0
        %v2469 = vadd.f32 %v270, %v2468
        %v2470 = vpop.f32.mrf.mxu0
        %v2471 = vadd.f32 %v270, %v2470
        %2472 = vdwg.mxu0
        %2473 = vmatprep.subr.bf16.mxu0 0
        %2474 = vmatpush1.bf16.msra.mxu0 0
        %2475 = vmatprep.subr.bf16.mxu0 0
        %2476 = vmatpush1.bf16.msra.mxu0 0
        %2477 = vmatprep.subr.bf16.mxu0 0
        %2478 = vmatpush1.bf16.msra.mxu0 0
        %2479 = vmatprep.subr.bf16.mxu0 0
        %2480 = vmatpush1.bf16.msra.mxu0 0
        %2481 = vmatprep.subr.bf16.mxu0 0
        %2482 = vmatpush1.bf16.msra.mxu0 0
        %2483 = vmatprep.subr.bf16.mxu0 0
        %2484 = vmatpush1.bf16.msra.mxu0 0
        %2485 = vmatprep.subr.bf16.mxu0 0
        %2486 = vmatpush1.bf16.msra.mxu0 0
        %2487 = vmatprep.subr.bf16.mxu0 %v1285
        %2488 = vmatpush1.bf16.msra.mxu0 %v1282
        %2489 = vmatprep.subr.bf16.mxu0 0
        %2490 = vmatpush2.bf16.msra.mxu0 0
        %2491 = vmatprep.subr.bf16.mxu0 0
        %2492 = vmatpush2.bf16.msra.mxu0 0
        %2493 = vmatprep.subr.bf16.mxu0 0
        %2494 = vmatpush2.bf16.msra.mxu0 0
        %2495 = vmatprep.subr.bf16.mxu0 0
        %2496 = vmatpush2.bf16.msra.mxu0 0
        %2497 = vmatprep.subr.bf16.mxu0 0
        %2498 = vmatpush2.bf16.msra.mxu0 0
        %2499 = vmatprep.subr.bf16.mxu0 0
        %2500 = vmatpush2.bf16.msra.mxu0 0
        %2501 = vmatprep.subr.bf16.mxu0 0
        %2502 = vmatpush2.bf16.msra.mxu0 0
        %2503 = vmatprep.subr.bf16.mxu0 0
        %2504 = vmatpush2.bf16.msra.mxu0 0
        %2505 = vmatprep.mubr.bf16.mxu0 0
        %2506 = vmatmul.mubr.bf16.gmra.mxu0 %v1179
        %v2507 = vpop.f32.mrf.mxu0
        %v2508 = vadd.f32 %v265, %v2507
        %v2509 = vpop.f32.mrf.mxu0
        %v2510 = vadd.f32 %v265, %v2509
        %v2511 = vpop.f32.mrf.mxu0
        %v2512 = vadd.f32 %v270, %v2511
        %v2513 = vpop.f32.mrf.mxu0
        %v2514 = vadd.f32 %v270, %v2513
        %2515 = vdwg.mxu0
        %2516 = vmatprep.subr.bf16.mxu0 0
        %2517 = vmatpush1.bf16.msra.mxu0 0
        %2518 = vmatprep.subr.bf16.mxu0 0
        %2519 = vmatpush1.bf16.msra.mxu0 0
        %2520 = vmatprep.subr.bf16.mxu0 0
        %2521 = vmatpush1.bf16.msra.mxu0 0
        %2522 = vmatprep.subr.bf16.mxu0 0
        %2523 = vmatpush1.bf16.msra.mxu0 0
        %2524 = vmatprep.subr.bf16.mxu0 0
        %2525 = vmatpush1.bf16.msra.mxu0 0
        %2526 = vmatprep.subr.bf16.mxu0 0
        %2527 = vmatpush1.bf16.msra.mxu0 0
        %2528 = vmatprep.subr.bf16.mxu0 0
        %2529 = vmatpush1.bf16.msra.mxu0 0
        %2530 = vmatprep.subr.bf16.mxu0 %v1291
        %2531 = vmatpush1.bf16.msra.mxu0 %v1288
        %2532 = vmatprep.subr.bf16.mxu0 0
        %2533 = vmatpush2.bf16.msra.mxu0 0
        %2534 = vmatprep.subr.bf16.mxu0 0
        %2535 = vmatpush2.bf16.msra.mxu0 0
        %2536 = vmatprep.subr.bf16.mxu0 0
        %2537 = vmatpush2.bf16.msra.mxu0 0
        %2538 = vmatprep.subr.bf16.mxu0 0
        %2539 = vmatpush2.bf16.msra.mxu0 0
        %2540 = vmatprep.subr.bf16.mxu0 0
        %2541 = vmatpush2.bf16.msra.mxu0 0
        %2542 = vmatprep.subr.bf16.mxu0 0
        %2543 = vmatpush2.bf16.msra.mxu0 0
        %2544 = vmatprep.subr.bf16.mxu0 0
        %2545 = vmatpush2.bf16.msra.mxu0 0
        %2546 = vmatprep.subr.bf16.mxu0 0
        %2547 = vmatpush2.bf16.msra.mxu0 0
        %2548 = vmatprep.mubr.bf16.mxu0 0
        %2549 = vmatmul.mubr.bf16.gmra.mxu0 %v1179
        %v2550 = vpop.f32.mrf.mxu0
        %v2551 = vadd.f32 %v265, %v2550
        %v2552 = vpop.f32.mrf.mxu0
        %v2553 = vadd.f32 %v265, %v2552
        %v2554 = vpop.f32.mrf.mxu0
        %v2555 = vadd.f32 %v270, %v2554
        %v2556 = vpop.f32.mrf.mxu0
        %v2557 = vadd.f32 %v270, %v2556
        %2558 = vdwg.mxu0
        %2559 = vmatprep.subr.bf16.mxu0 0
        %2560 = vmatpush1.bf16.msra.mxu0 0
        %2561 = vmatprep.subr.bf16.mxu0 0
        %2562 = vmatpush1.bf16.msra.mxu0 0
        %2563 = vmatprep.subr.bf16.mxu0 0
        %2564 = vmatpush1.bf16.msra.mxu0 0
        %2565 = vmatprep.subr.bf16.mxu0 0
        %2566 = vmatpush1.bf16.msra.mxu0 0
        %2567 = vmatprep.subr.bf16.mxu0 0
        %2568 = vmatpush1.bf16.msra.mxu0 0
        %2569 = vmatprep.subr.bf16.mxu0 0
        %2570 = vmatpush1.bf16.msra.mxu0 0
        %2571 = vmatprep.subr.bf16.mxu0 0
        %2572 = vmatpush1.bf16.msra.mxu0 0
        %2573 = vmatprep.subr.bf16.mxu0 %v1297
        %2574 = vmatpush1.bf16.msra.mxu0 %v1294
        %2575 = vmatprep.subr.bf16.mxu0 0
        %2576 = vmatpush2.bf16.msra.mxu0 0
        %2577 = vmatprep.subr.bf16.mxu0 0
        %2578 = vmatpush2.bf16.msra.mxu0 0
        %2579 = vmatprep.subr.bf16.mxu0 0
        %2580 = vmatpush2.bf16.msra.mxu0 0
        %2581 = vmatprep.subr.bf16.mxu0 0
        %2582 = vmatpush2.bf16.msra.mxu0 0
        %2583 = vmatprep.subr.bf16.mxu0 0
        %2584 = vmatpush2.bf16.msra.mxu0 0
        %2585 = vmatprep.subr.bf16.mxu0 0
        %2586 = vmatpush2.bf16.msra.mxu0 0
        %2587 = vmatprep.subr.bf16.mxu0 0
        %2588 = vmatpush2.bf16.msra.mxu0 0
        %2589 = vmatprep.subr.bf16.mxu0 0
        %2590 = vmatpush2.bf16.msra.mxu0 0
        %2591 = vmatprep.mubr.bf16.mxu0 0
        %2592 = vmatmul.mubr.bf16.gmra.mxu0 %v1179
        %v2593 = vpop.f32.mrf.mxu0
        %v2594 = vadd.f32 %v265, %v2593
        %v2595 = vpop.f32.mrf.mxu0
        %v2596 = vadd.f32 %v265, %v2595
        %v2597 = vpop.f32.mrf.mxu0
        %v2598 = vadd.f32 %v270, %v2597
        %v2599 = vpop.f32.mrf.mxu0
        %v2600 = vadd.f32 %v270, %v2599
        %2601 = vdwg.mxu0
        %2602 = vmatprep.subr.bf16.mxu0 0
        %2603 = vmatpush1.bf16.msra.mxu0 0
        %2604 = vmatprep.subr.bf16.mxu0 0
        %2605 = vmatpush1.bf16.msra.mxu0 0
        %2606 = vmatprep.subr.bf16.mxu0 0
        %2607 = vmatpush1.bf16.msra.mxu0 0
        %2608 = vmatprep.subr.bf16.mxu0 0
        %2609 = vmatpush1.bf16.msra.mxu0 0
        %2610 = vmatprep.subr.bf16.mxu0 0
        %2611 = vmatpush1.bf16.msra.mxu0 0
        %2612 = vmatprep.subr.bf16.mxu0 0
        %2613 = vmatpush1.bf16.msra.mxu0 0
        %2614 = vmatprep.subr.bf16.mxu0 0
        %2615 = vmatpush1.bf16.msra.mxu0 0
        %2616 = vmatprep.subr.bf16.mxu0 %v1303
        %2617 = vmatpush1.bf16.msra.mxu0 %v1300
        %2618 = vmatprep.subr.bf16.mxu0 0
        %2619 = vmatpush2.bf16.msra.mxu0 0
        %2620 = vmatprep.subr.bf16.mxu0 0
        %2621 = vmatpush2.bf16.msra.mxu0 0
        %2622 = vmatprep.subr.bf16.mxu0 0
        %2623 = vmatpush2.bf16.msra.mxu0 0
        %2624 = vmatprep.subr.bf16.mxu0 0
        %2625 = vmatpush2.bf16.msra.mxu0 0
        %2626 = vmatprep.subr.bf16.mxu0 0
        %2627 = vmatpush2.bf16.msra.mxu0 0
        %2628 = vmatprep.subr.bf16.mxu0 0
        %2629 = vmatpush2.bf16.msra.mxu0 0
        %2630 = vmatprep.subr.bf16.mxu0 0
        %2631 = vmatpush2.bf16.msra.mxu0 0
        %2632 = vmatprep.subr.bf16.mxu0 0
        %2633 = vmatpush2.bf16.msra.mxu0 0
        %2634 = vmatprep.mubr.bf16.mxu0 0
        %2635 = vmatmul.mubr.bf16.gmra.mxu0 %v1179
        %v2636 = vpop.f32.mrf.mxu0
        %v2637 = vadd.f32 %v265, %v2636
        %v2638 = vpop.f32.mrf.mxu0
        %v2639 = vadd.f32 %v265, %v2638
        %v2640 = vpop.f32.mrf.mxu0
        %v2641 = vadd.f32 %v270, %v2640
        %v2642 = vpop.f32.mrf.mxu0
        %v2643 = vadd.f32 %v270, %v2642
        %2644 = vdwg.mxu0
        %2645 = vmatprep.subr.bf16.mxu0 0
        %2646 = vmatpush1.bf16.msra.mxu0 0
        %2647 = vmatprep.subr.bf16.mxu0 0
        %2648 = vmatpush1.bf16.msra.mxu0 0
        %2649 = vmatprep.subr.bf16.mxu0 0
        %2650 = vmatpush1.bf16.msra.mxu0 0
        %2651 = vmatprep.subr.bf16.mxu0 0
        %2652 = vmatpush1.bf16.msra.mxu0 0
        %2653 = vmatprep.subr.bf16.mxu0 0
        %2654 = vmatpush1.bf16.msra.mxu0 0
        %2655 = vmatprep.subr.bf16.mxu0 0
        %2656 = vmatpush1.bf16.msra.mxu0 0
        %2657 = vmatprep.subr.bf16.mxu0 0
        %2658 = vmatpush1.bf16.msra.mxu0 0
        %2659 = vmatprep.subr.bf16.mxu0 %v1309
        %2660 = vmatpush1.bf16.msra.mxu0 %v1306
        %2661 = vmatprep.subr.bf16.mxu0 0
        %2662 = vmatpush2.bf16.msra.mxu0 0
        %2663 = vmatprep.subr.bf16.mxu0 0
        %2664 = vmatpush2.bf16.msra.mxu0 0
        %2665 = vmatprep.subr.bf16.mxu0 0
        %2666 = vmatpush2.bf16.msra.mxu0 0
        %2667 = vmatprep.subr.bf16.mxu0 0
        %2668 = vmatpush2.bf16.msra.mxu0 0
        %2669 = vmatprep.subr.bf16.mxu0 0
        %2670 = vmatpush2.bf16.msra.mxu0 0
        %2671 = vmatprep.subr.bf16.mxu0 0
        %2672 = vmatpush2.bf16.msra.mxu0 0
        %2673 = vmatprep.subr.bf16.mxu0 0
        %2674 = vmatpush2.bf16.msra.mxu0 0
        %2675 = vmatprep.subr.bf16.mxu0 0
        %2676 = vmatpush2.bf16.msra.mxu0 0
        %2677 = vmatprep.mubr.bf16.mxu0 0
        %2678 = vmatmul.mubr.bf16.gmra.mxu0 %v1179
        %v2679 = vpop.f32.mrf.mxu0
        %v2680 = vadd.f32 %v265, %v2679
        %v2681 = vpop.f32.mrf.mxu0
        %v2682 = vadd.f32 %v265, %v2681
        %v2683 = vpop.f32.mrf.mxu0
        %v2684 = vadd.f32 %v270, %v2683
        %v2685 = vpop.f32.mrf.mxu0
        %v2686 = vadd.f32 %v270, %v2685
        %2687 = vdwg.mxu0
        %2688 = vmatprep.subr.bf16.mxu0 0
        %2689 = vmatpush1.bf16.msra.mxu0 0
        %2690 = vmatprep.subr.bf16.mxu0 0
        %2691 = vmatpush1.bf16.msra.mxu0 0
        %2692 = vmatprep.subr.bf16.mxu0 0
        %2693 = vmatpush1.bf16.msra.mxu0 0
        %2694 = vmatprep.subr.bf16.mxu0 0
        %2695 = vmatpush1.bf16.msra.mxu0 0
        %2696 = vmatprep.subr.bf16.mxu0 0
        %2697 = vmatpush1.bf16.msra.mxu0 0
        %2698 = vmatprep.subr.bf16.mxu0 0
        %2699 = vmatpush1.bf16.msra.mxu0 0
        %2700 = vmatprep.subr.bf16.mxu0 0
        %2701 = vmatpush1.bf16.msra.mxu0 0
        %2702 = vmatprep.subr.bf16.mxu0 %v1315
        %2703 = vmatpush1.bf16.msra.mxu0 %v1312
        %2704 = vmatprep.subr.bf16.mxu0 0
        %2705 = vmatpush2.bf16.msra.mxu0 0
        %2706 = vmatprep.subr.bf16.mxu0 0
        %2707 = vmatpush2.bf16.msra.mxu0 0
        %2708 = vmatprep.subr.bf16.mxu0 0
        %2709 = vmatpush2.bf16.msra.mxu0 0
        %2710 = vmatprep.subr.bf16.mxu0 0
        %2711 = vmatpush2.bf16.msra.mxu0 0
        %2712 = vmatprep.subr.bf16.mxu0 0
        %2713 = vmatpush2.bf16.msra.mxu0 0
        %2714 = vmatprep.subr.bf16.mxu0 0
        %2715 = vmatpush2.bf16.msra.mxu0 0
        %2716 = vmatprep.subr.bf16.mxu0 0
        %2717 = vmatpush2.bf16.msra.mxu0 0
        %2718 = vmatprep.subr.bf16.mxu0 0
        %2719 = vmatpush2.bf16.msra.mxu0 0
        %2720 = vmatprep.mubr.bf16.mxu0 0
        %2721 = vmatmul.mubr.bf16.gmra.mxu0 %v1179
        %v2722 = vpop.f32.mrf.mxu0
        %v2723 = vadd.f32 %v265, %v2722
        %v2724 = vpop.f32.mrf.mxu0
        %v2725 = vadd.f32 %v265, %v2724
        %v2726 = vpop.f32.mrf.mxu0
        %v2727 = vadd.f32 %v270, %v2726
        %v2728 = vpop.f32.mrf.mxu0
        %v2729 = vadd.f32 %v270, %v2728
        %2730 = vdwg.mxu0
        %2731 = vmatprep.subr.bf16.mxu0 0
        %2732 = vmatpush1.bf16.msra.mxu0 0
        %2733 = vmatprep.subr.bf16.mxu0 0
        %2734 = vmatpush1.bf16.msra.mxu0 0
        %2735 = vmatprep.subr.bf16.mxu0 0
        %2736 = vmatpush1.bf16.msra.mxu0 0
        %2737 = vmatprep.subr.bf16.mxu0 0
        %2738 = vmatpush1.bf16.msra.mxu0 0
        %2739 = vmatprep.subr.bf16.mxu0 0
        %2740 = vmatpush1.bf16.msra.mxu0 0
        %2741 = vmatprep.subr.bf16.mxu0 0
        %2742 = vmatpush1.bf16.msra.mxu0 0
        %2743 = vmatprep.subr.bf16.mxu0 0
        %2744 = vmatpush1.bf16.msra.mxu0 0
        %2745 = vmatprep.subr.bf16.mxu0 %v1321
        %2746 = vmatpush1.bf16.msra.mxu0 %v1318
        %2747 = vmatprep.subr.bf16.mxu0 0
        %2748 = vmatpush2.bf16.msra.mxu0 0
        %2749 = vmatprep.subr.bf16.mxu0 0
        %2750 = vmatpush2.bf16.msra.mxu0 0
        %2751 = vmatprep.subr.bf16.mxu0 0
        %2752 = vmatpush2.bf16.msra.mxu0 0
        %2753 = vmatprep.subr.bf16.mxu0 0
        %2754 = vmatpush2.bf16.msra.mxu0 0
        %2755 = vmatprep.subr.bf16.mxu0 0
        %2756 = vmatpush2.bf16.msra.mxu0 0
        %2757 = vmatprep.subr.bf16.mxu0 0
        %2758 = vmatpush2.bf16.msra.mxu0 0
        %2759 = vmatprep.subr.bf16.mxu0 0
        %2760 = vmatpush2.bf16.msra.mxu0 0
        %2761 = vmatprep.subr.bf16.mxu0 0
        %2762 = vmatpush2.bf16.msra.mxu0 0
        %2763 = vmatprep.mubr.bf16.mxu0 0
        %2764 = vmatmul.mubr.bf16.gmra.mxu0 %v1179
        %v2765 = vpop.f32.mrf.mxu0
        %v2766 = vadd.f32 %v265, %v2765
        %v2767 = vpop.f32.mrf.mxu0
        %v2768 = vadd.f32 %v265, %v2767
        %v2769 = vpop.f32.mrf.mxu0
        %v2770 = vadd.f32 %v270, %v2769
        %v2771 = vpop.f32.mrf.mxu0
        %v2772 = vadd.f32 %v270, %v2771
        %2773 = vdwg.mxu0
        %2774 = vmatprep.subr.bf16.mxu0 0
        %2775 = vmatpush1.bf16.msra.mxu0 0
        %2776 = vmatprep.subr.bf16.mxu0 0
        %2777 = vmatpush1.bf16.msra.mxu0 0
        %2778 = vmatprep.subr.bf16.mxu0 0
        %2779 = vmatpush1.bf16.msra.mxu0 0
        %2780 = vmatprep.subr.bf16.mxu0 0
        %2781 = vmatpush1.bf16.msra.mxu0 0
        %2782 = vmatprep.subr.bf16.mxu0 0
        %2783 = vmatpush1.bf16.msra.mxu0 0
        %2784 = vmatprep.subr.bf16.mxu0 0
        %2785 = vmatpush1.bf16.msra.mxu0 0
        %2786 = vmatprep.subr.bf16.mxu0 0
        %2787 = vmatpush1.bf16.msra.mxu0 0
        %2788 = vmatprep.subr.bf16.mxu0 %v1327
        %2789 = vmatpush1.bf16.msra.mxu0 %v1324
        %2790 = vmatprep.subr.bf16.mxu0 0
        %2791 = vmatpush2.bf16.msra.mxu0 0
        %2792 = vmatprep.subr.bf16.mxu0 0
        %2793 = vmatpush2.bf16.msra.mxu0 0
        %2794 = vmatprep.subr.bf16.mxu0 0
        %2795 = vmatpush2.bf16.msra.mxu0 0
        %2796 = vmatprep.subr.bf16.mxu0 0
        %2797 = vmatpush2.bf16.msra.mxu0 0
        %2798 = vmatprep.subr.bf16.mxu0 0
        %2799 = vmatpush2.bf16.msra.mxu0 0
        %2800 = vmatprep.subr.bf16.mxu0 0
        %2801 = vmatpush2.bf16.msra.mxu0 0
        %2802 = vmatprep.subr.bf16.mxu0 0
        %2803 = vmatpush2.bf16.msra.mxu0 0
        %2804 = vmatprep.subr.bf16.mxu0 0
        %2805 = vmatpush2.bf16.msra.mxu0 0
        %2806 = vmatprep.mubr.bf16.mxu0 0
        %2807 = vmatmul.mubr.bf16.gmra.mxu0 %v1179
        %v2808 = vpop.f32.mrf.mxu0
        %v2809 = vadd.f32 %v265, %v2808
        %v2810 = vpop.f32.mrf.mxu0
        %v2811 = vadd.f32 %v265, %v2810
        %v2812 = vpop.f32.mrf.mxu0
        %v2813 = vadd.f32 %v270, %v2812
        %v2814 = vpop.f32.mrf.mxu0
        %v2815 = vadd.f32 %v270, %v2814
        %2816 = vdwg.mxu0
        %2817 = vmatprep.subr.bf16.mxu0 0
        %2818 = vmatpush1.bf16.msra.mxu0 0
        %2819 = vmatprep.subr.bf16.mxu0 0
        %2820 = vmatpush1.bf16.msra.mxu0 0
        %2821 = vmatprep.subr.bf16.mxu0 0
        %2822 = vmatpush1.bf16.msra.mxu0 0
        %2823 = vmatprep.subr.bf16.mxu0 0
        %2824 = vmatpush1.bf16.msra.mxu0 0
        %2825 = vmatprep.subr.bf16.mxu0 0
        %2826 = vmatpush1.bf16.msra.mxu0 0
        %2827 = vmatprep.subr.bf16.mxu0 0
        %2828 = vmatpush1.bf16.msra.mxu0 0
        %2829 = vmatprep.subr.bf16.mxu0 0
        %2830 = vmatpush1.bf16.msra.mxu0 0
        %2831 = vmatprep.subr.bf16.mxu0 %v1333
        %2832 = vmatpush1.bf16.msra.mxu0 %v1330
        %2833 = vmatprep.subr.bf16.mxu0 0
        %2834 = vmatpush2.bf16.msra.mxu0 0
        %2835 = vmatprep.subr.bf16.mxu0 0
        %2836 = vmatpush2.bf16.msra.mxu0 0
        %2837 = vmatprep.subr.bf16.mxu0 0
        %2838 = vmatpush2.bf16.msra.mxu0 0
        %2839 = vmatprep.subr.bf16.mxu0 0
        %2840 = vmatpush2.bf16.msra.mxu0 0
        %2841 = vmatprep.subr.bf16.mxu0 0
        %2842 = vmatpush2.bf16.msra.mxu0 0
        %2843 = vmatprep.subr.bf16.mxu0 0
        %2844 = vmatpush2.bf16.msra.mxu0 0
        %2845 = vmatprep.subr.bf16.mxu0 0
        %2846 = vmatpush2.bf16.msra.mxu0 0
        %2847 = vmatprep.subr.bf16.mxu0 0
        %2848 = vmatpush2.bf16.msra.mxu0 0
        %2849 = vmatprep.mubr.bf16.mxu0 0
        %2850 = vmatmul.mubr.bf16.gmra.mxu0 %v1179
        %v2851 = vpop.f32.mrf.mxu0
        %v2852 = vadd.f32 %v265, %v2851
        %v2853 = vpop.f32.mrf.mxu0
        %v2854 = vadd.f32 %v265, %v2853
        %v2855 = vpop.f32.mrf.mxu0
        %v2856 = vadd.f32 %v270, %v2855
        %v2857 = vpop.f32.mrf.mxu0
        %v2858 = vadd.f32 %v270, %v2857
        %2859 = vdwg.mxu0
        %2860 = vmatprep.subr.bf16.mxu0 0
        %2861 = vmatpush1.bf16.msra.mxu0 0
        %2862 = vmatprep.subr.bf16.mxu0 0
        %2863 = vmatpush1.bf16.msra.mxu0 0
        %2864 = vmatprep.subr.bf16.mxu0 0
        %2865 = vmatpush1.bf16.msra.mxu0 0
        %2866 = vmatprep.subr.bf16.mxu0 0
        %2867 = vmatpush1.bf16.msra.mxu0 0
        %2868 = vmatprep.subr.bf16.mxu0 0
        %2869 = vmatpush1.bf16.msra.mxu0 0
        %2870 = vmatprep.subr.bf16.mxu0 0
        %2871 = vmatpush1.bf16.msra.mxu0 0
        %2872 = vmatprep.subr.bf16.mxu0 0
        %2873 = vmatpush1.bf16.msra.mxu0 0
        %2874 = vmatprep.subr.bf16.mxu0 %v1339
        %2875 = vmatpush1.bf16.msra.mxu0 %v1336
        %2876 = vmatprep.subr.bf16.mxu0 0
        %2877 = vmatpush2.bf16.msra.mxu0 0
        %2878 = vmatprep.subr.bf16.mxu0 0
        %2879 = vmatpush2.bf16.msra.mxu0 0
        %2880 = vmatprep.subr.bf16.mxu0 0
        %2881 = vmatpush2.bf16.msra.mxu0 0
        %2882 = vmatprep.subr.bf16.mxu0 0
        %2883 = vmatpush2.bf16.msra.mxu0 0
        %2884 = vmatprep.subr.bf16.mxu0 0
        %2885 = vmatpush2.bf16.msra.mxu0 0
        %2886 = vmatprep.subr.bf16.mxu0 0
        %2887 = vmatpush2.bf16.msra.mxu0 0
        %2888 = vmatprep.subr.bf16.mxu0 0
        %2889 = vmatpush2.bf16.msra.mxu0 0
        %2890 = vmatprep.subr.bf16.mxu0 0
        %2891 = vmatpush2.bf16.msra.mxu0 0
        %2892 = vmatprep.mubr.bf16.mxu0 0
        %2893 = vmatmul.mubr.bf16.gmra.mxu0 %v1179
        %v2894 = vpop.f32.mrf.mxu0
        %v2895 = vadd.f32 %v265, %v2894
        %v2896 = vpop.f32.mrf.mxu0
        %v2897 = vadd.f32 %v265, %v2896
        %v2898 = vpop.f32.mrf.mxu0
        %v2899 = vadd.f32 %v270, %v2898
        %v2900 = vpop.f32.mrf.mxu0
        %v2901 = vadd.f32 %v270, %v2900
        %2902 = vdwg.mxu0
        %2903 = vmatprep.subr.bf16.mxu0 0
        %2904 = vmatpush1.bf16.msra.mxu0 0
        %2905 = vmatprep.subr.bf16.mxu0 0
        %2906 = vmatpush1.bf16.msra.mxu0 0
        %2907 = vmatprep.subr.bf16.mxu0 0
        %2908 = vmatpush1.bf16.msra.mxu0 0
        %2909 = vmatprep.subr.bf16.mxu0 0
        %2910 = vmatpush1.bf16.msra.mxu0 0
        %2911 = vmatprep.subr.bf16.mxu0 0
        %2912 = vmatpush1.bf16.msra.mxu0 0
        %2913 = vmatprep.subr.bf16.mxu0 0
        %2914 = vmatpush1.bf16.msra.mxu0 0
        %2915 = vmatprep.subr.bf16.mxu0 0
        %2916 = vmatpush1.bf16.msra.mxu0 0
        %2917 = vmatprep.subr.bf16.mxu0 %v1345
        %2918 = vmatpush1.bf16.msra.mxu0 %v1342
        %2919 = vmatprep.subr.bf16.mxu0 0
        %2920 = vmatpush2.bf16.msra.mxu0 0
        %2921 = vmatprep.subr.bf16.mxu0 0
        %2922 = vmatpush2.bf16.msra.mxu0 0
        %2923 = vmatprep.subr.bf16.mxu0 0
        %2924 = vmatpush2.bf16.msra.mxu0 0
        %2925 = vmatprep.subr.bf16.mxu0 0
        %2926 = vmatpush2.bf16.msra.mxu0 0
        %2927 = vmatprep.subr.bf16.mxu0 0
        %2928 = vmatpush2.bf16.msra.mxu0 0
        %2929 = vmatprep.subr.bf16.mxu0 0
        %2930 = vmatpush2.bf16.msra.mxu0 0
        %2931 = vmatprep.subr.bf16.mxu0 0
        %2932 = vmatpush2.bf16.msra.mxu0 0
        %2933 = vmatprep.subr.bf16.mxu0 0
        %2934 = vmatpush2.bf16.msra.mxu0 0
        %2935 = vmatprep.mubr.bf16.mxu0 0
        %2936 = vmatmul.mubr.bf16.gmra.mxu0 %v1179
        %v2937 = vpop.f32.mrf.mxu0
        %v2938 = vadd.f32 %v265, %v2937
        %v2939 = vpop.f32.mrf.mxu0
        %v2940 = vadd.f32 %v265, %v2939
        %v2941 = vpop.f32.mrf.mxu0
        %v2942 = vadd.f32 %v270, %v2941
        %v2943 = vpop.f32.mrf.mxu0
        %v2944 = vadd.f32 %v270, %v2943
        %2945 = vdwg.mxu0
        %2946 = vmatprep.subr.bf16.mxu0 0
        %2947 = vmatpush1.bf16.msra.mxu0 0
        %2948 = vmatprep.subr.bf16.mxu0 0
        %2949 = vmatpush1.bf16.msra.mxu0 0
        %2950 = vmatprep.subr.bf16.mxu0 0
        %2951 = vmatpush1.bf16.msra.mxu0 0
        %2952 = vmatprep.subr.bf16.mxu0 0
        %2953 = vmatpush1.bf16.msra.mxu0 0
        %2954 = vmatprep.subr.bf16.mxu0 0
        %2955 = vmatpush1.bf16.msra.mxu0 0
        %2956 = vmatprep.subr.bf16.mxu0 0
        %2957 = vmatpush1.bf16.msra.mxu0 0
        %2958 = vmatprep.subr.bf16.mxu0 0
        %2959 = vmatpush1.bf16.msra.mxu0 0
        %2960 = vmatprep.subr.bf16.mxu0 %v1351
        %2961 = vmatpush1.bf16.msra.mxu0 %v1348
        %2962 = vmatprep.subr.bf16.mxu0 0
        %2963 = vmatpush2.bf16.msra.mxu0 0
        %2964 = vmatprep.subr.bf16.mxu0 0
        %2965 = vmatpush2.bf16.msra.mxu0 0
        %2966 = vmatprep.subr.bf16.mxu0 0
        %2967 = vmatpush2.bf16.msra.mxu0 0
        %2968 = vmatprep.subr.bf16.mxu0 0
        %2969 = vmatpush2.bf16.msra.mxu0 0
        %2970 = vmatprep.subr.bf16.mxu0 0
        %2971 = vmatpush2.bf16.msra.mxu0 0
        %2972 = vmatprep.subr.bf16.mxu0 0
        %2973 = vmatpush2.bf16.msra.mxu0 0
        %2974 = vmatprep.subr.bf16.mxu0 0
        %2975 = vmatpush2.bf16.msra.mxu0 0
        %2976 = vmatprep.subr.bf16.mxu0 0
        %2977 = vmatpush2.bf16.msra.mxu0 0
        %2978 = vmatprep.mubr.bf16.mxu0 0
        %2979 = vmatmul.mubr.bf16.gmra.mxu0 %v1179
        %v2980 = vpop.f32.mrf.mxu0
        %v2981 = vadd.f32 %v265, %v2980
        %v2982 = vpop.f32.mrf.mxu0
        %v2983 = vadd.f32 %v265, %v2982
        %v2984 = vpop.f32.mrf.mxu0
        %v2985 = vadd.f32 %v270, %v2984
        %v2986 = vpop.f32.mrf.mxu0
        %v2987 = vadd.f32 %v270, %v2986
        %2988 = vdwg.mxu0
        %2989 = vmatprep.subr.bf16.mxu0 0
        %2990 = vmatpush1.bf16.msra.mxu0 0
        %2991 = vmatprep.subr.bf16.mxu0 0
        %2992 = vmatpush1.bf16.msra.mxu0 0
        %2993 = vmatprep.subr.bf16.mxu0 0
        %2994 = vmatpush1.bf16.msra.mxu0 0
        %2995 = vmatprep.subr.bf16.mxu0 0
        %2996 = vmatpush1.bf16.msra.mxu0 0
        %2997 = vmatprep.subr.bf16.mxu0 0
        %2998 = vmatpush1.bf16.msra.mxu0 0
        %2999 = vmatprep.subr.bf16.mxu0 0
        %3000 = vmatpush1.bf16.msra.mxu0 0
        %3001 = vmatprep.subr.bf16.mxu0 0
        %3002 = vmatpush1.bf16.msra.mxu0 0
        %3003 = vmatprep.subr.bf16.mxu0 %v1357
        %3004 = vmatpush1.bf16.msra.mxu0 %v1354
        %3005 = vmatprep.subr.bf16.mxu0 0
        %3006 = vmatpush2.bf16.msra.mxu0 0
        %3007 = vmatprep.subr.bf16.mxu0 0
        %3008 = vmatpush2.bf16.msra.mxu0 0
        %3009 = vmatprep.subr.bf16.mxu0 0
        %3010 = vmatpush2.bf16.msra.mxu0 0
        %3011 = vmatprep.subr.bf16.mxu0 0
        %3012 = vmatpush2.bf16.msra.mxu0 0
        %3013 = vmatprep.subr.bf16.mxu0 0
        %3014 = vmatpush2.bf16.msra.mxu0 0
        %3015 = vmatprep.subr.bf16.mxu0 0
        %3016 = vmatpush2.bf16.msra.mxu0 0
        %3017 = vmatprep.subr.bf16.mxu0 0
        %3018 = vmatpush2.bf16.msra.mxu0 0
        %3019 = vmatprep.subr.bf16.mxu0 0
        %3020 = vmatpush2.bf16.msra.mxu0 0
        %3021 = vmatprep.mubr.bf16.mxu0 0
        %3022 = vmatmul.mubr.bf16.gmra.mxu0 %v1179
        %v3023 = vpop.f32.mrf.mxu0
        %v3024 = vadd.f32 %v265, %v3023
        %v3025 = vpop.f32.mrf.mxu0
        %v3026 = vadd.f32 %v265, %v3025
        %v3027 = vpop.f32.mrf.mxu0
        %v3028 = vadd.f32 %v270, %v3027
        %v3029 = vpop.f32.mrf.mxu0
        %v3030 = vadd.f32 %v270, %v3029
        %3031 = vdwg.mxu0
        %3032 = vmatprep.subr.bf16.mxu0 0
        %3033 = vmatpush1.bf16.msra.mxu0 0
        %3034 = vmatprep.subr.bf16.mxu0 0
        %3035 = vmatpush1.bf16.msra.mxu0 0
        %3036 = vmatprep.subr.bf16.mxu0 0
        %3037 = vmatpush1.bf16.msra.mxu0 0
        %3038 = vmatprep.subr.bf16.mxu0 0
        %3039 = vmatpush1.bf16.msra.mxu0 0
        %3040 = vmatprep.subr.bf16.mxu0 0
        %3041 = vmatpush1.bf16.msra.mxu0 0
        %3042 = vmatprep.subr.bf16.mxu0 0
        %3043 = vmatpush1.bf16.msra.mxu0 0
        %3044 = vmatprep.subr.bf16.mxu0 0
        %3045 = vmatpush1.bf16.msra.mxu0 0
        %3046 = vmatprep.subr.bf16.mxu0 %v1363
        %3047 = vmatpush1.bf16.msra.mxu0 %v1360
        %3048 = vmatprep.subr.bf16.mxu0 0
        %3049 = vmatpush2.bf16.msra.mxu0 0
        %3050 = vmatprep.subr.bf16.mxu0 0
        %3051 = vmatpush2.bf16.msra.mxu0 0
        %3052 = vmatprep.subr.bf16.mxu0 0
        %3053 = vmatpush2.bf16.msra.mxu0 0
        %3054 = vmatprep.subr.bf16.mxu0 0
        %3055 = vmatpush2.bf16.msra.mxu0 0
        %3056 = vmatprep.subr.bf16.mxu0 0
        %3057 = vmatpush2.bf16.msra.mxu0 0
        %3058 = vmatprep.subr.bf16.mxu0 0
        %3059 = vmatpush2.bf16.msra.mxu0 0
        %3060 = vmatprep.subr.bf16.mxu0 0
        %3061 = vmatpush2.bf16.msra.mxu0 0
        %3062 = vmatprep.subr.bf16.mxu0 0
        %3063 = vmatpush2.bf16.msra.mxu0 0
        %3064 = vmatprep.mubr.bf16.mxu0 0
        %3065 = vmatmul.mubr.bf16.gmra.mxu0 %v1179
        %v3066 = vpop.f32.mrf.mxu0
        %v3067 = vadd.f32 %v265, %v3066
        %v3068 = vpop.f32.mrf.mxu0
        %v3069 = vadd.f32 %v265, %v3068
        %v3070 = vpop.f32.mrf.mxu0
        %v3071 = vadd.f32 %v270, %v3070
        %v3072 = vpop.f32.mrf.mxu0
        %v3073 = vadd.f32 %v270, %v3072
        %3074 = vdwg.mxu0
        %3075 = vmatprep.subr.bf16.mxu0 0
        %3076 = vmatpush1.bf16.msra.mxu0 0
        %3077 = vmatprep.subr.bf16.mxu0 0
        %3078 = vmatpush1.bf16.msra.mxu0 0
        %3079 = vmatprep.subr.bf16.mxu0 0
        %3080 = vmatpush1.bf16.msra.mxu0 0
        %3081 = vmatprep.subr.bf16.mxu0 0
        %3082 = vmatpush1.bf16.msra.mxu0 0
        %3083 = vmatprep.subr.bf16.mxu0 0
        %3084 = vmatpush1.bf16.msra.mxu0 0
        %3085 = vmatprep.subr.bf16.mxu0 0
        %3086 = vmatpush1.bf16.msra.mxu0 0
        %3087 = vmatprep.subr.bf16.mxu0 0
        %3088 = vmatpush1.bf16.msra.mxu0 0
        %3089 = vmatprep.subr.bf16.mxu0 %v1369
        %3090 = vmatpush1.bf16.msra.mxu0 %v1366
        %3091 = vmatprep.subr.bf16.mxu0 0
        %3092 = vmatpush2.bf16.msra.mxu0 0
        %3093 = vmatprep.subr.bf16.mxu0 0
        %3094 = vmatpush2.bf16.msra.mxu0 0
        %3095 = vmatprep.subr.bf16.mxu0 0
        %3096 = vmatpush2.bf16.msra.mxu0 0
        %3097 = vmatprep.subr.bf16.mxu0 0
        %3098 = vmatpush2.bf16.msra.mxu0 0
        %3099 = vmatprep.subr.bf16.mxu0 0
        %3100 = vmatpush2.bf16.msra.mxu0 0
        %3101 = vmatprep.subr.bf16.mxu0 0
        %3102 = vmatpush2.bf16.msra.mxu0 0
        %3103 = vmatprep.subr.bf16.mxu0 0
        %3104 = vmatpush2.bf16.msra.mxu0 0
        %3105 = vmatprep.subr.bf16.mxu0 0
        %3106 = vmatpush2.bf16.msra.mxu0 0
        %3107 = vmatprep.mubr.bf16.mxu0 0
        %3108 = vmatmul.mubr.bf16.gmra.mxu0 %v1179
        %v3109 = vpop.f32.mrf.mxu0
        %v3110 = vadd.f32 %v265, %v3109
        %v3111 = vpop.f32.mrf.mxu0
        %v3112 = vadd.f32 %v265, %v3111
        %v3113 = vpop.f32.mrf.mxu0
        %v3114 = vadd.f32 %v270, %v3113
        %v3115 = vpop.f32.mrf.mxu0
        %v3116 = vadd.f32 %v270, %v3115
        %3117 = vdwg.mxu0
        %3118 = vmatprep.subr.bf16.mxu0 0
        %3119 = vmatpush1.bf16.msra.mxu0 0
        %3120 = vmatprep.subr.bf16.mxu0 0
        %3121 = vmatpush1.bf16.msra.mxu0 0
        %3122 = vmatprep.subr.bf16.mxu0 0
        %3123 = vmatpush1.bf16.msra.mxu0 0
        %3124 = vmatprep.subr.bf16.mxu0 0
        %3125 = vmatpush1.bf16.msra.mxu0 0
        %3126 = vmatprep.subr.bf16.mxu0 0
        %3127 = vmatpush1.bf16.msra.mxu0 0
        %3128 = vmatprep.subr.bf16.mxu0 0
        %3129 = vmatpush1.bf16.msra.mxu0 0
        %3130 = vmatprep.subr.bf16.mxu0 0
        %3131 = vmatpush1.bf16.msra.mxu0 0
        %3132 = vmatprep.subr.bf16.mxu0 %v1375
        %3133 = vmatpush1.bf16.msra.mxu0 %v1372
        %3134 = vmatprep.subr.bf16.mxu0 0
        %3135 = vmatpush2.bf16.msra.mxu0 0
        %3136 = vmatprep.subr.bf16.mxu0 0
        %3137 = vmatpush2.bf16.msra.mxu0 0
        %3138 = vmatprep.subr.bf16.mxu0 0
        %3139 = vmatpush2.bf16.msra.mxu0 0
        %3140 = vmatprep.subr.bf16.mxu0 0
        %3141 = vmatpush2.bf16.msra.mxu0 0
        %3142 = vmatprep.subr.bf16.mxu0 0
        %3143 = vmatpush2.bf16.msra.mxu0 0
        %3144 = vmatprep.subr.bf16.mxu0 0
        %3145 = vmatpush2.bf16.msra.mxu0 0
        %3146 = vmatprep.subr.bf16.mxu0 0
        %3147 = vmatpush2.bf16.msra.mxu0 0
        %3148 = vmatprep.subr.bf16.mxu0 0
        %3149 = vmatpush2.bf16.msra.mxu0 0
        %3150 = vmatprep.mubr.bf16.mxu0 0
        %3151 = vmatmul.mubr.bf16.gmra.mxu0 %v1179
        %v3152 = vpop.f32.mrf.mxu0
        %v3153 = vadd.f32 %v265, %v3152
        %v3154 = vpop.f32.mrf.mxu0
        %v3155 = vadd.f32 %v265, %v3154
        %v3156 = vpop.f32.mrf.mxu0
        %v3157 = vadd.f32 %v270, %v3156
        %v3158 = vpop.f32.mrf.mxu0
        %v3159 = vadd.f32 %v270, %v3158
        %3160 = vdwg.mxu0
        %3161 = vmatprep.subr.bf16.mxu0 0
        %3162 = vmatpush1.bf16.msra.mxu0 0
        %3163 = vmatprep.subr.bf16.mxu0 0
        %3164 = vmatpush1.bf16.msra.mxu0 0
        %3165 = vmatprep.subr.bf16.mxu0 0
        %3166 = vmatpush1.bf16.msra.mxu0 0
        %3167 = vmatprep.subr.bf16.mxu0 0
        %3168 = vmatpush1.bf16.msra.mxu0 0
        %3169 = vmatprep.subr.bf16.mxu0 0
        %3170 = vmatpush1.bf16.msra.mxu0 0
        %3171 = vmatprep.subr.bf16.mxu0 0
        %3172 = vmatpush1.bf16.msra.mxu0 0
        %3173 = vmatprep.subr.bf16.mxu0 0
        %3174 = vmatpush1.bf16.msra.mxu0 0
        %3175 = vmatprep.subr.bf16.mxu0 %v1381
        %3176 = vmatpush1.bf16.msra.mxu0 %v1378
        %3177 = vmatprep.subr.bf16.mxu0 0
        %3178 = vmatpush2.bf16.msra.mxu0 0
        %3179 = vmatprep.subr.bf16.mxu0 0
        %3180 = vmatpush2.bf16.msra.mxu0 0
        %3181 = vmatprep.subr.bf16.mxu0 0
        %3182 = vmatpush2.bf16.msra.mxu0 0
        %3183 = vmatprep.subr.bf16.mxu0 0
        %3184 = vmatpush2.bf16.msra.mxu0 0
        %3185 = vmatprep.subr.bf16.mxu0 0
        %3186 = vmatpush2.bf16.msra.mxu0 0
        %3187 = vmatprep.subr.bf16.mxu0 0
        %3188 = vmatpush2.bf16.msra.mxu0 0
        %3189 = vmatprep.subr.bf16.mxu0 0
        %3190 = vmatpush2.bf16.msra.mxu0 0
        %3191 = vmatprep.subr.bf16.mxu0 0
        %3192 = vmatpush2.bf16.msra.mxu0 0
        %3193 = vmatprep.mubr.bf16.mxu0 0
        %3194 = vmatmul.mubr.bf16.gmra.mxu0 %v1179
        %v3195 = vpop.f32.mrf.mxu0
        %v3196 = vadd.f32 %v265, %v3195
        %v3197 = vpop.f32.mrf.mxu0
        %v3198 = vadd.f32 %v265, %v3197
        %v3199 = vpop.f32.mrf.mxu0
        %v3200 = vadd.f32 %v270, %v3199
        %v3201 = vpop.f32.mrf.mxu0
        %v3202 = vadd.f32 %v270, %v3201
        %3203 = vdwg.mxu0
        %3204 = vmatprep.subr.bf16.mxu0 0
        %3205 = vmatpush1.bf16.msra.mxu0 0
        %3206 = vmatprep.subr.bf16.mxu0 0
        %3207 = vmatpush1.bf16.msra.mxu0 0
        %3208 = vmatprep.subr.bf16.mxu0 0
        %3209 = vmatpush1.bf16.msra.mxu0 0
        %3210 = vmatprep.subr.bf16.mxu0 0
        %3211 = vmatpush1.bf16.msra.mxu0 0
        %3212 = vmatprep.subr.bf16.mxu0 0
        %3213 = vmatpush1.bf16.msra.mxu0 0
        %3214 = vmatprep.subr.bf16.mxu0 0
        %3215 = vmatpush1.bf16.msra.mxu0 0
        %3216 = vmatprep.subr.bf16.mxu0 0
        %3217 = vmatpush1.bf16.msra.mxu0 0
        %3218 = vmatprep.subr.bf16.mxu0 %v1387
        %3219 = vmatpush1.bf16.msra.mxu0 %v1384
        %3220 = vmatprep.subr.bf16.mxu0 0
        %3221 = vmatpush2.bf16.msra.mxu0 0
        %3222 = vmatprep.subr.bf16.mxu0 0
        %3223 = vmatpush2.bf16.msra.mxu0 0
        %3224 = vmatprep.subr.bf16.mxu0 0
        %3225 = vmatpush2.bf16.msra.mxu0 0
        %3226 = vmatprep.subr.bf16.mxu0 0
        %3227 = vmatpush2.bf16.msra.mxu0 0
        %3228 = vmatprep.subr.bf16.mxu0 0
        %3229 = vmatpush2.bf16.msra.mxu0 0
        %3230 = vmatprep.subr.bf16.mxu0 0
        %3231 = vmatpush2.bf16.msra.mxu0 0
        %3232 = vmatprep.subr.bf16.mxu0 0
        %3233 = vmatpush2.bf16.msra.mxu0 0
        %3234 = vmatprep.subr.bf16.mxu0 0
        %3235 = vmatpush2.bf16.msra.mxu0 0
        %3236 = vmatprep.mubr.bf16.mxu0 0
        %3237 = vmatmul.mubr.bf16.gmra.mxu0 %v1179
        %v3238 = vpop.f32.mrf.mxu0
        %v3239 = vadd.f32 %v265, %v3238
        %v3240 = vpop.f32.mrf.mxu0
        %v3241 = vadd.f32 %v265, %v3240
        %v3242 = vpop.f32.mrf.mxu0
        %v3243 = vadd.f32 %v270, %v3242
        %v3244 = vpop.f32.mrf.mxu0
        %v3245 = vadd.f32 %v270, %v3244
        %3246 = vdwg.mxu0
        %3247 = vmatprep.subr.bf16.mxu0 0
        %3248 = vmatpush1.bf16.msra.mxu0 0
        %3249 = vmatprep.subr.bf16.mxu0 0
        %3250 = vmatpush1.bf16.msra.mxu0 0
        %3251 = vmatprep.subr.bf16.mxu0 0
        %3252 = vmatpush1.bf16.msra.mxu0 0
        %3253 = vmatprep.subr.bf16.mxu0 0
        %3254 = vmatpush1.bf16.msra.mxu0 0
        %3255 = vmatprep.subr.bf16.mxu0 0
        %3256 = vmatpush1.bf16.msra.mxu0 0
        %3257 = vmatprep.subr.bf16.mxu0 0
        %3258 = vmatpush1.bf16.msra.mxu0 0
        %3259 = vmatprep.subr.bf16.mxu0 0
        %3260 = vmatpush1.bf16.msra.mxu0 0
        %3261 = vmatprep.subr.bf16.mxu0 %v1393
        %3262 = vmatpush1.bf16.msra.mxu0 %v1390
        %3263 = vmatprep.subr.bf16.mxu0 0
        %3264 = vmatpush2.bf16.msra.mxu0 0
        %3265 = vmatprep.subr.bf16.mxu0 0
        %3266 = vmatpush2.bf16.msra.mxu0 0
        %3267 = vmatprep.subr.bf16.mxu0 0
        %3268 = vmatpush2.bf16.msra.mxu0 0
        %3269 = vmatprep.subr.bf16.mxu0 0
        %3270 = vmatpush2.bf16.msra.mxu0 0
        %3271 = vmatprep.subr.bf16.mxu0 0
        %3272 = vmatpush2.bf16.msra.mxu0 0
        %3273 = vmatprep.subr.bf16.mxu0 0
        %3274 = vmatpush2.bf16.msra.mxu0 0
        %3275 = vmatprep.subr.bf16.mxu0 0
        %3276 = vmatpush2.bf16.msra.mxu0 0
        %3277 = vmatprep.subr.bf16.mxu0 0
        %3278 = vmatpush2.bf16.msra.mxu0 0
        %3279 = vmatprep.mubr.bf16.mxu0 0
        %3280 = vmatmul.mubr.bf16.gmra.mxu0 %v1179
        %v3281 = vpop.f32.mrf.mxu0
        %v3282 = vadd.f32 %v265, %v3281
        %v3283 = vpop.f32.mrf.mxu0
        %v3284 = vadd.f32 %v265, %v3283
        %v3285 = vpop.f32.mrf.mxu0
        %v3286 = vadd.f32 %v270, %v3285
        %v3287 = vpop.f32.mrf.mxu0
        %v3288 = vadd.f32 %v270, %v3287
        %3289 = vdwg.mxu0
        %3290 = vmatprep.subr.bf16.mxu0 0
        %3291 = vmatpush1.bf16.msra.mxu0 0
        %3292 = vmatprep.subr.bf16.mxu0 0
        %3293 = vmatpush1.bf16.msra.mxu0 0
        %3294 = vmatprep.subr.bf16.mxu0 0
        %3295 = vmatpush1.bf16.msra.mxu0 0
        %3296 = vmatprep.subr.bf16.mxu0 0
        %3297 = vmatpush1.bf16.msra.mxu0 0
        %3298 = vmatprep.subr.bf16.mxu0 0
        %3299 = vmatpush1.bf16.msra.mxu0 0
        %3300 = vmatprep.subr.bf16.mxu0 0
        %3301 = vmatpush1.bf16.msra.mxu0 0
        %3302 = vmatprep.subr.bf16.mxu0 0
        %3303 = vmatpush1.bf16.msra.mxu0 0
        %3304 = vmatprep.subr.bf16.mxu0 %v1399
        %3305 = vmatpush1.bf16.msra.mxu0 %v1396
        %3306 = vmatprep.subr.bf16.mxu0 0
        %3307 = vmatpush2.bf16.msra.mxu0 0
        %3308 = vmatprep.subr.bf16.mxu0 0
        %3309 = vmatpush2.bf16.msra.mxu0 0
        %3310 = vmatprep.subr.bf16.mxu0 0
        %3311 = vmatpush2.bf16.msra.mxu0 0
        %3312 = vmatprep.subr.bf16.mxu0 0
        %3313 = vmatpush2.bf16.msra.mxu0 0
        %3314 = vmatprep.subr.bf16.mxu0 0
        %3315 = vmatpush2.bf16.msra.mxu0 0
        %3316 = vmatprep.subr.bf16.mxu0 0
        %3317 = vmatpush2.bf16.msra.mxu0 0
        %3318 = vmatprep.subr.bf16.mxu0 0
        %3319 = vmatpush2.bf16.msra.mxu0 0
        %3320 = vmatprep.subr.bf16.mxu0 0
        %3321 = vmatpush2.bf16.msra.mxu0 0
        %3322 = vmatprep.mubr.bf16.mxu0 0
        %3323 = vmatmul.mubr.bf16.gmra.mxu0 %v1179
        %v3324 = vpop.f32.mrf.mxu0
        %v3325 = vadd.f32 %v265, %v3324
        %v3326 = vpop.f32.mrf.mxu0
        %v3327 = vadd.f32 %v265, %v3326
        %v3328 = vpop.f32.mrf.mxu0
        %v3329 = vadd.f32 %v270, %v3328
        %v3330 = vpop.f32.mrf.mxu0
        %v3331 = vadd.f32 %v270, %v3330
        %3332 = vdwg.mxu0
        %3333 = vmatprep.subr.bf16.mxu0 0
        %3334 = vmatpush1.bf16.msra.mxu0 0
        %3335 = vmatprep.subr.bf16.mxu0 0
        %3336 = vmatpush1.bf16.msra.mxu0 0
        %3337 = vmatprep.subr.bf16.mxu0 0
        %3338 = vmatpush1.bf16.msra.mxu0 0
        %3339 = vmatprep.subr.bf16.mxu0 0
        %3340 = vmatpush1.bf16.msra.mxu0 0
        %3341 = vmatprep.subr.bf16.mxu0 0
        %3342 = vmatpush1.bf16.msra.mxu0 0
        %3343 = vmatprep.subr.bf16.mxu0 0
        %3344 = vmatpush1.bf16.msra.mxu0 0
        %3345 = vmatprep.subr.bf16.mxu0 0
        %3346 = vmatpush1.bf16.msra.mxu0 0
        %3347 = vmatprep.subr.bf16.mxu0 %v1405
        %3348 = vmatpush1.bf16.msra.mxu0 %v1402
        %3349 = vmatprep.subr.bf16.mxu0 0
        %3350 = vmatpush2.bf16.msra.mxu0 0
        %3351 = vmatprep.subr.bf16.mxu0 0
        %3352 = vmatpush2.bf16.msra.mxu0 0
        %3353 = vmatprep.subr.bf16.mxu0 0
        %3354 = vmatpush2.bf16.msra.mxu0 0
        %3355 = vmatprep.subr.bf16.mxu0 0
        %3356 = vmatpush2.bf16.msra.mxu0 0
        %3357 = vmatprep.subr.bf16.mxu0 0
        %3358 = vmatpush2.bf16.msra.mxu0 0
        %3359 = vmatprep.subr.bf16.mxu0 0
        %3360 = vmatpush2.bf16.msra.mxu0 0
        %3361 = vmatprep.subr.bf16.mxu0 0
        %3362 = vmatpush2.bf16.msra.mxu0 0
        %3363 = vmatprep.subr.bf16.mxu0 0
        %3364 = vmatpush2.bf16.msra.mxu0 0
        %3365 = vmatprep.mubr.bf16.mxu0 0
        %3366 = vmatmul.mubr.bf16.gmra.mxu0 %v1179
        %v3367 = vpop.f32.mrf.mxu0
        %v3368 = vadd.f32 %v265, %v3367
        %v3369 = vpop.f32.mrf.mxu0
        %v3370 = vadd.f32 %v265, %v3369
        %v3371 = vpop.f32.mrf.mxu0
        %v3372 = vadd.f32 %v270, %v3371
        %v3373 = vpop.f32.mrf.mxu0
        %v3374 = vadd.f32 %v270, %v3373
        %3375 = vdwg.mxu0
        %3376 = vmatprep.subr.bf16.mxu0 0
        %3377 = vmatpush1.bf16.msra.mxu0 0
        %3378 = vmatprep.subr.bf16.mxu0 0
        %3379 = vmatpush1.bf16.msra.mxu0 0
        %3380 = vmatprep.subr.bf16.mxu0 0
        %3381 = vmatpush1.bf16.msra.mxu0 0
        %3382 = vmatprep.subr.bf16.mxu0 0
        %3383 = vmatpush1.bf16.msra.mxu0 0
        %3384 = vmatprep.subr.bf16.mxu0 0
        %3385 = vmatpush1.bf16.msra.mxu0 0
        %3386 = vmatprep.subr.bf16.mxu0 0
        %3387 = vmatpush1.bf16.msra.mxu0 0
        %3388 = vmatprep.subr.bf16.mxu0 0
        %3389 = vmatpush1.bf16.msra.mxu0 0
        %3390 = vmatprep.subr.bf16.mxu0 %v1411
        %3391 = vmatpush1.bf16.msra.mxu0 %v1408
        %3392 = vmatprep.subr.bf16.mxu0 0
        %3393 = vmatpush2.bf16.msra.mxu0 0
        %3394 = vmatprep.subr.bf16.mxu0 0
        %3395 = vmatpush2.bf16.msra.mxu0 0
        %3396 = vmatprep.subr.bf16.mxu0 0
        %3397 = vmatpush2.bf16.msra.mxu0 0
        %3398 = vmatprep.subr.bf16.mxu0 0
        %3399 = vmatpush2.bf16.msra.mxu0 0
        %3400 = vmatprep.subr.bf16.mxu0 0
        %3401 = vmatpush2.bf16.msra.mxu0 0
        %3402 = vmatprep.subr.bf16.mxu0 0
        %3403 = vmatpush2.bf16.msra.mxu0 0
        %3404 = vmatprep.subr.bf16.mxu0 0
        %3405 = vmatpush2.bf16.msra.mxu0 0
        %3406 = vmatprep.subr.bf16.mxu0 0
        %3407 = vmatpush2.bf16.msra.mxu0 0
        %3408 = vmatprep.mubr.bf16.mxu0 0
        %3409 = vmatmul.mubr.bf16.gmra.mxu0 %v1179
        %v3410 = vpop.f32.mrf.mxu0
        %v3411 = vadd.f32 %v265, %v3410
        %v3412 = vpop.f32.mrf.mxu0
        %v3413 = vadd.f32 %v265, %v3412
        %v3414 = vpop.f32.mrf.mxu0
        %v3415 = vadd.f32 %v270, %v3414
        %v3416 = vpop.f32.mrf.mxu0
        %v3417 = vadd.f32 %v270, %v3416
        %3418 = vdwg.mxu0
        %3419 = vmatprep.subr.bf16.mxu0 0
        %3420 = vmatpush1.bf16.msra.mxu0 0
        %3421 = vmatprep.subr.bf16.mxu0 0
        %3422 = vmatpush1.bf16.msra.mxu0 0
        %3423 = vmatprep.subr.bf16.mxu0 0
        %3424 = vmatpush1.bf16.msra.mxu0 0
        %3425 = vmatprep.subr.bf16.mxu0 0
        %3426 = vmatpush1.bf16.msra.mxu0 0
        %3427 = vmatprep.subr.bf16.mxu0 0
        %3428 = vmatpush1.bf16.msra.mxu0 0
        %3429 = vmatprep.subr.bf16.mxu0 0
        %3430 = vmatpush1.bf16.msra.mxu0 0
        %3431 = vmatprep.subr.bf16.mxu0 0
        %3432 = vmatpush1.bf16.msra.mxu0 0
        %3433 = vmatprep.subr.bf16.mxu0 %v1417
        %3434 = vmatpush1.bf16.msra.mxu0 %v1414
        %3435 = vmatprep.subr.bf16.mxu0 0
        %3436 = vmatpush2.bf16.msra.mxu0 0
        %3437 = vmatprep.subr.bf16.mxu0 0
        %3438 = vmatpush2.bf16.msra.mxu0 0
        %3439 = vmatprep.subr.bf16.mxu0 0
        %3440 = vmatpush2.bf16.msra.mxu0 0
        %3441 = vmatprep.subr.bf16.mxu0 0
        %3442 = vmatpush2.bf16.msra.mxu0 0
        %3443 = vmatprep.subr.bf16.mxu0 0
        %3444 = vmatpush2.bf16.msra.mxu0 0
        %3445 = vmatprep.subr.bf16.mxu0 0
        %3446 = vmatpush2.bf16.msra.mxu0 0
        %3447 = vmatprep.subr.bf16.mxu0 0
        %3448 = vmatpush2.bf16.msra.mxu0 0
        %3449 = vmatprep.subr.bf16.mxu0 0
        %3450 = vmatpush2.bf16.msra.mxu0 0
        %3451 = vmatprep.mubr.bf16.mxu0 0
        %3452 = vmatmul.mubr.bf16.gmra.mxu0 %v1179
        %v3453 = vpop.f32.mrf.mxu0
        %v3454 = vadd.f32 %v265, %v3453
        %v3455 = vpop.f32.mrf.mxu0
        %v3456 = vadd.f32 %v265, %v3455
        %v3457 = vpop.f32.mrf.mxu0
        %v3458 = vadd.f32 %v270, %v3457
        %v3459 = vpop.f32.mrf.mxu0
        %v3460 = vadd.f32 %v270, %v3459
        %3461 = vdwg.mxu0
        %3462 = vmatprep.subr.bf16.mxu0 0
        %3463 = vmatpush1.bf16.msra.mxu0 0
        %3464 = vmatprep.subr.bf16.mxu0 0
        %3465 = vmatpush1.bf16.msra.mxu0 0
        %3466 = vmatprep.subr.bf16.mxu0 0
        %3467 = vmatpush1.bf16.msra.mxu0 0
        %3468 = vmatprep.subr.bf16.mxu0 0
        %3469 = vmatpush1.bf16.msra.mxu0 0
        %3470 = vmatprep.subr.bf16.mxu0 0
        %3471 = vmatpush1.bf16.msra.mxu0 0
        %3472 = vmatprep.subr.bf16.mxu0 0
        %3473 = vmatpush1.bf16.msra.mxu0 0
        %3474 = vmatprep.subr.bf16.mxu0 0
        %3475 = vmatpush1.bf16.msra.mxu0 0
        %3476 = vmatprep.subr.bf16.mxu0 %v1423
        %3477 = vmatpush1.bf16.msra.mxu0 %v1420
        %3478 = vmatprep.subr.bf16.mxu0 0
        %3479 = vmatpush2.bf16.msra.mxu0 0
        %3480 = vmatprep.subr.bf16.mxu0 0
        %3481 = vmatpush2.bf16.msra.mxu0 0
        %3482 = vmatprep.subr.bf16.mxu0 0
        %3483 = vmatpush2.bf16.msra.mxu0 0
        %3484 = vmatprep.subr.bf16.mxu0 0
        %3485 = vmatpush2.bf16.msra.mxu0 0
        %3486 = vmatprep.subr.bf16.mxu0 0
        %3487 = vmatpush2.bf16.msra.mxu0 0
        %3488 = vmatprep.subr.bf16.mxu0 0
        %3489 = vmatpush2.bf16.msra.mxu0 0
        %3490 = vmatprep.subr.bf16.mxu0 0
        %3491 = vmatpush2.bf16.msra.mxu0 0
        %3492 = vmatprep.subr.bf16.mxu0 0
        %3493 = vmatpush2.bf16.msra.mxu0 0
        %3494 = vmatprep.mubr.bf16.mxu0 0
        %3495 = vmatmul.mubr.bf16.gmra.mxu0 %v1179
        %v3496 = vpop.f32.mrf.mxu0
        %v3497 = vadd.f32 %v265, %v3496
        %v3498 = vpop.f32.mrf.mxu0
        %v3499 = vadd.f32 %v265, %v3498
        %v3500 = vpop.f32.mrf.mxu0
        %v3501 = vadd.f32 %v270, %v3500
        %v3502 = vpop.f32.mrf.mxu0
        %v3503 = vadd.f32 %v270, %v3502
        %3504 = vdwg.mxu0
        %3505 = vmatprep.subr.bf16.mxu0 0
        %3506 = vmatpush1.bf16.msra.mxu0 0
        %3507 = vmatprep.subr.bf16.mxu0 0
        %3508 = vmatpush1.bf16.msra.mxu0 0
        %3509 = vmatprep.subr.bf16.mxu0 0
        %3510 = vmatpush1.bf16.msra.mxu0 0
        %3511 = vmatprep.subr.bf16.mxu0 0
        %3512 = vmatpush1.bf16.msra.mxu0 0
        %3513 = vmatprep.subr.bf16.mxu0 0
        %3514 = vmatpush1.bf16.msra.mxu0 0
        %3515 = vmatprep.subr.bf16.mxu0 0
        %3516 = vmatpush1.bf16.msra.mxu0 0
        %3517 = vmatprep.subr.bf16.mxu0 0
        %3518 = vmatpush1.bf16.msra.mxu0 0
        %3519 = vmatprep.subr.bf16.mxu0 %v1429
        %3520 = vmatpush1.bf16.msra.mxu0 %v1426
        %3521 = vmatprep.subr.bf16.mxu0 0
        %3522 = vmatpush2.bf16.msra.mxu0 0
        %3523 = vmatprep.subr.bf16.mxu0 0
        %3524 = vmatpush2.bf16.msra.mxu0 0
        %3525 = vmatprep.subr.bf16.mxu0 0
        %3526 = vmatpush2.bf16.msra.mxu0 0
        %3527 = vmatprep.subr.bf16.mxu0 0
        %3528 = vmatpush2.bf16.msra.mxu0 0
        %3529 = vmatprep.subr.bf16.mxu0 0
        %3530 = vmatpush2.bf16.msra.mxu0 0
        %3531 = vmatprep.subr.bf16.mxu0 0
        %3532 = vmatpush2.bf16.msra.mxu0 0
        %3533 = vmatprep.subr.bf16.mxu0 0
        %3534 = vmatpush2.bf16.msra.mxu0 0
        %3535 = vmatprep.subr.bf16.mxu0 0
        %3536 = vmatpush2.bf16.msra.mxu0 0
        %3537 = vmatprep.mubr.bf16.mxu0 0
        %3538 = vmatmul.mubr.bf16.gmra.mxu0 %v1179
        %v3539 = vpop.f32.mrf.mxu0
        %v3540 = vadd.f32 %v265, %v3539
        %v3541 = vpop.f32.mrf.mxu0
        %v3542 = vadd.f32 %v265, %v3541
        %v3543 = vpop.f32.mrf.mxu0
        %v3544 = vadd.f32 %v270, %v3543
        %v3545 = vpop.f32.mrf.mxu0
        %v3546 = vadd.f32 %v270, %v3545
        %3547 = vdwg.mxu0
        %3548 = vmatprep.subr.bf16.mxu0 0
        %3549 = vmatpush1.bf16.msra.mxu0 0
        %3550 = vmatprep.subr.bf16.mxu0 0
        %3551 = vmatpush1.bf16.msra.mxu0 0
        %3552 = vmatprep.subr.bf16.mxu0 0
        %3553 = vmatpush1.bf16.msra.mxu0 0
        %3554 = vmatprep.subr.bf16.mxu0 0
        %3555 = vmatpush1.bf16.msra.mxu0 0
        %3556 = vmatprep.subr.bf16.mxu0 0
        %3557 = vmatpush1.bf16.msra.mxu0 0
        %3558 = vmatprep.subr.bf16.mxu0 0
        %3559 = vmatpush1.bf16.msra.mxu0 0
        %3560 = vmatprep.subr.bf16.mxu0 0
        %3561 = vmatpush1.bf16.msra.mxu0 0
        %3562 = vmatprep.subr.bf16.mxu0 %v1435
        %3563 = vmatpush1.bf16.msra.mxu0 %v1432
        %3564 = vmatprep.subr.bf16.mxu0 0
        %3565 = vmatpush2.bf16.msra.mxu0 0
        %3566 = vmatprep.subr.bf16.mxu0 0
        %3567 = vmatpush2.bf16.msra.mxu0 0
        %3568 = vmatprep.subr.bf16.mxu0 0
        %3569 = vmatpush2.bf16.msra.mxu0 0
        %3570 = vmatprep.subr.bf16.mxu0 0
        %3571 = vmatpush2.bf16.msra.mxu0 0
        %3572 = vmatprep.subr.bf16.mxu0 0
        %3573 = vmatpush2.bf16.msra.mxu0 0
        %3574 = vmatprep.subr.bf16.mxu0 0
        %3575 = vmatpush2.bf16.msra.mxu0 0
        %3576 = vmatprep.subr.bf16.mxu0 0
        %3577 = vmatpush2.bf16.msra.mxu0 0
        %3578 = vmatprep.subr.bf16.mxu0 0
        %3579 = vmatpush2.bf16.msra.mxu0 0
        %3580 = vmatprep.mubr.bf16.mxu0 0
        %3581 = vmatmul.mubr.bf16.gmra.mxu0 %v1179
        %v3582 = vpop.f32.mrf.mxu0
        %v3583 = vadd.f32 %v265, %v3582
        %v3584 = vpop.f32.mrf.mxu0
        %v3585 = vadd.f32 %v265, %v3584
        %v3586 = vpop.f32.mrf.mxu0
        %v3587 = vadd.f32 %v270, %v3586
        %v3588 = vpop.f32.mrf.mxu0
        %v3589 = vadd.f32 %v270, %v3588
        %3590 = vdwg.mxu0
        %3591 = vmatprep.subr.bf16.mxu0 0
        %3592 = vmatpush1.bf16.msra.mxu0 0
        %3593 = vmatprep.subr.bf16.mxu0 0
        %3594 = vmatpush1.bf16.msra.mxu0 0
        %3595 = vmatprep.subr.bf16.mxu0 0
        %3596 = vmatpush1.bf16.msra.mxu0 0
        %3597 = vmatprep.subr.bf16.mxu0 0
        %3598 = vmatpush1.bf16.msra.mxu0 0
        %3599 = vmatprep.subr.bf16.mxu0 0
        %3600 = vmatpush1.bf16.msra.mxu0 0
        %3601 = vmatprep.subr.bf16.mxu0 0
        %3602 = vmatpush1.bf16.msra.mxu0 0
        %3603 = vmatprep.subr.bf16.mxu0 0
        %3604 = vmatpush1.bf16.msra.mxu0 0
        %3605 = vmatprep.subr.bf16.mxu0 %v1441
        %3606 = vmatpush1.bf16.msra.mxu0 %v1438
        %3607 = vmatprep.subr.bf16.mxu0 0
        %3608 = vmatpush2.bf16.msra.mxu0 0
        %3609 = vmatprep.subr.bf16.mxu0 0
        %3610 = vmatpush2.bf16.msra.mxu0 0
        %3611 = vmatprep.subr.bf16.mxu0 0
        %3612 = vmatpush2.bf16.msra.mxu0 0
        %3613 = vmatprep.subr.bf16.mxu0 0
        %3614 = vmatpush2.bf16.msra.mxu0 0
        %3615 = vmatprep.subr.bf16.mxu0 0
        %3616 = vmatpush2.bf16.msra.mxu0 0
        %3617 = vmatprep.subr.bf16.mxu0 0
        %3618 = vmatpush2.bf16.msra.mxu0 0
        %3619 = vmatprep.subr.bf16.mxu0 0
        %3620 = vmatpush2.bf16.msra.mxu0 0
        %3621 = vmatprep.subr.bf16.mxu0 0
        %3622 = vmatpush2.bf16.msra.mxu0 0
        %3623 = vmatprep.mubr.bf16.mxu0 0
        %3624 = vmatmul.mubr.bf16.gmra.mxu0 %v1179
        %v3625 = vpop.f32.mrf.mxu0
        %v3626 = vadd.f32 %v265, %v3625
        %v3627 = vpop.f32.mrf.mxu0
        %v3628 = vadd.f32 %v265, %v3627
        %v3629 = vpop.f32.mrf.mxu0
        %v3630 = vadd.f32 %v270, %v3629
        %v3631 = vpop.f32.mrf.mxu0
        %v3632 = vadd.f32 %v270, %v3631
        %3633 = vdwg.mxu0
        %3634 = vmatprep.subr.bf16.mxu0 0
        %3635 = vmatpush1.bf16.msra.mxu0 0
        %3636 = vmatprep.subr.bf16.mxu0 0
        %3637 = vmatpush1.bf16.msra.mxu0 0
        %3638 = vmatprep.subr.bf16.mxu0 0
        %3639 = vmatpush1.bf16.msra.mxu0 0
        %3640 = vmatprep.subr.bf16.mxu0 0
        %3641 = vmatpush1.bf16.msra.mxu0 0
        %3642 = vmatprep.subr.bf16.mxu0 0
        %3643 = vmatpush1.bf16.msra.mxu0 0
        %3644 = vmatprep.subr.bf16.mxu0 0
        %3645 = vmatpush1.bf16.msra.mxu0 0
        %3646 = vmatprep.subr.bf16.mxu0 0
        %3647 = vmatpush1.bf16.msra.mxu0 0
        %3648 = vmatprep.subr.bf16.mxu0 %v1447
        %3649 = vmatpush1.bf16.msra.mxu0 %v1444
        %3650 = vmatprep.subr.bf16.mxu0 0
        %3651 = vmatpush2.bf16.msra.mxu0 0
        %3652 = vmatprep.subr.bf16.mxu0 0
        %3653 = vmatpush2.bf16.msra.mxu0 0
        %3654 = vmatprep.subr.bf16.mxu0 0
        %3655 = vmatpush2.bf16.msra.mxu0 0
        %3656 = vmatprep.subr.bf16.mxu0 0
        %3657 = vmatpush2.bf16.msra.mxu0 0
        %3658 = vmatprep.subr.bf16.mxu0 0
        %3659 = vmatpush2.bf16.msra.mxu0 0
        %3660 = vmatprep.subr.bf16.mxu0 0
        %3661 = vmatpush2.bf16.msra.mxu0 0
        %3662 = vmatprep.subr.bf16.mxu0 0
        %3663 = vmatpush2.bf16.msra.mxu0 0
        %3664 = vmatprep.subr.bf16.mxu0 0
        %3665 = vmatpush2.bf16.msra.mxu0 0
        %3666 = vmatprep.mubr.bf16.mxu0 0
        %3667 = vmatmul.mubr.bf16.gmra.mxu0 %v1179
        %v3668 = vpop.f32.mrf.mxu0
        %v3669 = vadd.f32 %v265, %v3668
        %v3670 = vpop.f32.mrf.mxu0
        %v3671 = vadd.f32 %v265, %v3670
        %v3672 = vpop.f32.mrf.mxu0
        %v3673 = vadd.f32 %v270, %v3672
        %v3674 = vpop.f32.mrf.mxu0
        %v3675 = vadd.f32 %v270, %v3674
        %3676 = vdwg.mxu0
        %3677 = vmatprep.subr.bf16.mxu0 0
        %3678 = vmatpush1.bf16.msra.mxu0 0
        %3679 = vmatprep.subr.bf16.mxu0 0
        %3680 = vmatpush1.bf16.msra.mxu0 0
        %3681 = vmatprep.subr.bf16.mxu0 0
        %3682 = vmatpush1.bf16.msra.mxu0 0
        %3683 = vmatprep.subr.bf16.mxu0 0
        %3684 = vmatpush1.bf16.msra.mxu0 0
        %3685 = vmatprep.subr.bf16.mxu0 0
        %3686 = vmatpush1.bf16.msra.mxu0 0
        %3687 = vmatprep.subr.bf16.mxu0 0
        %3688 = vmatpush1.bf16.msra.mxu0 0
        %3689 = vmatprep.subr.bf16.mxu0 0
        %3690 = vmatpush1.bf16.msra.mxu0 0
        %3691 = vmatprep.subr.bf16.mxu0 %v1453
        %3692 = vmatpush1.bf16.msra.mxu0 %v1450
        %3693 = vmatprep.subr.bf16.mxu0 0
        %3694 = vmatpush2.bf16.msra.mxu0 0
        %3695 = vmatprep.subr.bf16.mxu0 0
        %3696 = vmatpush2.bf16.msra.mxu0 0
        %3697 = vmatprep.subr.bf16.mxu0 0
        %3698 = vmatpush2.bf16.msra.mxu0 0
        %3699 = vmatprep.subr.bf16.mxu0 0
        %3700 = vmatpush2.bf16.msra.mxu0 0
        %3701 = vmatprep.subr.bf16.mxu0 0
        %3702 = vmatpush2.bf16.msra.mxu0 0
        %3703 = vmatprep.subr.bf16.mxu0 0
        %3704 = vmatpush2.bf16.msra.mxu0 0
        %3705 = vmatprep.subr.bf16.mxu0 0
        %3706 = vmatpush2.bf16.msra.mxu0 0
        %3707 = vmatprep.subr.bf16.mxu0 0
        %3708 = vmatpush2.bf16.msra.mxu0 0
        %3709 = vmatprep.mubr.bf16.mxu0 0
        %3710 = vmatmul.mubr.bf16.gmra.mxu0 %v1179
        %v3711 = vpop.f32.mrf.mxu0
        %v3712 = vadd.f32 %v265, %v3711
        %v3713 = vpop.f32.mrf.mxu0
        %v3714 = vadd.f32 %v265, %v3713
        %v3715 = vpop.f32.mrf.mxu0
        %v3716 = vadd.f32 %v270, %v3715
        %v3717 = vpop.f32.mrf.mxu0
        %v3718 = vadd.f32 %v270, %v3717
        %3719 = vdwg.mxu0
        %3720 = vmatprep.subr.bf16.mxu0 0
        %3721 = vmatpush1.bf16.msra.mxu0 0
        %3722 = vmatprep.subr.bf16.mxu0 0
        %3723 = vmatpush1.bf16.msra.mxu0 0
        %3724 = vmatprep.subr.bf16.mxu0 0
        %3725 = vmatpush1.bf16.msra.mxu0 0
        %3726 = vmatprep.subr.bf16.mxu0 0
        %3727 = vmatpush1.bf16.msra.mxu0 0
        %3728 = vmatprep.subr.bf16.mxu0 0
        %3729 = vmatpush1.bf16.msra.mxu0 0
        %3730 = vmatprep.subr.bf16.mxu0 0
        %3731 = vmatpush1.bf16.msra.mxu0 0
        %3732 = vmatprep.subr.bf16.mxu0 0
        %3733 = vmatpush1.bf16.msra.mxu0 0
        %3734 = vmatprep.subr.bf16.mxu0 %v1459
        %3735 = vmatpush1.bf16.msra.mxu0 %v1456
        %3736 = vmatprep.subr.bf16.mxu0 0
        %3737 = vmatpush2.bf16.msra.mxu0 0
        %3738 = vmatprep.subr.bf16.mxu0 0
        %3739 = vmatpush2.bf16.msra.mxu0 0
        %3740 = vmatprep.subr.bf16.mxu0 0
        %3741 = vmatpush2.bf16.msra.mxu0 0
        %3742 = vmatprep.subr.bf16.mxu0 0
        %3743 = vmatpush2.bf16.msra.mxu0 0
        %3744 = vmatprep.subr.bf16.mxu0 0
        %3745 = vmatpush2.bf16.msra.mxu0 0
        %3746 = vmatprep.subr.bf16.mxu0 0
        %3747 = vmatpush2.bf16.msra.mxu0 0
        %3748 = vmatprep.subr.bf16.mxu0 0
        %3749 = vmatpush2.bf16.msra.mxu0 0
        %3750 = vmatprep.subr.bf16.mxu0 0
        %3751 = vmatpush2.bf16.msra.mxu0 0
        %3752 = vmatprep.mubr.bf16.mxu0 0
        %3753 = vmatmul.mubr.bf16.gmra.mxu0 %v1179
        %v3754 = vpop.f32.mrf.mxu0
        %v3755 = vadd.f32 %v265, %v3754
        %v3756 = vpop.f32.mrf.mxu0
        %v3757 = vadd.f32 %v265, %v3756
        %v3758 = vpop.f32.mrf.mxu0
        %v3759 = vadd.f32 %v270, %v3758
        %v3760 = vpop.f32.mrf.mxu0
        %v3761 = vadd.f32 %v270, %v3760
        %3762 = vdwg.mxu0
        %3763 = vmatprep.subr.bf16.mxu0 0
        %3764 = vmatpush1.bf16.msra.mxu0 0
        %3765 = vmatprep.subr.bf16.mxu0 0
        %3766 = vmatpush1.bf16.msra.mxu0 0
        %3767 = vmatprep.subr.bf16.mxu0 0
        %3768 = vmatpush1.bf16.msra.mxu0 0
        %3769 = vmatprep.subr.bf16.mxu0 0
        %3770 = vmatpush1.bf16.msra.mxu0 0
        %3771 = vmatprep.subr.bf16.mxu0 0
        %3772 = vmatpush1.bf16.msra.mxu0 0
        %3773 = vmatprep.subr.bf16.mxu0 0
        %3774 = vmatpush1.bf16.msra.mxu0 0
        %3775 = vmatprep.subr.bf16.mxu0 0
        %3776 = vmatpush1.bf16.msra.mxu0 0
        %3777 = vmatprep.subr.bf16.mxu0 %v1465
        %3778 = vmatpush1.bf16.msra.mxu0 %v1462
        %3779 = vmatprep.subr.bf16.mxu0 0
        %3780 = vmatpush2.bf16.msra.mxu0 0
        %3781 = vmatprep.subr.bf16.mxu0 0
        %3782 = vmatpush2.bf16.msra.mxu0 0
        %3783 = vmatprep.subr.bf16.mxu0 0
        %3784 = vmatpush2.bf16.msra.mxu0 0
        %3785 = vmatprep.subr.bf16.mxu0 0
        %3786 = vmatpush2.bf16.msra.mxu0 0
        %3787 = vmatprep.subr.bf16.mxu0 0
        %3788 = vmatpush2.bf16.msra.mxu0 0
        %3789 = vmatprep.subr.bf16.mxu0 0
        %3790 = vmatpush2.bf16.msra.mxu0 0
        %3791 = vmatprep.subr.bf16.mxu0 0
        %3792 = vmatpush2.bf16.msra.mxu0 0
        %3793 = vmatprep.subr.bf16.mxu0 0
        %3794 = vmatpush2.bf16.msra.mxu0 0
        %3795 = vmatprep.mubr.bf16.mxu0 0
        %3796 = vmatmul.mubr.bf16.gmra.mxu0 %v1179
        %v3797 = vpop.f32.mrf.mxu0
        %v3798 = vadd.f32 %v265, %v3797
        %v3799 = vpop.f32.mrf.mxu0
        %v3800 = vadd.f32 %v265, %v3799
        %v3801 = vpop.f32.mrf.mxu0
        %v3802 = vadd.f32 %v270, %v3801
        %v3803 = vpop.f32.mrf.mxu0
        %v3804 = vadd.f32 %v270, %v3803
        %3805 = vdwg.mxu0
        %3806 = vmatprep.subr.bf16.mxu0 0
        %3807 = vmatpush1.bf16.msra.mxu0 0
        %3808 = vmatprep.subr.bf16.mxu0 0
        %3809 = vmatpush1.bf16.msra.mxu0 0
        %3810 = vmatprep.subr.bf16.mxu0 0
        %3811 = vmatpush1.bf16.msra.mxu0 0
        %3812 = vmatprep.subr.bf16.mxu0 0
        %3813 = vmatpush1.bf16.msra.mxu0 0
        %3814 = vmatprep.subr.bf16.mxu0 0
        %3815 = vmatpush1.bf16.msra.mxu0 0
        %3816 = vmatprep.subr.bf16.mxu0 0
        %3817 = vmatpush1.bf16.msra.mxu0 0
        %3818 = vmatprep.subr.bf16.mxu0 0
        %3819 = vmatpush1.bf16.msra.mxu0 0
        %3820 = vmatprep.subr.bf16.mxu0 %v1471
        %3821 = vmatpush1.bf16.msra.mxu0 %v1468
        %3822 = vmatprep.subr.bf16.mxu0 0
        %3823 = vmatpush2.bf16.msra.mxu0 0
        %3824 = vmatprep.subr.bf16.mxu0 0
        %3825 = vmatpush2.bf16.msra.mxu0 0
        %3826 = vmatprep.subr.bf16.mxu0 0
        %3827 = vmatpush2.bf16.msra.mxu0 0
        %3828 = vmatprep.subr.bf16.mxu0 0
        %3829 = vmatpush2.bf16.msra.mxu0 0
        %3830 = vmatprep.subr.bf16.mxu0 0
        %3831 = vmatpush2.bf16.msra.mxu0 0
        %3832 = vmatprep.subr.bf16.mxu0 0
        %3833 = vmatpush2.bf16.msra.mxu0 0
        %3834 = vmatprep.subr.bf16.mxu0 0
        %3835 = vmatpush2.bf16.msra.mxu0 0
        %3836 = vmatprep.subr.bf16.mxu0 0
        %3837 = vmatpush2.bf16.msra.mxu0 0
        %3838 = vmatprep.mubr.bf16.mxu0 0
        %3839 = vmatmul.mubr.bf16.gmra.mxu0 %v1179
        %v3840 = vpop.f32.mrf.mxu0
        %v3841 = vadd.f32 %v265, %v3840
        %v3842 = vpop.f32.mrf.mxu0
        %v3843 = vadd.f32 %v265, %v3842
        %v3844 = vpop.f32.mrf.mxu0
        %v3845 = vadd.f32 %v270, %v3844
        %v3846 = vpop.f32.mrf.mxu0
        %v3847 = vadd.f32 %v270, %v3846
        %3848 = vdwg.mxu0
        %3849 = vmatprep.subr.bf16.mxu0 0
        %3850 = vmatpush1.bf16.msra.mxu0 0
        %3851 = vmatprep.subr.bf16.mxu0 0
        %3852 = vmatpush1.bf16.msra.mxu0 0
        %3853 = vmatprep.subr.bf16.mxu0 0
        %3854 = vmatpush1.bf16.msra.mxu0 0
        %3855 = vmatprep.subr.bf16.mxu0 0
        %3856 = vmatpush1.bf16.msra.mxu0 0
        %3857 = vmatprep.subr.bf16.mxu0 0
        %3858 = vmatpush1.bf16.msra.mxu0 0
        %3859 = vmatprep.subr.bf16.mxu0 0
        %3860 = vmatpush1.bf16.msra.mxu0 0
        %3861 = vmatprep.subr.bf16.mxu0 0
        %3862 = vmatpush1.bf16.msra.mxu0 0
        %3863 = vmatprep.subr.bf16.mxu0 %v1477
        %3864 = vmatpush1.bf16.msra.mxu0 %v1474
        %3865 = vmatprep.subr.bf16.mxu0 0
        %3866 = vmatpush2.bf16.msra.mxu0 0
        %3867 = vmatprep.subr.bf16.mxu0 0
        %3868 = vmatpush2.bf16.msra.mxu0 0
        %3869 = vmatprep.subr.bf16.mxu0 0
        %3870 = vmatpush2.bf16.msra.mxu0 0
        %3871 = vmatprep.subr.bf16.mxu0 0
        %3872 = vmatpush2.bf16.msra.mxu0 0
        %3873 = vmatprep.subr.bf16.mxu0 0
        %3874 = vmatpush2.bf16.msra.mxu0 0
        %3875 = vmatprep.subr.bf16.mxu0 0
        %3876 = vmatpush2.bf16.msra.mxu0 0
        %3877 = vmatprep.subr.bf16.mxu0 0
        %3878 = vmatpush2.bf16.msra.mxu0 0
        %3879 = vmatprep.subr.bf16.mxu0 0
        %3880 = vmatpush2.bf16.msra.mxu0 0
        %3881 = vmatprep.mubr.bf16.mxu0 0
        %3882 = vmatmul.mubr.bf16.gmra.mxu0 %v1179
        %v3883 = vpop.f32.mrf.mxu0
        %v3884 = vadd.f32 %v265, %v3883
        %v3885 = vpop.f32.mrf.mxu0
        %v3886 = vadd.f32 %v265, %v3885
        %v3887 = vpop.f32.mrf.mxu0
        %v3888 = vadd.f32 %v270, %v3887
        %v3889 = vpop.f32.mrf.mxu0
        %v3890 = vadd.f32 %v270, %v3889
        %3891 = vdwg.mxu0
        %3892 = vmatprep.subr.bf16.mxu0 0
        %3893 = vmatpush1.bf16.msra.mxu0 0
        %3894 = vmatprep.subr.bf16.mxu0 0
        %3895 = vmatpush1.bf16.msra.mxu0 0
        %3896 = vmatprep.subr.bf16.mxu0 0
        %3897 = vmatpush1.bf16.msra.mxu0 0
        %3898 = vmatprep.subr.bf16.mxu0 0
        %3899 = vmatpush1.bf16.msra.mxu0 0
        %3900 = vmatprep.subr.bf16.mxu0 0
        %3901 = vmatpush1.bf16.msra.mxu0 0
        %3902 = vmatprep.subr.bf16.mxu0 0
        %3903 = vmatpush1.bf16.msra.mxu0 0
        %3904 = vmatprep.subr.bf16.mxu0 0
        %3905 = vmatpush1.bf16.msra.mxu0 0
        %3906 = vmatprep.subr.bf16.mxu0 %v1483
        %3907 = vmatpush1.bf16.msra.mxu0 %v1480
        %3908 = vmatprep.subr.bf16.mxu0 0
        %3909 = vmatpush2.bf16.msra.mxu0 0
        %3910 = vmatprep.subr.bf16.mxu0 0
        %3911 = vmatpush2.bf16.msra.mxu0 0
        %3912 = vmatprep.subr.bf16.mxu0 0
        %3913 = vmatpush2.bf16.msra.mxu0 0
        %3914 = vmatprep.subr.bf16.mxu0 0
        %3915 = vmatpush2.bf16.msra.mxu0 0
        %3916 = vmatprep.subr.bf16.mxu0 0
        %3917 = vmatpush2.bf16.msra.mxu0 0
        %3918 = vmatprep.subr.bf16.mxu0 0
        %3919 = vmatpush2.bf16.msra.mxu0 0
        %3920 = vmatprep.subr.bf16.mxu0 0
        %3921 = vmatpush2.bf16.msra.mxu0 0
        %3922 = vmatprep.subr.bf16.mxu0 0
        %3923 = vmatpush2.bf16.msra.mxu0 0
        %3924 = vmatprep.mubr.bf16.mxu0 0
        %3925 = vmatmul.mubr.bf16.gmra.mxu0 %v1179
        %v3926 = vpop.f32.mrf.mxu0
        %v3927 = vadd.f32 %v265, %v3926
        %v3928 = vpop.f32.mrf.mxu0
        %v3929 = vadd.f32 %v265, %v3928
        %v3930 = vpop.f32.mrf.mxu0
        %v3931 = vadd.f32 %v270, %v3930
        %v3932 = vpop.f32.mrf.mxu0
        %v3933 = vadd.f32 %v270, %v3932
        %3934 = vdwg.mxu0
        %3935 = vmatprep.subr.bf16.mxu0 0
        %3936 = vmatpush1.bf16.msra.mxu0 0
        %3937 = vmatprep.subr.bf16.mxu0 0
        %3938 = vmatpush1.bf16.msra.mxu0 0
        %3939 = vmatprep.subr.bf16.mxu0 0
        %3940 = vmatpush1.bf16.msra.mxu0 0
        %3941 = vmatprep.subr.bf16.mxu0 0
        %3942 = vmatpush1.bf16.msra.mxu0 0
        %3943 = vmatprep.subr.bf16.mxu0 0
        %3944 = vmatpush1.bf16.msra.mxu0 0
        %3945 = vmatprep.subr.bf16.mxu0 0
        %3946 = vmatpush1.bf16.msra.mxu0 0
        %3947 = vmatprep.subr.bf16.mxu0 0
        %3948 = vmatpush1.bf16.msra.mxu0 0
        %3949 = vmatprep.subr.bf16.mxu0 %v1489
        %3950 = vmatpush1.bf16.msra.mxu0 %v1486
        %3951 = vmatprep.subr.bf16.mxu0 0
        %3952 = vmatpush2.bf16.msra.mxu0 0
        %3953 = vmatprep.subr.bf16.mxu0 0
        %3954 = vmatpush2.bf16.msra.mxu0 0
        %3955 = vmatprep.subr.bf16.mxu0 0
        %3956 = vmatpush2.bf16.msra.mxu0 0
        %3957 = vmatprep.subr.bf16.mxu0 0
        %3958 = vmatpush2.bf16.msra.mxu0 0
        %3959 = vmatprep.subr.bf16.mxu0 0
        %3960 = vmatpush2.bf16.msra.mxu0 0
        %3961 = vmatprep.subr.bf16.mxu0 0
        %3962 = vmatpush2.bf16.msra.mxu0 0
        %3963 = vmatprep.subr.bf16.mxu0 0
        %3964 = vmatpush2.bf16.msra.mxu0 0
        %3965 = vmatprep.subr.bf16.mxu0 0
        %3966 = vmatpush2.bf16.msra.mxu0 0
        %3967 = vmatprep.mubr.bf16.mxu0 0
        %3968 = vmatmul.mubr.bf16.gmra.mxu0 %v1179
        %v3969 = vpop.f32.mrf.mxu0
        %v3970 = vadd.f32 %v265, %v3969
        %v3971 = vpop.f32.mrf.mxu0
        %v3972 = vadd.f32 %v265, %v3971
        %v3973 = vpop.f32.mrf.mxu0
        %v3974 = vadd.f32 %v270, %v3973
        %v3975 = vpop.f32.mrf.mxu0
        %v3976 = vadd.f32 %v270, %v3975
        %3977 = vdwg.mxu0
        %3978 = vmatprep.subr.bf16.mxu0 0
        %3979 = vmatpush1.bf16.msra.mxu0 0
        %3980 = vmatprep.subr.bf16.mxu0 0
        %3981 = vmatpush1.bf16.msra.mxu0 0
        %3982 = vmatprep.subr.bf16.mxu0 0
        %3983 = vmatpush1.bf16.msra.mxu0 0
        %3984 = vmatprep.subr.bf16.mxu0 0
        %3985 = vmatpush1.bf16.msra.mxu0 0
        %3986 = vmatprep.subr.bf16.mxu0 0
        %3987 = vmatpush1.bf16.msra.mxu0 0
        %3988 = vmatprep.subr.bf16.mxu0 0
        %3989 = vmatpush1.bf16.msra.mxu0 0
        %3990 = vmatprep.subr.bf16.mxu0 0
        %3991 = vmatpush1.bf16.msra.mxu0 0
        %3992 = vmatprep.subr.bf16.mxu0 %v1495
        %3993 = vmatpush1.bf16.msra.mxu0 %v1492
        %3994 = vmatprep.subr.bf16.mxu0 0
        %3995 = vmatpush2.bf16.msra.mxu0 0
        %3996 = vmatprep.subr.bf16.mxu0 0
        %3997 = vmatpush2.bf16.msra.mxu0 0
        %3998 = vmatprep.subr.bf16.mxu0 0
        %3999 = vmatpush2.bf16.msra.mxu0 0
        %4000 = vmatprep.subr.bf16.mxu0 0
        %4001 = vmatpush2.bf16.msra.mxu0 0
        %4002 = vmatprep.subr.bf16.mxu0 0
        %4003 = vmatpush2.bf16.msra.mxu0 0
        %4004 = vmatprep.subr.bf16.mxu0 0
        %4005 = vmatpush2.bf16.msra.mxu0 0
        %4006 = vmatprep.subr.bf16.mxu0 0
        %4007 = vmatpush2.bf16.msra.mxu0 0
        %4008 = vmatprep.subr.bf16.mxu0 0
        %4009 = vmatpush2.bf16.msra.mxu0 0
        %4010 = vmatprep.mubr.bf16.mxu0 0
        %4011 = vmatmul.mubr.bf16.gmra.mxu0 %v1179
        %v4012 = vpop.f32.mrf.mxu0
        %v4013 = vadd.f32 %v265, %v4012
        %v4014 = vpop.f32.mrf.mxu0
        %v4015 = vadd.f32 %v265, %v4014
        %v4016 = vpop.f32.mrf.mxu0
        %v4017 = vadd.f32 %v270, %v4016
        %v4018 = vpop.f32.mrf.mxu0
        %v4019 = vadd.f32 %v270, %v4018
        %4020 = vdwg.mxu0
        %4021 = vmatprep.subr.bf16.mxu0 0
        %4022 = vmatpush1.bf16.msra.mxu0 0
        %4023 = vmatprep.subr.bf16.mxu0 0
        %4024 = vmatpush1.bf16.msra.mxu0 0
        %4025 = vmatprep.subr.bf16.mxu0 0
        %4026 = vmatpush1.bf16.msra.mxu0 0
        %4027 = vmatprep.subr.bf16.mxu0 0
        %4028 = vmatpush1.bf16.msra.mxu0 0
        %4029 = vmatprep.subr.bf16.mxu0 0
        %4030 = vmatpush1.bf16.msra.mxu0 0
        %4031 = vmatprep.subr.bf16.mxu0 0
        %4032 = vmatpush1.bf16.msra.mxu0 0
        %4033 = vmatprep.subr.bf16.mxu0 0
        %4034 = vmatpush1.bf16.msra.mxu0 0
        %4035 = vmatprep.subr.bf16.mxu0 %v1501
        %4036 = vmatpush1.bf16.msra.mxu0 %v1498
        %4037 = vmatprep.subr.bf16.mxu0 0
        %4038 = vmatpush2.bf16.msra.mxu0 0
        %4039 = vmatprep.subr.bf16.mxu0 0
        %4040 = vmatpush2.bf16.msra.mxu0 0
        %4041 = vmatprep.subr.bf16.mxu0 0
        %4042 = vmatpush2.bf16.msra.mxu0 0
        %4043 = vmatprep.subr.bf16.mxu0 0
        %4044 = vmatpush2.bf16.msra.mxu0 0
        %4045 = vmatprep.subr.bf16.mxu0 0
        %4046 = vmatpush2.bf16.msra.mxu0 0
        %4047 = vmatprep.subr.bf16.mxu0 0
        %4048 = vmatpush2.bf16.msra.mxu0 0
        %4049 = vmatprep.subr.bf16.mxu0 0
        %4050 = vmatpush2.bf16.msra.mxu0 0
        %4051 = vmatprep.subr.bf16.mxu0 0
        %4052 = vmatpush2.bf16.msra.mxu0 0
        %4053 = vmatprep.mubr.bf16.mxu0 0
        %4054 = vmatmul.mubr.bf16.gmra.mxu0 %v1179
        %v4055 = vpop.f32.mrf.mxu0
        %v4056 = vadd.f32 %v265, %v4055
        %v4057 = vpop.f32.mrf.mxu0
        %v4058 = vadd.f32 %v265, %v4057
        %v4059 = vpop.f32.mrf.mxu0
        %v4060 = vadd.f32 %v270, %v4059
        %v4061 = vpop.f32.mrf.mxu0
        %v4062 = vadd.f32 %v270, %v4061
        %4063 = vdwg.mxu0
        %4064 = vmatprep.subr.bf16.mxu0 0
        %4065 = vmatpush1.bf16.msra.mxu0 0
        %4066 = vmatprep.subr.bf16.mxu0 0
        %4067 = vmatpush1.bf16.msra.mxu0 0
        %4068 = vmatprep.subr.bf16.mxu0 0
        %4069 = vmatpush1.bf16.msra.mxu0 0
        %4070 = vmatprep.subr.bf16.mxu0 0
        %4071 = vmatpush1.bf16.msra.mxu0 0
        %4072 = vmatprep.subr.bf16.mxu0 0
        %4073 = vmatpush1.bf16.msra.mxu0 0
        %4074 = vmatprep.subr.bf16.mxu0 0
        %4075 = vmatpush1.bf16.msra.mxu0 0
        %4076 = vmatprep.subr.bf16.mxu0 0
        %4077 = vmatpush1.bf16.msra.mxu0 0
        %4078 = vmatprep.subr.bf16.mxu0 %v1507
        %4079 = vmatpush1.bf16.msra.mxu0 %v1504
        %4080 = vmatprep.subr.bf16.mxu0 0
        %4081 = vmatpush2.bf16.msra.mxu0 0
        %4082 = vmatprep.subr.bf16.mxu0 0
        %4083 = vmatpush2.bf16.msra.mxu0 0
        %4084 = vmatprep.subr.bf16.mxu0 0
        %4085 = vmatpush2.bf16.msra.mxu0 0
        %4086 = vmatprep.subr.bf16.mxu0 0
        %4087 = vmatpush2.bf16.msra.mxu0 0
        %4088 = vmatprep.subr.bf16.mxu0 0
        %4089 = vmatpush2.bf16.msra.mxu0 0
        %4090 = vmatprep.subr.bf16.mxu0 0
        %4091 = vmatpush2.bf16.msra.mxu0 0
        %4092 = vmatprep.subr.bf16.mxu0 0
        %4093 = vmatpush2.bf16.msra.mxu0 0
        %4094 = vmatprep.subr.bf16.mxu0 0
        %4095 = vmatpush2.bf16.msra.mxu0 0
        %4096 = vmatprep.mubr.bf16.mxu0 0
        %4097 = vmatmul.mubr.bf16.gmra.mxu0 %v1179
        %v4098 = vpop.f32.mrf.mxu0
        %v4099 = vadd.f32 %v265, %v4098
        %v4100 = vpop.f32.mrf.mxu0
        %v4101 = vadd.f32 %v265, %v4100
        %v4102 = vpop.f32.mrf.mxu0
        %v4103 = vadd.f32 %v270, %v4102
        %v4104 = vpop.f32.mrf.mxu0
        %v4105 = vadd.f32 %v270, %v4104
        %4106 = vdwg.mxu0
        %4107 = vmatprep.subr.bf16.mxu0 0
        %4108 = vmatpush1.bf16.msra.mxu0 0
        %4109 = vmatprep.subr.bf16.mxu0 0
        %4110 = vmatpush1.bf16.msra.mxu0 0
        %4111 = vmatprep.subr.bf16.mxu0 0
        %4112 = vmatpush1.bf16.msra.mxu0 0
        %4113 = vmatprep.subr.bf16.mxu0 0
        %4114 = vmatpush1.bf16.msra.mxu0 0
        %4115 = vmatprep.subr.bf16.mxu0 0
        %4116 = vmatpush1.bf16.msra.mxu0 0
        %4117 = vmatprep.subr.bf16.mxu0 0
        %4118 = vmatpush1.bf16.msra.mxu0 0
        %4119 = vmatprep.subr.bf16.mxu0 0
        %4120 = vmatpush1.bf16.msra.mxu0 0
        %4121 = vmatprep.subr.bf16.mxu0 %v1513
        %4122 = vmatpush1.bf16.msra.mxu0 %v1510
        %4123 = vmatprep.subr.bf16.mxu0 0
        %4124 = vmatpush2.bf16.msra.mxu0 0
        %4125 = vmatprep.subr.bf16.mxu0 0
        %4126 = vmatpush2.bf16.msra.mxu0 0
        %4127 = vmatprep.subr.bf16.mxu0 0
        %4128 = vmatpush2.bf16.msra.mxu0 0
        %4129 = vmatprep.subr.bf16.mxu0 0
        %4130 = vmatpush2.bf16.msra.mxu0 0
        %4131 = vmatprep.subr.bf16.mxu0 0
        %4132 = vmatpush2.bf16.msra.mxu0 0
        %4133 = vmatprep.subr.bf16.mxu0 0
        %4134 = vmatpush2.bf16.msra.mxu0 0
        %4135 = vmatprep.subr.bf16.mxu0 0
        %4136 = vmatpush2.bf16.msra.mxu0 0
        %4137 = vmatprep.subr.bf16.mxu0 0
        %4138 = vmatpush2.bf16.msra.mxu0 0
        %4139 = vmatprep.mubr.bf16.mxu0 0
        %4140 = vmatmul.mubr.bf16.gmra.mxu0 %v1179
        %v4141 = vpop.f32.mrf.mxu0
        %v4142 = vadd.f32 %v265, %v4141
        %v4143 = vpop.f32.mrf.mxu0
        %v4144 = vadd.f32 %v265, %v4143
        %v4145 = vpop.f32.mrf.mxu0
        %v4146 = vadd.f32 %v270, %v4145
        %v4147 = vpop.f32.mrf.mxu0
        %v4148 = vadd.f32 %v270, %v4147
        %4149 = vdwg.mxu0
        %4150 = vmatprep.subr.bf16.mxu0 0
        %4151 = vmatpush1.bf16.msra.mxu0 0
        %4152 = vmatprep.subr.bf16.mxu0 0
        %4153 = vmatpush1.bf16.msra.mxu0 0
        %4154 = vmatprep.subr.bf16.mxu0 0
        %4155 = vmatpush1.bf16.msra.mxu0 0
        %4156 = vmatprep.subr.bf16.mxu0 0
        %4157 = vmatpush1.bf16.msra.mxu0 0
        %4158 = vmatprep.subr.bf16.mxu0 0
        %4159 = vmatpush1.bf16.msra.mxu0 0
        %4160 = vmatprep.subr.bf16.mxu0 0
        %4161 = vmatpush1.bf16.msra.mxu0 0
        %4162 = vmatprep.subr.bf16.mxu0 0
        %4163 = vmatpush1.bf16.msra.mxu0 0
        %4164 = vmatprep.subr.bf16.mxu0 %v1519
        %4165 = vmatpush1.bf16.msra.mxu0 %v1516
        %4166 = vmatprep.subr.bf16.mxu0 0
        %4167 = vmatpush2.bf16.msra.mxu0 0
        %4168 = vmatprep.subr.bf16.mxu0 0
        %4169 = vmatpush2.bf16.msra.mxu0 0
        %4170 = vmatprep.subr.bf16.mxu0 0
        %4171 = vmatpush2.bf16.msra.mxu0 0
        %4172 = vmatprep.subr.bf16.mxu0 0
        %4173 = vmatpush2.bf16.msra.mxu0 0
        %4174 = vmatprep.subr.bf16.mxu0 0
        %4175 = vmatpush2.bf16.msra.mxu0 0
        %4176 = vmatprep.subr.bf16.mxu0 0
        %4177 = vmatpush2.bf16.msra.mxu0 0
        %4178 = vmatprep.subr.bf16.mxu0 0
        %4179 = vmatpush2.bf16.msra.mxu0 0
        %4180 = vmatprep.subr.bf16.mxu0 0
        %4181 = vmatpush2.bf16.msra.mxu0 0
        %4182 = vmatprep.mubr.bf16.mxu0 0
        %4183 = vmatmul.mubr.bf16.gmra.mxu0 %v1179
        %v4184 = vpop.f32.mrf.mxu0
        %v4185 = vadd.f32 %v265, %v4184
        %v4186 = vpop.f32.mrf.mxu0
        %v4187 = vadd.f32 %v265, %v4186
        %v4188 = vpop.f32.mrf.mxu0
        %v4189 = vadd.f32 %v270, %v4188
        %v4190 = vpop.f32.mrf.mxu0
        %v4191 = vadd.f32 %v270, %v4190
        %4192 = vdwg.mxu0
        %4193 = vmatprep.subr.bf16.mxu0 0
        %4194 = vmatpush1.bf16.msra.mxu0 0
        %4195 = vmatprep.subr.bf16.mxu0 0
        %4196 = vmatpush1.bf16.msra.mxu0 0
        %4197 = vmatprep.subr.bf16.mxu0 0
        %4198 = vmatpush1.bf16.msra.mxu0 0
        %4199 = vmatprep.subr.bf16.mxu0 0
        %4200 = vmatpush1.bf16.msra.mxu0 0
        %4201 = vmatprep.subr.bf16.mxu0 0
        %4202 = vmatpush1.bf16.msra.mxu0 0
        %4203 = vmatprep.subr.bf16.mxu0 0
        %4204 = vmatpush1.bf16.msra.mxu0 0
        %4205 = vmatprep.subr.bf16.mxu0 0
        %4206 = vmatpush1.bf16.msra.mxu0 0
        %4207 = vmatprep.subr.bf16.mxu0 %v1525
        %4208 = vmatpush1.bf16.msra.mxu0 %v1522
        %4209 = vmatprep.subr.bf16.mxu0 0
        %4210 = vmatpush2.bf16.msra.mxu0 0
        %4211 = vmatprep.subr.bf16.mxu0 0
        %4212 = vmatpush2.bf16.msra.mxu0 0
        %4213 = vmatprep.subr.bf16.mxu0 0
        %4214 = vmatpush2.bf16.msra.mxu0 0
        %4215 = vmatprep.subr.bf16.mxu0 0
        %4216 = vmatpush2.bf16.msra.mxu0 0
        %4217 = vmatprep.subr.bf16.mxu0 0
        %4218 = vmatpush2.bf16.msra.mxu0 0
        %4219 = vmatprep.subr.bf16.mxu0 0
        %4220 = vmatpush2.bf16.msra.mxu0 0
        %4221 = vmatprep.subr.bf16.mxu0 0
        %4222 = vmatpush2.bf16.msra.mxu0 0
        %4223 = vmatprep.subr.bf16.mxu0 0
        %4224 = vmatpush2.bf16.msra.mxu0 0
        %4225 = vmatprep.mubr.bf16.mxu0 0
        %4226 = vmatmul.mubr.bf16.gmra.mxu0 %v1179
        %v4227 = vpop.f32.mrf.mxu0
        %v4228 = vadd.f32 %v265, %v4227
        %v4229 = vpop.f32.mrf.mxu0
        %v4230 = vadd.f32 %v265, %v4229
        %v4231 = vpop.f32.mrf.mxu0
        %v4232 = vadd.f32 %v270, %v4231
        %v4233 = vpop.f32.mrf.mxu0
        %v4234 = vadd.f32 %v270, %v4233
        %4235 = vdwg.mxu0
        %4236 = vmatprep.subr.bf16.mxu0 0
        %4237 = vmatpush1.bf16.msra.mxu0 0
        %4238 = vmatprep.subr.bf16.mxu0 0
        %4239 = vmatpush1.bf16.msra.mxu0 0
        %4240 = vmatprep.subr.bf16.mxu0 0
        %4241 = vmatpush1.bf16.msra.mxu0 0
        %4242 = vmatprep.subr.bf16.mxu0 0
        %4243 = vmatpush1.bf16.msra.mxu0 0
        %4244 = vmatprep.subr.bf16.mxu0 0
        %4245 = vmatpush1.bf16.msra.mxu0 0
        %4246 = vmatprep.subr.bf16.mxu0 0
        %4247 = vmatpush1.bf16.msra.mxu0 0
        %4248 = vmatprep.subr.bf16.mxu0 0
        %4249 = vmatpush1.bf16.msra.mxu0 0
        %4250 = vmatprep.subr.bf16.mxu0 %v1531
        %4251 = vmatpush1.bf16.msra.mxu0 %v1528
        %4252 = vmatprep.subr.bf16.mxu0 0
        %4253 = vmatpush2.bf16.msra.mxu0 0
        %4254 = vmatprep.subr.bf16.mxu0 0
        %4255 = vmatpush2.bf16.msra.mxu0 0
        %4256 = vmatprep.subr.bf16.mxu0 0
        %4257 = vmatpush2.bf16.msra.mxu0 0
        %4258 = vmatprep.subr.bf16.mxu0 0
        %4259 = vmatpush2.bf16.msra.mxu0 0
        %4260 = vmatprep.subr.bf16.mxu0 0
        %4261 = vmatpush2.bf16.msra.mxu0 0
        %4262 = vmatprep.subr.bf16.mxu0 0
        %4263 = vmatpush2.bf16.msra.mxu0 0
        %4264 = vmatprep.subr.bf16.mxu0 0
        %4265 = vmatpush2.bf16.msra.mxu0 0
        %4266 = vmatprep.subr.bf16.mxu0 0
        %4267 = vmatpush2.bf16.msra.mxu0 0
        %4268 = vmatprep.mubr.bf16.mxu0 0
        %4269 = vmatmul.mubr.bf16.gmra.mxu0 %v1179
        %v4270 = vpop.f32.mrf.mxu0
        %v4271 = vadd.f32 %v265, %v4270
        %v4272 = vpop.f32.mrf.mxu0
        %v4273 = vadd.f32 %v265, %v4272
        %v4274 = vpop.f32.mrf.mxu0
        %v4275 = vadd.f32 %v270, %v4274
        %v4276 = vpop.f32.mrf.mxu0
        %v4277 = vadd.f32 %v270, %v4276
        %4278 = vdwg.mxu0
        %4279 = vmatprep.subr.bf16.mxu0 0
        %4280 = vmatpush1.bf16.msra.mxu0 0
        %4281 = vmatprep.subr.bf16.mxu0 0
        %4282 = vmatpush1.bf16.msra.mxu0 0
        %4283 = vmatprep.subr.bf16.mxu0 0
        %4284 = vmatpush1.bf16.msra.mxu0 0
        %4285 = vmatprep.subr.bf16.mxu0 0
        %4286 = vmatpush1.bf16.msra.mxu0 0
        %4287 = vmatprep.subr.bf16.mxu0 0
        %4288 = vmatpush1.bf16.msra.mxu0 0
        %4289 = vmatprep.subr.bf16.mxu0 0
        %4290 = vmatpush1.bf16.msra.mxu0 0
        %4291 = vmatprep.subr.bf16.mxu0 0
        %4292 = vmatpush1.bf16.msra.mxu0 0
        %4293 = vmatprep.subr.bf16.mxu0 %v1537
        %4294 = vmatpush1.bf16.msra.mxu0 %v1534
        %4295 = vmatprep.subr.bf16.mxu0 0
        %4296 = vmatpush2.bf16.msra.mxu0 0
        %4297 = vmatprep.subr.bf16.mxu0 0
        %4298 = vmatpush2.bf16.msra.mxu0 0
        %4299 = vmatprep.subr.bf16.mxu0 0
        %4300 = vmatpush2.bf16.msra.mxu0 0
        %4301 = vmatprep.subr.bf16.mxu0 0
        %4302 = vmatpush2.bf16.msra.mxu0 0
        %4303 = vmatprep.subr.bf16.mxu0 0
        %4304 = vmatpush2.bf16.msra.mxu0 0
        %4305 = vmatprep.subr.bf16.mxu0 0
        %4306 = vmatpush2.bf16.msra.mxu0 0
        %4307 = vmatprep.subr.bf16.mxu0 0
        %4308 = vmatpush2.bf16.msra.mxu0 0
        %4309 = vmatprep.subr.bf16.mxu0 0
        %4310 = vmatpush2.bf16.msra.mxu0 0
        %4311 = vmatprep.mubr.bf16.mxu0 0
        %4312 = vmatmul.mubr.bf16.gmra.mxu0 %v1179
        %v4313 = vpop.f32.mrf.mxu0
        %v4314 = vadd.f32 %v265, %v4313
        %v4315 = vpop.f32.mrf.mxu0
        %v4316 = vadd.f32 %v265, %v4315
        %v4317 = vpop.f32.mrf.mxu0
        %v4318 = vadd.f32 %v270, %v4317
        %v4319 = vpop.f32.mrf.mxu0
        %v4320 = vadd.f32 %v270, %v4319
        %4321 = vdwg.mxu0
        %4322 = vmatprep.subr.bf16.mxu0 0
        %4323 = vmatpush1.bf16.msra.mxu0 0
        %4324 = vmatprep.subr.bf16.mxu0 0
        %4325 = vmatpush1.bf16.msra.mxu0 0
        %4326 = vmatprep.subr.bf16.mxu0 0
        %4327 = vmatpush1.bf16.msra.mxu0 0
        %4328 = vmatprep.subr.bf16.mxu0 0
        %4329 = vmatpush1.bf16.msra.mxu0 0
        %4330 = vmatprep.subr.bf16.mxu0 0
        %4331 = vmatpush1.bf16.msra.mxu0 0
        %4332 = vmatprep.subr.bf16.mxu0 0
        %4333 = vmatpush1.bf16.msra.mxu0 0
        %4334 = vmatprep.subr.bf16.mxu0 0
        %4335 = vmatpush1.bf16.msra.mxu0 0
        %4336 = vmatprep.subr.bf16.mxu0 %v1543
        %4337 = vmatpush1.bf16.msra.mxu0 %v1540
        %4338 = vmatprep.subr.bf16.mxu0 0
        %4339 = vmatpush2.bf16.msra.mxu0 0
        %4340 = vmatprep.subr.bf16.mxu0 0
        %4341 = vmatpush2.bf16.msra.mxu0 0
        %4342 = vmatprep.subr.bf16.mxu0 0
        %4343 = vmatpush2.bf16.msra.mxu0 0
        %4344 = vmatprep.subr.bf16.mxu0 0
        %4345 = vmatpush2.bf16.msra.mxu0 0
        %4346 = vmatprep.subr.bf16.mxu0 0
        %4347 = vmatpush2.bf16.msra.mxu0 0
        %4348 = vmatprep.subr.bf16.mxu0 0
        %4349 = vmatpush2.bf16.msra.mxu0 0
        %4350 = vmatprep.subr.bf16.mxu0 0
        %4351 = vmatpush2.bf16.msra.mxu0 0
        %4352 = vmatprep.subr.bf16.mxu0 0
        %4353 = vmatpush2.bf16.msra.mxu0 0
        %4354 = vmatprep.mubr.bf16.mxu0 0
        %4355 = vmatmul.mubr.bf16.gmra.mxu0 %v1179
        %v4356 = vpop.f32.mrf.mxu0
        %v4357 = vadd.f32 %v265, %v4356
        %v4358 = vpop.f32.mrf.mxu0
        %v4359 = vadd.f32 %v265, %v4358
        %v4360 = vpop.f32.mrf.mxu0
        %v4361 = vadd.f32 %v270, %v4360
        %v4362 = vpop.f32.mrf.mxu0
        %v4363 = vadd.f32 %v270, %v4362
        %4364 = vdwg.mxu0
        %4365 = vmatprep.subr.bf16.mxu0 0
        %4366 = vmatpush1.bf16.msra.mxu0 0
        %4367 = vmatprep.subr.bf16.mxu0 0
        %4368 = vmatpush1.bf16.msra.mxu0 0
        %4369 = vmatprep.subr.bf16.mxu0 0
        %4370 = vmatpush1.bf16.msra.mxu0 0
        %4371 = vmatprep.subr.bf16.mxu0 0
        %4372 = vmatpush1.bf16.msra.mxu0 0
        %4373 = vmatprep.subr.bf16.mxu0 0
        %4374 = vmatpush1.bf16.msra.mxu0 0
        %4375 = vmatprep.subr.bf16.mxu0 0
        %4376 = vmatpush1.bf16.msra.mxu0 0
        %4377 = vmatprep.subr.bf16.mxu0 0
        %4378 = vmatpush1.bf16.msra.mxu0 0
        %4379 = vmatprep.subr.bf16.mxu0 %v1549
        %4380 = vmatpush1.bf16.msra.mxu0 %v1546
        %4381 = vmatprep.subr.bf16.mxu0 0
        %4382 = vmatpush2.bf16.msra.mxu0 0
        %4383 = vmatprep.subr.bf16.mxu0 0
        %4384 = vmatpush2.bf16.msra.mxu0 0
        %4385 = vmatprep.subr.bf16.mxu0 0
        %4386 = vmatpush2.bf16.msra.mxu0 0
        %4387 = vmatprep.subr.bf16.mxu0 0
        %4388 = vmatpush2.bf16.msra.mxu0 0
        %4389 = vmatprep.subr.bf16.mxu0 0
        %4390 = vmatpush2.bf16.msra.mxu0 0
        %4391 = vmatprep.subr.bf16.mxu0 0
        %4392 = vmatpush2.bf16.msra.mxu0 0
        %4393 = vmatprep.subr.bf16.mxu0 0
        %4394 = vmatpush2.bf16.msra.mxu0 0
        %4395 = vmatprep.subr.bf16.mxu0 0
        %4396 = vmatpush2.bf16.msra.mxu0 0
        %4397 = vmatprep.mubr.bf16.mxu0 0
        %4398 = vmatmul.mubr.bf16.gmra.mxu0 %v1179
        %v4399 = vpop.f32.mrf.mxu0
        %v4400 = vadd.f32 %v265, %v4399
        %v4401 = vpop.f32.mrf.mxu0
        %v4402 = vadd.f32 %v265, %v4401
        %v4403 = vpop.f32.mrf.mxu0
        %v4404 = vadd.f32 %v270, %v4403
        %v4405 = vpop.f32.mrf.mxu0
        %v4406 = vadd.f32 %v270, %v4405
        %4407 = vdwg.mxu0
        %4408 = vmatprep.subr.bf16.mxu0 0
        %4409 = vmatpush1.bf16.msra.mxu0 0
        %4410 = vmatprep.subr.bf16.mxu0 0
        %4411 = vmatpush1.bf16.msra.mxu0 0
        %4412 = vmatprep.subr.bf16.mxu0 0
        %4413 = vmatpush1.bf16.msra.mxu0 0
        %4414 = vmatprep.subr.bf16.mxu0 0
        %4415 = vmatpush1.bf16.msra.mxu0 0
        %4416 = vmatprep.subr.bf16.mxu0 0
        %4417 = vmatpush1.bf16.msra.mxu0 0
        %4418 = vmatprep.subr.bf16.mxu0 0
        %4419 = vmatpush1.bf16.msra.mxu0 0
        %4420 = vmatprep.subr.bf16.mxu0 0
        %4421 = vmatpush1.bf16.msra.mxu0 0
        %4422 = vmatprep.subr.bf16.mxu0 %v1555
        %4423 = vmatpush1.bf16.msra.mxu0 %v1552
        %4424 = vmatprep.subr.bf16.mxu0 0
        %4425 = vmatpush2.bf16.msra.mxu0 0
        %4426 = vmatprep.subr.bf16.mxu0 0
        %4427 = vmatpush2.bf16.msra.mxu0 0
        %4428 = vmatprep.subr.bf16.mxu0 0
        %4429 = vmatpush2.bf16.msra.mxu0 0
        %4430 = vmatprep.subr.bf16.mxu0 0
        %4431 = vmatpush2.bf16.msra.mxu0 0
        %4432 = vmatprep.subr.bf16.mxu0 0
        %4433 = vmatpush2.bf16.msra.mxu0 0
        %4434 = vmatprep.subr.bf16.mxu0 0
        %4435 = vmatpush2.bf16.msra.mxu0 0
        %4436 = vmatprep.subr.bf16.mxu0 0
        %4437 = vmatpush2.bf16.msra.mxu0 0
        %4438 = vmatprep.subr.bf16.mxu0 0
        %4439 = vmatpush2.bf16.msra.mxu0 0
        %4440 = vmatprep.mubr.bf16.mxu0 0
        %4441 = vmatmul.mubr.bf16.gmra.mxu0 %v1179
        %v4442 = vpop.f32.mrf.mxu0
        %v4443 = vadd.f32 %v265, %v4442
        %v4444 = vpop.f32.mrf.mxu0
        %v4445 = vadd.f32 %v265, %v4444
        %v4446 = vpop.f32.mrf.mxu0
        %v4447 = vadd.f32 %v270, %v4446
        %v4448 = vpop.f32.mrf.mxu0
        %v4449 = vadd.f32 %v270, %v4448
        %4450 = vdwg.mxu0
        %4451 = vmatprep.subr.bf16.mxu0 0
        %4452 = vmatpush1.bf16.msra.mxu0 0
        %4453 = vmatprep.subr.bf16.mxu0 0
        %4454 = vmatpush1.bf16.msra.mxu0 0
        %4455 = vmatprep.subr.bf16.mxu0 0
        %4456 = vmatpush1.bf16.msra.mxu0 0
        %4457 = vmatprep.subr.bf16.mxu0 0
        %4458 = vmatpush1.bf16.msra.mxu0 0
        %4459 = vmatprep.subr.bf16.mxu0 0
        %4460 = vmatpush1.bf16.msra.mxu0 0
        %4461 = vmatprep.subr.bf16.mxu0 0
        %4462 = vmatpush1.bf16.msra.mxu0 0
        %4463 = vmatprep.subr.bf16.mxu0 0
        %4464 = vmatpush1.bf16.msra.mxu0 0
        %4465 = vmatprep.subr.bf16.mxu0 %v1561
        %4466 = vmatpush1.bf16.msra.mxu0 %v1558
        %4467 = vmatprep.subr.bf16.mxu0 0
        %4468 = vmatpush2.bf16.msra.mxu0 0
        %4469 = vmatprep.subr.bf16.mxu0 0
        %4470 = vmatpush2.bf16.msra.mxu0 0
        %4471 = vmatprep.subr.bf16.mxu0 0
        %4472 = vmatpush2.bf16.msra.mxu0 0
        %4473 = vmatprep.subr.bf16.mxu0 0
        %4474 = vmatpush2.bf16.msra.mxu0 0
        %4475 = vmatprep.subr.bf16.mxu0 0
        %4476 = vmatpush2.bf16.msra.mxu0 0
        %4477 = vmatprep.subr.bf16.mxu0 0
        %4478 = vmatpush2.bf16.msra.mxu0 0
        %4479 = vmatprep.subr.bf16.mxu0 0
        %4480 = vmatpush2.bf16.msra.mxu0 0
        %4481 = vmatprep.subr.bf16.mxu0 0
        %4482 = vmatpush2.bf16.msra.mxu0 0
        %4483 = vmatprep.mubr.bf16.mxu0 0
        %4484 = vmatmul.mubr.bf16.gmra.mxu0 %v1179
        %v4485 = vpop.f32.mrf.mxu0
        %v4486 = vadd.f32 %v265, %v4485
        %v4487 = vpop.f32.mrf.mxu0
        %v4488 = vadd.f32 %v265, %v4487
        %v4489 = vpop.f32.mrf.mxu0
        %v4490 = vadd.f32 %v270, %v4489
        %v4491 = vpop.f32.mrf.mxu0
        %v4492 = vadd.f32 %v270, %v4491
        %4493 = vdwg.mxu0
        %4494 = vmatprep.subr.bf16.mxu0 0
        %4495 = vmatpush1.bf16.msra.mxu0 0
        %4496 = vmatprep.subr.bf16.mxu0 0
        %4497 = vmatpush1.bf16.msra.mxu0 0
        %4498 = vmatprep.subr.bf16.mxu0 0
        %4499 = vmatpush1.bf16.msra.mxu0 0
        %4500 = vmatprep.subr.bf16.mxu0 0
        %4501 = vmatpush1.bf16.msra.mxu0 0
        %4502 = vmatprep.subr.bf16.mxu0 0
        %4503 = vmatpush1.bf16.msra.mxu0 0
        %4504 = vmatprep.subr.bf16.mxu0 0
        %4505 = vmatpush1.bf16.msra.mxu0 0
        %4506 = vmatprep.subr.bf16.mxu0 0
        %4507 = vmatpush1.bf16.msra.mxu0 0
        %4508 = vmatprep.subr.bf16.mxu0 %v1567
        %4509 = vmatpush1.bf16.msra.mxu0 %v1564
        %4510 = vmatprep.subr.bf16.mxu0 0
        %4511 = vmatpush2.bf16.msra.mxu0 0
        %4512 = vmatprep.subr.bf16.mxu0 0
        %4513 = vmatpush2.bf16.msra.mxu0 0
        %4514 = vmatprep.subr.bf16.mxu0 0
        %4515 = vmatpush2.bf16.msra.mxu0 0
        %4516 = vmatprep.subr.bf16.mxu0 0
        %4517 = vmatpush2.bf16.msra.mxu0 0
        %4518 = vmatprep.subr.bf16.mxu0 0
        %4519 = vmatpush2.bf16.msra.mxu0 0
        %4520 = vmatprep.subr.bf16.mxu0 0
        %4521 = vmatpush2.bf16.msra.mxu0 0
        %4522 = vmatprep.subr.bf16.mxu0 0
        %4523 = vmatpush2.bf16.msra.mxu0 0
        %4524 = vmatprep.subr.bf16.mxu0 0
        %4525 = vmatpush2.bf16.msra.mxu0 0
        %4526 = vmatprep.mubr.bf16.mxu0 0
        %4527 = vmatmul.mubr.bf16.gmra.mxu0 %v1179
        %v4528 = vpop.f32.mrf.mxu0
        %v4529 = vadd.f32 %v265, %v4528
        %v4530 = vpop.f32.mrf.mxu0
        %v4531 = vadd.f32 %v265, %v4530
        %v4532 = vpop.f32.mrf.mxu0
        %v4533 = vadd.f32 %v270, %v4532
        %v4534 = vpop.f32.mrf.mxu0
        %v4535 = vadd.f32 %v270, %v4534
        %4536 = vdwg.mxu0
        %4537 = vmatprep.subr.bf16.mxu0 0
        %4538 = vmatpush1.bf16.msra.mxu0 0
        %4539 = vmatprep.subr.bf16.mxu0 0
        %4540 = vmatpush1.bf16.msra.mxu0 0
        %4541 = vmatprep.subr.bf16.mxu0 0
        %4542 = vmatpush1.bf16.msra.mxu0 0
        %4543 = vmatprep.subr.bf16.mxu0 0
        %4544 = vmatpush1.bf16.msra.mxu0 0
        %4545 = vmatprep.subr.bf16.mxu0 0
        %4546 = vmatpush1.bf16.msra.mxu0 0
        %4547 = vmatprep.subr.bf16.mxu0 0
        %4548 = vmatpush1.bf16.msra.mxu0 0
        %4549 = vmatprep.subr.bf16.mxu0 0
        %4550 = vmatpush1.bf16.msra.mxu0 0
        %4551 = vmatprep.subr.bf16.mxu0 %v1573
        %4552 = vmatpush1.bf16.msra.mxu0 %v1570
        %4553 = vmatprep.subr.bf16.mxu0 0
        %4554 = vmatpush2.bf16.msra.mxu0 0
        %4555 = vmatprep.subr.bf16.mxu0 0
        %4556 = vmatpush2.bf16.msra.mxu0 0
        %4557 = vmatprep.subr.bf16.mxu0 0
        %4558 = vmatpush2.bf16.msra.mxu0 0
        %4559 = vmatprep.subr.bf16.mxu0 0
        %4560 = vmatpush2.bf16.msra.mxu0 0
        %4561 = vmatprep.subr.bf16.mxu0 0
        %4562 = vmatpush2.bf16.msra.mxu0 0
        %4563 = vmatprep.subr.bf16.mxu0 0
        %4564 = vmatpush2.bf16.msra.mxu0 0
        %4565 = vmatprep.subr.bf16.mxu0 0
        %4566 = vmatpush2.bf16.msra.mxu0 0
        %4567 = vmatprep.subr.bf16.mxu0 0
        %4568 = vmatpush2.bf16.msra.mxu0 0
        %4569 = vmatprep.mubr.bf16.mxu0 0
        %4570 = vmatmul.mubr.bf16.gmra.mxu0 %v1179
        %v4571 = vpop.f32.mrf.mxu0
        %v4572 = vadd.f32 %v265, %v4571
        %v4573 = vpop.f32.mrf.mxu0
        %v4574 = vadd.f32 %v265, %v4573
        %v4575 = vpop.f32.mrf.mxu0
        %v4576 = vadd.f32 %v270, %v4575
        %v4577 = vpop.f32.mrf.mxu0
        %v4578 = vadd.f32 %v270, %v4577
        %4579 = vdwg.mxu0
        %4580 = vmatprep.subr.bf16.mxu0 0
        %4581 = vmatpush1.bf16.msra.mxu0 0
        %4582 = vmatprep.subr.bf16.mxu0 0
        %4583 = vmatpush1.bf16.msra.mxu0 0
        %4584 = vmatprep.subr.bf16.mxu0 0
        %4585 = vmatpush1.bf16.msra.mxu0 0
        %4586 = vmatprep.subr.bf16.mxu0 0
        %4587 = vmatpush1.bf16.msra.mxu0 0
        %4588 = vmatprep.subr.bf16.mxu0 0
        %4589 = vmatpush1.bf16.msra.mxu0 0
        %4590 = vmatprep.subr.bf16.mxu0 0
        %4591 = vmatpush1.bf16.msra.mxu0 0
        %4592 = vmatprep.subr.bf16.mxu0 0
        %4593 = vmatpush1.bf16.msra.mxu0 0
        %4594 = vmatprep.subr.bf16.mxu0 %v1579
        %4595 = vmatpush1.bf16.msra.mxu0 %v1576
        %4596 = vmatprep.subr.bf16.mxu0 0
        %4597 = vmatpush2.bf16.msra.mxu0 0
        %4598 = vmatprep.subr.bf16.mxu0 0
        %4599 = vmatpush2.bf16.msra.mxu0 0
        %4600 = vmatprep.subr.bf16.mxu0 0
        %4601 = vmatpush2.bf16.msra.mxu0 0
        %4602 = vmatprep.subr.bf16.mxu0 0
        %4603 = vmatpush2.bf16.msra.mxu0 0
        %4604 = vmatprep.subr.bf16.mxu0 0
        %4605 = vmatpush2.bf16.msra.mxu0 0
        %4606 = vmatprep.subr.bf16.mxu0 0
        %4607 = vmatpush2.bf16.msra.mxu0 0
        %4608 = vmatprep.subr.bf16.mxu0 0
        %4609 = vmatpush2.bf16.msra.mxu0 0
        %4610 = vmatprep.subr.bf16.mxu0 0
        %4611 = vmatpush2.bf16.msra.mxu0 0
        %4612 = vmatprep.mubr.bf16.mxu0 0
        %4613 = vmatmul.mubr.bf16.gmra.mxu0 %v1179
        %v4614 = vpop.f32.mrf.mxu0
        %v4615 = vadd.f32 %v265, %v4614
        %v4616 = vpop.f32.mrf.mxu0
        %v4617 = vadd.f32 %v265, %v4616
        %v4618 = vpop.f32.mrf.mxu0
        %v4619 = vadd.f32 %v270, %v4618
        %v4620 = vpop.f32.mrf.mxu0
        %v4621 = vadd.f32 %v270, %v4620
        %4622 = vdwg.mxu0
        %4623 = vmatprep.subr.bf16.mxu0 0
        %4624 = vmatpush1.bf16.msra.mxu0 0
        %4625 = vmatprep.subr.bf16.mxu0 0
        %4626 = vmatpush1.bf16.msra.mxu0 0
        %4627 = vmatprep.subr.bf16.mxu0 0
        %4628 = vmatpush1.bf16.msra.mxu0 0
        %4629 = vmatprep.subr.bf16.mxu0 0
        %4630 = vmatpush1.bf16.msra.mxu0 0
        %4631 = vmatprep.subr.bf16.mxu0 0
        %4632 = vmatpush1.bf16.msra.mxu0 0
        %4633 = vmatprep.subr.bf16.mxu0 0
        %4634 = vmatpush1.bf16.msra.mxu0 0
        %4635 = vmatprep.subr.bf16.mxu0 0
        %4636 = vmatpush1.bf16.msra.mxu0 0
        %4637 = vmatprep.subr.bf16.mxu0 %v1585
        %4638 = vmatpush1.bf16.msra.mxu0 %v1582
        %4639 = vmatprep.subr.bf16.mxu0 0
        %4640 = vmatpush2.bf16.msra.mxu0 0
        %4641 = vmatprep.subr.bf16.mxu0 0
        %4642 = vmatpush2.bf16.msra.mxu0 0
        %4643 = vmatprep.subr.bf16.mxu0 0
        %4644 = vmatpush2.bf16.msra.mxu0 0
        %4645 = vmatprep.subr.bf16.mxu0 0
        %4646 = vmatpush2.bf16.msra.mxu0 0
        %4647 = vmatprep.subr.bf16.mxu0 0
        %4648 = vmatpush2.bf16.msra.mxu0 0
        %4649 = vmatprep.subr.bf16.mxu0 0
        %4650 = vmatpush2.bf16.msra.mxu0 0
        %4651 = vmatprep.subr.bf16.mxu0 0
        %4652 = vmatpush2.bf16.msra.mxu0 0
        %4653 = vmatprep.subr.bf16.mxu0 0
        %4654 = vmatpush2.bf16.msra.mxu0 0
        %4655 = vmatprep.mubr.bf16.mxu0 0
        %4656 = vmatmul.mubr.bf16.gmra.mxu0 %v1179
        %v4657 = vpop.f32.mrf.mxu0
        %v4658 = vadd.f32 %v265, %v4657
        %v4659 = vpop.f32.mrf.mxu0
        %v4660 = vadd.f32 %v265, %v4659
        %v4661 = vpop.f32.mrf.mxu0
        %v4662 = vadd.f32 %v270, %v4661
        %v4663 = vpop.f32.mrf.mxu0
        %v4664 = vadd.f32 %v270, %v4663
        %4665 = vdwg.mxu0
        %4666 = vmatprep.subr.bf16.mxu0 0
        %4667 = vmatpush1.bf16.msra.mxu0 0
        %4668 = vmatprep.subr.bf16.mxu0 0
        %4669 = vmatpush1.bf16.msra.mxu0 0
        %4670 = vmatprep.subr.bf16.mxu0 0
        %4671 = vmatpush1.bf16.msra.mxu0 0
        %4672 = vmatprep.subr.bf16.mxu0 0
        %4673 = vmatpush1.bf16.msra.mxu0 0
        %4674 = vmatprep.subr.bf16.mxu0 0
        %4675 = vmatpush1.bf16.msra.mxu0 0
        %4676 = vmatprep.subr.bf16.mxu0 0
        %4677 = vmatpush1.bf16.msra.mxu0 0
        %4678 = vmatprep.subr.bf16.mxu0 0
        %4679 = vmatpush1.bf16.msra.mxu0 0
        %4680 = vmatprep.subr.bf16.mxu0 %v1591
        %4681 = vmatpush1.bf16.msra.mxu0 %v1588
        %4682 = vmatprep.subr.bf16.mxu0 0
        %4683 = vmatpush2.bf16.msra.mxu0 0
        %4684 = vmatprep.subr.bf16.mxu0 0
        %4685 = vmatpush2.bf16.msra.mxu0 0
        %4686 = vmatprep.subr.bf16.mxu0 0
        %4687 = vmatpush2.bf16.msra.mxu0 0
        %4688 = vmatprep.subr.bf16.mxu0 0
        %4689 = vmatpush2.bf16.msra.mxu0 0
        %4690 = vmatprep.subr.bf16.mxu0 0
        %4691 = vmatpush2.bf16.msra.mxu0 0
        %4692 = vmatprep.subr.bf16.mxu0 0
        %4693 = vmatpush2.bf16.msra.mxu0 0
        %4694 = vmatprep.subr.bf16.mxu0 0
        %4695 = vmatpush2.bf16.msra.mxu0 0
        %4696 = vmatprep.subr.bf16.mxu0 0
        %4697 = vmatpush2.bf16.msra.mxu0 0
        %4698 = vmatprep.mubr.bf16.mxu0 0
        %4699 = vmatmul.mubr.bf16.gmra.mxu0 %v1179
        %v4700 = vpop.f32.mrf.mxu0
        %v4701 = vadd.f32 %v265, %v4700
        %v4702 = vpop.f32.mrf.mxu0
        %v4703 = vadd.f32 %v265, %v4702
        %v4704 = vpop.f32.mrf.mxu0
        %v4705 = vadd.f32 %v270, %v4704
        %v4706 = vpop.f32.mrf.mxu0
        %v4707 = vadd.f32 %v270, %v4706
        %4708 = vdwg.mxu0
        %4709 = vmatprep.subr.bf16.mxu0 0
        %4710 = vmatpush1.bf16.msra.mxu0 0
        %4711 = vmatprep.subr.bf16.mxu0 0
        %4712 = vmatpush1.bf16.msra.mxu0 0
        %4713 = vmatprep.subr.bf16.mxu0 0
        %4714 = vmatpush1.bf16.msra.mxu0 0
        %4715 = vmatprep.subr.bf16.mxu0 0
        %4716 = vmatpush1.bf16.msra.mxu0 0
        %4717 = vmatprep.subr.bf16.mxu0 0
        %4718 = vmatpush1.bf16.msra.mxu0 0
        %4719 = vmatprep.subr.bf16.mxu0 0
        %4720 = vmatpush1.bf16.msra.mxu0 0
        %4721 = vmatprep.subr.bf16.mxu0 0
        %4722 = vmatpush1.bf16.msra.mxu0 0
        %4723 = vmatprep.subr.bf16.mxu0 %v1597
        %4724 = vmatpush1.bf16.msra.mxu0 %v1594
        %4725 = vmatprep.subr.bf16.mxu0 0
        %4726 = vmatpush2.bf16.msra.mxu0 0
        %4727 = vmatprep.subr.bf16.mxu0 0
        %4728 = vmatpush2.bf16.msra.mxu0 0
        %4729 = vmatprep.subr.bf16.mxu0 0
        %4730 = vmatpush2.bf16.msra.mxu0 0
        %4731 = vmatprep.subr.bf16.mxu0 0
        %4732 = vmatpush2.bf16.msra.mxu0 0
        %4733 = vmatprep.subr.bf16.mxu0 0
        %4734 = vmatpush2.bf16.msra.mxu0 0
        %4735 = vmatprep.subr.bf16.mxu0 0
        %4736 = vmatpush2.bf16.msra.mxu0 0
        %4737 = vmatprep.subr.bf16.mxu0 0
        %4738 = vmatpush2.bf16.msra.mxu0 0
        %4739 = vmatprep.subr.bf16.mxu0 0
        %4740 = vmatpush2.bf16.msra.mxu0 0
        %4741 = vmatprep.mubr.bf16.mxu0 0
        %4742 = vmatmul.mubr.bf16.gmra.mxu0 %v1179
        %v4743 = vpop.f32.mrf.mxu0
        %v4744 = vadd.f32 %v265, %v4743
        %v4745 = vpop.f32.mrf.mxu0
        %v4746 = vadd.f32 %v265, %v4745
        %v4747 = vpop.f32.mrf.mxu0
        %v4748 = vadd.f32 %v270, %v4747
        %v4749 = vpop.f32.mrf.mxu0
        %v4750 = vadd.f32 %v270, %v4749
        %4751 = vdwg.mxu0
        %4752 = vmatprep.subr.bf16.mxu0 0
        %4753 = vmatpush1.bf16.msra.mxu0 0
        %4754 = vmatprep.subr.bf16.mxu0 0
        %4755 = vmatpush1.bf16.msra.mxu0 0
        %4756 = vmatprep.subr.bf16.mxu0 0
        %4757 = vmatpush1.bf16.msra.mxu0 0
        %4758 = vmatprep.subr.bf16.mxu0 0
        %4759 = vmatpush1.bf16.msra.mxu0 0
        %4760 = vmatprep.subr.bf16.mxu0 0
        %4761 = vmatpush1.bf16.msra.mxu0 0
        %4762 = vmatprep.subr.bf16.mxu0 0
        %4763 = vmatpush1.bf16.msra.mxu0 0
        %4764 = vmatprep.subr.bf16.mxu0 0
        %4765 = vmatpush1.bf16.msra.mxu0 0
        %4766 = vmatprep.subr.bf16.mxu0 %v1603
        %4767 = vmatpush1.bf16.msra.mxu0 %v1600
        %4768 = vmatprep.subr.bf16.mxu0 0
        %4769 = vmatpush2.bf16.msra.mxu0 0
        %4770 = vmatprep.subr.bf16.mxu0 0
        %4771 = vmatpush2.bf16.msra.mxu0 0
        %4772 = vmatprep.subr.bf16.mxu0 0
        %4773 = vmatpush2.bf16.msra.mxu0 0
        %4774 = vmatprep.subr.bf16.mxu0 0
        %4775 = vmatpush2.bf16.msra.mxu0 0
        %4776 = vmatprep.subr.bf16.mxu0 0
        %4777 = vmatpush2.bf16.msra.mxu0 0
        %4778 = vmatprep.subr.bf16.mxu0 0
        %4779 = vmatpush2.bf16.msra.mxu0 0
        %4780 = vmatprep.subr.bf16.mxu0 0
        %4781 = vmatpush2.bf16.msra.mxu0 0
        %4782 = vmatprep.subr.bf16.mxu0 0
        %4783 = vmatpush2.bf16.msra.mxu0 0
        %4784 = vmatprep.mubr.bf16.mxu0 0
        %4785 = vmatmul.mubr.bf16.gmra.mxu0 %v1179
        %v4786 = vpop.f32.mrf.mxu0
        %v4787 = vadd.f32 %v265, %v4786
        %v4788 = vpop.f32.mrf.mxu0
        %v4789 = vadd.f32 %v265, %v4788
        %v4790 = vpop.f32.mrf.mxu0
        %v4791 = vadd.f32 %v270, %v4790
        %v4792 = vpop.f32.mrf.mxu0
        %v4793 = vadd.f32 %v270, %v4792
        %4794 = vdwg.mxu0
        %4795 = vmatprep.subr.bf16.mxu0 0
        %4796 = vmatpush1.bf16.msra.mxu0 0
        %4797 = vmatprep.subr.bf16.mxu0 0
        %4798 = vmatpush1.bf16.msra.mxu0 0
        %4799 = vmatprep.subr.bf16.mxu0 0
        %4800 = vmatpush1.bf16.msra.mxu0 0
        %4801 = vmatprep.subr.bf16.mxu0 0
        %4802 = vmatpush1.bf16.msra.mxu0 0
        %4803 = vmatprep.subr.bf16.mxu0 0
        %4804 = vmatpush1.bf16.msra.mxu0 0
        %4805 = vmatprep.subr.bf16.mxu0 0
        %4806 = vmatpush1.bf16.msra.mxu0 0
        %4807 = vmatprep.subr.bf16.mxu0 0
        %4808 = vmatpush1.bf16.msra.mxu0 0
        %4809 = vmatprep.subr.bf16.mxu0 %v1609
        %4810 = vmatpush1.bf16.msra.mxu0 %v1606
        %4811 = vmatprep.subr.bf16.mxu0 0
        %4812 = vmatpush2.bf16.msra.mxu0 0
        %4813 = vmatprep.subr.bf16.mxu0 0
        %4814 = vmatpush2.bf16.msra.mxu0 0
        %4815 = vmatprep.subr.bf16.mxu0 0
        %4816 = vmatpush2.bf16.msra.mxu0 0
        %4817 = vmatprep.subr.bf16.mxu0 0
        %4818 = vmatpush2.bf16.msra.mxu0 0
        %4819 = vmatprep.subr.bf16.mxu0 0
        %4820 = vmatpush2.bf16.msra.mxu0 0
        %4821 = vmatprep.subr.bf16.mxu0 0
        %4822 = vmatpush2.bf16.msra.mxu0 0
        %4823 = vmatprep.subr.bf16.mxu0 0
        %4824 = vmatpush2.bf16.msra.mxu0 0
        %4825 = vmatprep.subr.bf16.mxu0 0
        %4826 = vmatpush2.bf16.msra.mxu0 0
        %4827 = vmatprep.mubr.bf16.mxu0 0
        %4828 = vmatmul.mubr.bf16.gmra.mxu0 %v1179
        %v4829 = vpop.f32.mrf.mxu0
        %v4830 = vadd.f32 %v265, %v4829
        %v4831 = vpop.f32.mrf.mxu0
        %v4832 = vadd.f32 %v265, %v4831
        %v4833 = vpop.f32.mrf.mxu0
        %v4834 = vadd.f32 %v270, %v4833
        %v4835 = vpop.f32.mrf.mxu0
        %v4836 = vadd.f32 %v270, %v4835
        %4837 = vdwg.mxu0
        %4838 = vmatprep.subr.bf16.mxu0 0
        %4839 = vmatpush1.bf16.msra.mxu0 0
        %4840 = vmatprep.subr.bf16.mxu0 0
        %4841 = vmatpush1.bf16.msra.mxu0 0
        %4842 = vmatprep.subr.bf16.mxu0 0
        %4843 = vmatpush1.bf16.msra.mxu0 0
        %4844 = vmatprep.subr.bf16.mxu0 0
        %4845 = vmatpush1.bf16.msra.mxu0 0
        %4846 = vmatprep.subr.bf16.mxu0 0
        %4847 = vmatpush1.bf16.msra.mxu0 0
        %4848 = vmatprep.subr.bf16.mxu0 0
        %4849 = vmatpush1.bf16.msra.mxu0 0
        %4850 = vmatprep.subr.bf16.mxu0 0
        %4851 = vmatpush1.bf16.msra.mxu0 0
        %4852 = vmatprep.subr.bf16.mxu0 %v1615
        %4853 = vmatpush1.bf16.msra.mxu0 %v1612
        %4854 = vmatprep.subr.bf16.mxu0 0
        %4855 = vmatpush2.bf16.msra.mxu0 0
        %4856 = vmatprep.subr.bf16.mxu0 0
        %4857 = vmatpush2.bf16.msra.mxu0 0
        %4858 = vmatprep.subr.bf16.mxu0 0
        %4859 = vmatpush2.bf16.msra.mxu0 0
        %4860 = vmatprep.subr.bf16.mxu0 0
        %4861 = vmatpush2.bf16.msra.mxu0 0
        %4862 = vmatprep.subr.bf16.mxu0 0
        %4863 = vmatpush2.bf16.msra.mxu0 0
        %4864 = vmatprep.subr.bf16.mxu0 0
        %4865 = vmatpush2.bf16.msra.mxu0 0
        %4866 = vmatprep.subr.bf16.mxu0 0
        %4867 = vmatpush2.bf16.msra.mxu0 0
        %4868 = vmatprep.subr.bf16.mxu0 0
        %4869 = vmatpush2.bf16.msra.mxu0 0
        %4870 = vmatprep.mubr.bf16.mxu0 0
        %4871 = vmatmul.mubr.bf16.gmra.mxu0 %v1179
        %v4872 = vpop.f32.mrf.mxu0
        %v4873 = vadd.f32 %v265, %v4872
        %v4874 = vpop.f32.mrf.mxu0
        %v4875 = vadd.f32 %v265, %v4874
        %v4876 = vpop.f32.mrf.mxu0
        %v4877 = vadd.f32 %v270, %v4876
        %v4878 = vpop.f32.mrf.mxu0
        %v4879 = vadd.f32 %v270, %v4878
        %4880 = vdwg.mxu0
        %4881 = vmatprep.subr.bf16.mxu0 0
        %4882 = vmatpush1.bf16.msra.mxu0 0
        %4883 = vmatprep.subr.bf16.mxu0 0
        %4884 = vmatpush1.bf16.msra.mxu0 0
        %4885 = vmatprep.subr.bf16.mxu0 0
        %4886 = vmatpush1.bf16.msra.mxu0 0
        %4887 = vmatprep.subr.bf16.mxu0 0
        %4888 = vmatpush1.bf16.msra.mxu0 0
        %4889 = vmatprep.subr.bf16.mxu0 0
        %4890 = vmatpush1.bf16.msra.mxu0 0
        %4891 = vmatprep.subr.bf16.mxu0 0
        %4892 = vmatpush1.bf16.msra.mxu0 0
        %4893 = vmatprep.subr.bf16.mxu0 0
        %4894 = vmatpush1.bf16.msra.mxu0 0
        %4895 = vmatprep.subr.bf16.mxu0 %v1621
        %4896 = vmatpush1.bf16.msra.mxu0 %v1618
        %4897 = vmatprep.subr.bf16.mxu0 0
        %4898 = vmatpush2.bf16.msra.mxu0 0
        %4899 = vmatprep.subr.bf16.mxu0 0
        %4900 = vmatpush2.bf16.msra.mxu0 0
        %4901 = vmatprep.subr.bf16.mxu0 0
        %4902 = vmatpush2.bf16.msra.mxu0 0
        %4903 = vmatprep.subr.bf16.mxu0 0
        %4904 = vmatpush2.bf16.msra.mxu0 0
        %4905 = vmatprep.subr.bf16.mxu0 0
        %4906 = vmatpush2.bf16.msra.mxu0 0
        %4907 = vmatprep.subr.bf16.mxu0 0
        %4908 = vmatpush2.bf16.msra.mxu0 0
        %4909 = vmatprep.subr.bf16.mxu0 0
        %4910 = vmatpush2.bf16.msra.mxu0 0
        %4911 = vmatprep.subr.bf16.mxu0 0
        %4912 = vmatpush2.bf16.msra.mxu0 0
        %4913 = vmatprep.mubr.bf16.mxu0 0
        %4914 = vmatmul.mubr.bf16.gmra.mxu0 %v1179
        %v4915 = vpop.f32.mrf.mxu0
        %v4916 = vadd.f32 %v265, %v4915
        %v4917 = vpop.f32.mrf.mxu0
        %v4918 = vadd.f32 %v265, %v4917
        %v4919 = vpop.f32.mrf.mxu0
        %v4920 = vadd.f32 %v270, %v4919
        %v4921 = vpop.f32.mrf.mxu0
        %v4922 = vadd.f32 %v270, %v4921
        %4923 = vdwg.mxu0
        %4924 = vmatprep.subr.bf16.mxu0 0
        %4925 = vmatpush1.bf16.msra.mxu0 0
        %4926 = vmatprep.subr.bf16.mxu0 0
        %4927 = vmatpush1.bf16.msra.mxu0 0
        %4928 = vmatprep.subr.bf16.mxu0 0
        %4929 = vmatpush1.bf16.msra.mxu0 0
        %4930 = vmatprep.subr.bf16.mxu0 0
        %4931 = vmatpush1.bf16.msra.mxu0 0
        %4932 = vmatprep.subr.bf16.mxu0 0
        %4933 = vmatpush1.bf16.msra.mxu0 0
        %4934 = vmatprep.subr.bf16.mxu0 0
        %4935 = vmatpush1.bf16.msra.mxu0 0
        %4936 = vmatprep.subr.bf16.mxu0 0
        %4937 = vmatpush1.bf16.msra.mxu0 0
        %4938 = vmatprep.subr.bf16.mxu0 %v1627
        %4939 = vmatpush1.bf16.msra.mxu0 %v1624
        %4940 = vmatprep.subr.bf16.mxu0 0
        %4941 = vmatpush2.bf16.msra.mxu0 0
        %4942 = vmatprep.subr.bf16.mxu0 0
        %4943 = vmatpush2.bf16.msra.mxu0 0
        %4944 = vmatprep.subr.bf16.mxu0 0
        %4945 = vmatpush2.bf16.msra.mxu0 0
        %4946 = vmatprep.subr.bf16.mxu0 0
        %4947 = vmatpush2.bf16.msra.mxu0 0
        %4948 = vmatprep.subr.bf16.mxu0 0
        %4949 = vmatpush2.bf16.msra.mxu0 0
        %4950 = vmatprep.subr.bf16.mxu0 0
        %4951 = vmatpush2.bf16.msra.mxu0 0
        %4952 = vmatprep.subr.bf16.mxu0 0
        %4953 = vmatpush2.bf16.msra.mxu0 0
        %4954 = vmatprep.subr.bf16.mxu0 0
        %4955 = vmatpush2.bf16.msra.mxu0 0
        %4956 = vmatprep.mubr.bf16.mxu0 0
        %4957 = vmatmul.mubr.bf16.gmra.mxu0 %v1179
        %v4958 = vpop.f32.mrf.mxu0
        %v4959 = vadd.f32 %v265, %v4958
        %v4960 = vpop.f32.mrf.mxu0
        %v4961 = vadd.f32 %v265, %v4960
        %v4962 = vpop.f32.mrf.mxu0
        %v4963 = vadd.f32 %v270, %v4962
        %v4964 = vpop.f32.mrf.mxu0
        %v4965 = vadd.f32 %v270, %v4964
        %4966 = vdwg.mxu0
        %4967 = vmatprep.subr.bf16.mxu0 0
        %4968 = vmatpush1.bf16.msra.mxu0 0
        %4969 = vmatprep.subr.bf16.mxu0 0
        %4970 = vmatpush1.bf16.msra.mxu0 0
        %4971 = vmatprep.subr.bf16.mxu0 0
        %4972 = vmatpush1.bf16.msra.mxu0 0
        %4973 = vmatprep.subr.bf16.mxu0 0
        %4974 = vmatpush1.bf16.msra.mxu0 0
        %4975 = vmatprep.subr.bf16.mxu0 0
        %4976 = vmatpush1.bf16.msra.mxu0 0
        %4977 = vmatprep.subr.bf16.mxu0 0
        %4978 = vmatpush1.bf16.msra.mxu0 0
        %4979 = vmatprep.subr.bf16.mxu0 0
        %4980 = vmatpush1.bf16.msra.mxu0 0
        %4981 = vmatprep.subr.bf16.mxu0 %v1633
        %4982 = vmatpush1.bf16.msra.mxu0 %v1630
        %4983 = vmatprep.subr.bf16.mxu0 0
        %4984 = vmatpush2.bf16.msra.mxu0 0
        %4985 = vmatprep.subr.bf16.mxu0 0
        %4986 = vmatpush2.bf16.msra.mxu0 0
        %4987 = vmatprep.subr.bf16.mxu0 0
        %4988 = vmatpush2.bf16.msra.mxu0 0
        %4989 = vmatprep.subr.bf16.mxu0 0
        %4990 = vmatpush2.bf16.msra.mxu0 0
        %4991 = vmatprep.subr.bf16.mxu0 0
        %4992 = vmatpush2.bf16.msra.mxu0 0
        %4993 = vmatprep.subr.bf16.mxu0 0
        %4994 = vmatpush2.bf16.msra.mxu0 0
        %4995 = vmatprep.subr.bf16.mxu0 0
        %4996 = vmatpush2.bf16.msra.mxu0 0
        %4997 = vmatprep.subr.bf16.mxu0 0
        %4998 = vmatpush2.bf16.msra.mxu0 0
        %4999 = vmatprep.mubr.bf16.mxu0 0
        %5000 = vmatmul.mubr.bf16.gmra.mxu0 %v1179
        %v5001 = vpop.f32.mrf.mxu0
        %v5002 = vadd.f32 %v265, %v5001
        %v5003 = vpop.f32.mrf.mxu0
        %v5004 = vadd.f32 %v265, %v5003
        %v5005 = vpop.f32.mrf.mxu0
        %v5006 = vadd.f32 %v270, %v5005
        %v5007 = vpop.f32.mrf.mxu0
        %v5008 = vadd.f32 %v270, %v5007
        %5009 = vdwg.mxu0
        %5010 = vmatprep.subr.bf16.mxu0 0
        %5011 = vmatpush1.bf16.msra.mxu0 0
        %5012 = vmatprep.subr.bf16.mxu0 0
        %5013 = vmatpush1.bf16.msra.mxu0 0
        %5014 = vmatprep.subr.bf16.mxu0 0
        %5015 = vmatpush1.bf16.msra.mxu0 0
        %5016 = vmatprep.subr.bf16.mxu0 0
        %5017 = vmatpush1.bf16.msra.mxu0 0
        %5018 = vmatprep.subr.bf16.mxu0 0
        %5019 = vmatpush1.bf16.msra.mxu0 0
        %5020 = vmatprep.subr.bf16.mxu0 0
        %5021 = vmatpush1.bf16.msra.mxu0 0
        %5022 = vmatprep.subr.bf16.mxu0 0
        %5023 = vmatpush1.bf16.msra.mxu0 0
        %5024 = vmatprep.subr.bf16.mxu0 %v1639
        %5025 = vmatpush1.bf16.msra.mxu0 %v1636
        %5026 = vmatprep.subr.bf16.mxu0 0
        %5027 = vmatpush2.bf16.msra.mxu0 0
        %5028 = vmatprep.subr.bf16.mxu0 0
        %5029 = vmatpush2.bf16.msra.mxu0 0
        %5030 = vmatprep.subr.bf16.mxu0 0
        %5031 = vmatpush2.bf16.msra.mxu0 0
        %5032 = vmatprep.subr.bf16.mxu0 0
        %5033 = vmatpush2.bf16.msra.mxu0 0
        %5034 = vmatprep.subr.bf16.mxu0 0
        %5035 = vmatpush2.bf16.msra.mxu0 0
        %5036 = vmatprep.subr.bf16.mxu0 0
        %5037 = vmatpush2.bf16.msra.mxu0 0
        %5038 = vmatprep.subr.bf16.mxu0 0
        %5039 = vmatpush2.bf16.msra.mxu0 0
        %5040 = vmatprep.subr.bf16.mxu0 0
        %5041 = vmatpush2.bf16.msra.mxu0 0
        %5042 = vmatprep.mubr.bf16.mxu0 0
        %5043 = vmatmul.mubr.bf16.gmra.mxu0 %v1179
        %v5044 = vpop.f32.mrf.mxu0
        %v5045 = vadd.f32 %v265, %v5044
        %v5046 = vpop.f32.mrf.mxu0
        %v5047 = vadd.f32 %v265, %v5046
        %v5048 = vpop.f32.mrf.mxu0
        %v5049 = vadd.f32 %v270, %v5048
        %v5050 = vpop.f32.mrf.mxu0
        %v5051 = vadd.f32 %v270, %v5050
        %5052 = vdwg.mxu0
        %5053 = vmatprep.subr.bf16.mxu0 0
        %5054 = vmatpush1.bf16.msra.mxu0 0
        %5055 = vmatprep.subr.bf16.mxu0 0
        %5056 = vmatpush1.bf16.msra.mxu0 0
        %5057 = vmatprep.subr.bf16.mxu0 0
        %5058 = vmatpush1.bf16.msra.mxu0 0
        %5059 = vmatprep.subr.bf16.mxu0 0
        %5060 = vmatpush1.bf16.msra.mxu0 0
        %5061 = vmatprep.subr.bf16.mxu0 0
        %5062 = vmatpush1.bf16.msra.mxu0 0
        %5063 = vmatprep.subr.bf16.mxu0 0
        %5064 = vmatpush1.bf16.msra.mxu0 0
        %5065 = vmatprep.subr.bf16.mxu0 0
        %5066 = vmatpush1.bf16.msra.mxu0 0
        %5067 = vmatprep.subr.bf16.mxu0 %v1645
        %5068 = vmatpush1.bf16.msra.mxu0 %v1642
        %5069 = vmatprep.subr.bf16.mxu0 0
        %5070 = vmatpush2.bf16.msra.mxu0 0
        %5071 = vmatprep.subr.bf16.mxu0 0
        %5072 = vmatpush2.bf16.msra.mxu0 0
        %5073 = vmatprep.subr.bf16.mxu0 0
        %5074 = vmatpush2.bf16.msra.mxu0 0
        %5075 = vmatprep.subr.bf16.mxu0 0
        %5076 = vmatpush2.bf16.msra.mxu0 0
        %5077 = vmatprep.subr.bf16.mxu0 0
        %5078 = vmatpush2.bf16.msra.mxu0 0
        %5079 = vmatprep.subr.bf16.mxu0 0
        %5080 = vmatpush2.bf16.msra.mxu0 0
        %5081 = vmatprep.subr.bf16.mxu0 0
        %5082 = vmatpush2.bf16.msra.mxu0 0
        %5083 = vmatprep.subr.bf16.mxu0 0
        %5084 = vmatpush2.bf16.msra.mxu0 0
        %5085 = vmatprep.mubr.bf16.mxu0 0
        %5086 = vmatmul.mubr.bf16.gmra.mxu0 %v1179
        %v5087 = vpop.f32.mrf.mxu0
        %v5088 = vadd.f32 %v265, %v5087
        %v5089 = vpop.f32.mrf.mxu0
        %v5090 = vadd.f32 %v265, %v5089
        %v5091 = vpop.f32.mrf.mxu0
        %v5092 = vadd.f32 %v270, %v5091
        %v5093 = vpop.f32.mrf.mxu0
        %v5094 = vadd.f32 %v270, %v5093
        %5095 = vdwg.mxu0
        %5096 = vmatprep.subr.bf16.mxu0 0
        %5097 = vmatpush1.bf16.msra.mxu0 0
        %5098 = vmatprep.subr.bf16.mxu0 0
        %5099 = vmatpush1.bf16.msra.mxu0 0
        %5100 = vmatprep.subr.bf16.mxu0 0
        %5101 = vmatpush1.bf16.msra.mxu0 0
        %5102 = vmatprep.subr.bf16.mxu0 0
        %5103 = vmatpush1.bf16.msra.mxu0 0
        %5104 = vmatprep.subr.bf16.mxu0 0
        %5105 = vmatpush1.bf16.msra.mxu0 0
        %5106 = vmatprep.subr.bf16.mxu0 0
        %5107 = vmatpush1.bf16.msra.mxu0 0
        %5108 = vmatprep.subr.bf16.mxu0 0
        %5109 = vmatpush1.bf16.msra.mxu0 0
        %5110 = vmatprep.subr.bf16.mxu0 %v1651
        %5111 = vmatpush1.bf16.msra.mxu0 %v1648
        %5112 = vmatprep.subr.bf16.mxu0 0
        %5113 = vmatpush2.bf16.msra.mxu0 0
        %5114 = vmatprep.subr.bf16.mxu0 0
        %5115 = vmatpush2.bf16.msra.mxu0 0
        %5116 = vmatprep.subr.bf16.mxu0 0
        %5117 = vmatpush2.bf16.msra.mxu0 0
        %5118 = vmatprep.subr.bf16.mxu0 0
        %5119 = vmatpush2.bf16.msra.mxu0 0
        %5120 = vmatprep.subr.bf16.mxu0 0
        %5121 = vmatpush2.bf16.msra.mxu0 0
        %5122 = vmatprep.subr.bf16.mxu0 0
        %5123 = vmatpush2.bf16.msra.mxu0 0
        %5124 = vmatprep.subr.bf16.mxu0 0
        %5125 = vmatpush2.bf16.msra.mxu0 0
        %5126 = vmatprep.subr.bf16.mxu0 0
        %5127 = vmatpush2.bf16.msra.mxu0 0
        %5128 = vmatprep.mubr.bf16.mxu0 0
        %5129 = vmatmul.mubr.bf16.gmra.mxu0 %v1179
        %v5130 = vpop.f32.mrf.mxu0
        %v5131 = vadd.f32 %v265, %v5130
        %v5132 = vpop.f32.mrf.mxu0
        %v5133 = vadd.f32 %v265, %v5132
        %v5134 = vpop.f32.mrf.mxu0
        %v5135 = vadd.f32 %v270, %v5134
        %v5136 = vpop.f32.mrf.mxu0
        %v5137 = vadd.f32 %v270, %v5136
        %5138 = vdwg.mxu0
        %5139 = vmatprep.subr.bf16.mxu0 0
        %5140 = vmatpush1.bf16.msra.mxu0 0
        %5141 = vmatprep.subr.bf16.mxu0 0
        %5142 = vmatpush1.bf16.msra.mxu0 0
        %5143 = vmatprep.subr.bf16.mxu0 0
        %5144 = vmatpush1.bf16.msra.mxu0 0
        %5145 = vmatprep.subr.bf16.mxu0 0
        %5146 = vmatpush1.bf16.msra.mxu0 0
        %5147 = vmatprep.subr.bf16.mxu0 0
        %5148 = vmatpush1.bf16.msra.mxu0 0
        %5149 = vmatprep.subr.bf16.mxu0 0
        %5150 = vmatpush1.bf16.msra.mxu0 0
        %5151 = vmatprep.subr.bf16.mxu0 0
        %5152 = vmatpush1.bf16.msra.mxu0 0
        %5153 = vmatprep.subr.bf16.mxu0 %v1657
        %5154 = vmatpush1.bf16.msra.mxu0 %v1654
        %5155 = vmatprep.subr.bf16.mxu0 0
        %5156 = vmatpush2.bf16.msra.mxu0 0
        %5157 = vmatprep.subr.bf16.mxu0 0
        %5158 = vmatpush2.bf16.msra.mxu0 0
        %5159 = vmatprep.subr.bf16.mxu0 0
        %5160 = vmatpush2.bf16.msra.mxu0 0
        %5161 = vmatprep.subr.bf16.mxu0 0
        %5162 = vmatpush2.bf16.msra.mxu0 0
        %5163 = vmatprep.subr.bf16.mxu0 0
        %5164 = vmatpush2.bf16.msra.mxu0 0
        %5165 = vmatprep.subr.bf16.mxu0 0
        %5166 = vmatpush2.bf16.msra.mxu0 0
        %5167 = vmatprep.subr.bf16.mxu0 0
        %5168 = vmatpush2.bf16.msra.mxu0 0
        %5169 = vmatprep.subr.bf16.mxu0 0
        %5170 = vmatpush2.bf16.msra.mxu0 0
        %5171 = vmatprep.mubr.bf16.mxu0 0
        %5172 = vmatmul.mubr.bf16.gmra.mxu0 %v1179
        %v5173 = vpop.f32.mrf.mxu0
        %v5174 = vadd.f32 %v265, %v5173
        %v5175 = vpop.f32.mrf.mxu0
        %v5176 = vadd.f32 %v265, %v5175
        %v5177 = vpop.f32.mrf.mxu0
        %v5178 = vadd.f32 %v270, %v5177
        %v5179 = vpop.f32.mrf.mxu0
        %v5180 = vadd.f32 %v270, %v5179
        %5181 = vdwg.mxu0
        %5182 = vmatprep.subr.bf16.mxu0 0
        %5183 = vmatpush1.bf16.msra.mxu0 0
        %5184 = vmatprep.subr.bf16.mxu0 0
        %5185 = vmatpush1.bf16.msra.mxu0 0
        %5186 = vmatprep.subr.bf16.mxu0 0
        %5187 = vmatpush1.bf16.msra.mxu0 0
        %5188 = vmatprep.subr.bf16.mxu0 0
        %5189 = vmatpush1.bf16.msra.mxu0 0
        %5190 = vmatprep.subr.bf16.mxu0 0
        %5191 = vmatpush1.bf16.msra.mxu0 0
        %5192 = vmatprep.subr.bf16.mxu0 0
        %5193 = vmatpush1.bf16.msra.mxu0 0
        %5194 = vmatprep.subr.bf16.mxu0 0
        %5195 = vmatpush1.bf16.msra.mxu0 0
        %5196 = vmatprep.subr.bf16.mxu0 %v1663
        %5197 = vmatpush1.bf16.msra.mxu0 %v1660
        %5198 = vmatprep.subr.bf16.mxu0 0
        %5199 = vmatpush2.bf16.msra.mxu0 0
        %5200 = vmatprep.subr.bf16.mxu0 0
        %5201 = vmatpush2.bf16.msra.mxu0 0
        %5202 = vmatprep.subr.bf16.mxu0 0
        %5203 = vmatpush2.bf16.msra.mxu0 0
        %5204 = vmatprep.subr.bf16.mxu0 0
        %5205 = vmatpush2.bf16.msra.mxu0 0
        %5206 = vmatprep.subr.bf16.mxu0 0
        %5207 = vmatpush2.bf16.msra.mxu0 0
        %5208 = vmatprep.subr.bf16.mxu0 0
        %5209 = vmatpush2.bf16.msra.mxu0 0
        %5210 = vmatprep.subr.bf16.mxu0 0
        %5211 = vmatpush2.bf16.msra.mxu0 0
        %5212 = vmatprep.subr.bf16.mxu0 0
        %5213 = vmatpush2.bf16.msra.mxu0 0
        %5214 = vmatprep.mubr.bf16.mxu0 0
        %5215 = vmatmul.mubr.bf16.gmra.mxu0 %v1179
        %v5216 = vpop.f32.mrf.mxu0
        %v5217 = vadd.f32 %v265, %v5216
        %v5218 = vpop.f32.mrf.mxu0
        %v5219 = vadd.f32 %v265, %v5218
        %v5220 = vpop.f32.mrf.mxu0
        %v5221 = vadd.f32 %v270, %v5220
        %v5222 = vpop.f32.mrf.mxu0
        %v5223 = vadd.f32 %v270, %v5222
        %5224 = vdwg.mxu0
        %5225 = vmatprep.subr.bf16.mxu0 0
        %5226 = vmatpush1.bf16.msra.mxu0 0
        %5227 = vmatprep.subr.bf16.mxu0 0
        %5228 = vmatpush1.bf16.msra.mxu0 0
        %5229 = vmatprep.subr.bf16.mxu0 0
        %5230 = vmatpush1.bf16.msra.mxu0 0
        %5231 = vmatprep.subr.bf16.mxu0 0
        %5232 = vmatpush1.bf16.msra.mxu0 0
        %5233 = vmatprep.subr.bf16.mxu0 0
        %5234 = vmatpush1.bf16.msra.mxu0 0
        %5235 = vmatprep.subr.bf16.mxu0 0
        %5236 = vmatpush1.bf16.msra.mxu0 0
        %5237 = vmatprep.subr.bf16.mxu0 0
        %5238 = vmatpush1.bf16.msra.mxu0 0
        %5239 = vmatprep.subr.bf16.mxu0 %v1669
        %5240 = vmatpush1.bf16.msra.mxu0 %v1666
        %5241 = vmatprep.subr.bf16.mxu0 0
        %5242 = vmatpush2.bf16.msra.mxu0 0
        %5243 = vmatprep.subr.bf16.mxu0 0
        %5244 = vmatpush2.bf16.msra.mxu0 0
        %5245 = vmatprep.subr.bf16.mxu0 0
        %5246 = vmatpush2.bf16.msra.mxu0 0
        %5247 = vmatprep.subr.bf16.mxu0 0
        %5248 = vmatpush2.bf16.msra.mxu0 0
        %5249 = vmatprep.subr.bf16.mxu0 0
        %5250 = vmatpush2.bf16.msra.mxu0 0
        %5251 = vmatprep.subr.bf16.mxu0 0
        %5252 = vmatpush2.bf16.msra.mxu0 0
        %5253 = vmatprep.subr.bf16.mxu0 0
        %5254 = vmatpush2.bf16.msra.mxu0 0
        %5255 = vmatprep.subr.bf16.mxu0 0
        %5256 = vmatpush2.bf16.msra.mxu0 0
        %5257 = vmatprep.mubr.bf16.mxu0 0
        %5258 = vmatmul.mubr.bf16.gmra.mxu0 %v1179
        %v5259 = vpop.f32.mrf.mxu0
        %v5260 = vadd.f32 %v265, %v5259
        %v5261 = vpop.f32.mrf.mxu0
        %v5262 = vadd.f32 %v265, %v5261
        %v5263 = vpop.f32.mrf.mxu0
        %v5264 = vadd.f32 %v270, %v5263
        %v5265 = vpop.f32.mrf.mxu0
        %v5266 = vadd.f32 %v270, %v5265
        %5267 = vdwg.mxu0
        %5268 = vmatprep.subr.bf16.mxu0 0
        %5269 = vmatpush1.bf16.msra.mxu0 0
        %5270 = vmatprep.subr.bf16.mxu0 0
        %5271 = vmatpush1.bf16.msra.mxu0 0
        %5272 = vmatprep.subr.bf16.mxu0 0
        %5273 = vmatpush1.bf16.msra.mxu0 0
        %5274 = vmatprep.subr.bf16.mxu0 0
        %5275 = vmatpush1.bf16.msra.mxu0 0
        %5276 = vmatprep.subr.bf16.mxu0 0
        %5277 = vmatpush1.bf16.msra.mxu0 0
        %5278 = vmatprep.subr.bf16.mxu0 0
        %5279 = vmatpush1.bf16.msra.mxu0 0
        %5280 = vmatprep.subr.bf16.mxu0 0
        %5281 = vmatpush1.bf16.msra.mxu0 0
        %5282 = vmatprep.subr.bf16.mxu0 %v1675
        %5283 = vmatpush1.bf16.msra.mxu0 %v1672
        %5284 = vmatprep.subr.bf16.mxu0 0
        %5285 = vmatpush2.bf16.msra.mxu0 0
        %5286 = vmatprep.subr.bf16.mxu0 0
        %5287 = vmatpush2.bf16.msra.mxu0 0
        %5288 = vmatprep.subr.bf16.mxu0 0
        %5289 = vmatpush2.bf16.msra.mxu0 0
        %5290 = vmatprep.subr.bf16.mxu0 0
        %5291 = vmatpush2.bf16.msra.mxu0 0
        %5292 = vmatprep.subr.bf16.mxu0 0
        %5293 = vmatpush2.bf16.msra.mxu0 0
        %5294 = vmatprep.subr.bf16.mxu0 0
        %5295 = vmatpush2.bf16.msra.mxu0 0
        %5296 = vmatprep.subr.bf16.mxu0 0
        %5297 = vmatpush2.bf16.msra.mxu0 0
        %5298 = vmatprep.subr.bf16.mxu0 0
        %5299 = vmatpush2.bf16.msra.mxu0 0
        %5300 = vmatprep.mubr.bf16.mxu0 0
        %5301 = vmatmul.mubr.bf16.gmra.mxu0 %v1179
        %v5302 = vpop.f32.mrf.mxu0
        %v5303 = vadd.f32 %v265, %v5302
        %v5304 = vpop.f32.mrf.mxu0
        %v5305 = vadd.f32 %v265, %v5304
        %v5306 = vpop.f32.mrf.mxu0
        %v5307 = vadd.f32 %v270, %v5306
        %v5308 = vpop.f32.mrf.mxu0
        %v5309 = vadd.f32 %v270, %v5308
        %5310 = vdwg.mxu0
        %5311 = vmatprep.subr.bf16.mxu0 0
        %5312 = vmatpush1.bf16.msra.mxu0 0
        %5313 = vmatprep.subr.bf16.mxu0 0
        %5314 = vmatpush1.bf16.msra.mxu0 0
        %5315 = vmatprep.subr.bf16.mxu0 0
        %5316 = vmatpush1.bf16.msra.mxu0 0
        %5317 = vmatprep.subr.bf16.mxu0 0
        %5318 = vmatpush1.bf16.msra.mxu0 0
        %5319 = vmatprep.subr.bf16.mxu0 0
        %5320 = vmatpush1.bf16.msra.mxu0 0
        %5321 = vmatprep.subr.bf16.mxu0 0
        %5322 = vmatpush1.bf16.msra.mxu0 0
        %5323 = vmatprep.subr.bf16.mxu0 0
        %5324 = vmatpush1.bf16.msra.mxu0 0
        %5325 = vmatprep.subr.bf16.mxu0 %v1681
        %5326 = vmatpush1.bf16.msra.mxu0 %v1678
        %5327 = vmatprep.subr.bf16.mxu0 0
        %5328 = vmatpush2.bf16.msra.mxu0 0
        %5329 = vmatprep.subr.bf16.mxu0 0
        %5330 = vmatpush2.bf16.msra.mxu0 0
        %5331 = vmatprep.subr.bf16.mxu0 0
        %5332 = vmatpush2.bf16.msra.mxu0 0
        %5333 = vmatprep.subr.bf16.mxu0 0
        %5334 = vmatpush2.bf16.msra.mxu0 0
        %5335 = vmatprep.subr.bf16.mxu0 0
        %5336 = vmatpush2.bf16.msra.mxu0 0
        %5337 = vmatprep.subr.bf16.mxu0 0
        %5338 = vmatpush2.bf16.msra.mxu0 0
        %5339 = vmatprep.subr.bf16.mxu0 0
        %5340 = vmatpush2.bf16.msra.mxu0 0
        %5341 = vmatprep.subr.bf16.mxu0 0
        %5342 = vmatpush2.bf16.msra.mxu0 0
        %5343 = vmatprep.mubr.bf16.mxu0 0
        %5344 = vmatmul.mubr.bf16.gmra.mxu0 %v1179
        %v5345 = vpop.f32.mrf.mxu0
        %v5346 = vadd.f32 %v265, %v5345
        %v5347 = vpop.f32.mrf.mxu0
        %v5348 = vadd.f32 %v265, %v5347
        %v5349 = vpop.f32.mrf.mxu0
        %v5350 = vadd.f32 %v270, %v5349
        %v5351 = vpop.f32.mrf.mxu0
        %v5352 = vadd.f32 %v270, %v5351
        %5353 = vdwg.mxu0
        %5354 = vmatprep.subr.bf16.mxu0 0
        %5355 = vmatpush1.bf16.msra.mxu0 0
        %5356 = vmatprep.subr.bf16.mxu0 0
        %5357 = vmatpush1.bf16.msra.mxu0 0
        %5358 = vmatprep.subr.bf16.mxu0 0
        %5359 = vmatpush1.bf16.msra.mxu0 0
        %5360 = vmatprep.subr.bf16.mxu0 0
        %5361 = vmatpush1.bf16.msra.mxu0 0
        %5362 = vmatprep.subr.bf16.mxu0 0
        %5363 = vmatpush1.bf16.msra.mxu0 0
        %5364 = vmatprep.subr.bf16.mxu0 0
        %5365 = vmatpush1.bf16.msra.mxu0 0
        %5366 = vmatprep.subr.bf16.mxu0 0
        %5367 = vmatpush1.bf16.msra.mxu0 0
        %5368 = vmatprep.subr.bf16.mxu0 %v1687
        %5369 = vmatpush1.bf16.msra.mxu0 %v1684
        %5370 = vmatprep.subr.bf16.mxu0 0
        %5371 = vmatpush2.bf16.msra.mxu0 0
        %5372 = vmatprep.subr.bf16.mxu0 0
        %5373 = vmatpush2.bf16.msra.mxu0 0
        %5374 = vmatprep.subr.bf16.mxu0 0
        %5375 = vmatpush2.bf16.msra.mxu0 0
        %5376 = vmatprep.subr.bf16.mxu0 0
        %5377 = vmatpush2.bf16.msra.mxu0 0
        %5378 = vmatprep.subr.bf16.mxu0 0
        %5379 = vmatpush2.bf16.msra.mxu0 0
        %5380 = vmatprep.subr.bf16.mxu0 0
        %5381 = vmatpush2.bf16.msra.mxu0 0
        %5382 = vmatprep.subr.bf16.mxu0 0
        %5383 = vmatpush2.bf16.msra.mxu0 0
        %5384 = vmatprep.subr.bf16.mxu0 0
        %5385 = vmatpush2.bf16.msra.mxu0 0
        %5386 = vmatprep.mubr.bf16.mxu0 0
        %5387 = vmatmul.mubr.bf16.gmra.mxu0 %v1179
        %v5388 = vpop.f32.mrf.mxu0
        %v5389 = vadd.f32 %v265, %v5388
        %v5390 = vpop.f32.mrf.mxu0
        %v5391 = vadd.f32 %v265, %v5390
        %v5392 = vpop.f32.mrf.mxu0
        %v5393 = vadd.f32 %v270, %v5392
        %v5394 = vpop.f32.mrf.mxu0
        %v5395 = vadd.f32 %v270, %v5394
        %5396 = vdwg.mxu0
        %5397 = vmatprep.subr.bf16.mxu0 0
        %5398 = vmatpush1.bf16.msra.mxu0 0
        %5399 = vmatprep.subr.bf16.mxu0 0
        %5400 = vmatpush1.bf16.msra.mxu0 0
        %5401 = vmatprep.subr.bf16.mxu0 0
        %5402 = vmatpush1.bf16.msra.mxu0 0
        %5403 = vmatprep.subr.bf16.mxu0 0
        %5404 = vmatpush1.bf16.msra.mxu0 0
        %5405 = vmatprep.subr.bf16.mxu0 0
        %5406 = vmatpush1.bf16.msra.mxu0 0
        %5407 = vmatprep.subr.bf16.mxu0 0
        %5408 = vmatpush1.bf16.msra.mxu0 0
        %5409 = vmatprep.subr.bf16.mxu0 0
        %5410 = vmatpush1.bf16.msra.mxu0 0
        %5411 = vmatprep.subr.bf16.mxu0 %v1693
        %5412 = vmatpush1.bf16.msra.mxu0 %v1690
        %5413 = vmatprep.subr.bf16.mxu0 0
        %5414 = vmatpush2.bf16.msra.mxu0 0
        %5415 = vmatprep.subr.bf16.mxu0 0
        %5416 = vmatpush2.bf16.msra.mxu0 0
        %5417 = vmatprep.subr.bf16.mxu0 0
        %5418 = vmatpush2.bf16.msra.mxu0 0
        %5419 = vmatprep.subr.bf16.mxu0 0
        %5420 = vmatpush2.bf16.msra.mxu0 0
        %5421 = vmatprep.subr.bf16.mxu0 0
        %5422 = vmatpush2.bf16.msra.mxu0 0
        %5423 = vmatprep.subr.bf16.mxu0 0
        %5424 = vmatpush2.bf16.msra.mxu0 0
        %5425 = vmatprep.subr.bf16.mxu0 0
        %5426 = vmatpush2.bf16.msra.mxu0 0
        %5427 = vmatprep.subr.bf16.mxu0 0
        %5428 = vmatpush2.bf16.msra.mxu0 0
        %5429 = vmatprep.mubr.bf16.mxu0 0
        %5430 = vmatmul.mubr.bf16.gmra.mxu0 %v1179
        %v5431 = vpop.f32.mrf.mxu0
        %v5432 = vadd.f32 %v265, %v5431
        %v5433 = vpop.f32.mrf.mxu0
        %v5434 = vadd.f32 %v265, %v5433
        %v5435 = vpop.f32.mrf.mxu0
        %v5436 = vadd.f32 %v270, %v5435
        %v5437 = vpop.f32.mrf.mxu0
        %v5438 = vadd.f32 %v270, %v5437
        %5439 = vdwg.mxu0
        %5440 = vmatprep.subr.bf16.mxu0 0
        %5441 = vmatpush1.bf16.msra.mxu0 0
        %5442 = vmatprep.subr.bf16.mxu0 0
        %5443 = vmatpush1.bf16.msra.mxu0 0
        %5444 = vmatprep.subr.bf16.mxu0 0
        %5445 = vmatpush1.bf16.msra.mxu0 0
        %5446 = vmatprep.subr.bf16.mxu0 0
        %5447 = vmatpush1.bf16.msra.mxu0 0
        %5448 = vmatprep.subr.bf16.mxu0 0
        %5449 = vmatpush1.bf16.msra.mxu0 0
        %5450 = vmatprep.subr.bf16.mxu0 0
        %5451 = vmatpush1.bf16.msra.mxu0 0
        %5452 = vmatprep.subr.bf16.mxu0 0
        %5453 = vmatpush1.bf16.msra.mxu0 0
        %5454 = vmatprep.subr.bf16.mxu0 %v1699
        %5455 = vmatpush1.bf16.msra.mxu0 %v1696
        %5456 = vmatprep.subr.bf16.mxu0 0
        %5457 = vmatpush2.bf16.msra.mxu0 0
        %5458 = vmatprep.subr.bf16.mxu0 0
        %5459 = vmatpush2.bf16.msra.mxu0 0
        %5460 = vmatprep.subr.bf16.mxu0 0
        %5461 = vmatpush2.bf16.msra.mxu0 0
        %5462 = vmatprep.subr.bf16.mxu0 0
        %5463 = vmatpush2.bf16.msra.mxu0 0
        %5464 = vmatprep.subr.bf16.mxu0 0
        %5465 = vmatpush2.bf16.msra.mxu0 0
        %5466 = vmatprep.subr.bf16.mxu0 0
        %5467 = vmatpush2.bf16.msra.mxu0 0
        %5468 = vmatprep.subr.bf16.mxu0 0
        %5469 = vmatpush2.bf16.msra.mxu0 0
        %5470 = vmatprep.subr.bf16.mxu0 0
        %5471 = vmatpush2.bf16.msra.mxu0 0
        %5472 = vmatprep.mubr.bf16.mxu0 0
        %5473 = vmatmul.mubr.bf16.gmra.mxu0 %v1179
        %v5474 = vpop.f32.mrf.mxu0
        %v5475 = vadd.f32 %v265, %v5474
        %v5476 = vpop.f32.mrf.mxu0
        %v5477 = vadd.f32 %v265, %v5476
        %v5478 = vpop.f32.mrf.mxu0
        %v5479 = vadd.f32 %v270, %v5478
        %v5480 = vpop.f32.mrf.mxu0
        %v5481 = vadd.f32 %v270, %v5480
        %5482 = vdwg.mxu0
        %5483 = vmatprep.subr.bf16.mxu0 0
        %5484 = vmatpush1.bf16.msra.mxu0 0
        %5485 = vmatprep.subr.bf16.mxu0 0
        %5486 = vmatpush1.bf16.msra.mxu0 0
        %5487 = vmatprep.subr.bf16.mxu0 0
        %5488 = vmatpush1.bf16.msra.mxu0 0
        %5489 = vmatprep.subr.bf16.mxu0 0
        %5490 = vmatpush1.bf16.msra.mxu0 0
        %5491 = vmatprep.subr.bf16.mxu0 0
        %5492 = vmatpush1.bf16.msra.mxu0 0
        %5493 = vmatprep.subr.bf16.mxu0 0
        %5494 = vmatpush1.bf16.msra.mxu0 0
        %5495 = vmatprep.subr.bf16.mxu0 0
        %5496 = vmatpush1.bf16.msra.mxu0 0
        %5497 = vmatprep.subr.bf16.mxu0 %v1705
        %5498 = vmatpush1.bf16.msra.mxu0 %v1702
        %5499 = vmatprep.subr.bf16.mxu0 0
        %5500 = vmatpush2.bf16.msra.mxu0 0
        %5501 = vmatprep.subr.bf16.mxu0 0
        %5502 = vmatpush2.bf16.msra.mxu0 0
        %5503 = vmatprep.subr.bf16.mxu0 0
        %5504 = vmatpush2.bf16.msra.mxu0 0
        %5505 = vmatprep.subr.bf16.mxu0 0
        %5506 = vmatpush2.bf16.msra.mxu0 0
        %5507 = vmatprep.subr.bf16.mxu0 0
        %5508 = vmatpush2.bf16.msra.mxu0 0
        %5509 = vmatprep.subr.bf16.mxu0 0
        %5510 = vmatpush2.bf16.msra.mxu0 0
        %5511 = vmatprep.subr.bf16.mxu0 0
        %5512 = vmatpush2.bf16.msra.mxu0 0
        %5513 = vmatprep.subr.bf16.mxu0 0
        %5514 = vmatpush2.bf16.msra.mxu0 0
        %5515 = vmatprep.mubr.bf16.mxu0 0
        %5516 = vmatmul.mubr.bf16.gmra.mxu0 %v1179
        %v5517 = vpop.f32.mrf.mxu0
        %v5518 = vadd.f32 %v265, %v5517
        %v5519 = vpop.f32.mrf.mxu0
        %v5520 = vadd.f32 %v265, %v5519
        %v5521 = vpop.f32.mrf.mxu0
        %v5522 = vadd.f32 %v270, %v5521
        %v5523 = vpop.f32.mrf.mxu0
        %v5524 = vadd.f32 %v270, %v5523
        %5525 = vdwg.mxu0
        %5526 = vmatprep.subr.bf16.mxu0 0
        %5527 = vmatpush1.bf16.msra.mxu0 0
        %5528 = vmatprep.subr.bf16.mxu0 0
        %5529 = vmatpush1.bf16.msra.mxu0 0
        %5530 = vmatprep.subr.bf16.mxu0 0
        %5531 = vmatpush1.bf16.msra.mxu0 0
        %5532 = vmatprep.subr.bf16.mxu0 0
        %5533 = vmatpush1.bf16.msra.mxu0 0
        %5534 = vmatprep.subr.bf16.mxu0 0
        %5535 = vmatpush1.bf16.msra.mxu0 0
        %5536 = vmatprep.subr.bf16.mxu0 0
        %5537 = vmatpush1.bf16.msra.mxu0 0
        %5538 = vmatprep.subr.bf16.mxu0 0
        %5539 = vmatpush1.bf16.msra.mxu0 0
        %5540 = vmatprep.subr.bf16.mxu0 %v1711
        %5541 = vmatpush1.bf16.msra.mxu0 %v1708
        %5542 = vmatprep.subr.bf16.mxu0 0
        %5543 = vmatpush2.bf16.msra.mxu0 0
        %5544 = vmatprep.subr.bf16.mxu0 0
        %5545 = vmatpush2.bf16.msra.mxu0 0
        %5546 = vmatprep.subr.bf16.mxu0 0
        %5547 = vmatpush2.bf16.msra.mxu0 0
        %5548 = vmatprep.subr.bf16.mxu0 0
        %5549 = vmatpush2.bf16.msra.mxu0 0
        %5550 = vmatprep.subr.bf16.mxu0 0
        %5551 = vmatpush2.bf16.msra.mxu0 0
        %5552 = vmatprep.subr.bf16.mxu0 0
        %5553 = vmatpush2.bf16.msra.mxu0 0
        %5554 = vmatprep.subr.bf16.mxu0 0
        %5555 = vmatpush2.bf16.msra.mxu0 0
        %5556 = vmatprep.subr.bf16.mxu0 0
        %5557 = vmatpush2.bf16.msra.mxu0 0
        %5558 = vmatprep.mubr.bf16.mxu0 0
        %5559 = vmatmul.mubr.bf16.gmra.mxu0 %v1179
        %v5560 = vpop.f32.mrf.mxu0
        %v5561 = vadd.f32 %v265, %v5560
        %v5562 = vpop.f32.mrf.mxu0
        %v5563 = vadd.f32 %v265, %v5562
        %v5564 = vpop.f32.mrf.mxu0
        %v5565 = vadd.f32 %v270, %v5564
        %v5566 = vpop.f32.mrf.mxu0
        %v5567 = vadd.f32 %v270, %v5566
        %5568 = vdwg.mxu0
        %5569 = vmatprep.subr.bf16.mxu0 0
        %5570 = vmatpush1.bf16.msra.mxu0 0
        %5571 = vmatprep.subr.bf16.mxu0 0
        %5572 = vmatpush1.bf16.msra.mxu0 0
        %5573 = vmatprep.subr.bf16.mxu0 0
        %5574 = vmatpush1.bf16.msra.mxu0 0
        %5575 = vmatprep.subr.bf16.mxu0 0
        %5576 = vmatpush1.bf16.msra.mxu0 0
        %5577 = vmatprep.subr.bf16.mxu0 0
        %5578 = vmatpush1.bf16.msra.mxu0 0
        %5579 = vmatprep.subr.bf16.mxu0 0
        %5580 = vmatpush1.bf16.msra.mxu0 0
        %5581 = vmatprep.subr.bf16.mxu0 0
        %5582 = vmatpush1.bf16.msra.mxu0 0
        %5583 = vmatprep.subr.bf16.mxu0 %v1717
        %5584 = vmatpush1.bf16.msra.mxu0 %v1714
        %5585 = vmatprep.subr.bf16.mxu0 0
        %5586 = vmatpush2.bf16.msra.mxu0 0
        %5587 = vmatprep.subr.bf16.mxu0 0
        %5588 = vmatpush2.bf16.msra.mxu0 0
        %5589 = vmatprep.subr.bf16.mxu0 0
        %5590 = vmatpush2.bf16.msra.mxu0 0
        %5591 = vmatprep.subr.bf16.mxu0 0
        %5592 = vmatpush2.bf16.msra.mxu0 0
        %5593 = vmatprep.subr.bf16.mxu0 0
        %5594 = vmatpush2.bf16.msra.mxu0 0
        %5595 = vmatprep.subr.bf16.mxu0 0
        %5596 = vmatpush2.bf16.msra.mxu0 0
        %5597 = vmatprep.subr.bf16.mxu0 0
        %5598 = vmatpush2.bf16.msra.mxu0 0
        %5599 = vmatprep.subr.bf16.mxu0 0
        %5600 = vmatpush2.bf16.msra.mxu0 0
        %5601 = vmatprep.mubr.bf16.mxu0 0
        %5602 = vmatmul.mubr.bf16.gmra.mxu0 %v1179
        %v5603 = vpop.f32.mrf.mxu0
        %v5604 = vadd.f32 %v265, %v5603
        %v5605 = vpop.f32.mrf.mxu0
        %v5606 = vadd.f32 %v265, %v5605
        %v5607 = vpop.f32.mrf.mxu0
        %v5608 = vadd.f32 %v270, %v5607
        %v5609 = vpop.f32.mrf.mxu0
        %v5610 = vadd.f32 %v270, %v5609
        %5611 = vdwg.mxu0
        %5612 = vmatprep.subr.bf16.mxu0 0
        %5613 = vmatpush1.bf16.msra.mxu0 0
        %5614 = vmatprep.subr.bf16.mxu0 0
        %5615 = vmatpush1.bf16.msra.mxu0 0
        %5616 = vmatprep.subr.bf16.mxu0 0
        %5617 = vmatpush1.bf16.msra.mxu0 0
        %5618 = vmatprep.subr.bf16.mxu0 0
        %5619 = vmatpush1.bf16.msra.mxu0 0
        %5620 = vmatprep.subr.bf16.mxu0 0
        %5621 = vmatpush1.bf16.msra.mxu0 0
        %5622 = vmatprep.subr.bf16.mxu0 0
        %5623 = vmatpush1.bf16.msra.mxu0 0
        %5624 = vmatprep.subr.bf16.mxu0 0
        %5625 = vmatpush1.bf16.msra.mxu0 0
        %5626 = vmatprep.subr.bf16.mxu0 %v1723
        %5627 = vmatpush1.bf16.msra.mxu0 %v1720
        %5628 = vmatprep.subr.bf16.mxu0 0
        %5629 = vmatpush2.bf16.msra.mxu0 0
        %5630 = vmatprep.subr.bf16.mxu0 0
        %5631 = vmatpush2.bf16.msra.mxu0 0
        %5632 = vmatprep.subr.bf16.mxu0 0
        %5633 = vmatpush2.bf16.msra.mxu0 0
        %5634 = vmatprep.subr.bf16.mxu0 0
        %5635 = vmatpush2.bf16.msra.mxu0 0
        %5636 = vmatprep.subr.bf16.mxu0 0
        %5637 = vmatpush2.bf16.msra.mxu0 0
        %5638 = vmatprep.subr.bf16.mxu0 0
        %5639 = vmatpush2.bf16.msra.mxu0 0
        %5640 = vmatprep.subr.bf16.mxu0 0
        %5641 = vmatpush2.bf16.msra.mxu0 0
        %5642 = vmatprep.subr.bf16.mxu0 0
        %5643 = vmatpush2.bf16.msra.mxu0 0
        %5644 = vmatprep.mubr.bf16.mxu0 0
        %5645 = vmatmul.mubr.bf16.gmra.mxu0 %v1179
        %v5646 = vpop.f32.mrf.mxu0
        %v5647 = vadd.f32 %v265, %v5646
        %v5648 = vpop.f32.mrf.mxu0
        %v5649 = vadd.f32 %v265, %v5648
        %v5650 = vpop.f32.mrf.mxu0
        %v5651 = vadd.f32 %v270, %v5650
        %v5652 = vpop.f32.mrf.mxu0
        %v5653 = vadd.f32 %v270, %v5652
        %5654 = vdwg.mxu0
        %5655 = vmatprep.subr.bf16.mxu0 0
        %5656 = vmatpush1.bf16.msra.mxu0 0
        %5657 = vmatprep.subr.bf16.mxu0 0
        %5658 = vmatpush1.bf16.msra.mxu0 0
        %5659 = vmatprep.subr.bf16.mxu0 0
        %5660 = vmatpush1.bf16.msra.mxu0 0
        %5661 = vmatprep.subr.bf16.mxu0 0
        %5662 = vmatpush1.bf16.msra.mxu0 0
        %5663 = vmatprep.subr.bf16.mxu0 0
        %5664 = vmatpush1.bf16.msra.mxu0 0
        %5665 = vmatprep.subr.bf16.mxu0 0
        %5666 = vmatpush1.bf16.msra.mxu0 0
        %5667 = vmatprep.subr.bf16.mxu0 0
        %5668 = vmatpush1.bf16.msra.mxu0 0
        %5669 = vmatprep.subr.bf16.mxu0 %v1729
        %5670 = vmatpush1.bf16.msra.mxu0 %v1726
        %5671 = vmatprep.subr.bf16.mxu0 0
        %5672 = vmatpush2.bf16.msra.mxu0 0
        %5673 = vmatprep.subr.bf16.mxu0 0
        %5674 = vmatpush2.bf16.msra.mxu0 0
        %5675 = vmatprep.subr.bf16.mxu0 0
        %5676 = vmatpush2.bf16.msra.mxu0 0
        %5677 = vmatprep.subr.bf16.mxu0 0
        %5678 = vmatpush2.bf16.msra.mxu0 0
        %5679 = vmatprep.subr.bf16.mxu0 0
        %5680 = vmatpush2.bf16.msra.mxu0 0
        %5681 = vmatprep.subr.bf16.mxu0 0
        %5682 = vmatpush2.bf16.msra.mxu0 0
        %5683 = vmatprep.subr.bf16.mxu0 0
        %5684 = vmatpush2.bf16.msra.mxu0 0
        %5685 = vmatprep.subr.bf16.mxu0 0
        %5686 = vmatpush2.bf16.msra.mxu0 0
        %5687 = vmatprep.mubr.bf16.mxu0 0
        %5688 = vmatmul.mubr.bf16.gmra.mxu0 %v1179
        %v5689 = vpop.f32.mrf.mxu0
        %v5690 = vadd.f32 %v265, %v5689
        %v5691 = vpop.f32.mrf.mxu0
        %v5692 = vadd.f32 %v265, %v5691
        %v5693 = vpop.f32.mrf.mxu0
        %v5694 = vadd.f32 %v270, %v5693
        %v5695 = vpop.f32.mrf.mxu0
        %v5696 = vadd.f32 %v270, %v5695
        %5697 = vdwg.mxu0
        %5698 = vmatprep.subr.bf16.mxu0 0
        %5699 = vmatpush1.bf16.msra.mxu0 0
        %5700 = vmatprep.subr.bf16.mxu0 0
        %5701 = vmatpush1.bf16.msra.mxu0 0
        %5702 = vmatprep.subr.bf16.mxu0 0
        %5703 = vmatpush1.bf16.msra.mxu0 0
        %5704 = vmatprep.subr.bf16.mxu0 0
        %5705 = vmatpush1.bf16.msra.mxu0 0
        %5706 = vmatprep.subr.bf16.mxu0 0
        %5707 = vmatpush1.bf16.msra.mxu0 0
        %5708 = vmatprep.subr.bf16.mxu0 0
        %5709 = vmatpush1.bf16.msra.mxu0 0
        %5710 = vmatprep.subr.bf16.mxu0 0
        %5711 = vmatpush1.bf16.msra.mxu0 0
        %5712 = vmatprep.subr.bf16.mxu0 %v1735
        %5713 = vmatpush1.bf16.msra.mxu0 %v1732
        %5714 = vmatprep.subr.bf16.mxu0 0
        %5715 = vmatpush2.bf16.msra.mxu0 0
        %5716 = vmatprep.subr.bf16.mxu0 0
        %5717 = vmatpush2.bf16.msra.mxu0 0
        %5718 = vmatprep.subr.bf16.mxu0 0
        %5719 = vmatpush2.bf16.msra.mxu0 0
        %5720 = vmatprep.subr.bf16.mxu0 0
        %5721 = vmatpush2.bf16.msra.mxu0 0
        %5722 = vmatprep.subr.bf16.mxu0 0
        %5723 = vmatpush2.bf16.msra.mxu0 0
        %5724 = vmatprep.subr.bf16.mxu0 0
        %5725 = vmatpush2.bf16.msra.mxu0 0
        %5726 = vmatprep.subr.bf16.mxu0 0
        %5727 = vmatpush2.bf16.msra.mxu0 0
        %5728 = vmatprep.subr.bf16.mxu0 0
        %5729 = vmatpush2.bf16.msra.mxu0 0
        %5730 = vmatprep.mubr.bf16.mxu0 0
        %5731 = vmatmul.mubr.bf16.gmra.mxu0 %v1179
        %v5732 = vpop.f32.mrf.mxu0
        %v5733 = vadd.f32 %v265, %v5732
        %v5734 = vpop.f32.mrf.mxu0
        %v5735 = vadd.f32 %v265, %v5734
        %v5736 = vpop.f32.mrf.mxu0
        %v5737 = vadd.f32 %v270, %v5736
        %v5738 = vpop.f32.mrf.mxu0
        %v5739 = vadd.f32 %v270, %v5738
        %5740 = vdwg.mxu0
        %5741 = vmatprep.subr.bf16.mxu0 0
        %5742 = vmatpush1.bf16.msra.mxu0 0
        %5743 = vmatprep.subr.bf16.mxu0 0
        %5744 = vmatpush1.bf16.msra.mxu0 0
        %5745 = vmatprep.subr.bf16.mxu0 0
        %5746 = vmatpush1.bf16.msra.mxu0 0
        %5747 = vmatprep.subr.bf16.mxu0 0
        %5748 = vmatpush1.bf16.msra.mxu0 0
        %5749 = vmatprep.subr.bf16.mxu0 0
        %5750 = vmatpush1.bf16.msra.mxu0 0
        %5751 = vmatprep.subr.bf16.mxu0 0
        %5752 = vmatpush1.bf16.msra.mxu0 0
        %5753 = vmatprep.subr.bf16.mxu0 0
        %5754 = vmatpush1.bf16.msra.mxu0 0
        %5755 = vmatprep.subr.bf16.mxu0 %v1741
        %5756 = vmatpush1.bf16.msra.mxu0 %v1738
        %5757 = vmatprep.subr.bf16.mxu0 0
        %5758 = vmatpush2.bf16.msra.mxu0 0
        %5759 = vmatprep.subr.bf16.mxu0 0
        %5760 = vmatpush2.bf16.msra.mxu0 0
        %5761 = vmatprep.subr.bf16.mxu0 0
        %5762 = vmatpush2.bf16.msra.mxu0 0
        %5763 = vmatprep.subr.bf16.mxu0 0
        %5764 = vmatpush2.bf16.msra.mxu0 0
        %5765 = vmatprep.subr.bf16.mxu0 0
        %5766 = vmatpush2.bf16.msra.mxu0 0
        %5767 = vmatprep.subr.bf16.mxu0 0
        %5768 = vmatpush2.bf16.msra.mxu0 0
        %5769 = vmatprep.subr.bf16.mxu0 0
        %5770 = vmatpush2.bf16.msra.mxu0 0
        %5771 = vmatprep.subr.bf16.mxu0 0
        %5772 = vmatpush2.bf16.msra.mxu0 0
        %5773 = vmatprep.mubr.bf16.mxu0 0
        %5774 = vmatmul.mubr.bf16.gmra.mxu0 %v1179
        %v5775 = vpop.f32.mrf.mxu0
        %v5776 = vadd.f32 %v265, %v5775
        %v5777 = vpop.f32.mrf.mxu0
        %v5778 = vadd.f32 %v265, %v5777
        %v5779 = vpop.f32.mrf.mxu0
        %v5780 = vadd.f32 %v270, %v5779
        %v5781 = vpop.f32.mrf.mxu0
        %v5782 = vadd.f32 %v270, %v5781
        %5783 = vdwg.mxu0
        %5784 = vmatprep.subr.bf16.mxu0 0
        %5785 = vmatpush1.bf16.msra.mxu0 0
        %5786 = vmatprep.subr.bf16.mxu0 0
        %5787 = vmatpush1.bf16.msra.mxu0 0
        %5788 = vmatprep.subr.bf16.mxu0 0
        %5789 = vmatpush1.bf16.msra.mxu0 0
        %5790 = vmatprep.subr.bf16.mxu0 0
        %5791 = vmatpush1.bf16.msra.mxu0 0
        %5792 = vmatprep.subr.bf16.mxu0 0
        %5793 = vmatpush1.bf16.msra.mxu0 0
        %5794 = vmatprep.subr.bf16.mxu0 0
        %5795 = vmatpush1.bf16.msra.mxu0 0
        %5796 = vmatprep.subr.bf16.mxu0 0
        %5797 = vmatpush1.bf16.msra.mxu0 0
        %5798 = vmatprep.subr.bf16.mxu0 %v1747
        %5799 = vmatpush1.bf16.msra.mxu0 %v1744
        %5800 = vmatprep.subr.bf16.mxu0 0
        %5801 = vmatpush2.bf16.msra.mxu0 0
        %5802 = vmatprep.subr.bf16.mxu0 0
        %5803 = vmatpush2.bf16.msra.mxu0 0
        %5804 = vmatprep.subr.bf16.mxu0 0
        %5805 = vmatpush2.bf16.msra.mxu0 0
        %5806 = vmatprep.subr.bf16.mxu0 0
        %5807 = vmatpush2.bf16.msra.mxu0 0
        %5808 = vmatprep.subr.bf16.mxu0 0
        %5809 = vmatpush2.bf16.msra.mxu0 0
        %5810 = vmatprep.subr.bf16.mxu0 0
        %5811 = vmatpush2.bf16.msra.mxu0 0
        %5812 = vmatprep.subr.bf16.mxu0 0
        %5813 = vmatpush2.bf16.msra.mxu0 0
        %5814 = vmatprep.subr.bf16.mxu0 0
        %5815 = vmatpush2.bf16.msra.mxu0 0
        %5816 = vmatprep.mubr.bf16.mxu0 0
        %5817 = vmatmul.mubr.bf16.gmra.mxu0 %v1179
        %v5818 = vpop.f32.mrf.mxu0
        %v5819 = vadd.f32 %v265, %v5818
        %v5820 = vpop.f32.mrf.mxu0
        %v5821 = vadd.f32 %v265, %v5820
        %v5822 = vpop.f32.mrf.mxu0
        %v5823 = vadd.f32 %v270, %v5822
        %v5824 = vpop.f32.mrf.mxu0
        %v5825 = vadd.f32 %v270, %v5824
        %5826 = vdwg.mxu0
        %5827 = vmatprep.subr.bf16.mxu0 0
        %5828 = vmatpush1.bf16.msra.mxu0 0
        %5829 = vmatprep.subr.bf16.mxu0 0
        %5830 = vmatpush1.bf16.msra.mxu0 0
        %5831 = vmatprep.subr.bf16.mxu0 0
        %5832 = vmatpush1.bf16.msra.mxu0 0
        %5833 = vmatprep.subr.bf16.mxu0 0
        %5834 = vmatpush1.bf16.msra.mxu0 0
        %5835 = vmatprep.subr.bf16.mxu0 0
        %5836 = vmatpush1.bf16.msra.mxu0 0
        %5837 = vmatprep.subr.bf16.mxu0 0
        %5838 = vmatpush1.bf16.msra.mxu0 0
        %5839 = vmatprep.subr.bf16.mxu0 0
        %5840 = vmatpush1.bf16.msra.mxu0 0
        %5841 = vmatprep.subr.bf16.mxu0 %v1753
        %5842 = vmatpush1.bf16.msra.mxu0 %v1750
        %5843 = vmatprep.subr.bf16.mxu0 0
        %5844 = vmatpush2.bf16.msra.mxu0 0
        %5845 = vmatprep.subr.bf16.mxu0 0
        %5846 = vmatpush2.bf16.msra.mxu0 0
        %5847 = vmatprep.subr.bf16.mxu0 0
        %5848 = vmatpush2.bf16.msra.mxu0 0
        %5849 = vmatprep.subr.bf16.mxu0 0
        %5850 = vmatpush2.bf16.msra.mxu0 0
        %5851 = vmatprep.subr.bf16.mxu0 0
        %5852 = vmatpush2.bf16.msra.mxu0 0
        %5853 = vmatprep.subr.bf16.mxu0 0
        %5854 = vmatpush2.bf16.msra.mxu0 0
        %5855 = vmatprep.subr.bf16.mxu0 0
        %5856 = vmatpush2.bf16.msra.mxu0 0
        %5857 = vmatprep.subr.bf16.mxu0 0
        %5858 = vmatpush2.bf16.msra.mxu0 0
        %5859 = vmatprep.mubr.bf16.mxu0 0
        %5860 = vmatmul.mubr.bf16.gmra.mxu0 %v1179
        %v5861 = vpop.f32.mrf.mxu0
        %v5862 = vadd.f32 %v265, %v5861
        %v5863 = vpop.f32.mrf.mxu0
        %v5864 = vadd.f32 %v265, %v5863
        %v5865 = vpop.f32.mrf.mxu0
        %v5866 = vadd.f32 %v270, %v5865
        %v5867 = vpop.f32.mrf.mxu0
        %v5868 = vadd.f32 %v270, %v5867
        %5869 = vdwg.mxu0
        %5870 = vmatprep.subr.bf16.mxu0 0
        %5871 = vmatpush1.bf16.msra.mxu0 0
        %5872 = vmatprep.subr.bf16.mxu0 0
        %5873 = vmatpush1.bf16.msra.mxu0 0
        %5874 = vmatprep.subr.bf16.mxu0 0
        %5875 = vmatpush1.bf16.msra.mxu0 0
        %5876 = vmatprep.subr.bf16.mxu0 0
        %5877 = vmatpush1.bf16.msra.mxu0 0
        %5878 = vmatprep.subr.bf16.mxu0 0
        %5879 = vmatpush1.bf16.msra.mxu0 0
        %5880 = vmatprep.subr.bf16.mxu0 0
        %5881 = vmatpush1.bf16.msra.mxu0 0
        %5882 = vmatprep.subr.bf16.mxu0 0
        %5883 = vmatpush1.bf16.msra.mxu0 0
        %5884 = vmatprep.subr.bf16.mxu0 %v1759
        %5885 = vmatpush1.bf16.msra.mxu0 %v1756
        %5886 = vmatprep.subr.bf16.mxu0 0
        %5887 = vmatpush2.bf16.msra.mxu0 0
        %5888 = vmatprep.subr.bf16.mxu0 0
        %5889 = vmatpush2.bf16.msra.mxu0 0
        %5890 = vmatprep.subr.bf16.mxu0 0
        %5891 = vmatpush2.bf16.msra.mxu0 0
        %5892 = vmatprep.subr.bf16.mxu0 0
        %5893 = vmatpush2.bf16.msra.mxu0 0
        %5894 = vmatprep.subr.bf16.mxu0 0
        %5895 = vmatpush2.bf16.msra.mxu0 0
        %5896 = vmatprep.subr.bf16.mxu0 0
        %5897 = vmatpush2.bf16.msra.mxu0 0
        %5898 = vmatprep.subr.bf16.mxu0 0
        %5899 = vmatpush2.bf16.msra.mxu0 0
        %5900 = vmatprep.subr.bf16.mxu0 0
        %5901 = vmatpush2.bf16.msra.mxu0 0
        %5902 = vmatprep.mubr.bf16.mxu0 0
        %5903 = vmatmul.mubr.bf16.gmra.mxu0 %v1179
        %v5904 = vpop.f32.mrf.mxu0
        %v5905 = vadd.f32 %v265, %v5904
        %v5906 = vpop.f32.mrf.mxu0
        %v5907 = vadd.f32 %v265, %v5906
        %v5908 = vpop.f32.mrf.mxu0
        %v5909 = vadd.f32 %v270, %v5908
        %v5910 = vpop.f32.mrf.mxu0
        %v5911 = vadd.f32 %v270, %v5910
        %5912 = vdwg.mxu0
        %5913 = vmatprep.subr.bf16.mxu0 0
        %5914 = vmatpush1.bf16.msra.mxu0 0
        %5915 = vmatprep.subr.bf16.mxu0 0
        %5916 = vmatpush1.bf16.msra.mxu0 0
        %5917 = vmatprep.subr.bf16.mxu0 0
        %5918 = vmatpush1.bf16.msra.mxu0 0
        %5919 = vmatprep.subr.bf16.mxu0 0
        %5920 = vmatpush1.bf16.msra.mxu0 0
        %5921 = vmatprep.subr.bf16.mxu0 0
        %5922 = vmatpush1.bf16.msra.mxu0 0
        %5923 = vmatprep.subr.bf16.mxu0 0
        %5924 = vmatpush1.bf16.msra.mxu0 0
        %5925 = vmatprep.subr.bf16.mxu0 0
        %5926 = vmatpush1.bf16.msra.mxu0 0
        %5927 = vmatprep.subr.bf16.mxu0 %v1765
        %5928 = vmatpush1.bf16.msra.mxu0 %v1762
        %5929 = vmatprep.subr.bf16.mxu0 0
        %5930 = vmatpush2.bf16.msra.mxu0 0
        %5931 = vmatprep.subr.bf16.mxu0 0
        %5932 = vmatpush2.bf16.msra.mxu0 0
        %5933 = vmatprep.subr.bf16.mxu0 0
        %5934 = vmatpush2.bf16.msra.mxu0 0
        %5935 = vmatprep.subr.bf16.mxu0 0
        %5936 = vmatpush2.bf16.msra.mxu0 0
        %5937 = vmatprep.subr.bf16.mxu0 0
        %5938 = vmatpush2.bf16.msra.mxu0 0
        %5939 = vmatprep.subr.bf16.mxu0 0
        %5940 = vmatpush2.bf16.msra.mxu0 0
        %5941 = vmatprep.subr.bf16.mxu0 0
        %5942 = vmatpush2.bf16.msra.mxu0 0
        %5943 = vmatprep.subr.bf16.mxu0 0
        %5944 = vmatpush2.bf16.msra.mxu0 0
        %5945 = vmatprep.mubr.bf16.mxu0 0
        %5946 = vmatmul.mubr.bf16.gmra.mxu0 %v1179
        %v5947 = vpop.f32.mrf.mxu0
        %v5948 = vadd.f32 %v265, %v5947
        %v5949 = vpop.f32.mrf.mxu0
        %v5950 = vadd.f32 %v265, %v5949
        %v5951 = vpop.f32.mrf.mxu0
        %v5952 = vadd.f32 %v270, %v5951
        %v5953 = vpop.f32.mrf.mxu0
        %v5954 = vadd.f32 %v270, %v5953
        %5955 = vdwg.mxu0
        %5956 = vmatprep.subr.bf16.mxu0 0
        %5957 = vmatpush1.bf16.msra.mxu0 0
        %5958 = vmatprep.subr.bf16.mxu0 0
        %5959 = vmatpush1.bf16.msra.mxu0 0
        %5960 = vmatprep.subr.bf16.mxu0 0
        %5961 = vmatpush1.bf16.msra.mxu0 0
        %5962 = vmatprep.subr.bf16.mxu0 0
        %5963 = vmatpush1.bf16.msra.mxu0 0
        %5964 = vmatprep.subr.bf16.mxu0 0
        %5965 = vmatpush1.bf16.msra.mxu0 0
        %5966 = vmatprep.subr.bf16.mxu0 0
        %5967 = vmatpush1.bf16.msra.mxu0 0
        %5968 = vmatprep.subr.bf16.mxu0 0
        %5969 = vmatpush1.bf16.msra.mxu0 0
        %5970 = vmatprep.subr.bf16.mxu0 %v1771
        %5971 = vmatpush1.bf16.msra.mxu0 %v1768
        %5972 = vmatprep.subr.bf16.mxu0 0
        %5973 = vmatpush2.bf16.msra.mxu0 0
        %5974 = vmatprep.subr.bf16.mxu0 0
        %5975 = vmatpush2.bf16.msra.mxu0 0
        %5976 = vmatprep.subr.bf16.mxu0 0
        %5977 = vmatpush2.bf16.msra.mxu0 0
        %5978 = vmatprep.subr.bf16.mxu0 0
        %5979 = vmatpush2.bf16.msra.mxu0 0
        %5980 = vmatprep.subr.bf16.mxu0 0
        %5981 = vmatpush2.bf16.msra.mxu0 0
        %5982 = vmatprep.subr.bf16.mxu0 0
        %5983 = vmatpush2.bf16.msra.mxu0 0
        %5984 = vmatprep.subr.bf16.mxu0 0
        %5985 = vmatpush2.bf16.msra.mxu0 0
        %5986 = vmatprep.subr.bf16.mxu0 0
        %5987 = vmatpush2.bf16.msra.mxu0 0
        %5988 = vmatprep.mubr.bf16.mxu0 0
        %5989 = vmatmul.mubr.bf16.gmra.mxu0 %v1179
        %v5990 = vpop.f32.mrf.mxu0
        %v5991 = vadd.f32 %v265, %v5990
        %v5992 = vpop.f32.mrf.mxu0
        %v5993 = vadd.f32 %v265, %v5992
        %v5994 = vpop.f32.mrf.mxu0
        %v5995 = vadd.f32 %v270, %v5994
        %v5996 = vpop.f32.mrf.mxu0
        %v5997 = vadd.f32 %v270, %v5996
        %5998 = vdwg.mxu0
        %5999 = vmatprep.subr.bf16.mxu0 0
        %6000 = vmatpush1.bf16.msra.mxu0 0
        %6001 = vmatprep.subr.bf16.mxu0 0
        %6002 = vmatpush1.bf16.msra.mxu0 0
        %6003 = vmatprep.subr.bf16.mxu0 0
        %6004 = vmatpush1.bf16.msra.mxu0 0
        %6005 = vmatprep.subr.bf16.mxu0 0
        %6006 = vmatpush1.bf16.msra.mxu0 0
        %6007 = vmatprep.subr.bf16.mxu0 0
        %6008 = vmatpush1.bf16.msra.mxu0 0
        %6009 = vmatprep.subr.bf16.mxu0 0
        %6010 = vmatpush1.bf16.msra.mxu0 0
        %6011 = vmatprep.subr.bf16.mxu0 0
        %6012 = vmatpush1.bf16.msra.mxu0 0
        %6013 = vmatprep.subr.bf16.mxu0 %v1777
        %6014 = vmatpush1.bf16.msra.mxu0 %v1774
        %6015 = vmatprep.subr.bf16.mxu0 0
        %6016 = vmatpush2.bf16.msra.mxu0 0
        %6017 = vmatprep.subr.bf16.mxu0 0
        %6018 = vmatpush2.bf16.msra.mxu0 0
        %6019 = vmatprep.subr.bf16.mxu0 0
        %6020 = vmatpush2.bf16.msra.mxu0 0
        %6021 = vmatprep.subr.bf16.mxu0 0
        %6022 = vmatpush2.bf16.msra.mxu0 0
        %6023 = vmatprep.subr.bf16.mxu0 0
        %6024 = vmatpush2.bf16.msra.mxu0 0
        %6025 = vmatprep.subr.bf16.mxu0 0
        %6026 = vmatpush2.bf16.msra.mxu0 0
        %6027 = vmatprep.subr.bf16.mxu0 0
        %6028 = vmatpush2.bf16.msra.mxu0 0
        %6029 = vmatprep.subr.bf16.mxu0 0
        %6030 = vmatpush2.bf16.msra.mxu0 0
        %6031 = vmatprep.mubr.bf16.mxu0 0
        %6032 = vmatmul.mubr.bf16.gmra.mxu0 %v1179
        %v6033 = vpop.f32.mrf.mxu0
        %v6034 = vadd.f32 %v265, %v6033
        %v6035 = vpop.f32.mrf.mxu0
        %v6036 = vadd.f32 %v265, %v6035
        %v6037 = vpop.f32.mrf.mxu0
        %v6038 = vadd.f32 %v270, %v6037
        %v6039 = vpop.f32.mrf.mxu0
        %v6040 = vadd.f32 %v270, %v6039
        %6041 = vdwg.mxu0
        %6042 = vmatprep.subr.bf16.mxu0 0
        %6043 = vmatpush1.bf16.msra.mxu0 0
        %6044 = vmatprep.subr.bf16.mxu0 0
        %6045 = vmatpush1.bf16.msra.mxu0 0
        %6046 = vmatprep.subr.bf16.mxu0 0
        %6047 = vmatpush1.bf16.msra.mxu0 0
        %6048 = vmatprep.subr.bf16.mxu0 0
        %6049 = vmatpush1.bf16.msra.mxu0 0
        %6050 = vmatprep.subr.bf16.mxu0 0
        %6051 = vmatpush1.bf16.msra.mxu0 0
        %6052 = vmatprep.subr.bf16.mxu0 0
        %6053 = vmatpush1.bf16.msra.mxu0 0
        %6054 = vmatprep.subr.bf16.mxu0 0
        %6055 = vmatpush1.bf16.msra.mxu0 0
        %6056 = vmatprep.subr.bf16.mxu0 %v1783
        %6057 = vmatpush1.bf16.msra.mxu0 %v1780
        %6058 = vmatprep.subr.bf16.mxu0 0
        %6059 = vmatpush2.bf16.msra.mxu0 0
        %6060 = vmatprep.subr.bf16.mxu0 0
        %6061 = vmatpush2.bf16.msra.mxu0 0
        %6062 = vmatprep.subr.bf16.mxu0 0
        %6063 = vmatpush2.bf16.msra.mxu0 0
        %6064 = vmatprep.subr.bf16.mxu0 0
        %6065 = vmatpush2.bf16.msra.mxu0 0
        %6066 = vmatprep.subr.bf16.mxu0 0
        %6067 = vmatpush2.bf16.msra.mxu0 0
        %6068 = vmatprep.subr.bf16.mxu0 0
        %6069 = vmatpush2.bf16.msra.mxu0 0
        %6070 = vmatprep.subr.bf16.mxu0 0
        %6071 = vmatpush2.bf16.msra.mxu0 0
        %6072 = vmatprep.subr.bf16.mxu0 0
        %6073 = vmatpush2.bf16.msra.mxu0 0
        %6074 = vmatprep.mubr.bf16.mxu0 0
        %6075 = vmatmul.mubr.bf16.gmra.mxu0 %v1179
        %v6076 = vpop.f32.mrf.mxu0
        %v6077 = vadd.f32 %v265, %v6076
        %v6078 = vpop.f32.mrf.mxu0
        %v6079 = vadd.f32 %v265, %v6078
        %v6080 = vpop.f32.mrf.mxu0
        %v6081 = vadd.f32 %v270, %v6080
        %v6082 = vpop.f32.mrf.mxu0
        %v6083 = vadd.f32 %v270, %v6082
        %6084 = vdwg.mxu0
        %v6085 = vmax.f32 %v1820, 0.0
        %v6086 = vmax.f32 %v1822, 0.0
        %v6087 = vmax.f32 %v1863, 0.0
        %v6088 = vmax.f32 %v1865, 0.0
        %v6089 = vmax.f32 %v1906, 0.0
        %v6090 = vmax.f32 %v1908, 0.0
        %v6091 = vmax.f32 %v1949, 0.0
        %v6092 = vmax.f32 %v1951, 0.0
        %v6093 = vmax.f32 %v1992, 0.0
        %v6094 = vmax.f32 %v1994, 0.0
        %v6095 = vmax.f32 %v2035, 0.0
        %v6096 = vmax.f32 %v2037, 0.0
        %v6097 = vmax.f32 %v2078, 0.0
        %v6098 = vmax.f32 %v2080, 0.0
        %v6099 = vmax.f32 %v2121, 0.0
        %v6100 = vmax.f32 %v2123, 0.0
        %v6101 = vmax.f32 %v2164, 0.0
        %v6102 = vmax.f32 %v2166, 0.0
        %v6103 = vmax.f32 %v2207, 0.0
        %v6104 = vmax.f32 %v2209, 0.0
        %v6105 = vmax.f32 %v2250, 0.0
        %v6106 = vmax.f32 %v2252, 0.0
        %v6107 = vmax.f32 %v2293, 0.0
        %v6108 = vmax.f32 %v2295, 0.0
        %v6109 = vmax.f32 %v2336, 0.0
        %v6110 = vmax.f32 %v2338, 0.0
        %v6111 = vmax.f32 %v2379, 0.0
        %v6112 = vmax.f32 %v2381, 0.0
        %v6113 = vmax.f32 %v2422, 0.0
        %v6114 = vmax.f32 %v2424, 0.0
        %v6115 = vmax.f32 %v2465, 0.0
        %v6116 = vmax.f32 %v2467, 0.0
        %v6117 = vmax.f32 %v2508, 0.0
        %v6118 = vmax.f32 %v2510, 0.0
        %v6119 = vmax.f32 %v2551, 0.0
        %v6120 = vmax.f32 %v2553, 0.0
        %v6121 = vmax.f32 %v2594, 0.0
        %v6122 = vmax.f32 %v2596, 0.0
        %v6123 = vmax.f32 %v2637, 0.0
        %v6124 = vmax.f32 %v2639, 0.0
        %v6125 = vmax.f32 %v2680, 0.0
        %v6126 = vmax.f32 %v2682, 0.0
        %v6127 = vmax.f32 %v2723, 0.0
        %v6128 = vmax.f32 %v2725, 0.0
        %v6129 = vmax.f32 %v2766, 0.0
        %v6130 = vmax.f32 %v2768, 0.0
        %v6131 = vmax.f32 %v2809, 0.0
        %v6132 = vmax.f32 %v2811, 0.0
        %v6133 = vmax.f32 %v2852, 0.0
        %v6134 = vmax.f32 %v2854, 0.0
        %v6135 = vmax.f32 %v2895, 0.0
        %v6136 = vmax.f32 %v2897, 0.0
        %v6137 = vmax.f32 %v2938, 0.0
        %v6138 = vmax.f32 %v2940, 0.0
        %v6139 = vmax.f32 %v2981, 0.0
        %v6140 = vmax.f32 %v2983, 0.0
        %v6141 = vmax.f32 %v3024, 0.0
        %v6142 = vmax.f32 %v3026, 0.0
        %v6143 = vmax.f32 %v3067, 0.0
        %v6144 = vmax.f32 %v3069, 0.0
        %v6145 = vmax.f32 %v3110, 0.0
        %v6146 = vmax.f32 %v3112, 0.0
        %v6147 = vmax.f32 %v3153, 0.0
        %v6148 = vmax.f32 %v3155, 0.0
        %v6149 = vmax.f32 %v3196, 0.0
        %v6150 = vmax.f32 %v3198, 0.0
        %v6151 = vmax.f32 %v3239, 0.0
        %v6152 = vmax.f32 %v3241, 0.0
        %v6153 = vmax.f32 %v3282, 0.0
        %v6154 = vmax.f32 %v3284, 0.0
        %v6155 = vmax.f32 %v3325, 0.0
        %v6156 = vmax.f32 %v3327, 0.0
        %v6157 = vmax.f32 %v3368, 0.0
        %v6158 = vmax.f32 %v3370, 0.0
        %v6159 = vmax.f32 %v3411, 0.0
        %v6160 = vmax.f32 %v3413, 0.0
        %v6161 = vmax.f32 %v3454, 0.0
        %v6162 = vmax.f32 %v3456, 0.0
        %v6163 = vmax.f32 %v3497, 0.0
        %v6164 = vmax.f32 %v3499, 0.0
        %v6165 = vmax.f32 %v3540, 0.0
        %v6166 = vmax.f32 %v3542, 0.0
        %v6167 = vmax.f32 %v3583, 0.0
        %v6168 = vmax.f32 %v3585, 0.0
        %v6169 = vmax.f32 %v3626, 0.0
        %v6170 = vmax.f32 %v3628, 0.0
        %v6171 = vmax.f32 %v3669, 0.0
        %v6172 = vmax.f32 %v3671, 0.0
        %v6173 = vmax.f32 %v3712, 0.0
        %v6174 = vmax.f32 %v3714, 0.0
        %v6175 = vmax.f32 %v3755, 0.0
        %v6176 = vmax.f32 %v3757, 0.0
        %v6177 = vmax.f32 %v3798, 0.0
        %v6178 = vmax.f32 %v3800, 0.0
        %v6179 = vmax.f32 %v3841, 0.0
        %v6180 = vmax.f32 %v3843, 0.0
        %v6181 = vmax.f32 %v3884, 0.0
        %v6182 = vmax.f32 %v3886, 0.0
        %v6183 = vmax.f32 %v3927, 0.0
        %v6184 = vmax.f32 %v3929, 0.0
        %v6185 = vmax.f32 %v3970, 0.0
        %v6186 = vmax.f32 %v3972, 0.0
        %v6187 = vmax.f32 %v4013, 0.0
        %v6188 = vmax.f32 %v4015, 0.0
        %v6189 = vmax.f32 %v4056, 0.0
        %v6190 = vmax.f32 %v4058, 0.0
        %v6191 = vmax.f32 %v4099, 0.0
        %v6192 = vmax.f32 %v4101, 0.0
        %v6193 = vmax.f32 %v4142, 0.0
        %v6194 = vmax.f32 %v4144, 0.0
        %v6195 = vmax.f32 %v4185, 0.0
        %v6196 = vmax.f32 %v4187, 0.0
        %v6197 = vmax.f32 %v4228, 0.0
        %v6198 = vmax.f32 %v4230, 0.0
        %v6199 = vmax.f32 %v4271, 0.0
        %v6200 = vmax.f32 %v4273, 0.0
        %v6201 = vmax.f32 %v4314, 0.0
        %v6202 = vmax.f32 %v4316, 0.0
        %v6203 = vmax.f32 %v4357, 0.0
        %v6204 = vmax.f32 %v4359, 0.0
        %v6205 = vmax.f32 %v4400, 0.0
        %v6206 = vmax.f32 %v4402, 0.0
        %v6207 = vmax.f32 %v4443, 0.0
        %v6208 = vmax.f32 %v4445, 0.0
        %v6209 = vmax.f32 %v4486, 0.0
        %v6210 = vmax.f32 %v4488, 0.0
        %v6211 = vmax.f32 %v4529, 0.0
        %v6212 = vmax.f32 %v4531, 0.0
        %v6213 = vmax.f32 %v4572, 0.0
        %v6214 = vmax.f32 %v4574, 0.0
        %v6215 = vmax.f32 %v4615, 0.0
        %v6216 = vmax.f32 %v4617, 0.0
        %v6217 = vmax.f32 %v4658, 0.0
        %v6218 = vmax.f32 %v4660, 0.0
        %v6219 = vmax.f32 %v4701, 0.0
        %v6220 = vmax.f32 %v4703, 0.0
        %v6221 = vmax.f32 %v4744, 0.0
        %v6222 = vmax.f32 %v4746, 0.0
        %v6223 = vmax.f32 %v4787, 0.0
        %v6224 = vmax.f32 %v4789, 0.0
        %v6225 = vmax.f32 %v4830, 0.0
        %v6226 = vmax.f32 %v4832, 0.0
        %v6227 = vmax.f32 %v4873, 0.0
        %v6228 = vmax.f32 %v4875, 0.0
        %v6229 = vmax.f32 %v4916, 0.0
        %v6230 = vmax.f32 %v4918, 0.0
        %v6231 = vmax.f32 %v4959, 0.0
        %v6232 = vmax.f32 %v4961, 0.0
        %v6233 = vmax.f32 %v5002, 0.0
        %v6234 = vmax.f32 %v5004, 0.0
        %v6235 = vmax.f32 %v5045, 0.0
        %v6236 = vmax.f32 %v5047, 0.0
        %v6237 = vmax.f32 %v5088, 0.0
        %v6238 = vmax.f32 %v5090, 0.0
        %v6239 = vmax.f32 %v5131, 0.0
        %v6240 = vmax.f32 %v5133, 0.0
        %v6241 = vmax.f32 %v5174, 0.0
        %v6242 = vmax.f32 %v5176, 0.0
        %v6243 = vmax.f32 %v5217, 0.0
        %v6244 = vmax.f32 %v5219, 0.0
        %v6245 = vmax.f32 %v5260, 0.0
        %v6246 = vmax.f32 %v5262, 0.0
        %v6247 = vmax.f32 %v5303, 0.0
        %v6248 = vmax.f32 %v5305, 0.0
        %v6249 = vmax.f32 %v5346, 0.0
        %v6250 = vmax.f32 %v5348, 0.0
        %v6251 = vmax.f32 %v5389, 0.0
        %v6252 = vmax.f32 %v5391, 0.0
        %v6253 = vmax.f32 %v5432, 0.0
        %v6254 = vmax.f32 %v5434, 0.0
        %v6255 = vmax.f32 %v5475, 0.0
        %v6256 = vmax.f32 %v5477, 0.0
        %v6257 = vmax.f32 %v5518, 0.0
        %v6258 = vmax.f32 %v5520, 0.0
        %v6259 = vmax.f32 %v5561, 0.0
        %v6260 = vmax.f32 %v5563, 0.0
        %v6261 = vmax.f32 %v5604, 0.0
        %v6262 = vmax.f32 %v5606, 0.0
        %v6263 = vmax.f32 %v5647, 0.0
        %v6264 = vmax.f32 %v5649, 0.0
        %v6265 = vmax.f32 %v5690, 0.0
        %v6266 = vmax.f32 %v5692, 0.0
        %v6267 = vmax.f32 %v5733, 0.0
        %v6268 = vmax.f32 %v5735, 0.0
        %v6269 = vmax.f32 %v5776, 0.0
        %v6270 = vmax.f32 %v5778, 0.0
        %v6271 = vmax.f32 %v5819, 0.0
        %v6272 = vmax.f32 %v5821, 0.0
        %v6273 = vmax.f32 %v5862, 0.0
        %v6274 = vmax.f32 %v5864, 0.0
        %v6275 = vmax.f32 %v5905, 0.0
        %v6276 = vmax.f32 %v5907, 0.0
        %v6277 = vmax.f32 %v5948, 0.0
        %v6278 = vmax.f32 %v5950, 0.0
        %v6279 = vmax.f32 %v5991, 0.0
        %v6280 = vmax.f32 %v5993, 0.0
        %v6281 = vmax.f32 %v6034, 0.0
        %v6282 = vmax.f32 %v6036, 0.0
        %v6283 = vmax.f32 %v6077, 0.0
        %v6284 = vmax.f32 %v6079, 0.0
        %v6285 = vmax.f32 %v1824, 0.0
        %v6286 = vmax.f32 %v1826, 0.0
        %v6287 = vmax.f32 %v1867, 0.0
        %v6288 = vmax.f32 %v1869, 0.0
        %v6289 = vmax.f32 %v1910, 0.0
        %v6290 = vmax.f32 %v1912, 0.0
        %v6291 = vmax.f32 %v1953, 0.0
        %v6292 = vmax.f32 %v1955, 0.0
        %v6293 = vmax.f32 %v1996, 0.0
        %v6294 = vmax.f32 %v1998, 0.0
        %v6295 = vmax.f32 %v2039, 0.0
        %v6296 = vmax.f32 %v2041, 0.0
        %v6297 = vmax.f32 %v2082, 0.0
        %v6298 = vmax.f32 %v2084, 0.0
        %v6299 = vmax.f32 %v2125, 0.0
        %v6300 = vmax.f32 %v2127, 0.0
        %v6301 = vmax.f32 %v2168, 0.0
        %v6302 = vmax.f32 %v2170, 0.0
        %v6303 = vmax.f32 %v2211, 0.0
        %v6304 = vmax.f32 %v2213, 0.0
        %v6305 = vmax.f32 %v2254, 0.0
        %v6306 = vmax.f32 %v2256, 0.0
        %v6307 = vmax.f32 %v2297, 0.0
        %v6308 = vmax.f32 %v2299, 0.0
        %v6309 = vmax.f32 %v2340, 0.0
        %v6310 = vmax.f32 %v2342, 0.0
        %v6311 = vmax.f32 %v2383, 0.0
        %v6312 = vmax.f32 %v2385, 0.0
        %v6313 = vmax.f32 %v2426, 0.0
        %v6314 = vmax.f32 %v2428, 0.0
        %v6315 = vmax.f32 %v2469, 0.0
        %v6316 = vmax.f32 %v2471, 0.0
        %v6317 = vmax.f32 %v2512, 0.0
        %v6318 = vmax.f32 %v2514, 0.0
        %v6319 = vmax.f32 %v2555, 0.0
        %v6320 = vmax.f32 %v2557, 0.0
        %v6321 = vmax.f32 %v2598, 0.0
        %v6322 = vmax.f32 %v2600, 0.0
        %v6323 = vmax.f32 %v2641, 0.0
        %v6324 = vmax.f32 %v2643, 0.0
        %v6325 = vmax.f32 %v2684, 0.0
        %v6326 = vmax.f32 %v2686, 0.0
        %v6327 = vmax.f32 %v2727, 0.0
        %v6328 = vmax.f32 %v2729, 0.0
        %v6329 = vmax.f32 %v2770, 0.0
        %v6330 = vmax.f32 %v2772, 0.0
        %v6331 = vmax.f32 %v2813, 0.0
        %v6332 = vmax.f32 %v2815, 0.0
        %v6333 = vmax.f32 %v2856, 0.0
        %v6334 = vmax.f32 %v2858, 0.0
        %v6335 = vmax.f32 %v2899, 0.0
        %v6336 = vmax.f32 %v2901, 0.0
        %v6337 = vmax.f32 %v2942, 0.0
        %v6338 = vmax.f32 %v2944, 0.0
        %v6339 = vmax.f32 %v2985, 0.0
        %v6340 = vmax.f32 %v2987, 0.0
        %v6341 = vmax.f32 %v3028, 0.0
        %v6342 = vmax.f32 %v3030, 0.0
        %v6343 = vmax.f32 %v3071, 0.0
        %v6344 = vmax.f32 %v3073, 0.0
        %v6345 = vmax.f32 %v3114, 0.0
        %v6346 = vmax.f32 %v3116, 0.0
        %v6347 = vmax.f32 %v3157, 0.0
        %v6348 = vmax.f32 %v3159, 0.0
        %v6349 = vmax.f32 %v3200, 0.0
        %v6350 = vmax.f32 %v3202, 0.0
        %v6351 = vmax.f32 %v3243, 0.0
        %v6352 = vmax.f32 %v3245, 0.0
        %v6353 = vmax.f32 %v3286, 0.0
        %v6354 = vmax.f32 %v3288, 0.0
        %v6355 = vmax.f32 %v3329, 0.0
        %v6356 = vmax.f32 %v3331, 0.0
        %v6357 = vmax.f32 %v3372, 0.0
        %v6358 = vmax.f32 %v3374, 0.0
        %v6359 = vmax.f32 %v3415, 0.0
        %v6360 = vmax.f32 %v3417, 0.0
        %v6361 = vmax.f32 %v3458, 0.0
        %v6362 = vmax.f32 %v3460, 0.0
        %v6363 = vmax.f32 %v3501, 0.0
        %v6364 = vmax.f32 %v3503, 0.0
        %v6365 = vmax.f32 %v3544, 0.0
        %v6366 = vmax.f32 %v3546, 0.0
        %v6367 = vmax.f32 %v3587, 0.0
        %v6368 = vmax.f32 %v3589, 0.0
        %v6369 = vmax.f32 %v3630, 0.0
        %v6370 = vmax.f32 %v3632, 0.0
        %v6371 = vmax.f32 %v3673, 0.0
        %v6372 = vmax.f32 %v3675, 0.0
        %v6373 = vmax.f32 %v3716, 0.0
        %v6374 = vmax.f32 %v3718, 0.0
        %v6375 = vmax.f32 %v3759, 0.0
        %v6376 = vmax.f32 %v3761, 0.0
        %v6377 = vmax.f32 %v3802, 0.0
        %v6378 = vmax.f32 %v3804, 0.0
        %v6379 = vmax.f32 %v3845, 0.0
        %v6380 = vmax.f32 %v3847, 0.0
        %v6381 = vmax.f32 %v3888, 0.0
        %v6382 = vmax.f32 %v3890, 0.0
        %v6383 = vmax.f32 %v3931, 0.0
        %v6384 = vmax.f32 %v3933, 0.0
        %v6385 = vmax.f32 %v3974, 0.0
        %v6386 = vmax.f32 %v3976, 0.0
        %v6387 = vmax.f32 %v4017, 0.0
        %v6388 = vmax.f32 %v4019, 0.0
        %v6389 = vmax.f32 %v4060, 0.0
        %v6390 = vmax.f32 %v4062, 0.0
        %v6391 = vmax.f32 %v4103, 0.0
        %v6392 = vmax.f32 %v4105, 0.0
        %v6393 = vmax.f32 %v4146, 0.0
        %v6394 = vmax.f32 %v4148, 0.0
        %v6395 = vmax.f32 %v4189, 0.0
        %v6396 = vmax.f32 %v4191, 0.0
        %v6397 = vmax.f32 %v4232, 0.0
        %v6398 = vmax.f32 %v4234, 0.0
        %v6399 = vmax.f32 %v4275, 0.0
        %v6400 = vmax.f32 %v4277, 0.0
        %v6401 = vmax.f32 %v4318, 0.0
        %v6402 = vmax.f32 %v4320, 0.0
        %v6403 = vmax.f32 %v4361, 0.0
        %v6404 = vmax.f32 %v4363, 0.0
        %v6405 = vmax.f32 %v4404, 0.0
        %v6406 = vmax.f32 %v4406, 0.0
        %v6407 = vmax.f32 %v4447, 0.0
        %v6408 = vmax.f32 %v4449, 0.0
        %v6409 = vmax.f32 %v4490, 0.0
        %v6410 = vmax.f32 %v4492, 0.0
        %v6411 = vmax.f32 %v4533, 0.0
        %v6412 = vmax.f32 %v4535, 0.0
        %v6413 = vmax.f32 %v4576, 0.0
        %v6414 = vmax.f32 %v4578, 0.0
        %v6415 = vmax.f32 %v4619, 0.0
        %v6416 = vmax.f32 %v4621, 0.0
        %v6417 = vmax.f32 %v4662, 0.0
        %v6418 = vmax.f32 %v4664, 0.0
        %v6419 = vmax.f32 %v4705, 0.0
        %v6420 = vmax.f32 %v4707, 0.0
        %v6421 = vmax.f32 %v4748, 0.0
        %v6422 = vmax.f32 %v4750, 0.0
        %v6423 = vmax.f32 %v4791, 0.0
        %v6424 = vmax.f32 %v4793, 0.0
        %v6425 = vmax.f32 %v4834, 0.0
        %v6426 = vmax.f32 %v4836, 0.0
        %v6427 = vmax.f32 %v4877, 0.0
        %v6428 = vmax.f32 %v4879, 0.0
        %v6429 = vmax.f32 %v4920, 0.0
        %v6430 = vmax.f32 %v4922, 0.0
        %v6431 = vmax.f32 %v4963, 0.0
        %v6432 = vmax.f32 %v4965, 0.0
        %v6433 = vmax.f32 %v5006, 0.0
        %v6434 = vmax.f32 %v5008, 0.0
        %v6435 = vmax.f32 %v5049, 0.0
        %v6436 = vmax.f32 %v5051, 0.0
        %v6437 = vmax.f32 %v5092, 0.0
        %v6438 = vmax.f32 %v5094, 0.0
        %v6439 = vmax.f32 %v5135, 0.0
        %v6440 = vmax.f32 %v5137, 0.0
        %v6441 = vmax.f32 %v5178, 0.0
        %v6442 = vmax.f32 %v5180, 0.0
        %v6443 = vmax.f32 %v5221, 0.0
        %v6444 = vmax.f32 %v5223, 0.0
        %v6445 = vmax.f32 %v5264, 0.0
        %v6446 = vmax.f32 %v5266, 0.0
        %v6447 = vmax.f32 %v5307, 0.0
        %v6448 = vmax.f32 %v5309, 0.0
        %v6449 = vmax.f32 %v5350, 0.0
        %v6450 = vmax.f32 %v5352, 0.0
        %v6451 = vmax.f32 %v5393, 0.0
        %v6452 = vmax.f32 %v5395, 0.0
        %v6453 = vmax.f32 %v5436, 0.0
        %v6454 = vmax.f32 %v5438, 0.0
        %v6455 = vmax.f32 %v5479, 0.0
        %v6456 = vmax.f32 %v5481, 0.0
        %v6457 = vmax.f32 %v5522, 0.0
        %v6458 = vmax.f32 %v5524, 0.0
        %v6459 = vmax.f32 %v5565, 0.0
        %v6460 = vmax.f32 %v5567, 0.0
        %v6461 = vmax.f32 %v5608, 0.0
        %v6462 = vmax.f32 %v5610, 0.0
        %v6463 = vmax.f32 %v5651, 0.0
        %v6464 = vmax.f32 %v5653, 0.0
        %v6465 = vmax.f32 %v5694, 0.0
        %v6466 = vmax.f32 %v5696, 0.0
        %v6467 = vmax.f32 %v5737, 0.0
        %v6468 = vmax.f32 %v5739, 0.0
        %v6469 = vmax.f32 %v5780, 0.0
        %v6470 = vmax.f32 %v5782, 0.0
        %v6471 = vmax.f32 %v5823, 0.0
        %v6472 = vmax.f32 %v5825, 0.0
        %v6473 = vmax.f32 %v5866, 0.0
        %v6474 = vmax.f32 %v5868, 0.0
        %v6475 = vmax.f32 %v5909, 0.0
        %v6476 = vmax.f32 %v5911, 0.0
        %v6477 = vmax.f32 %v5952, 0.0
        %v6478 = vmax.f32 %v5954, 0.0
        %v6479 = vmax.f32 %v5995, 0.0
        %v6480 = vmax.f32 %v5997, 0.0
        %v6481 = vmax.f32 %v6038, 0.0
        %v6482 = vmax.f32 %v6040, 0.0
        %v6483 = vmax.f32 %v6081, 0.0
        %v6484 = vmax.f32 %v6083, 0.0
        %v6485 = vmin.f32 %v6085, 6.0
        %v6486 = vmin.f32 %v6086, 6.0
        %v6487 = vmin.f32 %v6087, 6.0
        %v6488 = vmin.f32 %v6088, 6.0
        %v6489 = vmin.f32 %v6089, 6.0
        %v6490 = vmin.f32 %v6090, 6.0
        %v6491 = vmin.f32 %v6091, 6.0
        %v6492 = vmin.f32 %v6092, 6.0
        %v6493 = vmin.f32 %v6093, 6.0
        %v6494 = vmin.f32 %v6094, 6.0
        %v6495 = vmin.f32 %v6095, 6.0
        %v6496 = vmin.f32 %v6096, 6.0
        %v6497 = vmin.f32 %v6097, 6.0
        %v6498 = vmin.f32 %v6098, 6.0
        %v6499 = vmin.f32 %v6099, 6.0
        %v6500 = vmin.f32 %v6100, 6.0
        %v6501 = vmin.f32 %v6101, 6.0
        %v6502 = vmin.f32 %v6102, 6.0
        %v6503 = vmin.f32 %v6103, 6.0
        %v6504 = vmin.f32 %v6104, 6.0
        %v6505 = vmin.f32 %v6105, 6.0
        %v6506 = vmin.f32 %v6106, 6.0
        %v6507 = vmin.f32 %v6107, 6.0
        %v6508 = vmin.f32 %v6108, 6.0
        %v6509 = vmin.f32 %v6109, 6.0
        %v6510 = vmin.f32 %v6110, 6.0
        %v6511 = vmin.f32 %v6111, 6.0
        %v6512 = vmin.f32 %v6112, 6.0
        %v6513 = vmin.f32 %v6113, 6.0
        %v6514 = vmin.f32 %v6114, 6.0
        %v6515 = vmin.f32 %v6115, 6.0
        %v6516 = vmin.f32 %v6116, 6.0
        %v6517 = vmin.f32 %v6117, 6.0
        %v6518 = vmin.f32 %v6118, 6.0
        %v6519 = vmin.f32 %v6119, 6.0
        %v6520 = vmin.f32 %v6120, 6.0
        %v6521 = vmin.f32 %v6121, 6.0
        %v6522 = vmin.f32 %v6122, 6.0
        %v6523 = vmin.f32 %v6123, 6.0
        %v6524 = vmin.f32 %v6124, 6.0
        %v6525 = vmin.f32 %v6125, 6.0
        %v6526 = vmin.f32 %v6126, 6.0
        %v6527 = vmin.f32 %v6127, 6.0
        %v6528 = vmin.f32 %v6128, 6.0
        %v6529 = vmin.f32 %v6129, 6.0
        %v6530 = vmin.f32 %v6130, 6.0
        %v6531 = vmin.f32 %v6131, 6.0
        %v6532 = vmin.f32 %v6132, 6.0
        %v6533 = vmin.f32 %v6133, 6.0
        %v6534 = vmin.f32 %v6134, 6.0
        %v6535 = vmin.f32 %v6135, 6.0
        %v6536 = vmin.f32 %v6136, 6.0
        %v6537 = vmin.f32 %v6137, 6.0
        %v6538 = vmin.f32 %v6138, 6.0
        %v6539 = vmin.f32 %v6139, 6.0
        %v6540 = vmin.f32 %v6140, 6.0
        %v6541 = vmin.f32 %v6141, 6.0
        %v6542 = vmin.f32 %v6142, 6.0
        %v6543 = vmin.f32 %v6143, 6.0
        %v6544 = vmin.f32 %v6144, 6.0
        %v6545 = vmin.f32 %v6145, 6.0
        %v6546 = vmin.f32 %v6146, 6.0
        %v6547 = vmin.f32 %v6147, 6.0
        %v6548 = vmin.f32 %v6148, 6.0
        %v6549 = vmin.f32 %v6149, 6.0
        %v6550 = vmin.f32 %v6150, 6.0
        %v6551 = vmin.f32 %v6151, 6.0
        %v6552 = vmin.f32 %v6152, 6.0
        %v6553 = vmin.f32 %v6153, 6.0
        %v6554 = vmin.f32 %v6154, 6.0
        %v6555 = vmin.f32 %v6155, 6.0
        %v6556 = vmin.f32 %v6156, 6.0
        %v6557 = vmin.f32 %v6157, 6.0
        %v6558 = vmin.f32 %v6158, 6.0
        %v6559 = vmin.f32 %v6159, 6.0
        %v6560 = vmin.f32 %v6160, 6.0
        %v6561 = vmin.f32 %v6161, 6.0
        %v6562 = vmin.f32 %v6162, 6.0
        %v6563 = vmin.f32 %v6163, 6.0
        %v6564 = vmin.f32 %v6164, 6.0
        %v6565 = vmin.f32 %v6165, 6.0
        %v6566 = vmin.f32 %v6166, 6.0
        %v6567 = vmin.f32 %v6167, 6.0
        %v6568 = vmin.f32 %v6168, 6.0
        %v6569 = vmin.f32 %v6169, 6.0
        %v6570 = vmin.f32 %v6170, 6.0
        %v6571 = vmin.f32 %v6171, 6.0
        %v6572 = vmin.f32 %v6172, 6.0
        %v6573 = vmin.f32 %v6173, 6.0
        %v6574 = vmin.f32 %v6174, 6.0
        %v6575 = vmin.f32 %v6175, 6.0
        %v6576 = vmin.f32 %v6176, 6.0
        %v6577 = vmin.f32 %v6177, 6.0
        %v6578 = vmin.f32 %v6178, 6.0
        %v6579 = vmin.f32 %v6179, 6.0
        %v6580 = vmin.f32 %v6180, 6.0
        %v6581 = vmin.f32 %v6181, 6.0
        %v6582 = vmin.f32 %v6182, 6.0
        %v6583 = vmin.f32 %v6183, 6.0
        %v6584 = vmin.f32 %v6184, 6.0
        %v6585 = vmin.f32 %v6185, 6.0
        %v6586 = vmin.f32 %v6186, 6.0
        %v6587 = vmin.f32 %v6187, 6.0
        %v6588 = vmin.f32 %v6188, 6.0
        %v6589 = vmin.f32 %v6189, 6.0
        %v6590 = vmin.f32 %v6190, 6.0
        %v6591 = vmin.f32 %v6191, 6.0
        %v6592 = vmin.f32 %v6192, 6.0
        %v6593 = vmin.f32 %v6193, 6.0
        %v6594 = vmin.f32 %v6194, 6.0
        %v6595 = vmin.f32 %v6195, 6.0
        %v6596 = vmin.f32 %v6196, 6.0
        %v6597 = vmin.f32 %v6197, 6.0
        %v6598 = vmin.f32 %v6198, 6.0
        %v6599 = vmin.f32 %v6199, 6.0
        %v6600 = vmin.f32 %v6200, 6.0
        %v6601 = vmin.f32 %v6201, 6.0
        %v6602 = vmin.f32 %v6202, 6.0
        %v6603 = vmin.f32 %v6203, 6.0
        %v6604 = vmin.f32 %v6204, 6.0
        %v6605 = vmin.f32 %v6205, 6.0
        %v6606 = vmin.f32 %v6206, 6.0
        %v6607 = vmin.f32 %v6207, 6.0
        %v6608 = vmin.f32 %v6208, 6.0
        %v6609 = vmin.f32 %v6209, 6.0
        %v6610 = vmin.f32 %v6210, 6.0
        %v6611 = vmin.f32 %v6211, 6.0
        %v6612 = vmin.f32 %v6212, 6.0
        %v6613 = vmin.f32 %v6213, 6.0
        %v6614 = vmin.f32 %v6214, 6.0
        %v6615 = vmin.f32 %v6215, 6.0
        %v6616 = vmin.f32 %v6216, 6.0
        %v6617 = vmin.f32 %v6217, 6.0
        %v6618 = vmin.f32 %v6218, 6.0
        %v6619 = vmin.f32 %v6219, 6.0
        %v6620 = vmin.f32 %v6220, 6.0
        %v6621 = vmin.f32 %v6221, 6.0
        %v6622 = vmin.f32 %v6222, 6.0
        %v6623 = vmin.f32 %v6223, 6.0
        %v6624 = vmin.f32 %v6224, 6.0
        %v6625 = vmin.f32 %v6225, 6.0
        %v6626 = vmin.f32 %v6226, 6.0
        %v6627 = vmin.f32 %v6227, 6.0
        %v6628 = vmin.f32 %v6228, 6.0
        %v6629 = vmin.f32 %v6229, 6.0
        %v6630 = vmin.f32 %v6230, 6.0
        %v6631 = vmin.f32 %v6231, 6.0
        %v6632 = vmin.f32 %v6232, 6.0
        %v6633 = vmin.f32 %v6233, 6.0
        %v6634 = vmin.f32 %v6234, 6.0
        %v6635 = vmin.f32 %v6235, 6.0
        %v6636 = vmin.f32 %v6236, 6.0
        %v6637 = vmin.f32 %v6237, 6.0
        %v6638 = vmin.f32 %v6238, 6.0
        %v6639 = vmin.f32 %v6239, 6.0
        %v6640 = vmin.f32 %v6240, 6.0
        %v6641 = vmin.f32 %v6241, 6.0
        %v6642 = vmin.f32 %v6242, 6.0
        %v6643 = vmin.f32 %v6243, 6.0
        %v6644 = vmin.f32 %v6244, 6.0
        %v6645 = vmin.f32 %v6245, 6.0
        %v6646 = vmin.f32 %v6246, 6.0
        %v6647 = vmin.f32 %v6247, 6.0
        %v6648 = vmin.f32 %v6248, 6.0
        %v6649 = vmin.f32 %v6249, 6.0
        %v6650 = vmin.f32 %v6250, 6.0
        %v6651 = vmin.f32 %v6251, 6.0
        %v6652 = vmin.f32 %v6252, 6.0
        %v6653 = vmin.f32 %v6253, 6.0
        %v6654 = vmin.f32 %v6254, 6.0
        %v6655 = vmin.f32 %v6255, 6.0
        %v6656 = vmin.f32 %v6256, 6.0
        %v6657 = vmin.f32 %v6257, 6.0
        %v6658 = vmin.f32 %v6258, 6.0
        %v6659 = vmin.f32 %v6259, 6.0
        %v6660 = vmin.f32 %v6260, 6.0
        %v6661 = vmin.f32 %v6261, 6.0
        %v6662 = vmin.f32 %v6262, 6.0
        %v6663 = vmin.f32 %v6263, 6.0
        %v6664 = vmin.f32 %v6264, 6.0
        %v6665 = vmin.f32 %v6265, 6.0
        %v6666 = vmin.f32 %v6266, 6.0
        %v6667 = vmin.f32 %v6267, 6.0
        %v6668 = vmin.f32 %v6268, 6.0
        %v6669 = vmin.f32 %v6269, 6.0
        %v6670 = vmin.f32 %v6270, 6.0
        %v6671 = vmin.f32 %v6271, 6.0
        %v6672 = vmin.f32 %v6272, 6.0
        %v6673 = vmin.f32 %v6273, 6.0
        %v6674 = vmin.f32 %v6274, 6.0
        %v6675 = vmin.f32 %v6275, 6.0
        %v6676 = vmin.f32 %v6276, 6.0
        %v6677 = vmin.f32 %v6277, 6.0
        %v6678 = vmin.f32 %v6278, 6.0
        %v6679 = vmin.f32 %v6279, 6.0
        %v6680 = vmin.f32 %v6280, 6.0
        %v6681 = vmin.f32 %v6281, 6.0
        %v6682 = vmin.f32 %v6282, 6.0
        %v6683 = vmin.f32 %v6283, 6.0
        %v6684 = vmin.f32 %v6284, 6.0
        %v6685 = vmin.f32 %v6285, 6.0
        %v6686 = vmin.f32 %v6286, 6.0
        %v6687 = vmin.f32 %v6287, 6.0
        %v6688 = vmin.f32 %v6288, 6.0
        %v6689 = vmin.f32 %v6289, 6.0
        %v6690 = vmin.f32 %v6290, 6.0
        %v6691 = vmin.f32 %v6291, 6.0
        %v6692 = vmin.f32 %v6292, 6.0
        %v6693 = vmin.f32 %v6293, 6.0
        %v6694 = vmin.f32 %v6294, 6.0
        %v6695 = vmin.f32 %v6295, 6.0
        %v6696 = vmin.f32 %v6296, 6.0
        %v6697 = vmin.f32 %v6297, 6.0
        %v6698 = vmin.f32 %v6298, 6.0
        %v6699 = vmin.f32 %v6299, 6.0
        %v6700 = vmin.f32 %v6300, 6.0
        %v6701 = vmin.f32 %v6301, 6.0
        %v6702 = vmin.f32 %v6302, 6.0
        %v6703 = vmin.f32 %v6303, 6.0
        %v6704 = vmin.f32 %v6304, 6.0
        %v6705 = vmin.f32 %v6305, 6.0
        %v6706 = vmin.f32 %v6306, 6.0
        %v6707 = vmin.f32 %v6307, 6.0
        %v6708 = vmin.f32 %v6308, 6.0
        %v6709 = vmin.f32 %v6309, 6.0
        %v6710 = vmin.f32 %v6310, 6.0
        %v6711 = vmin.f32 %v6311, 6.0
        %v6712 = vmin.f32 %v6312, 6.0
        %v6713 = vmin.f32 %v6313, 6.0
        %v6714 = vmin.f32 %v6314, 6.0
        %v6715 = vmin.f32 %v6315, 6.0
        %v6716 = vmin.f32 %v6316, 6.0
        %v6717 = vmin.f32 %v6317, 6.0
        %v6718 = vmin.f32 %v6318, 6.0
        %v6719 = vmin.f32 %v6319, 6.0
        %v6720 = vmin.f32 %v6320, 6.0
        %v6721 = vmin.f32 %v6321, 6.0
        %v6722 = vmin.f32 %v6322, 6.0
        %v6723 = vmin.f32 %v6323, 6.0
        %v6724 = vmin.f32 %v6324, 6.0
        %v6725 = vmin.f32 %v6325, 6.0
        %v6726 = vmin.f32 %v6326, 6.0
        %v6727 = vmin.f32 %v6327, 6.0
        %v6728 = vmin.f32 %v6328, 6.0
        %v6729 = vmin.f32 %v6329, 6.0
        %v6730 = vmin.f32 %v6330, 6.0
        %v6731 = vmin.f32 %v6331, 6.0
        %v6732 = vmin.f32 %v6332, 6.0
        %v6733 = vmin.f32 %v6333, 6.0
        %v6734 = vmin.f32 %v6334, 6.0
        %v6735 = vmin.f32 %v6335, 6.0
        %v6736 = vmin.f32 %v6336, 6.0
        %v6737 = vmin.f32 %v6337, 6.0
        %v6738 = vmin.f32 %v6338, 6.0
        %v6739 = vmin.f32 %v6339, 6.0
        %v6740 = vmin.f32 %v6340, 6.0
        %v6741 = vmin.f32 %v6341, 6.0
        %v6742 = vmin.f32 %v6342, 6.0
        %v6743 = vmin.f32 %v6343, 6.0
        %v6744 = vmin.f32 %v6344, 6.0
        %v6745 = vmin.f32 %v6345, 6.0
        %v6746 = vmin.f32 %v6346, 6.0
        %v6747 = vmin.f32 %v6347, 6.0
        %v6748 = vmin.f32 %v6348, 6.0
        %v6749 = vmin.f32 %v6349, 6.0
        %v6750 = vmin.f32 %v6350, 6.0
        %v6751 = vmin.f32 %v6351, 6.0
        %v6752 = vmin.f32 %v6352, 6.0
        %v6753 = vmin.f32 %v6353, 6.0
        %v6754 = vmin.f32 %v6354, 6.0
        %v6755 = vmin.f32 %v6355, 6.0
        %v6756 = vmin.f32 %v6356, 6.0
        %v6757 = vmin.f32 %v6357, 6.0
        %v6758 = vmin.f32 %v6358, 6.0
        %v6759 = vmin.f32 %v6359, 6.0
        %v6760 = vmin.f32 %v6360, 6.0
        %v6761 = vmin.f32 %v6361, 6.0
        %v6762 = vmin.f32 %v6362, 6.0
        %v6763 = vmin.f32 %v6363, 6.0
        %v6764 = vmin.f32 %v6364, 6.0
        %v6765 = vmin.f32 %v6365, 6.0
        %v6766 = vmin.f32 %v6366, 6.0
        %v6767 = vmin.f32 %v6367, 6.0
        %v6768 = vmin.f32 %v6368, 6.0
        %v6769 = vmin.f32 %v6369, 6.0
        %v6770 = vmin.f32 %v6370, 6.0
        %v6771 = vmin.f32 %v6371, 6.0
        %v6772 = vmin.f32 %v6372, 6.0
        %v6773 = vmin.f32 %v6373, 6.0
        %v6774 = vmin.f32 %v6374, 6.0
        %v6775 = vmin.f32 %v6375, 6.0
        %v6776 = vmin.f32 %v6376, 6.0
        %v6777 = vmin.f32 %v6377, 6.0
        %v6778 = vmin.f32 %v6378, 6.0
        %v6779 = vmin.f32 %v6379, 6.0
        %v6780 = vmin.f32 %v6380, 6.0
        %v6781 = vmin.f32 %v6381, 6.0
        %v6782 = vmin.f32 %v6382, 6.0
        %v6783 = vmin.f32 %v6383, 6.0
        %v6784 = vmin.f32 %v6384, 6.0
        %v6785 = vmin.f32 %v6385, 6.0
        %v6786 = vmin.f32 %v6386, 6.0
        %v6787 = vmin.f32 %v6387, 6.0
        %v6788 = vmin.f32 %v6388, 6.0
        %v6789 = vmin.f32 %v6389, 6.0
        %v6790 = vmin.f32 %v6390, 6.0
        %v6791 = vmin.f32 %v6391, 6.0
        %v6792 = vmin.f32 %v6392, 6.0
        %v6793 = vmin.f32 %v6393, 6.0
        %v6794 = vmin.f32 %v6394, 6.0
        %v6795 = vmin.f32 %v6395, 6.0
        %v6796 = vmin.f32 %v6396, 6.0
        %v6797 = vmin.f32 %v6397, 6.0
        %v6798 = vmin.f32 %v6398, 6.0
        %v6799 = vmin.f32 %v6399, 6.0
        %v6800 = vmin.f32 %v6400, 6.0
        %v6801 = vmin.f32 %v6401, 6.0
        %v6802 = vmin.f32 %v6402, 6.0
        %v6803 = vmin.f32 %v6403, 6.0
        %v6804 = vmin.f32 %v6404, 6.0
        %v6805 = vmin.f32 %v6405, 6.0
        %v6806 = vmin.f32 %v6406, 6.0
        %v6807 = vmin.f32 %v6407, 6.0
        %v6808 = vmin.f32 %v6408, 6.0
        %v6809 = vmin.f32 %v6409, 6.0
        %v6810 = vmin.f32 %v6410, 6.0
        %v6811 = vmin.f32 %v6411, 6.0
        %v6812 = vmin.f32 %v6412, 6.0
        %v6813 = vmin.f32 %v6413, 6.0
        %v6814 = vmin.f32 %v6414, 6.0
        %v6815 = vmin.f32 %v6415, 6.0
        %v6816 = vmin.f32 %v6416, 6.0
        %v6817 = vmin.f32 %v6417, 6.0
        %v6818 = vmin.f32 %v6418, 6.0
        %v6819 = vmin.f32 %v6419, 6.0
        %v6820 = vmin.f32 %v6420, 6.0
        %v6821 = vmin.f32 %v6421, 6.0
        %v6822 = vmin.f32 %v6422, 6.0
        %v6823 = vmin.f32 %v6423, 6.0
        %v6824 = vmin.f32 %v6424, 6.0
        %v6825 = vmin.f32 %v6425, 6.0
        %v6826 = vmin.f32 %v6426, 6.0
        %v6827 = vmin.f32 %v6427, 6.0
        %v6828 = vmin.f32 %v6428, 6.0
        %v6829 = vmin.f32 %v6429, 6.0
        %v6830 = vmin.f32 %v6430, 6.0
        %v6831 = vmin.f32 %v6431, 6.0
        %v6832 = vmin.f32 %v6432, 6.0
        %v6833 = vmin.f32 %v6433, 6.0
        %v6834 = vmin.f32 %v6434, 6.0
        %v6835 = vmin.f32 %v6435, 6.0
        %v6836 = vmin.f32 %v6436, 6.0
        %v6837 = vmin.f32 %v6437, 6.0
        %v6838 = vmin.f32 %v6438, 6.0
        %v6839 = vmin.f32 %v6439, 6.0
        %v6840 = vmin.f32 %v6440, 6.0
        %v6841 = vmin.f32 %v6441, 6.0
        %v6842 = vmin.f32 %v6442, 6.0
        %v6843 = vmin.f32 %v6443, 6.0
        %v6844 = vmin.f32 %v6444, 6.0
        %v6845 = vmin.f32 %v6445, 6.0
        %v6846 = vmin.f32 %v6446, 6.0
        %v6847 = vmin.f32 %v6447, 6.0
        %v6848 = vmin.f32 %v6448, 6.0
        %v6849 = vmin.f32 %v6449, 6.0
        %v6850 = vmin.f32 %v6450, 6.0
        %v6851 = vmin.f32 %v6451, 6.0
        %v6852 = vmin.f32 %v6452, 6.0
        %v6853 = vmin.f32 %v6453, 6.0
        %v6854 = vmin.f32 %v6454, 6.0
        %v6855 = vmin.f32 %v6455, 6.0
        %v6856 = vmin.f32 %v6456, 6.0
        %v6857 = vmin.f32 %v6457, 6.0
        %v6858 = vmin.f32 %v6458, 6.0
        %v6859 = vmin.f32 %v6459, 6.0
        %v6860 = vmin.f32 %v6460, 6.0
        %v6861 = vmin.f32 %v6461, 6.0
        %v6862 = vmin.f32 %v6462, 6.0
        %v6863 = vmin.f32 %v6463, 6.0
        %v6864 = vmin.f32 %v6464, 6.0
        %v6865 = vmin.f32 %v6465, 6.0
        %v6866 = vmin.f32 %v6466, 6.0
        %v6867 = vmin.f32 %v6467, 6.0
        %v6868 = vmin.f32 %v6468, 6.0
        %v6869 = vmin.f32 %v6469, 6.0
        %v6870 = vmin.f32 %v6470, 6.0
        %v6871 = vmin.f32 %v6471, 6.0
        %v6872 = vmin.f32 %v6472, 6.0
        %v6873 = vmin.f32 %v6473, 6.0
        %v6874 = vmin.f32 %v6474, 6.0
        %v6875 = vmin.f32 %v6475, 6.0
        %v6876 = vmin.f32 %v6476, 6.0
        %v6877 = vmin.f32 %v6477, 6.0
        %v6878 = vmin.f32 %v6478, 6.0
        %v6879 = vmin.f32 %v6479, 6.0
        %v6880 = vmin.f32 %v6480, 6.0
        %v6881 = vmin.f32 %v6481, 6.0
        %v6882 = vmin.f32 %v6482, 6.0
        %v6883 = vmin.f32 %v6483, 6.0
        %v6884 = vmin.f32 %v6484, 6.0
        %v6885 = vpack.c.bf16 %v6685, %v6485
        %v6886 = vpack.c.bf16 %v6686, %v6486
        %v6887 = vpack.c.bf16 %v6687, %v6487
        %v6888 = vpack.c.bf16 %v6688, %v6488
        %v6889 = vpack.c.bf16 %v6689, %v6489
        %v6890 = vpack.c.bf16 %v6690, %v6490
        %v6891 = vpack.c.bf16 %v6691, %v6491
        %v6892 = vpack.c.bf16 %v6692, %v6492
        %v6893 = vpack.c.bf16 %v6693, %v6493
        %v6894 = vpack.c.bf16 %v6694, %v6494
        %v6895 = vpack.c.bf16 %v6695, %v6495
        %v6896 = vpack.c.bf16 %v6696, %v6496
        %v6897 = vpack.c.bf16 %v6697, %v6497
        %v6898 = vpack.c.bf16 %v6698, %v6498
        %v6899 = vpack.c.bf16 %v6699, %v6499
        %v6900 = vpack.c.bf16 %v6700, %v6500
        %v6901 = vpack.c.bf16 %v6701, %v6501
        %v6902 = vpack.c.bf16 %v6702, %v6502
        %v6903 = vpack.c.bf16 %v6703, %v6503
        %v6904 = vpack.c.bf16 %v6704, %v6504
        %v6905 = vpack.c.bf16 %v6705, %v6505
        %v6906 = vpack.c.bf16 %v6706, %v6506
        %v6907 = vpack.c.bf16 %v6707, %v6507
        %v6908 = vpack.c.bf16 %v6708, %v6508
        %v6909 = vpack.c.bf16 %v6709, %v6509
        %v6910 = vpack.c.bf16 %v6710, %v6510
        %v6911 = vpack.c.bf16 %v6711, %v6511
        %v6912 = vpack.c.bf16 %v6712, %v6512
        %v6913 = vpack.c.bf16 %v6713, %v6513
        %v6914 = vpack.c.bf16 %v6714, %v6514
        %v6915 = vpack.c.bf16 %v6715, %v6515
        %v6916 = vpack.c.bf16 %v6716, %v6516
        %v6917 = vpack.c.bf16 %v6717, %v6517
        %v6918 = vpack.c.bf16 %v6718, %v6518
        %v6919 = vpack.c.bf16 %v6719, %v6519
        %v6920 = vpack.c.bf16 %v6720, %v6520
        %v6921 = vpack.c.bf16 %v6721, %v6521
        %v6922 = vpack.c.bf16 %v6722, %v6522
        %v6923 = vpack.c.bf16 %v6723, %v6523
        %v6924 = vpack.c.bf16 %v6724, %v6524
        %v6925 = vpack.c.bf16 %v6725, %v6525
        %v6926 = vpack.c.bf16 %v6726, %v6526
        %v6927 = vpack.c.bf16 %v6727, %v6527
        %v6928 = vpack.c.bf16 %v6728, %v6528
        %v6929 = vpack.c.bf16 %v6729, %v6529
        %v6930 = vpack.c.bf16 %v6730, %v6530
        %v6931 = vpack.c.bf16 %v6731, %v6531
        %v6932 = vpack.c.bf16 %v6732, %v6532
        %v6933 = vpack.c.bf16 %v6733, %v6533
        %v6934 = vpack.c.bf16 %v6734, %v6534
        %v6935 = vpack.c.bf16 %v6735, %v6535
        %v6936 = vpack.c.bf16 %v6736, %v6536
        %v6937 = vpack.c.bf16 %v6737, %v6537
        %v6938 = vpack.c.bf16 %v6738, %v6538
        %v6939 = vpack.c.bf16 %v6739, %v6539
        %v6940 = vpack.c.bf16 %v6740, %v6540
        %v6941 = vpack.c.bf16 %v6741, %v6541
        %v6942 = vpack.c.bf16 %v6742, %v6542
        %v6943 = vpack.c.bf16 %v6743, %v6543
        %v6944 = vpack.c.bf16 %v6744, %v6544
        %v6945 = vpack.c.bf16 %v6745, %v6545
        %v6946 = vpack.c.bf16 %v6746, %v6546
        %v6947 = vpack.c.bf16 %v6747, %v6547
        %v6948 = vpack.c.bf16 %v6748, %v6548
        %v6949 = vpack.c.bf16 %v6749, %v6549
        %v6950 = vpack.c.bf16 %v6750, %v6550
        %v6951 = vpack.c.bf16 %v6751, %v6551
        %v6952 = vpack.c.bf16 %v6752, %v6552
        %v6953 = vpack.c.bf16 %v6753, %v6553
        %v6954 = vpack.c.bf16 %v6754, %v6554
        %v6955 = vpack.c.bf16 %v6755, %v6555
        %v6956 = vpack.c.bf16 %v6756, %v6556
        %v6957 = vpack.c.bf16 %v6757, %v6557
        %v6958 = vpack.c.bf16 %v6758, %v6558
        %v6959 = vpack.c.bf16 %v6759, %v6559
        %v6960 = vpack.c.bf16 %v6760, %v6560
        %v6961 = vpack.c.bf16 %v6761, %v6561
        %v6962 = vpack.c.bf16 %v6762, %v6562
        %v6963 = vpack.c.bf16 %v6763, %v6563
        %v6964 = vpack.c.bf16 %v6764, %v6564
        %v6965 = vpack.c.bf16 %v6765, %v6565
        %v6966 = vpack.c.bf16 %v6766, %v6566
        %v6967 = vpack.c.bf16 %v6767, %v6567
        %v6968 = vpack.c.bf16 %v6768, %v6568
        %v6969 = vpack.c.bf16 %v6769, %v6569
        %v6970 = vpack.c.bf16 %v6770, %v6570
        %v6971 = vpack.c.bf16 %v6771, %v6571
        %v6972 = vpack.c.bf16 %v6772, %v6572
        %v6973 = vpack.c.bf16 %v6773, %v6573
        %v6974 = vpack.c.bf16 %v6774, %v6574
        %v6975 = vpack.c.bf16 %v6775, %v6575
        %v6976 = vpack.c.bf16 %v6776, %v6576
        %v6977 = vpack.c.bf16 %v6777, %v6577
        %v6978 = vpack.c.bf16 %v6778, %v6578
        %v6979 = vpack.c.bf16 %v6779, %v6579
        %v6980 = vpack.c.bf16 %v6780, %v6580
        %v6981 = vpack.c.bf16 %v6781, %v6581
        %v6982 = vpack.c.bf16 %v6782, %v6582
        %v6983 = vpack.c.bf16 %v6783, %v6583
        %v6984 = vpack.c.bf16 %v6784, %v6584
        %v6985 = vpack.c.bf16 %v6785, %v6585
        %v6986 = vpack.c.bf16 %v6786, %v6586
        %v6987 = vpack.c.bf16 %v6787, %v6587
        %v6988 = vpack.c.bf16 %v6788, %v6588
        %v6989 = vpack.c.bf16 %v6789, %v6589
        %v6990 = vpack.c.bf16 %v6790, %v6590
        %v6991 = vpack.c.bf16 %v6791, %v6591
        %v6992 = vpack.c.bf16 %v6792, %v6592
        %v6993 = vpack.c.bf16 %v6793, %v6593
        %v6994 = vpack.c.bf16 %v6794, %v6594
        %v6995 = vpack.c.bf16 %v6795, %v6595
        %v6996 = vpack.c.bf16 %v6796, %v6596
        %v6997 = vpack.c.bf16 %v6797, %v6597
        %v6998 = vpack.c.bf16 %v6798, %v6598
        %v6999 = vpack.c.bf16 %v6799, %v6599
        %v7000 = vpack.c.bf16 %v6800, %v6600
        %v7001 = vpack.c.bf16 %v6801, %v6601
        %v7002 = vpack.c.bf16 %v6802, %v6602
        %v7003 = vpack.c.bf16 %v6803, %v6603
        %v7004 = vpack.c.bf16 %v6804, %v6604
        %v7005 = vpack.c.bf16 %v6805, %v6605
        %v7006 = vpack.c.bf16 %v6806, %v6606
        %v7007 = vpack.c.bf16 %v6807, %v6607
        %v7008 = vpack.c.bf16 %v6808, %v6608
        %v7009 = vpack.c.bf16 %v6809, %v6609
        %v7010 = vpack.c.bf16 %v6810, %v6610
        %v7011 = vpack.c.bf16 %v6811, %v6611
        %v7012 = vpack.c.bf16 %v6812, %v6612
        %v7013 = vpack.c.bf16 %v6813, %v6613
        %v7014 = vpack.c.bf16 %v6814, %v6614
        %v7015 = vpack.c.bf16 %v6815, %v6615
        %v7016 = vpack.c.bf16 %v6816, %v6616
        %v7017 = vpack.c.bf16 %v6817, %v6617
        %v7018 = vpack.c.bf16 %v6818, %v6618
        %v7019 = vpack.c.bf16 %v6819, %v6619
        %v7020 = vpack.c.bf16 %v6820, %v6620
        %v7021 = vpack.c.bf16 %v6821, %v6621
        %v7022 = vpack.c.bf16 %v6822, %v6622
        %v7023 = vpack.c.bf16 %v6823, %v6623
        %v7024 = vpack.c.bf16 %v6824, %v6624
        %v7025 = vpack.c.bf16 %v6825, %v6625
        %v7026 = vpack.c.bf16 %v6826, %v6626
        %v7027 = vpack.c.bf16 %v6827, %v6627
        %v7028 = vpack.c.bf16 %v6828, %v6628
        %v7029 = vpack.c.bf16 %v6829, %v6629
        %v7030 = vpack.c.bf16 %v6830, %v6630
        %v7031 = vpack.c.bf16 %v6831, %v6631
        %v7032 = vpack.c.bf16 %v6832, %v6632
        %v7033 = vpack.c.bf16 %v6833, %v6633
        %v7034 = vpack.c.bf16 %v6834, %v6634
        %v7035 = vpack.c.bf16 %v6835, %v6635
        %v7036 = vpack.c.bf16 %v6836, %v6636
        %v7037 = vpack.c.bf16 %v6837, %v6637
        %v7038 = vpack.c.bf16 %v6838, %v6638
        %v7039 = vpack.c.bf16 %v6839, %v6639
        %v7040 = vpack.c.bf16 %v6840, %v6640
        %v7041 = vpack.c.bf16 %v6841, %v6641
        %v7042 = vpack.c.bf16 %v6842, %v6642
        %v7043 = vpack.c.bf16 %v6843, %v6643
        %v7044 = vpack.c.bf16 %v6844, %v6644
        %v7045 = vpack.c.bf16 %v6845, %v6645
        %v7046 = vpack.c.bf16 %v6846, %v6646
        %v7047 = vpack.c.bf16 %v6847, %v6647
        %v7048 = vpack.c.bf16 %v6848, %v6648
        %v7049 = vpack.c.bf16 %v6849, %v6649
        %v7050 = vpack.c.bf16 %v6850, %v6650
        %v7051 = vpack.c.bf16 %v6851, %v6651
        %v7052 = vpack.c.bf16 %v6852, %v6652
        %v7053 = vpack.c.bf16 %v6853, %v6653
        %v7054 = vpack.c.bf16 %v6854, %v6654
        %v7055 = vpack.c.bf16 %v6855, %v6655
        %v7056 = vpack.c.bf16 %v6856, %v6656
        %v7057 = vpack.c.bf16 %v6857, %v6657
        %v7058 = vpack.c.bf16 %v6858, %v6658
        %v7059 = vpack.c.bf16 %v6859, %v6659
        %v7060 = vpack.c.bf16 %v6860, %v6660
        %v7061 = vpack.c.bf16 %v6861, %v6661
        %v7062 = vpack.c.bf16 %v6862, %v6662
        %v7063 = vpack.c.bf16 %v6863, %v6663
        %v7064 = vpack.c.bf16 %v6864, %v6664
        %v7065 = vpack.c.bf16 %v6865, %v6665
        %v7066 = vpack.c.bf16 %v6866, %v6666
        %v7067 = vpack.c.bf16 %v6867, %v6667
        %v7068 = vpack.c.bf16 %v6868, %v6668
        %v7069 = vpack.c.bf16 %v6869, %v6669
        %v7070 = vpack.c.bf16 %v6870, %v6670
        %v7071 = vpack.c.bf16 %v6871, %v6671
        %v7072 = vpack.c.bf16 %v6872, %v6672
        %v7073 = vpack.c.bf16 %v6873, %v6673
        %v7074 = vpack.c.bf16 %v6874, %v6674
        %v7075 = vpack.c.bf16 %v6875, %v6675
        %v7076 = vpack.c.bf16 %v6876, %v6676
        %v7077 = vpack.c.bf16 %v6877, %v6677
        %v7078 = vpack.c.bf16 %v6878, %v6678
        %v7079 = vpack.c.bf16 %v6879, %v6679
        %v7080 = vpack.c.bf16 %v6880, %v6680
        %v7081 = vpack.c.bf16 %v6881, %v6681
        %v7082 = vpack.c.bf16 %v6882, %v6682
        %v7083 = vpack.c.bf16 %v6883, %v6683
        %v7084 = vpack.c.bf16 %v6884, %v6684
        %v7285 = vunpack.c.l.b16 %v6885
        %v7286 = vunpack.c.l.b16 %v6886
        %v7287 = vunpack.c.l.b16 %v6887
        %v7288 = vunpack.c.l.b16 %v6888
        %v7289 = vunpack.c.l.b16 %v6889
        %v7290 = vunpack.c.l.b16 %v6890
        %v7291 = vunpack.c.l.b16 %v6891
        %v7292 = vunpack.c.l.b16 %v6892
        %v7293 = vunpack.c.l.b16 %v6893
        %v7294 = vunpack.c.l.b16 %v6894
        %v7295 = vunpack.c.l.b16 %v6895
        %v7296 = vunpack.c.l.b16 %v6896
        %v7297 = vunpack.c.l.b16 %v6897
        %v7298 = vunpack.c.l.b16 %v6898
        %v7299 = vunpack.c.l.b16 %v6899
        %v7300 = vunpack.c.l.b16 %v6900
        %v7301 = vunpack.c.l.b16 %v6901
        %v7302 = vunpack.c.l.b16 %v6902
        %v7303 = vunpack.c.l.b16 %v6903
        %v7304 = vunpack.c.l.b16 %v6904
        %v7305 = vunpack.c.l.b16 %v6905
        %v7306 = vunpack.c.l.b16 %v6906
        %v7307 = vunpack.c.l.b16 %v6907
        %v7308 = vunpack.c.l.b16 %v6908
        %v7309 = vunpack.c.l.b16 %v6909
        %v7310 = vunpack.c.l.b16 %v6910
        %v7311 = vunpack.c.l.b16 %v6911
        %v7312 = vunpack.c.l.b16 %v6912
        %v7313 = vunpack.c.l.b16 %v6913
        %v7314 = vunpack.c.l.b16 %v6914
        %v7315 = vunpack.c.l.b16 %v6915
        %v7316 = vunpack.c.l.b16 %v6916
        %v7317 = vunpack.c.l.b16 %v6917
        %v7318 = vunpack.c.l.b16 %v6918
        %v7319 = vunpack.c.l.b16 %v6919
        %v7320 = vunpack.c.l.b16 %v6920
        %v7321 = vunpack.c.l.b16 %v6921
        %v7322 = vunpack.c.l.b16 %v6922
        %v7323 = vunpack.c.l.b16 %v6923
        %v7324 = vunpack.c.l.b16 %v6924
        %v7325 = vunpack.c.l.b16 %v6925
        %v7326 = vunpack.c.l.b16 %v6926
        %v7327 = vunpack.c.l.b16 %v6927
        %v7328 = vunpack.c.l.b16 %v6928
        %v7329 = vunpack.c.l.b16 %v6929
        %v7330 = vunpack.c.l.b16 %v6930
        %v7331 = vunpack.c.l.b16 %v6931
        %v7332 = vunpack.c.l.b16 %v6932
        %v7333 = vunpack.c.l.b16 %v6933
        %v7334 = vunpack.c.l.b16 %v6934
        %v7335 = vunpack.c.l.b16 %v6935
        %v7336 = vunpack.c.l.b16 %v6936
        %v7337 = vunpack.c.l.b16 %v6937
        %v7338 = vunpack.c.l.b16 %v6938
        %v7339 = vunpack.c.l.b16 %v6939
        %v7340 = vunpack.c.l.b16 %v6940
        %v7341 = vunpack.c.l.b16 %v6941
        %v7342 = vunpack.c.l.b16 %v6942
        %v7343 = vunpack.c.l.b16 %v6943
        %v7344 = vunpack.c.l.b16 %v6944
        %v7345 = vunpack.c.l.b16 %v6945
        %v7346 = vunpack.c.l.b16 %v6946
        %v7347 = vunpack.c.l.b16 %v6947
        %v7348 = vunpack.c.l.b16 %v6948
        %v7349 = vunpack.c.l.b16 %v6949
        %v7350 = vunpack.c.l.b16 %v6950
        %v7351 = vunpack.c.l.b16 %v6951
        %v7352 = vunpack.c.l.b16 %v6952
        %v7353 = vunpack.c.l.b16 %v6953
        %v7354 = vunpack.c.l.b16 %v6954
        %v7355 = vunpack.c.l.b16 %v6955
        %v7356 = vunpack.c.l.b16 %v6956
        %v7357 = vunpack.c.l.b16 %v6957
        %v7358 = vunpack.c.l.b16 %v6958
        %v7359 = vunpack.c.l.b16 %v6959
        %v7360 = vunpack.c.l.b16 %v6960
        %v7361 = vunpack.c.l.b16 %v6961
        %v7362 = vunpack.c.l.b16 %v6962
        %v7363 = vunpack.c.l.b16 %v6963
        %v7364 = vunpack.c.l.b16 %v6964
        %v7365 = vunpack.c.l.b16 %v6965
        %v7366 = vunpack.c.l.b16 %v6966
        %v7367 = vunpack.c.l.b16 %v6967
        %v7368 = vunpack.c.l.b16 %v6968
        %v7369 = vunpack.c.l.b16 %v6969
        %v7370 = vunpack.c.l.b16 %v6970
        %v7371 = vunpack.c.l.b16 %v6971
        %v7372 = vunpack.c.l.b16 %v6972
        %v7373 = vunpack.c.l.b16 %v6973
        %v7374 = vunpack.c.l.b16 %v6974
        %v7375 = vunpack.c.l.b16 %v6975
        %v7376 = vunpack.c.l.b16 %v6976
        %v7377 = vunpack.c.l.b16 %v6977
        %v7378 = vunpack.c.l.b16 %v6978
        %v7379 = vunpack.c.l.b16 %v6979
        %v7380 = vunpack.c.l.b16 %v6980
        %v7381 = vunpack.c.l.b16 %v6981
        %v7382 = vunpack.c.l.b16 %v6982
        %v7383 = vunpack.c.l.b16 %v6983
        %v7384 = vunpack.c.l.b16 %v6984
        %v7385 = vunpack.c.l.b16 %v6985
        %v7386 = vunpack.c.l.b16 %v6986
        %v7387 = vunpack.c.l.b16 %v6987
        %v7388 = vunpack.c.l.b16 %v6988
        %v7389 = vunpack.c.l.b16 %v6989
        %v7390 = vunpack.c.l.b16 %v6990
        %v7391 = vunpack.c.l.b16 %v6991
        %v7392 = vunpack.c.l.b16 %v6992
        %v7393 = vunpack.c.l.b16 %v6993
        %v7394 = vunpack.c.l.b16 %v6994
        %v7395 = vunpack.c.l.b16 %v6995
        %v7396 = vunpack.c.l.b16 %v6996
        %v7397 = vunpack.c.l.b16 %v6997
        %v7398 = vunpack.c.l.b16 %v6998
        %v7399 = vunpack.c.l.b16 %v6999
        %v7400 = vunpack.c.l.b16 %v7000
        %v7401 = vunpack.c.l.b16 %v7001
        %v7402 = vunpack.c.l.b16 %v7002
        %v7403 = vunpack.c.l.b16 %v7003
        %v7404 = vunpack.c.l.b16 %v7004
        %v7405 = vunpack.c.l.b16 %v7005
        %v7406 = vunpack.c.l.b16 %v7006
        %v7407 = vunpack.c.l.b16 %v7007
        %v7408 = vunpack.c.l.b16 %v7008
        %v7409 = vunpack.c.l.b16 %v7009
        %v7410 = vunpack.c.l.b16 %v7010
        %v7411 = vunpack.c.l.b16 %v7011
        %v7412 = vunpack.c.l.b16 %v7012
        %v7413 = vunpack.c.l.b16 %v7013
        %v7414 = vunpack.c.l.b16 %v7014
        %v7415 = vunpack.c.l.b16 %v7015
        %v7416 = vunpack.c.l.b16 %v7016
        %v7417 = vunpack.c.l.b16 %v7017
        %v7418 = vunpack.c.l.b16 %v7018
        %v7419 = vunpack.c.l.b16 %v7019
        %v7420 = vunpack.c.l.b16 %v7020
        %v7421 = vunpack.c.l.b16 %v7021
        %v7422 = vunpack.c.l.b16 %v7022
        %v7423 = vunpack.c.l.b16 %v7023
        %v7424 = vunpack.c.l.b16 %v7024
        %v7425 = vunpack.c.l.b16 %v7025
        %v7426 = vunpack.c.l.b16 %v7026
        %v7427 = vunpack.c.l.b16 %v7027
        %v7428 = vunpack.c.l.b16 %v7028
        %v7429 = vunpack.c.l.b16 %v7029
        %v7430 = vunpack.c.l.b16 %v7030
        %v7431 = vunpack.c.l.b16 %v7031
        %v7432 = vunpack.c.l.b16 %v7032
        %v7433 = vunpack.c.l.b16 %v7033
        %v7434 = vunpack.c.l.b16 %v7034
        %v7435 = vunpack.c.l.b16 %v7035
        %v7436 = vunpack.c.l.b16 %v7036
        %v7437 = vunpack.c.l.b16 %v7037
        %v7438 = vunpack.c.l.b16 %v7038
        %v7439 = vunpack.c.l.b16 %v7039
        %v7440 = vunpack.c.l.b16 %v7040
        %v7441 = vunpack.c.l.b16 %v7041
        %v7442 = vunpack.c.l.b16 %v7042
        %v7443 = vunpack.c.l.b16 %v7043
        %v7444 = vunpack.c.l.b16 %v7044
        %v7445 = vunpack.c.l.b16 %v7045
        %v7446 = vunpack.c.l.b16 %v7046
        %v7447 = vunpack.c.l.b16 %v7047
        %v7448 = vunpack.c.l.b16 %v7048
        %v7449 = vunpack.c.l.b16 %v7049
        %v7450 = vunpack.c.l.b16 %v7050
        %v7451 = vunpack.c.l.b16 %v7051
        %v7452 = vunpack.c.l.b16 %v7052
        %v7453 = vunpack.c.l.b16 %v7053
        %v7454 = vunpack.c.l.b16 %v7054
        %v7455 = vunpack.c.l.b16 %v7055
        %v7456 = vunpack.c.l.b16 %v7056
        %v7457 = vunpack.c.l.b16 %v7057
        %v7458 = vunpack.c.l.b16 %v7058
        %v7459 = vunpack.c.l.b16 %v7059
        %v7460 = vunpack.c.l.b16 %v7060
        %v7461 = vunpack.c.l.b16 %v7061
        %v7462 = vunpack.c.l.b16 %v7062
        %v7463 = vunpack.c.l.b16 %v7063
        %v7464 = vunpack.c.l.b16 %v7064
        %v7465 = vunpack.c.l.b16 %v7065
        %v7466 = vunpack.c.l.b16 %v7066
        %v7467 = vunpack.c.l.b16 %v7067
        %v7468 = vunpack.c.l.b16 %v7068
        %v7469 = vunpack.c.l.b16 %v7069
        %v7470 = vunpack.c.l.b16 %v7070
        %v7471 = vunpack.c.l.b16 %v7071
        %v7472 = vunpack.c.l.b16 %v7072
        %v7473 = vunpack.c.l.b16 %v7073
        %v7474 = vunpack.c.l.b16 %v7074
        %v7475 = vunpack.c.l.b16 %v7075
        %v7476 = vunpack.c.l.b16 %v7076
        %v7477 = vunpack.c.l.b16 %v7077
        %v7478 = vunpack.c.l.b16 %v7078
        %v7479 = vunpack.c.l.b16 %v7079
        %v7480 = vunpack.c.l.b16 %v7080
        %v7481 = vunpack.c.l.b16 %v7081
        %v7482 = vunpack.c.l.b16 %v7082
        %v7483 = vunpack.c.l.b16 %v7083
        %v7484 = vunpack.c.l.b16 %v7084
        %v7485 = vunpack.c.h.b16 %v6885
        %v7486 = vunpack.c.h.b16 %v6886
        %v7487 = vunpack.c.h.b16 %v6887
        %v7488 = vunpack.c.h.b16 %v6888
        %v7489 = vunpack.c.h.b16 %v6889
        %v7490 = vunpack.c.h.b16 %v6890
        %v7491 = vunpack.c.h.b16 %v6891
        %v7492 = vunpack.c.h.b16 %v6892
        %v7493 = vunpack.c.h.b16 %v6893
        %v7494 = vunpack.c.h.b16 %v6894
        %v7495 = vunpack.c.h.b16 %v6895
        %v7496 = vunpack.c.h.b16 %v6896
        %v7497 = vunpack.c.h.b16 %v6897
        %v7498 = vunpack.c.h.b16 %v6898
        %v7499 = vunpack.c.h.b16 %v6899
        %v7500 = vunpack.c.h.b16 %v6900
        %v7501 = vunpack.c.h.b16 %v6901
        %v7502 = vunpack.c.h.b16 %v6902
        %v7503 = vunpack.c.h.b16 %v6903
        %v7504 = vunpack.c.h.b16 %v6904
        %v7505 = vunpack.c.h.b16 %v6905
        %v7506 = vunpack.c.h.b16 %v6906
        %v7507 = vunpack.c.h.b16 %v6907
        %v7508 = vunpack.c.h.b16 %v6908
        %v7509 = vunpack.c.h.b16 %v6909
        %v7510 = vunpack.c.h.b16 %v6910
        %v7511 = vunpack.c.h.b16 %v6911
        %v7512 = vunpack.c.h.b16 %v6912
        %v7513 = vunpack.c.h.b16 %v6913
        %v7514 = vunpack.c.h.b16 %v6914
        %v7515 = vunpack.c.h.b16 %v6915
        %v7516 = vunpack.c.h.b16 %v6916
        %v7517 = vunpack.c.h.b16 %v6917
        %v7518 = vunpack.c.h.b16 %v6918
        %v7519 = vunpack.c.h.b16 %v6919
        %v7520 = vunpack.c.h.b16 %v6920
        %v7521 = vunpack.c.h.b16 %v6921
        %v7522 = vunpack.c.h.b16 %v6922
        %v7523 = vunpack.c.h.b16 %v6923
        %v7524 = vunpack.c.h.b16 %v6924
        %v7525 = vunpack.c.h.b16 %v6925
        %v7526 = vunpack.c.h.b16 %v6926
        %v7527 = vunpack.c.h.b16 %v6927
        %v7528 = vunpack.c.h.b16 %v6928
        %v7529 = vunpack.c.h.b16 %v6929
        %v7530 = vunpack.c.h.b16 %v6930
        %v7531 = vunpack.c.h.b16 %v6931
        %v7532 = vunpack.c.h.b16 %v6932
        %v7533 = vunpack.c.h.b16 %v6933
        %v7534 = vunpack.c.h.b16 %v6934
        %v7535 = vunpack.c.h.b16 %v6935
        %v7536 = vunpack.c.h.b16 %v6936
        %v7537 = vunpack.c.h.b16 %v6937
        %v7538 = vunpack.c.h.b16 %v6938
        %v7539 = vunpack.c.h.b16 %v6939
        %v7540 = vunpack.c.h.b16 %v6940
        %v7541 = vunpack.c.h.b16 %v6941
        %v7542 = vunpack.c.h.b16 %v6942
        %v7543 = vunpack.c.h.b16 %v6943
        %v7544 = vunpack.c.h.b16 %v6944
        %v7545 = vunpack.c.h.b16 %v6945
        %v7546 = vunpack.c.h.b16 %v6946
        %v7547 = vunpack.c.h.b16 %v6947
        %v7548 = vunpack.c.h.b16 %v6948
        %v7549 = vunpack.c.h.b16 %v6949
        %v7550 = vunpack.c.h.b16 %v6950
        %v7551 = vunpack.c.h.b16 %v6951
        %v7552 = vunpack.c.h.b16 %v6952
        %v7553 = vunpack.c.h.b16 %v6953
        %v7554 = vunpack.c.h.b16 %v6954
        %v7555 = vunpack.c.h.b16 %v6955
        %v7556 = vunpack.c.h.b16 %v6956
        %v7557 = vunpack.c.h.b16 %v6957
        %v7558 = vunpack.c.h.b16 %v6958
        %v7559 = vunpack.c.h.b16 %v6959
        %v7560 = vunpack.c.h.b16 %v6960
        %v7561 = vunpack.c.h.b16 %v6961
        %v7562 = vunpack.c.h.b16 %v6962
        %v7563 = vunpack.c.h.b16 %v6963
        %v7564 = vunpack.c.h.b16 %v6964
        %v7565 = vunpack.c.h.b16 %v6965
        %v7566 = vunpack.c.h.b16 %v6966
        %v7567 = vunpack.c.h.b16 %v6967
        %v7568 = vunpack.c.h.b16 %v6968
        %v7569 = vunpack.c.h.b16 %v6969
        %v7570 = vunpack.c.h.b16 %v6970
        %v7571 = vunpack.c.h.b16 %v6971
        %v7572 = vunpack.c.h.b16 %v6972
        %v7573 = vunpack.c.h.b16 %v6973
        %v7574 = vunpack.c.h.b16 %v6974
        %v7575 = vunpack.c.h.b16 %v6975
        %v7576 = vunpack.c.h.b16 %v6976
        %v7577 = vunpack.c.h.b16 %v6977
        %v7578 = vunpack.c.h.b16 %v6978
        %v7579 = vunpack.c.h.b16 %v6979
        %v7580 = vunpack.c.h.b16 %v6980
        %v7581 = vunpack.c.h.b16 %v6981
        %v7582 = vunpack.c.h.b16 %v6982
        %v7583 = vunpack.c.h.b16 %v6983
        %v7584 = vunpack.c.h.b16 %v6984
        %v7585 = vunpack.c.h.b16 %v6985
        %v7586 = vunpack.c.h.b16 %v6986
        %v7587 = vunpack.c.h.b16 %v6987
        %v7588 = vunpack.c.h.b16 %v6988
        %v7589 = vunpack.c.h.b16 %v6989
        %v7590 = vunpack.c.h.b16 %v6990
        %v7591 = vunpack.c.h.b16 %v6991
        %v7592 = vunpack.c.h.b16 %v6992
        %v7593 = vunpack.c.h.b16 %v6993
        %v7594 = vunpack.c.h.b16 %v6994
        %v7595 = vunpack.c.h.b16 %v6995
        %v7596 = vunpack.c.h.b16 %v6996
        %v7597 = vunpack.c.h.b16 %v6997
        %v7598 = vunpack.c.h.b16 %v6998
        %v7599 = vunpack.c.h.b16 %v6999
        %v7600 = vunpack.c.h.b16 %v7000
        %v7601 = vunpack.c.h.b16 %v7001
        %v7602 = vunpack.c.h.b16 %v7002
        %v7603 = vunpack.c.h.b16 %v7003
        %v7604 = vunpack.c.h.b16 %v7004
        %v7605 = vunpack.c.h.b16 %v7005
        %v7606 = vunpack.c.h.b16 %v7006
        %v7607 = vunpack.c.h.b16 %v7007
        %v7608 = vunpack.c.h.b16 %v7008
        %v7609 = vunpack.c.h.b16 %v7009
        %v7610 = vunpack.c.h.b16 %v7010
        %v7611 = vunpack.c.h.b16 %v7011
        %v7612 = vunpack.c.h.b16 %v7012
        %v7613 = vunpack.c.h.b16 %v7013
        %v7614 = vunpack.c.h.b16 %v7014
        %v7615 = vunpack.c.h.b16 %v7015
        %v7616 = vunpack.c.h.b16 %v7016
        %v7617 = vunpack.c.h.b16 %v7017
        %v7618 = vunpack.c.h.b16 %v7018
        %v7619 = vunpack.c.h.b16 %v7019
        %v7620 = vunpack.c.h.b16 %v7020
        %v7621 = vunpack.c.h.b16 %v7021
        %v7622 = vunpack.c.h.b16 %v7022
        %v7623 = vunpack.c.h.b16 %v7023
        %v7624 = vunpack.c.h.b16 %v7024
        %v7625 = vunpack.c.h.b16 %v7025
        %v7626 = vunpack.c.h.b16 %v7026
        %v7627 = vunpack.c.h.b16 %v7027
        %v7628 = vunpack.c.h.b16 %v7028
        %v7629 = vunpack.c.h.b16 %v7029
        %v7630 = vunpack.c.h.b16 %v7030
        %v7631 = vunpack.c.h.b16 %v7031
        %v7632 = vunpack.c.h.b16 %v7032
        %v7633 = vunpack.c.h.b16 %v7033
        %v7634 = vunpack.c.h.b16 %v7034
        %v7635 = vunpack.c.h.b16 %v7035
        %v7636 = vunpack.c.h.b16 %v7036
        %v7637 = vunpack.c.h.b16 %v7037
        %v7638 = vunpack.c.h.b16 %v7038
        %v7639 = vunpack.c.h.b16 %v7039
        %v7640 = vunpack.c.h.b16 %v7040
        %v7641 = vunpack.c.h.b16 %v7041
        %v7642 = vunpack.c.h.b16 %v7042
        %v7643 = vunpack.c.h.b16 %v7043
        %v7644 = vunpack.c.h.b16 %v7044
        %v7645 = vunpack.c.h.b16 %v7045
        %v7646 = vunpack.c.h.b16 %v7046
        %v7647 = vunpack.c.h.b16 %v7047
        %v7648 = vunpack.c.h.b16 %v7048
        %v7649 = vunpack.c.h.b16 %v7049
        %v7650 = vunpack.c.h.b16 %v7050
        %v7651 = vunpack.c.h.b16 %v7051
        %v7652 = vunpack.c.h.b16 %v7052
        %v7653 = vunpack.c.h.b16 %v7053
        %v7654 = vunpack.c.h.b16 %v7054
        %v7655 = vunpack.c.h.b16 %v7055
        %v7656 = vunpack.c.h.b16 %v7056
        %v7657 = vunpack.c.h.b16 %v7057
        %v7658 = vunpack.c.h.b16 %v7058
        %v7659 = vunpack.c.h.b16 %v7059
        %v7660 = vunpack.c.h.b16 %v7060
        %v7661 = vunpack.c.h.b16 %v7061
        %v7662 = vunpack.c.h.b16 %v7062
        %v7663 = vunpack.c.h.b16 %v7063
        %v7664 = vunpack.c.h.b16 %v7064
        %v7665 = vunpack.c.h.b16 %v7065
        %v7666 = vunpack.c.h.b16 %v7066
        %v7667 = vunpack.c.h.b16 %v7067
        %v7668 = vunpack.c.h.b16 %v7068
        %v7669 = vunpack.c.h.b16 %v7069
        %v7670 = vunpack.c.h.b16 %v7070
        %v7671 = vunpack.c.h.b16 %v7071
        %v7672 = vunpack.c.h.b16 %v7072
        %v7673 = vunpack.c.h.b16 %v7073
        %v7674 = vunpack.c.h.b16 %v7074
        %v7675 = vunpack.c.h.b16 %v7075
        %v7676 = vunpack.c.h.b16 %v7076
        %v7677 = vunpack.c.h.b16 %v7077
        %v7678 = vunpack.c.h.b16 %v7078
        %v7679 = vunpack.c.h.b16 %v7079
        %v7680 = vunpack.c.h.b16 %v7080
        %v7681 = vunpack.c.h.b16 %v7081
        %v7682 = vunpack.c.h.b16 %v7082
        %v7683 = vunpack.c.h.b16 %v7083
        %v7684 = vunpack.c.h.b16 %v7084
        %v7685 = vpack.c.b16 %v7286, %v7285
        %v7686 = vpack.c.b16 %v7288, %v7287
        %v7687 = vpack.c.b16 %v7290, %v7289
        %v7688 = vpack.c.b16 %v7292, %v7291
        %v7689 = vpack.c.b16 %v7294, %v7293
        %v7690 = vpack.c.b16 %v7296, %v7295
        %v7691 = vpack.c.b16 %v7298, %v7297
        %v7692 = vpack.c.b16 %v7300, %v7299
        %v7693 = vpack.c.b16 %v7302, %v7301
        %v7694 = vpack.c.b16 %v7304, %v7303
        %v7695 = vpack.c.b16 %v7306, %v7305
        %v7696 = vpack.c.b16 %v7308, %v7307
        %v7697 = vpack.c.b16 %v7310, %v7309
        %v7698 = vpack.c.b16 %v7312, %v7311
        %v7699 = vpack.c.b16 %v7314, %v7313
        %v7700 = vpack.c.b16 %v7316, %v7315
        %v7701 = vpack.c.b16 %v7318, %v7317
        %v7702 = vpack.c.b16 %v7320, %v7319
        %v7703 = vpack.c.b16 %v7322, %v7321
        %v7704 = vpack.c.b16 %v7324, %v7323
        %v7705 = vpack.c.b16 %v7326, %v7325
        %v7706 = vpack.c.b16 %v7328, %v7327
        %v7707 = vpack.c.b16 %v7330, %v7329
        %v7708 = vpack.c.b16 %v7332, %v7331
        %v7709 = vpack.c.b16 %v7334, %v7333
        %v7710 = vpack.c.b16 %v7336, %v7335
        %v7711 = vpack.c.b16 %v7338, %v7337
        %v7712 = vpack.c.b16 %v7340, %v7339
        %v7713 = vpack.c.b16 %v7342, %v7341
        %v7714 = vpack.c.b16 %v7344, %v7343
        %v7715 = vpack.c.b16 %v7346, %v7345
        %v7716 = vpack.c.b16 %v7348, %v7347
        %v7717 = vpack.c.b16 %v7350, %v7349
        %v7718 = vpack.c.b16 %v7352, %v7351
        %v7719 = vpack.c.b16 %v7354, %v7353
        %v7720 = vpack.c.b16 %v7356, %v7355
        %v7721 = vpack.c.b16 %v7358, %v7357
        %v7722 = vpack.c.b16 %v7360, %v7359
        %v7723 = vpack.c.b16 %v7362, %v7361
        %v7724 = vpack.c.b16 %v7364, %v7363
        %v7725 = vpack.c.b16 %v7366, %v7365
        %v7726 = vpack.c.b16 %v7368, %v7367
        %v7727 = vpack.c.b16 %v7370, %v7369
        %v7728 = vpack.c.b16 %v7372, %v7371
        %v7729 = vpack.c.b16 %v7374, %v7373
        %v7730 = vpack.c.b16 %v7376, %v7375
        %v7731 = vpack.c.b16 %v7378, %v7377
        %v7732 = vpack.c.b16 %v7380, %v7379
        %v7733 = vpack.c.b16 %v7382, %v7381
        %v7734 = vpack.c.b16 %v7384, %v7383
        %v7735 = vpack.c.b16 %v7386, %v7385
        %v7736 = vpack.c.b16 %v7388, %v7387
        %v7737 = vpack.c.b16 %v7390, %v7389
        %v7738 = vpack.c.b16 %v7392, %v7391
        %v7739 = vpack.c.b16 %v7394, %v7393
        %v7740 = vpack.c.b16 %v7396, %v7395
        %v7741 = vpack.c.b16 %v7398, %v7397
        %v7742 = vpack.c.b16 %v7400, %v7399
        %v7743 = vpack.c.b16 %v7402, %v7401
        %v7744 = vpack.c.b16 %v7404, %v7403
        %v7745 = vpack.c.b16 %v7406, %v7405
        %v7746 = vpack.c.b16 %v7408, %v7407
        %v7747 = vpack.c.b16 %v7410, %v7409
        %v7748 = vpack.c.b16 %v7412, %v7411
        %v7749 = vpack.c.b16 %v7414, %v7413
        %v7750 = vpack.c.b16 %v7416, %v7415
        %v7751 = vpack.c.b16 %v7418, %v7417
        %v7752 = vpack.c.b16 %v7420, %v7419
        %v7753 = vpack.c.b16 %v7422, %v7421
        %v7754 = vpack.c.b16 %v7424, %v7423
        %v7755 = vpack.c.b16 %v7426, %v7425
        %v7756 = vpack.c.b16 %v7428, %v7427
        %v7757 = vpack.c.b16 %v7430, %v7429
        %v7758 = vpack.c.b16 %v7432, %v7431
        %v7759 = vpack.c.b16 %v7434, %v7433
        %v7760 = vpack.c.b16 %v7436, %v7435
        %v7761 = vpack.c.b16 %v7438, %v7437
        %v7762 = vpack.c.b16 %v7440, %v7439
        %v7763 = vpack.c.b16 %v7442, %v7441
        %v7764 = vpack.c.b16 %v7444, %v7443
        %v7765 = vpack.c.b16 %v7446, %v7445
        %v7766 = vpack.c.b16 %v7448, %v7447
        %v7767 = vpack.c.b16 %v7450, %v7449
        %v7768 = vpack.c.b16 %v7452, %v7451
        %v7769 = vpack.c.b16 %v7454, %v7453
        %v7770 = vpack.c.b16 %v7456, %v7455
        %v7771 = vpack.c.b16 %v7458, %v7457
        %v7772 = vpack.c.b16 %v7460, %v7459
        %v7773 = vpack.c.b16 %v7462, %v7461
        %v7774 = vpack.c.b16 %v7464, %v7463
        %v7775 = vpack.c.b16 %v7466, %v7465
        %v7776 = vpack.c.b16 %v7468, %v7467
        %v7777 = vpack.c.b16 %v7470, %v7469
        %v7778 = vpack.c.b16 %v7472, %v7471
        %v7779 = vpack.c.b16 %v7474, %v7473
        %v7780 = vpack.c.b16 %v7476, %v7475
        %v7781 = vpack.c.b16 %v7478, %v7477
        %v7782 = vpack.c.b16 %v7480, %v7479
        %v7783 = vpack.c.b16 %v7482, %v7481
        %v7784 = vpack.c.b16 %v7484, %v7483
        %v7785 = vpack.c.b16 %v7486, %v7485
        %v7786 = vpack.c.b16 %v7488, %v7487
        %v7787 = vpack.c.b16 %v7490, %v7489
        %v7788 = vpack.c.b16 %v7492, %v7491
        %v7789 = vpack.c.b16 %v7494, %v7493
        %v7790 = vpack.c.b16 %v7496, %v7495
        %v7791 = vpack.c.b16 %v7498, %v7497
        %v7792 = vpack.c.b16 %v7500, %v7499
        %v7793 = vpack.c.b16 %v7502, %v7501
        %v7794 = vpack.c.b16 %v7504, %v7503
        %v7795 = vpack.c.b16 %v7506, %v7505
        %v7796 = vpack.c.b16 %v7508, %v7507
        %v7797 = vpack.c.b16 %v7510, %v7509
        %v7798 = vpack.c.b16 %v7512, %v7511
        %v7799 = vpack.c.b16 %v7514, %v7513
        %v7800 = vpack.c.b16 %v7516, %v7515
        %v7801 = vpack.c.b16 %v7518, %v7517
        %v7802 = vpack.c.b16 %v7520, %v7519
        %v7803 = vpack.c.b16 %v7522, %v7521
        %v7804 = vpack.c.b16 %v7524, %v7523
        %v7805 = vpack.c.b16 %v7526, %v7525
        %v7806 = vpack.c.b16 %v7528, %v7527
        %v7807 = vpack.c.b16 %v7530, %v7529
        %v7808 = vpack.c.b16 %v7532, %v7531
        %v7809 = vpack.c.b16 %v7534, %v7533
        %v7810 = vpack.c.b16 %v7536, %v7535
        %v7811 = vpack.c.b16 %v7538, %v7537
        %v7812 = vpack.c.b16 %v7540, %v7539
        %v7813 = vpack.c.b16 %v7542, %v7541
        %v7814 = vpack.c.b16 %v7544, %v7543
        %v7815 = vpack.c.b16 %v7546, %v7545
        %v7816 = vpack.c.b16 %v7548, %v7547
        %v7817 = vpack.c.b16 %v7550, %v7549
        %v7818 = vpack.c.b16 %v7552, %v7551
        %v7819 = vpack.c.b16 %v7554, %v7553
        %v7820 = vpack.c.b16 %v7556, %v7555
        %v7821 = vpack.c.b16 %v7558, %v7557
        %v7822 = vpack.c.b16 %v7560, %v7559
        %v7823 = vpack.c.b16 %v7562, %v7561
        %v7824 = vpack.c.b16 %v7564, %v7563
        %v7825 = vpack.c.b16 %v7566, %v7565
        %v7826 = vpack.c.b16 %v7568, %v7567
        %v7827 = vpack.c.b16 %v7570, %v7569
        %v7828 = vpack.c.b16 %v7572, %v7571
        %v7829 = vpack.c.b16 %v7574, %v7573
        %v7830 = vpack.c.b16 %v7576, %v7575
        %v7831 = vpack.c.b16 %v7578, %v7577
        %v7832 = vpack.c.b16 %v7580, %v7579
        %v7833 = vpack.c.b16 %v7582, %v7581
        %v7834 = vpack.c.b16 %v7584, %v7583
        %v7835 = vpack.c.b16 %v7586, %v7585
        %v7836 = vpack.c.b16 %v7588, %v7587
        %v7837 = vpack.c.b16 %v7590, %v7589
        %v7838 = vpack.c.b16 %v7592, %v7591
        %v7839 = vpack.c.b16 %v7594, %v7593
        %v7840 = vpack.c.b16 %v7596, %v7595
        %v7841 = vpack.c.b16 %v7598, %v7597
        %v7842 = vpack.c.b16 %v7600, %v7599
        %v7843 = vpack.c.b16 %v7602, %v7601
        %v7844 = vpack.c.b16 %v7604, %v7603
        %v7845 = vpack.c.b16 %v7606, %v7605
        %v7846 = vpack.c.b16 %v7608, %v7607
        %v7847 = vpack.c.b16 %v7610, %v7609
        %v7848 = vpack.c.b16 %v7612, %v7611
        %v7849 = vpack.c.b16 %v7614, %v7613
        %v7850 = vpack.c.b16 %v7616, %v7615
        %v7851 = vpack.c.b16 %v7618, %v7617
        %v7852 = vpack.c.b16 %v7620, %v7619
        %v7853 = vpack.c.b16 %v7622, %v7621
        %v7854 = vpack.c.b16 %v7624, %v7623
        %v7855 = vpack.c.b16 %v7626, %v7625
        %v7856 = vpack.c.b16 %v7628, %v7627
        %v7857 = vpack.c.b16 %v7630, %v7629
        %v7858 = vpack.c.b16 %v7632, %v7631
        %v7859 = vpack.c.b16 %v7634, %v7633
        %v7860 = vpack.c.b16 %v7636, %v7635
        %v7861 = vpack.c.b16 %v7638, %v7637
        %v7862 = vpack.c.b16 %v7640, %v7639
        %v7863 = vpack.c.b16 %v7642, %v7641
        %v7864 = vpack.c.b16 %v7644, %v7643
        %v7865 = vpack.c.b16 %v7646, %v7645
        %v7866 = vpack.c.b16 %v7648, %v7647
        %v7867 = vpack.c.b16 %v7650, %v7649
        %v7868 = vpack.c.b16 %v7652, %v7651
        %v7869 = vpack.c.b16 %v7654, %v7653
        %v7870 = vpack.c.b16 %v7656, %v7655
        %v7871 = vpack.c.b16 %v7658, %v7657
        %v7872 = vpack.c.b16 %v7660, %v7659
        %v7873 = vpack.c.b16 %v7662, %v7661
        %v7874 = vpack.c.b16 %v7664, %v7663
        %v7875 = vpack.c.b16 %v7666, %v7665
        %v7876 = vpack.c.b16 %v7668, %v7667
        %v7877 = vpack.c.b16 %v7670, %v7669
        %v7878 = vpack.c.b16 %v7672, %v7671
        %v7879 = vpack.c.b16 %v7674, %v7673
        %v7880 = vpack.c.b16 %v7676, %v7675
        %v7881 = vpack.c.b16 %v7678, %v7677
        %v7882 = vpack.c.b16 %v7680, %v7679
        %v7883 = vpack.c.b16 %v7682, %v7681
        %v7884 = vpack.c.b16 %v7684, %v7683
        %8085 = vst [vmem:[%s204] sm:$0xff] %v7685
        %8086 = vst [vmem:[%s204 + $0x8] sm:$0xff] %v7686
        %8087 = vst [vmem:[%s204 + $0x10] sm:$0xff] %v7687
        %8088 = vst [vmem:[%s204 + $0x18] sm:$0xff] %v7688
        %8089 = vst [vmem:[%s204 + $0x20] sm:$0xff] %v7689
        %8090 = vst [vmem:[%s204 + $0x28] sm:$0xff] %v7690
        %8091 = vst [vmem:[%s204 + $0x30] sm:$0xff] %v7691
        %8092 = vst [vmem:[%s204 + $0x38] sm:$0xff] %v7692
        %8093 = vst [vmem:[%s204 + $0x40] sm:$0xff] %v7693
        %8094 = vst [vmem:[%s204 + $0x48] sm:$0xff] %v7694
        %8095 = vst [vmem:[%s204 + $0x50] sm:$0xff] %v7695
        %8096 = vst [vmem:[%s204 + $0x58] sm:$0xff] %v7696
        %8097 = vst [vmem:[%s204 + $0x60] sm:$0xff] %v7697
        %8098 = vst [vmem:[%s204 + $0x68] sm:$0xff] %v7698
        %8099 = vst [vmem:[%s204 + $0x70] sm:$0xff] %v7699
        %8100 = vst [vmem:[%s204 + $0x78] sm:$0xff] %v7700
        %8101 = vst [vmem:[%s204 + $0x80] sm:$0xff] %v7701
        %8102 = vst [vmem:[%s204 + $0x88] sm:$0xff] %v7702
        %8103 = vst [vmem:[%s204 + $0x90] sm:$0xff] %v7703
        %8104 = vst [vmem:[%s204 + $0x98] sm:$0xff] %v7704
        %8105 = vst [vmem:[%s204 + $0xa0] sm:$0xff] %v7705
        %8106 = vst [vmem:[%s204 + $0xa8] sm:$0xff] %v7706
        %8107 = vst [vmem:[%s204 + $0xb0] sm:$0xff] %v7707
        %8108 = vst [vmem:[%s204 + $0xb8] sm:$0xff] %v7708
        %8109 = vst [vmem:[%s204 + $0xc0] sm:$0xff] %v7709
        %8110 = vst [vmem:[%s204 + $0xc8] sm:$0xff] %v7710
        %8111 = vst [vmem:[%s204 + $0xd0] sm:$0xff] %v7711
        %8112 = vst [vmem:[%s204 + $0xd8] sm:$0xff] %v7712
        %8113 = vst [vmem:[%s204 + $0xe0] sm:$0xff] %v7713
        %8114 = vst [vmem:[%s204 + $0xe8] sm:$0xff] %v7714
        %8115 = vst [vmem:[%s204 + $0xf0] sm:$0xff] %v7715
        %8116 = vst [vmem:[%s204 + $0xf8] sm:$0xff] %v7716
        %8117 = vst [vmem:[%s204 + $0x100] sm:$0xff] %v7717
        %8118 = vst [vmem:[%s204 + $0x108] sm:$0xff] %v7718
        %8119 = vst [vmem:[%s204 + $0x110] sm:$0xff] %v7719
        %8120 = vst [vmem:[%s204 + $0x118] sm:$0xff] %v7720
        %8121 = vst [vmem:[%s204 + $0x120] sm:$0xff] %v7721
        %8122 = vst [vmem:[%s204 + $0x128] sm:$0xff] %v7722
        %8123 = vst [vmem:[%s204 + $0x130] sm:$0xff] %v7723
        %8124 = vst [vmem:[%s204 + $0x138] sm:$0xff] %v7724
        %8125 = vst [vmem:[%s204 + $0x140] sm:$0xff] %v7725
        %8126 = vst [vmem:[%s204 + $0x148] sm:$0xff] %v7726
        %8127 = vst [vmem:[%s204 + $0x150] sm:$0xff] %v7727
        %8128 = vst [vmem:[%s204 + $0x158] sm:$0xff] %v7728
        %8129 = vst [vmem:[%s204 + $0x160] sm:$0xff] %v7729
        %8130 = vst [vmem:[%s204 + $0x168] sm:$0xff] %v7730
        %8131 = vst [vmem:[%s204 + $0x170] sm:$0xff] %v7731
        %8132 = vst [vmem:[%s204 + $0x178] sm:$0xff] %v7732
        %8133 = vst [vmem:[%s204 + $0x180] sm:$0xff] %v7733
        %8134 = vst [vmem:[%s204 + $0x188] sm:$0xff] %v7734
        %8135 = vst [vmem:[%s204 + $0x190] sm:$0xff] %v7735
        %8136 = vst [vmem:[%s204 + $0x198] sm:$0xff] %v7736
        %8137 = vst [vmem:[%s204 + $0x1a0] sm:$0xff] %v7737
        %8138 = vst [vmem:[%s204 + $0x1a8] sm:$0xff] %v7738
        %8139 = vst [vmem:[%s204 + $0x1b0] sm:$0xff] %v7739
        %8140 = vst [vmem:[%s204 + $0x1b8] sm:$0xff] %v7740
        %8141 = vst [vmem:[%s204 + $0x1c0] sm:$0xff] %v7741
        %8142 = vst [vmem:[%s204 + $0x1c8] sm:$0xff] %v7742
        %8143 = vst [vmem:[%s204 + $0x1d0] sm:$0xff] %v7743
        %8144 = vst [vmem:[%s204 + $0x1d8] sm:$0xff] %v7744
        %8145 = vst [vmem:[%s204 + $0x1e0] sm:$0xff] %v7745
        %8146 = vst [vmem:[%s204 + $0x1e8] sm:$0xff] %v7746
        %8147 = vst [vmem:[%s204 + $0x1f0] sm:$0xff] %v7747
        %8148 = vst [vmem:[%s204 + $0x1f8] sm:$0xff] %v7748
        %8149 = vst [vmem:[%s204 + $0x200] sm:$0xff] %v7749
        %8150 = vst [vmem:[%s204 + $0x208] sm:$0xff] %v7750
        %8151 = vst [vmem:[%s204 + $0x210] sm:$0xff] %v7751
        %8152 = vst [vmem:[%s204 + $0x218] sm:$0xff] %v7752
        %8153 = vst [vmem:[%s204 + $0x220] sm:$0xff] %v7753
        %8154 = vst [vmem:[%s204 + $0x228] sm:$0xff] %v7754
        %8155 = vst [vmem:[%s204 + $0x230] sm:$0xff] %v7755
        %8156 = vst [vmem:[%s204 + $0x238] sm:$0xff] %v7756
        %8157 = vst [vmem:[%s204 + $0x240] sm:$0xff] %v7757
        %8158 = vst [vmem:[%s204 + $0x248] sm:$0xff] %v7758
        %8159 = vst [vmem:[%s204 + $0x250] sm:$0xff] %v7759
        %8160 = vst [vmem:[%s204 + $0x258] sm:$0xff] %v7760
        %8161 = vst [vmem:[%s204 + $0x260] sm:$0xff] %v7761
        %8162 = vst [vmem:[%s204 + $0x268] sm:$0xff] %v7762
        %8163 = vst [vmem:[%s204 + $0x270] sm:$0xff] %v7763
        %8164 = vst [vmem:[%s204 + $0x278] sm:$0xff] %v7764
        %8165 = vst [vmem:[%s204 + $0x280] sm:$0xff] %v7765
        %8166 = vst [vmem:[%s204 + $0x288] sm:$0xff] %v7766
        %8167 = vst [vmem:[%s204 + $0x290] sm:$0xff] %v7767
        %8168 = vst [vmem:[%s204 + $0x298] sm:$0xff] %v7768
        %8169 = vst [vmem:[%s204 + $0x2a0] sm:$0xff] %v7769
        %8170 = vst [vmem:[%s204 + $0x2a8] sm:$0xff] %v7770
        %8171 = vst [vmem:[%s204 + $0x2b0] sm:$0xff] %v7771
        %8172 = vst [vmem:[%s204 + $0x2b8] sm:$0xff] %v7772
        %8173 = vst [vmem:[%s204 + $0x2c0] sm:$0xff] %v7773
        %8174 = vst [vmem:[%s204 + $0x2c8] sm:$0xff] %v7774
        %8175 = vst [vmem:[%s204 + $0x2d0] sm:$0xff] %v7775
        %8176 = vst [vmem:[%s204 + $0x2d8] sm:$0xff] %v7776
        %8177 = vst [vmem:[%s204 + $0x2e0] sm:$0xff] %v7777
        %8178 = vst [vmem:[%s204 + $0x2e8] sm:$0xff] %v7778
        %8179 = vst [vmem:[%s204 + $0x2f0] sm:$0xff] %v7779
        %8180 = vst [vmem:[%s204 + $0x2f8] sm:$0xff] %v7780
        %8181 = vst [vmem:[%s204 + $0x300] sm:$0xff] %v7781
        %8182 = vst [vmem:[%s204 + $0x308] sm:$0xff] %v7782
        %8183 = vst [vmem:[%s204 + $0x310] sm:$0xff] %v7783
        %8184 = vst [vmem:[%s204 + $0x318] sm:$0xff] %v7784
        %8185 = vst [vmem:[%s204 + $0x320] sm:$0x33] %v7785
        %8186 = vst [vmem:[%s204 + $0x328] sm:$0x33] %v7786
        %8187 = vst [vmem:[%s204 + $0x330] sm:$0x33] %v7787
        %8188 = vst [vmem:[%s204 + $0x338] sm:$0x33] %v7788
        %8189 = vst [vmem:[%s204 + $0x340] sm:$0x33] %v7789
        %8190 = vst [vmem:[%s204 + $0x348] sm:$0x33] %v7790
        %8191 = vst [vmem:[%s204 + $0x350] sm:$0x33] %v7791
        %8192 = vst [vmem:[%s204 + $0x358] sm:$0x33] %v7792
        %8193 = vst [vmem:[%s204 + $0x360] sm:$0x33] %v7793
        %8194 = vst [vmem:[%s204 + $0x368] sm:$0x33] %v7794
        %8195 = vst [vmem:[%s204 + $0x370] sm:$0x33] %v7795
        %8196 = vst [vmem:[%s204 + $0x378] sm:$0x33] %v7796
        %8197 = vst [vmem:[%s204 + $0x380] sm:$0x33] %v7797
        %8198 = vst [vmem:[%s204 + $0x388] sm:$0x33] %v7798
        %8199 = vst [vmem:[%s204 + $0x390] sm:$0x33] %v7799
        %8200 = vst [vmem:[%s204 + $0x398] sm:$0x33] %v7800
        %8201 = vst [vmem:[%s204 + $0x3a0] sm:$0x33] %v7801
        %8202 = vst [vmem:[%s204 + $0x3a8] sm:$0x33] %v7802
        %8203 = vst [vmem:[%s204 + $0x3b0] sm:$0x33] %v7803
        %8204 = vst [vmem:[%s204 + $0x3b8] sm:$0x33] %v7804
        %8205 = vst [vmem:[%s204 + $0x3c0] sm:$0x33] %v7805
        %8206 = vst [vmem:[%s204 + $0x3c8] sm:$0x33] %v7806
        %8207 = vst [vmem:[%s204 + $0x3d0] sm:$0x33] %v7807
        %8208 = vst [vmem:[%s204 + $0x3d8] sm:$0x33] %v7808
        %8209 = vst [vmem:[%s204 + $0x3e0] sm:$0x33] %v7809
        %8210 = vst [vmem:[%s204 + $0x3e8] sm:$0x33] %v7810
        %8211 = vst [vmem:[%s204 + $0x3f0] sm:$0x33] %v7811
        %8212 = vst [vmem:[%s204 + $0x3f8] sm:$0x33] %v7812
        %8213 = vst [vmem:[%s204 + $0x400] sm:$0x33] %v7813
        %8214 = vst [vmem:[%s204 + $0x408] sm:$0x33] %v7814
        %8215 = vst [vmem:[%s204 + $0x410] sm:$0x33] %v7815
        %8216 = vst [vmem:[%s204 + $0x418] sm:$0x33] %v7816
        %8217 = vst [vmem:[%s204 + $0x420] sm:$0x33] %v7817
        %8218 = vst [vmem:[%s204 + $0x428] sm:$0x33] %v7818
        %8219 = vst [vmem:[%s204 + $0x430] sm:$0x33] %v7819
        %8220 = vst [vmem:[%s204 + $0x438] sm:$0x33] %v7820
        %8221 = vst [vmem:[%s204 + $0x440] sm:$0x33] %v7821
        %8222 = vst [vmem:[%s204 + $0x448] sm:$0x33] %v7822
        %8223 = vst [vmem:[%s204 + $0x450] sm:$0x33] %v7823
        %8224 = vst [vmem:[%s204 + $0x458] sm:$0x33] %v7824
        %8225 = vst [vmem:[%s204 + $0x460] sm:$0x33] %v7825
        %8226 = vst [vmem:[%s204 + $0x468] sm:$0x33] %v7826
        %8227 = vst [vmem:[%s204 + $0x470] sm:$0x33] %v7827
        %8228 = vst [vmem:[%s204 + $0x478] sm:$0x33] %v7828
        %8229 = vst [vmem:[%s204 + $0x480] sm:$0x33] %v7829
        %8230 = vst [vmem:[%s204 + $0x488] sm:$0x33] %v7830
        %8231 = vst [vmem:[%s204 + $0x490] sm:$0x33] %v7831
        %8232 = vst [vmem:[%s204 + $0x498] sm:$0x33] %v7832
        %8233 = vst [vmem:[%s204 + $0x4a0] sm:$0x33] %v7833
        %8234 = vst [vmem:[%s204 + $0x4a8] sm:$0x33] %v7834
        %8235 = vst [vmem:[%s204 + $0x4b0] sm:$0x33] %v7835
        %8236 = vst [vmem:[%s204 + $0x4b8] sm:$0x33] %v7836
        %8237 = vst [vmem:[%s204 + $0x4c0] sm:$0x33] %v7837
        %8238 = vst [vmem:[%s204 + $0x4c8] sm:$0x33] %v7838
        %8239 = vst [vmem:[%s204 + $0x4d0] sm:$0x33] %v7839
        %8240 = vst [vmem:[%s204 + $0x4d8] sm:$0x33] %v7840
        %8241 = vst [vmem:[%s204 + $0x4e0] sm:$0x33] %v7841
        %8242 = vst [vmem:[%s204 + $0x4e8] sm:$0x33] %v7842
        %8243 = vst [vmem:[%s204 + $0x4f0] sm:$0x33] %v7843
        %8244 = vst [vmem:[%s204 + $0x4f8] sm:$0x33] %v7844
        %8245 = vst [vmem:[%s204 + $0x500] sm:$0x33] %v7845
        %8246 = vst [vmem:[%s204 + $0x508] sm:$0x33] %v7846
        %8247 = vst [vmem:[%s204 + $0x510] sm:$0x33] %v7847
        %8248 = vst [vmem:[%s204 + $0x518] sm:$0x33] %v7848
        %8249 = vst [vmem:[%s204 + $0x520] sm:$0x33] %v7849
        %8250 = vst [vmem:[%s204 + $0x528] sm:$0x33] %v7850
        %8251 = vst [vmem:[%s204 + $0x530] sm:$0x33] %v7851
        %8252 = vst [vmem:[%s204 + $0x538] sm:$0x33] %v7852
        %8253 = vst [vmem:[%s204 + $0x540] sm:$0x33] %v7853
        %8254 = vst [vmem:[%s204 + $0x548] sm:$0x33] %v7854
        %8255 = vst [vmem:[%s204 + $0x550] sm:$0x33] %v7855
        %8256 = vst [vmem:[%s204 + $0x558] sm:$0x33] %v7856
        %8257 = vst [vmem:[%s204 + $0x560] sm:$0x33] %v7857
        %8258 = vst [vmem:[%s204 + $0x568] sm:$0x33] %v7858
        %8259 = vst [vmem:[%s204 + $0x570] sm:$0x33] %v7859
        %8260 = vst [vmem:[%s204 + $0x578] sm:$0x33] %v7860
        %8261 = vst [vmem:[%s204 + $0x580] sm:$0x33] %v7861
        %8262 = vst [vmem:[%s204 + $0x588] sm:$0x33] %v7862
        %8263 = vst [vmem:[%s204 + $0x590] sm:$0x33] %v7863
        %8264 = vst [vmem:[%s204 + $0x598] sm:$0x33] %v7864
        %8265 = vst [vmem:[%s204 + $0x5a0] sm:$0x33] %v7865
        %8266 = vst [vmem:[%s204 + $0x5a8] sm:$0x33] %v7866
        %8267 = vst [vmem:[%s204 + $0x5b0] sm:$0x33] %v7867
        %8268 = vst [vmem:[%s204 + $0x5b8] sm:$0x33] %v7868
        %8269 = vst [vmem:[%s204 + $0x5c0] sm:$0x33] %v7869
        %8270 = vst [vmem:[%s204 + $0x5c8] sm:$0x33] %v7870
        %8271 = vst [vmem:[%s204 + $0x5d0] sm:$0x33] %v7871
        %8272 = vst [vmem:[%s204 + $0x5d8] sm:$0x33] %v7872
        %8273 = vst [vmem:[%s204 + $0x5e0] sm:$0x33] %v7873
        %8274 = vst [vmem:[%s204 + $0x5e8] sm:$0x33] %v7874
        %8275 = vst [vmem:[%s204 + $0x5f0] sm:$0x33] %v7875
        %8276 = vst [vmem:[%s204 + $0x5f8] sm:$0x33] %v7876
        %8277 = vst [vmem:[%s204 + $0x600] sm:$0x33] %v7877
        %8278 = vst [vmem:[%s204 + $0x608] sm:$0x33] %v7878
        %8279 = vst [vmem:[%s204 + $0x610] sm:$0x33] %v7879
        %8280 = vst [vmem:[%s204 + $0x618] sm:$0x33] %v7880
        %8281 = vst [vmem:[%s204 + $0x620] sm:$0x33] %v7881
        %8282 = vst [vmem:[%s204 + $0x628] sm:$0x33] %v7882
        %8283 = vst [vmem:[%s204 + $0x630] sm:$0x33] %v7883
        %8284 = vst [vmem:[%s204 + $0x638] sm:$0x33] %v7884
        %s8285 = sand.u32 %s112, 1
        %s8286 = scalar_lea.sflag [#allocation4], %s8285
        %s8287 = sand.u32 %s112, 1
        %s8288 = smul.addr %s8287, 1600
        %s8289 = scalar_lea.vmem [#allocation5], %s8288
        // Predicated region
        $region37: #{tpu_custom_call.1} parent=31 // pred_check
          %p8290 = pneg %p122
        $region38: #{tpu_custom_call.1} parent=31 // pred_check_branch
          %8292 = sbr.rel (%p8290) target = $region40
        $region39: #{tpu_custom_call.1} parent=31 // pred_region
          %s8293 = smul.u32 200, %s25
          %s8295 = ssub.s32 25600, 25600
          %8296 = vsyncadd %s8286, %s8295
          %s8297 = smul.addr %s24, 1600
          %s8298 = sadd.s32 %s8293, %s8297
          %s8299 = smul.addr %s8298, 64
          %s8300 = scalar_lea.hbm %s3, %s8299
          %s8301 = sshll.u32 %s8289, 4
          %s8302 = int_to_ptr.vmem [resolvable:$true] %s8301
          %8307 = dma.vmem_to_hbm [thread:$0]  %s8302, 25600, %s8300, %s8286, 12800, 51200, 800
        $region40: #{tpu_custom_call.1} parent=31 // pred_fallthru
          _
      $region32: #{tpu_custom_call.1} parent=5 // pred_fallthru
        _
      %p8308 = scmp.le.s32.totalorder 2, %s15
      // Predicated region
      $region41: #{tpu_custom_call.1} parent=5 // pred_check
        %p8309 = pneg %p8308
      $region42: #{tpu_custom_call.1} parent=5 // pred_check_branch
        %8311 = sbr.rel (%p8309) target = $region44
      $region43: #{tpu_custom_call.1} parent=5 // pred_region
        %s8312 = ssub.s32 %s15, 2
        // Predicated region
        $region45: #{tpu_custom_call.1} parent=43 // pred_check
          %p8313 = pneg %p128
        $region46: #{tpu_custom_call.1} parent=43 // pred_check_branch
          %8315 = sbr.rel (%p8313) target = $region48
        $region47: #{tpu_custom_call.1} parent=43 // pred_region
          %s8316 = sand.u32 %s113, 1
          %s8317 = scalar_lea.sflag [#allocation4], %s8316
          %s8318 = sand.u32 %s113, 1
          %s8319 = smul.addr %s8318, 1600
          %s8320 = scalar_lea.vmem [#allocation5], %s8319
          %8321 = dma.done %s8317, 25600
        $region48: #{tpu_custom_call.1} parent=43 // pred_fallthru
          _
      $region44: #{tpu_custom_call.1} parent=5 // pred_fallthru
        _
    $region6: #{tpu_custom_call.1} parent=1 // loop_footer
      %s19 = sadd.s32 1, %s15
    $region7: #{tpu_custom_call.1} parent=1 // loop_footer_branch
      %14 = sbr.rel target = $region3
    $region8: #{tpu_custom_call.1} parent=1 // loop_exit
      _
    %8322 = vsyncpa [#allocation3], 1
    %s8323 = scalar_lea.sflag [#allocation3], 1
    %8324 = vsyncpa %s8323, 1
    %8325 = vsyncpa [#allocation4], 1
    %s8326 = scalar_lea.sflag [#allocation4], 1
    %8327 = vsyncpa %s8326, 1

</llo_original>
